<compile_context>
chip_gen: v6e
topology: v6e:2x2x1
jax: 0.10.0
libtpu: 0.0.40
codegen_flags: <defaults>
</compile_context>

<pallas_src>
import math

import jax
import jax.numpy as jnp
import numpy as np
from jax.experimental import pallas as pl
from jax.experimental.pallas import tpu as pltpu


# ----------------------------------------------------------------------------
# Parameter construction (deterministic, mirrors PixelPred / Predictor shapes)
# ----------------------------------------------------------------------------
def build_params(blocksize, key):
    """Returns (nested_params, pred_layer_shapes).

    nested_params: list over predictors kp=2..blockarea-1 of list of (W, b),
                   W: (din, dout), b: (1, dout)   (applied as x @ W + b).
    """
    blockarea = blocksize * blocksize
    nested_params = []
    pred_layer_shapes = []
    for kp in range(2, blockarea):
        nch = [(kp << 1) - 1]
        k = kp
        while k >= 1:
            nch.append(k)
            k >>= 1
        layers = []
        shapes = []
        for kl in range(1, len(nch)):
            din, dout = nch[kl - 1], nch[kl]
            key, kw, kb = jax.random.split(key, 3)
            bound = 1.0 / math.sqrt(din)
            W = jax.random.uniform(kw, (din, dout), jnp.float32, -bound, bound)
            b = jax.random.uniform(kb, (1, dout), jnp.float32, -bound, bound)
            layers.append((W, b))
            shapes.append((din, dout))
        nested_params.append(layers)
        pred_layer_shapes.append(shapes)
    return nested_params, pred_layer_shapes


def flatten_params(nested_params, pred_layer_shapes):
    """Pack every W/b into one flat f32 vector; return (flat, static metadata).

    metadata: per predictor, list of (w_off, b_off, din, dout) with W stored
    row-major so W[j, d] sits at w_off + j*dout + d.
    """
    flat = []
    meta = []
    off = 0
    for layers, shapes in zip(nested_params, pred_layer_shapes):
        lmeta = []
        for (W, b), (din, dout) in zip(layers, shapes):
            flat.append(W.reshape(-1))
            w_off = off
            off += din * dout
            flat.append(b.reshape(-1))
            b_off = off
            off += dout
            lmeta.append((w_off, b_off, din, dout))
        meta.append(lmeta)
    return jnp.concatenate(flat), meta


# ----------------------------------------------------------------------------
# Pallas kernel
# ----------------------------------------------------------------------------
def make_predictor_kernel(param_meta, block_rows, tl):
    """param_meta: per predictor kp=2.., list of (w_off, b_off, din, dout)."""
    nsub = block_rows // 8

    def kernel(params_ref, x_ref, out_ref):
        # params_ref : (P,) f32 in SMEM  (all W / b, read as scalars)
        # x_ref      : (BA,   block_rows, tl) f32 in VMEM
        # out_ref    : (BA-1, block_rows, tl) f32 in VMEM; also serves as the
        #              error storage (rows are read back by later predictors).

        def sub_tile(s0):
            sl = pl.ds(s0, 8)

            # errors[0] = x[1] - x[0]   (lane-dense (8, tl) store)
            out_ref[0, sl, :] = x_ref[1, sl, :] - x_ref[0, sl, :]

            for pi, lmeta in enumerate(param_meta):
                k = pi + 2
                nlay = len(lmeta)

                h = None        # previous-layer hidden rows, kept in vregs
                h_last = None
                for li, (w_off, b_off, din, dout) in enumerate(lmeta):
                    last = li == nlay - 1

                    # bias splats: one accumulator per output channel
                    accs = [jnp.full((8, tl), params_ref[b_off + d], jnp.float32)
                            for d in range(dout)]

                    # loop interchange: each input row is loaded ONCE, then
                    # broadcast-MAC'd into all dout accumulators (scalar x
                    # vector multiplies, dout independent f32 add chains).
                    for j in range(din):
                        if li == 0:
                            # layer-0 input = cat(x[:k], errors[:k-1]) rows,
                            # read straight from the refs.
                            row = x_ref[j, sl, :] if j < k else out_ref[j - k, sl, :]
                        else:
                            row = h[j]
                        for d in range(dout):
                            accs[d] = accs[d] + row * params_ref[w_off + j * dout + d]

                    if not last:
                        # leaky_relu(negative_slope=0.01): max form (2 VALU ops)
                        h = [jnp.maximum(a, 0.01 * a) for a in accs]
                    else:
                        # last layer has dout == 1
                        h_last = jnp.clip(accs[0], -1.0, 1.0)

                delta = x_ref[k, sl, :] - h_last
                # torch.fmod(delta + 1, 2) - 1 without the divide path:
                # fmod(y, 2) == y - 2*trunc(y*0.5); exact because y is in
                # [-1, 3] here (x in [-1,1], h clipped to [-1,1]).
                y = delta + 1.0
                y = y - 2.0 * jnp.trunc(y * 0.5)
                out_ref[k - 1, sl, :] = y - 1.0

        if nsub == 1:
            sub_tile(0)
        else:
            @pl.loop(0, nsub)
            def _(s):
                sub_tile(pl.multiple_of(s * 8, 8))

    return kernel


# ----------------------------------------------------------------------------
# Wrapper
# ----------------------------------------------------------------------------
def predictor_forward(x, nested_params, pred_layer_shapes, tl=256, block_rows=128):
    """x: (B, C, H, blockarea) -> errors: (B, C, H, blockarea-1).

    tl         : lane tile width (multiple of 128).
    block_rows : sublane rows per grid step (multiple of 8); the kernel walks
                 (8, tl) sub-tiles inside each block.
    """
    B, C, H, BA = x.shape
    N = B * C * H

    # Tiling: N columns are folded into sublane rows of width tl.
    cols = -(-N // tl)                       # ceil(N / tl)
    cols8 = max(8, -(-cols // 8) * 8)        # round up to multiple of 8
    br = max(8, (min(block_rows, cols8) // 8) * 8)
    Spad = -(-cols8 // br) * br              # multiple of block_rows
    Sg = Spad // br                          # grid steps (>= 2 for megacore
    Npad = Spad * tl                         #   when there is enough work)
    pad = Npad - N

    # Single fused pad + transpose + reshape pass into (BA, Spad, tl).
    xf = x.reshape(N, BA).astype(jnp.float32)
    if pad:
        xf = jnp.pad(xf, ((0, pad), (0, 0)))
    x3 = xf.T.reshape(BA, Spad, tl)

    params_flat, param_meta = flatten_params(nested_params, pred_layer_shapes)

    kernel = make_predictor_kernel(param_meta, br, tl)

    out3 = pl.pallas_call(
        kernel,
        out_shape=jax.ShapeDtypeStruct((BA - 1, Spad, tl), jnp.float32),
        grid=(Sg,),
        in_specs=[
            pl.BlockSpec(memory_space=pltpu.MemorySpace.SMEM),      # packed params
            pl.BlockSpec((BA, br, tl), lambda i: (0, i, 0)),        # x block
        ],
        out_specs=pl.BlockSpec((BA - 1, br, tl), lambda i: (0, i, 0)),
        compiler_params=pltpu.CompilerParams(
            dimension_semantics=("parallel",)),
    )(params_flat, x3)

    out = out3.reshape(BA - 1, Npad)[:, :N].T.reshape(B, C, H, BA - 1)
    return out


# ----------------------------------------------------------------------------
# Pure-JAX reference (mirrors the PyTorch forward exactly)
# ----------------------------------------------------------------------------
def reference_forward(x, nested_params):
    x = x.astype(jnp.float32)
    errors = x[..., 1:2] - x[..., 0:1]
    k = 2
    for layers in nested_params:
        h = jnp.concatenate([x[..., :k], errors], axis=-1)
        nlay = len(layers)
        for li, (W, b) in enumerate(layers):
            h = h @ W + b[0]
            if li < nlay - 1:
                h = jnp.where(h > 0, h, 0.01 * h)
            else:
                h = jnp.clip(h, -1.0, 1.0)
        delta = x[..., k:k + 1] - h
        delta = jnp.fmod(delta + 1.0, 2.0) - 1.0
        errors = jnp.concatenate([errors, delta], axis=-1)
        k += 1
    return errors


# ----------------------------------------------------------------------------
if __name__ == "__main__":
    blocksize = 3                      # blockarea = 9 -> 7 PixelPred MLPs
    blockarea = blocksize * blocksize
    B, C, H = 2, 4, 512                # N = 4096 rows

    key = jax.random.PRNGKey(0)
    key, kx, kp = jax.random.split(key, 3)
    x = jax.random.uniform(kx, (B, C, H, blockarea), jnp.float32, -1.0, 1.0)

    nested_params, pred_layer_shapes = build_params(blocksize, kp)

    # demo tiling: tl=128, block_rows=16 -> 2 parallel grid steps, and each
    # step walks 2 (8, 128) sub-tiles (exercises the in-kernel sub-tile loop).
    # real workloads should use the larger tl=256 / block_rows=128 defaults.
    out = predictor_forward(x, nested_params, pred_layer_shapes,
                            tl=128, block_rows=16)
    out = jax.block_until_ready(out)

    ref = jax.block_until_ready(reference_forward(x, nested_params))

    assert out.shape == (B, C, H, blockarea - 1), out.shape
    assert np.allclose(np.asarray(out), np.asarray(ref), atol=1e-5, rtol=1e-5), (
        "mismatch vs reference")
    print("KERNEL_OK")
</pallas_src>

<mosaic_0001>
module attributes {stable_mosaic.version = 11 : i64} {
  func.func @kernel(%arg0: i32, %arg1: memref<543xf32, #tpu.memory_space<smem>>, %arg2: memref<9x16x128xf32, #tpu.memory_space<vmem>>, %arg3: memref<8x16x128xf32, #tpu.memory_space<vmem>>) attributes {dimension_semantics = [#tpu.dimension_semantics<parallel>], iteration_bounds = array<i64: 2>, scalar_prefetch = 0 : i64, scratch_operands = 0 : i64, tpu.core_type = #tpu.core_type<tc>, window_params = [{transform_indices = @transform_0, window_bounds = array<i64: 543>}, {transform_indices = @transform_1, window_bounds = array<i64: 9, 16, 128>}, {transform_indices = @transform_2, window_bounds = array<i64: 8, 16, 128>}]} {
    %c0_i32 = arith.constant 0 : i32
    %c2_i32 = arith.constant 2 : i32
    %0 = arith.addi %c0_i32, %c2_i32 : i32
    %c1_i32 = arith.constant 1 : i32
    scf.for %arg4 = %c0_i32 to %0 step %c1_i32  : i32 {
      %c1_i32_1 = arith.constant 1 : i32
      %1 = arith.muli %arg4, %c1_i32_1 : i32
      %c0_i32_2 = arith.constant 0 : i32
      %2 = arith.addi %c0_i32_2, %1 : i32
      %c8_i32 = arith.constant 8 : i32
      %3 = arith.muli %2, %c8_i32 : i32
      %4 = tpu.assume_multiple %3, 8 : i32
      %c1 = arith.constant 1 : index
      %5 = arith.index_cast %4 : i32 to index
      %c0 = arith.constant 0 : index
      %6 = vector.load %arg2[%c1, %5, %c0] : memref<9x16x128xf32, #tpu.memory_space<vmem>>, vector<1x8x128xf32>
      %7 = vector.shape_cast %6 : vector<1x8x128xf32> to vector<8x128xf32>
      %c0_3 = arith.constant 0 : index
      %8 = arith.index_cast %4 : i32 to index
      %c0_4 = arith.constant 0 : index
      %9 = vector.load %arg2[%c0_3, %8, %c0_4] : memref<9x16x128xf32, #tpu.memory_space<vmem>>, vector<1x8x128xf32>
      %10 = vector.shape_cast %9 : vector<1x8x128xf32> to vector<8x128xf32>
      %11 = arith.subf %7, %10 : vector<8x128xf32>
      %c0_5 = arith.constant 0 : index
      %12 = arith.index_cast %4 : i32 to index
      %c0_6 = arith.constant 0 : index
      %13 = vector.load %arg3[%c0_5, %12, %c0_6] : memref<8x16x128xf32, #tpu.memory_space<vmem>>, vector<1x8x128xf32>
      %14 = vector.shape_cast %13 : vector<1x8x128xf32> to vector<8x128xf32>
      %15 = vector.shape_cast %11 : vector<8x128xf32> to vector<1x8x128xf32>
      tpu.vector_store %arg3[%c0_5, %12, %c0_6], %15 {strides = array<i32>} : memref<8x16x128xf32, #tpu.memory_space<vmem>>, vector<1x8x128xf32>,
      %c6 = arith.constant 6 : index
      %16 = memref.load %arg1[%c6] : memref<543xf32, #tpu.memory_space<smem>>
      %17 = vector.broadcast %16 : f32 to vector<8x128xf32>
      %c7 = arith.constant 7 : index
      %18 = memref.load %arg1[%c7] : memref<543xf32, #tpu.memory_space<smem>>
      %19 = vector.broadcast %18 : f32 to vector<8x128xf32>
      %c0_7 = arith.constant 0 : index
      %20 = arith.index_cast %4 : i32 to index
      %c0_8 = arith.constant 0 : index
      %21 = vector.load %arg2[%c0_7, %20, %c0_8] : memref<9x16x128xf32, #tpu.memory_space<vmem>>, vector<1x8x128xf32>
      %22 = vector.shape_cast %21 : vector<1x8x128xf32> to vector<8x128xf32>
      %c0_9 = arith.constant 0 : index
      %23 = memref.load %arg1[%c0_9] : memref<543xf32, #tpu.memory_space<smem>>
      %24 = vector.broadcast %23 : f32 to vector<8x128xf32>
      %25 = arith.mulf %22, %24 : vector<8x128xf32>
      %26 = arith.addf %17, %25 : vector<8x128xf32>
      %c1_10 = arith.constant 1 : index
      %27 = memref.load %arg1[%c1_10] : memref<543xf32, #tpu.memory_space<smem>>
      %28 = vector.broadcast %27 : f32 to vector<8x128xf32>
      %29 = arith.mulf %22, %28 : vector<8x128xf32>
      %30 = arith.addf %19, %29 : vector<8x128xf32>
      %c1_11 = arith.constant 1 : index
      %31 = arith.index_cast %4 : i32 to index
      %c0_12 = arith.constant 0 : index
      %32 = vector.load %arg2[%c1_11, %31, %c0_12] : memref<9x16x128xf32, #tpu.memory_space<vmem>>, vector<1x8x128xf32>
      %33 = vector.shape_cast %32 : vector<1x8x128xf32> to vector<8x128xf32>
      %c2 = arith.constant 2 : index
      %34 = memref.load %arg1[%c2] : memref<543xf32, #tpu.memory_space<smem>>
      %35 = vector.broadcast %34 : f32 to vector<8x128xf32>
      %36 = arith.mulf %33, %35 : vector<8x128xf32>
      %37 = arith.addf %26, %36 : vector<8x128xf32>
      %c3 = arith.constant 3 : index
      %38 = memref.load %arg1[%c3] : memref<543xf32, #tpu.memory_space<smem>>
      %39 = vector.broadcast %38 : f32 to vector<8x128xf32>
      %40 = arith.mulf %33, %39 : vector<8x128xf32>
      %41 = arith.addf %30, %40 : vector<8x128xf32>
      %c0_13 = arith.constant 0 : index
      %42 = arith.index_cast %4 : i32 to index
      %c0_14 = arith.constant 0 : index
      %43 = vector.load %arg3[%c0_13, %42, %c0_14] : memref<8x16x128xf32, #tpu.memory_space<vmem>>, vector<1x8x128xf32>
      %44 = vector.shape_cast %43 : vector<1x8x128xf32> to vector<8x128xf32>
      %c4 = arith.constant 4 : index
      %45 = memref.load %arg1[%c4] : memref<543xf32, #tpu.memory_space<smem>>
      %46 = vector.broadcast %45 : f32 to vector<8x128xf32>
      %47 = arith.mulf %44, %46 : vector<8x128xf32>
      %48 = arith.addf %37, %47 : vector<8x128xf32>
      %c5 = arith.constant 5 : index
      %49 = memref.load %arg1[%c5] : memref<543xf32, #tpu.memory_space<smem>>
      %50 = vector.broadcast %49 : f32 to vector<8x128xf32>
      %51 = arith.mulf %44, %50 : vector<8x128xf32>
      %52 = arith.addf %41, %51 : vector<8x128xf32>
      %cst = arith.constant 0.00999999977 : f32
      %53 = vector.broadcast %cst : f32 to vector<8x128xf32>
      %54 = arith.mulf %53, %48 : vector<8x128xf32>
      %55 = arith.maximumf %48, %54 : vector<8x128xf32>
      %cst_15 = arith.constant 0.00999999977 : f32
      %56 = vector.broadcast %cst_15 : f32 to vector<8x128xf32>
      %57 = arith.mulf %56, %52 : vector<8x128xf32>
      %58 = arith.maximumf %52, %57 : vector<8x128xf32>
      %c10 = arith.constant 10 : index
      %59 = memref.load %arg1[%c10] : memref<543xf32, #tpu.memory_space<smem>>
      %60 = vector.broadcast %59 : f32 to vector<8x128xf32>
      %c8 = arith.constant 8 : index
      %61 = memref.load %arg1[%c8] : memref<543xf32, #tpu.memory_space<smem>>
      %62 = vector.broadcast %61 : f32 to vector<8x128xf32>
      %63 = arith.mulf %55, %62 : vector<8x128xf32>
      %64 = arith.addf %60, %63 : vector<8x128xf32>
      %c9 = arith.constant 9 : index
      %65 = memref.load %arg1[%c9] : memref<543xf32, #tpu.memory_space<smem>>
      %66 = vector.broadcast %65 : f32 to vector<8x128xf32>
      %67 = arith.mulf %58, %66 : vector<8x128xf32>
      %68 = arith.addf %64, %67 : vector<8x128xf32>
      %cst_16 = arith.constant -1.000000e+00 : f32
      %cst_17 = arith.constant 1.000000e+00 : f32
      %69 = vector.broadcast %cst_16 : f32 to vector<8x128xf32>
      %70 = arith.maximumf %69, %68 : vector<8x128xf32>
      %71 = vector.broadcast %cst_17 : f32 to vector<8x128xf32>
      %72 = arith.minimumf %71, %70 : vector<8x128xf32>
      %c2_18 = arith.constant 2 : index
      %73 = arith.index_cast %4 : i32 to index
      %c0_19 = arith.constant 0 : index
      %74 = vector.load %arg2[%c2_18, %73, %c0_19] : memref<9x16x128xf32, #tpu.memory_space<vmem>>, vector<1x8x128xf32>
      %75 = vector.shape_cast %74 : vector<1x8x128xf32> to vector<8x128xf32>
      %76 = arith.subf %75, %72 : vector<8x128xf32>
      %cst_20 = arith.constant 1.000000e+00 : f32
      %77 = vector.broadcast %cst_20 : f32 to vector<8x128xf32>
      %78 = arith.addf %76, %77 : vector<8x128xf32>
      %cst_21 = arith.constant 5.000000e-01 : f32
      %79 = vector.broadcast %cst_21 : f32 to vector<8x128xf32>
      %80 = arith.mulf %78, %79 : vector<8x128xf32>
      %cst_22 = arith.constant 0.000000e+00 : f32
      %81 = vector.broadcast %cst_22 : f32 to vector<8x128xf32>
      %82 = arith.cmpf olt, %80, %81 : vector<8x128xf32>
      %83 = math.ceil %80 : vector<8x128xf32>
      %84 = math.floor %80 : vector<8x128xf32>
      %85 = arith.select %82, %83, %84 : vector<8x128xi1>, vector<8x128xf32>
      %cst_23 = arith.constant 2.000000e+00 : f32
      %86 = vector.broadcast %cst_23 : f32 to vector<8x128xf32>
      %87 = arith.mulf %86, %85 : vector<8x128xf32>
      %88 = arith.subf %78, %87 : vector<8x128xf32>
      %cst_24 = arith.constant 1.000000e+00 : f32
      %89 = vector.broadcast %cst_24 : f32 to vector<8x128xf32>
      %90 = arith.subf %88, %89 : vector<8x128xf32>
      %c1_25 = arith.constant 1 : index
      %91 = arith.index_cast %4 : i32 to index
      %c0_26 = arith.constant 0 : index
      %92 = vector.load %arg3[%c1_25, %91, %c0_26] : memref<8x16x128xf32, #tpu.memory_space<vmem>>, vector<1x8x128xf32>
      %93 = vector.shape_cast %92 : vector<1x8x128xf32> to vector<8x128xf32>
      %94 = vector.shape_cast %90 : vector<8x128xf32> to vector<1x8x128xf32>
      tpu.vector_store %arg3[%c1_25, %91, %c0_26], %94 {strides = array<i32>} : memref<8x16x128xf32, #tpu.memory_space<vmem>>, vector<1x8x128xf32>,
      %c26 = arith.constant 26 : index
      %95 = memref.load %arg1[%c26] : memref<543xf32, #tpu.memory_space<smem>>
      %96 = vector.broadcast %95 : f32 to vector<8x128xf32>
      %c27 = arith.constant 27 : index
      %97 = memref.load %arg1[%c27] : memref<543xf32, #tpu.memory_space<smem>>
      %98 = vector.broadcast %97 : f32 to vector<8x128xf32>
      %c28 = arith.constant 28 : index
      %99 = memref.load %arg1[%c28] : memref<543xf32, #tpu.memory_space<smem>>
      %100 = vector.broadcast %99 : f32 to vector<8x128xf32>
      %c0_27 = arith.constant 0 : index
      %101 = arith.index_cast %4 : i32 to index
      %c0_28 = arith.constant 0 : index
      %102 = vector.load %arg2[%c0_27, %101, %c0_28] : memref<9x16x128xf32, #tpu.memory_space<vmem>>, vector<1x8x128xf32>
      %103 = vector.shape_cast %102 : vector<1x8x128xf32> to vector<8x128xf32>
      %c11 = arith.constant 11 : index
      %104 = memref.load %arg1[%c11] : memref<543xf32, #tpu.memory_space<smem>>
      %105 = vector.broadcast %104 : f32 to vector<8x128xf32>
      %106 = arith.mulf %103, %105 : vector<8x128xf32>
      %107 = arith.addf %96, %106 : vector<8x128xf32>
      %c12 = arith.constant 12 : index
      %108 = memref.load %arg1[%c12] : memref<543xf32, #tpu.memory_space<smem>>
      %109 = vector.broadcast %108 : f32 to vector<8x128xf32>
      %110 = arith.mulf %103, %109 : vector<8x128xf32>
      %111 = arith.addf %98, %110 : vector<8x128xf32>
      %c13 = arith.constant 13 : index
      %112 = memref.load %arg1[%c13] : memref<543xf32, #tpu.memory_space<smem>>
      %113 = vector.broadcast %112 : f32 to vector<8x128xf32>
      %114 = arith.mulf %103, %113 : vector<8x128xf32>
      %115 = arith.addf %100, %114 : vector<8x128xf32>
      %c1_29 = arith.constant 1 : index
      %116 = arith.index_cast %4 : i32 to index
      %c0_30 = arith.constant 0 : index
      %117 = vector.load %arg2[%c1_29, %116, %c0_30] : memref<9x16x128xf32, #tpu.memory_space<vmem>>, vector<1x8x128xf32>
      %118 = vector.shape_cast %117 : vector<1x8x128xf32> to vector<8x128xf32>
      %c14 = arith.constant 14 : index
      %119 = memref.load %arg1[%c14] : memref<543xf32, #tpu.memory_space<smem>>
      %120 = vector.broadcast %119 : f32 to vector<8x128xf32>
      %121 = arith.mulf %118, %120 : vector<8x128xf32>
      %122 = arith.addf %107, %121 : vector<8x128xf32>
      %c15 = arith.constant 15 : index
      %123 = memref.load %arg1[%c15] : memref<543xf32, #tpu.memory_space<smem>>
      %124 = vector.broadcast %123 : f32 to vector<8x128xf32>
      %125 = arith.mulf %118, %124 : vector<8x128xf32>
      %126 = arith.addf %111, %125 : vector<8x128xf32>
      %c16 = arith.constant 16 : index
      %127 = memref.load %arg1[%c16] : memref<543xf32, #tpu.memory_space<smem>>
      %128 = vector.broadcast %127 : f32 to vector<8x128xf32>
      %129 = arith.mulf %118, %128 : vector<8x128xf32>
      %130 = arith.addf %115, %129 : vector<8x128xf32>
      %c2_31 = arith.constant 2 : index
      %131 = arith.index_cast %4 : i32 to index
      %c0_32 = arith.constant 0 : index
      %132 = vector.load %arg2[%c2_31, %131, %c0_32] : memref<9x16x128xf32, #tpu.memory_space<vmem>>, vector<1x8x128xf32>
      %133 = vector.shape_cast %132 : vector<1x8x128xf32> to vector<8x128xf32>
      %c17 = arith.constant 17 : index
      %134 = memref.load %arg1[%c17] : memref<543xf32, #tpu.memory_space<smem>>
      %135 = vector.broadcast %134 : f32 to vector<8x128xf32>
      %136 = arith.mulf %133, %135 : vector<8x128xf32>
      %137 = arith.addf %122, %136 : vector<8x128xf32>
      %c18 = arith.constant 18 : index
      %138 = memref.load %arg1[%c18] : memref<543xf32, #tpu.memory_space<smem>>
      %139 = vector.broadcast %138 : f32 to vector<8x128xf32>
      %140 = arith.mulf %133, %139 : vector<8x128xf32>
      %141 = arith.addf %126, %140 : vector<8x128xf32>
      %c19 = arith.constant 19 : index
      %142 = memref.load %arg1[%c19] : memref<543xf32, #tpu.memory_space<smem>>
      %143 = vector.broadcast %142 : f32 to vector<8x128xf32>
      %144 = arith.mulf %133, %143 : vector<8x128xf32>
      %145 = arith.addf %130, %144 : vector<8x128xf32>
      %c0_33 = arith.constant 0 : index
      %146 = arith.index_cast %4 : i32 to index
      %c0_34 = arith.constant 0 : index
      %147 = vector.load %arg3[%c0_33, %146, %c0_34] : memref<8x16x128xf32, #tpu.memory_space<vmem>>, vector<1x8x128xf32>
      %148 = vector.shape_cast %147 : vector<1x8x128xf32> to vector<8x128xf32>
      %c20 = arith.constant 20 : index
      %149 = memref.load %arg1[%c20] : memref<543xf32, #tpu.memory_space<smem>>
      %150 = vector.broadcast %149 : f32 to vector<8x128xf32>
      %151 = arith.mulf %148, %150 : vector<8x128xf32>
      %152 = arith.addf %137, %151 : vector<8x128xf32>
      %c21 = arith.constant 21 : index
      %153 = memref.load %arg1[%c21] : memref<543xf32, #tpu.memory_space<smem>>
      %154 = vector.broadcast %153 : f32 to vector<8x128xf32>
      %155 = arith.mulf %148, %154 : vector<8x128xf32>
      %156 = arith.addf %141, %155 : vector<8x128xf32>
      %c22 = arith.constant 22 : index
      %157 = memref.load %arg1[%c22] : memref<543xf32, #tpu.memory_space<smem>>
      %158 = vector.broadcast %157 : f32 to vector<8x128xf32>
      %159 = arith.mulf %148, %158 : vector<8x128xf32>
      %160 = arith.addf %145, %159 : vector<8x128xf32>
      %c1_35 = arith.constant 1 : index
      %161 = arith.index_cast %4 : i32 to index
      %c0_36 = arith.constant 0 : index
      %162 = vector.load %arg3[%c1_35, %161, %c0_36] : memref<8x16x128xf32, #tpu.memory_space<vmem>>, vector<1x8x128xf32>
      %163 = vector.shape_cast %162 : vector<1x8x128xf32> to vector<8x128xf32>
      %c23 = arith.constant 23 : index
      %164 = memref.load %arg1[%c23] : memref<543xf32, #tpu.memory_space<smem>>
      %165 = vector.broadcast %164 : f32 to vector<8x128xf32>
      %166 = arith.mulf %163, %165 : vector<8x128xf32>
      %167 = arith.addf %152, %166 : vector<8x128xf32>
      %c24 = arith.constant 24 : index
      %168 = memref.load %arg1[%c24] : memref<543xf32, #tpu.memory_space<smem>>
      %169 = vector.broadcast %168 : f32 to vector<8x128xf32>
      %170 = arith.mulf %163, %169 : vector<8x128xf32>
      %171 = arith.addf %156, %170 : vector<8x128xf32>
      %c25 = arith.constant 25 : index
      %172 = memref.load %arg1[%c25] : memref<543xf32, #tpu.memory_space<smem>>
      %173 = vector.broadcast %172 : f32 to vector<8x128xf32>
      %174 = arith.mulf %163, %173 : vector<8x128xf32>
      %175 = arith.addf %160, %174 : vector<8x128xf32>
      %cst_37 = arith.constant 0.00999999977 : f32
      %176 = vector.broadcast %cst_37 : f32 to vector<8x128xf32>
      %177 = arith.mulf %176, %167 : vector<8x128xf32>
      %178 = arith.maximumf %167, %177 : vector<8x128xf32>
      %cst_38 = arith.constant 0.00999999977 : f32
      %179 = vector.broadcast %cst_38 : f32 to vector<8x128xf32>
      %180 = arith.mulf %179, %171 : vector<8x128xf32>
      %181 = arith.maximumf %171, %180 : vector<8x128xf32>
      %cst_39 = arith.constant 0.00999999977 : f32
      %182 = vector.broadcast %cst_39 : f32 to vector<8x128xf32>
      %183 = arith.mulf %182, %175 : vector<8x128xf32>
      %184 = arith.maximumf %175, %183 : vector<8x128xf32>
      %c32 = arith.constant 32 : index
      %185 = memref.load %arg1[%c32] : memref<543xf32, #tpu.memory_space<smem>>
      %186 = vector.broadcast %185 : f32 to vector<8x128xf32>
      %c29 = arith.constant 29 : index
      %187 = memref.load %arg1[%c29] : memref<543xf32, #tpu.memory_space<smem>>
      %188 = vector.broadcast %187 : f32 to vector<8x128xf32>
      %189 = arith.mulf %178, %188 : vector<8x128xf32>
      %190 = arith.addf %186, %189 : vector<8x128xf32>
      %c30 = arith.constant 30 : index
      %191 = memref.load %arg1[%c30] : memref<543xf32, #tpu.memory_space<smem>>
      %192 = vector.broadcast %191 : f32 to vector<8x128xf32>
      %193 = arith.mulf %181, %192 : vector<8x128xf32>
      %194 = arith.addf %190, %193 : vector<8x128xf32>
      %c31 = arith.constant 31 : index
      %195 = memref.load %arg1[%c31] : memref<543xf32, #tpu.memory_space<smem>>
      %196 = vector.broadcast %195 : f32 to vector<8x128xf32>
      %197 = arith.mulf %184, %196 : vector<8x128xf32>
      %198 = arith.addf %194, %197 : vector<8x128xf32>
      %cst_40 = arith.constant -1.000000e+00 : f32
      %cst_41 = arith.constant 1.000000e+00 : f32
      %199 = vector.broadcast %cst_40 : f32 to vector<8x128xf32>
      %200 = arith.maximumf %199, %198 : vector<8x128xf32>
      %201 = vector.broadcast %cst_41 : f32 to vector<8x128xf32>
      %202 = arith.minimumf %201, %200 : vector<8x128xf32>
      %c3_42 = arith.constant 3 : index
      %203 = arith.index_cast %4 : i32 to index
      %c0_43 = arith.constant 0 : index
      %204 = vector.load %arg2[%c3_42, %203, %c0_43] : memref<9x16x128xf32, #tpu.memory_space<vmem>>, vector<1x8x128xf32>
      %205 = vector.shape_cast %204 : vector<1x8x128xf32> to vector<8x128xf32>
      %206 = arith.subf %205, %202 : vector<8x128xf32>
      %cst_44 = arith.constant 1.000000e+00 : f32
      %207 = vector.broadcast %cst_44 : f32 to vector<8x128xf32>
      %208 = arith.addf %206, %207 : vector<8x128xf32>
      %cst_45 = arith.constant 5.000000e-01 : f32
      %209 = vector.broadcast %cst_45 : f32 to vector<8x128xf32>
      %210 = arith.mulf %208, %209 : vector<8x128xf32>
      %cst_46 = arith.constant 0.000000e+00 : f32
      %211 = vector.broadcast %cst_46 : f32 to vector<8x128xf32>
      %212 = arith.cmpf olt, %210, %211 : vector<8x128xf32>
      %213 = math.ceil %210 : vector<8x128xf32>
      %214 = math.floor %210 : vector<8x128xf32>
      %215 = arith.select %212, %213, %214 : vector<8x128xi1>, vector<8x128xf32>
      %cst_47 = arith.constant 2.000000e+00 : f32
      %216 = vector.broadcast %cst_47 : f32 to vector<8x128xf32>
      %217 = arith.mulf %216, %215 : vector<8x128xf32>
      %218 = arith.subf %208, %217 : vector<8x128xf32>
      %cst_48 = arith.constant 1.000000e+00 : f32
      %219 = vector.broadcast %cst_48 : f32 to vector<8x128xf32>
      %220 = arith.subf %218, %219 : vector<8x128xf32>
      %c2_49 = arith.constant 2 : index
      %221 = arith.index_cast %4 : i32 to index
      %c0_50 = arith.constant 0 : index
      %222 = vector.load %arg3[%c2_49, %221, %c0_50] : memref<8x16x128xf32, #tpu.memory_space<vmem>>, vector<1x8x128xf32>
      %223 = vector.shape_cast %222 : vector<1x8x128xf32> to vector<8x128xf32>
      %224 = vector.shape_cast %220 : vector<8x128xf32> to vector<1x8x128xf32>
      tpu.vector_store %arg3[%c2_49, %221, %c0_50], %224 {strides = array<i32>} : memref<8x16x128xf32, #tpu.memory_space<vmem>>, vector<1x8x128xf32>,
      %c61 = arith.constant 61 : index
      %225 = memref.load %arg1[%c61] : memref<543xf32, #tpu.memory_space<smem>>
      %226 = vector.broadcast %225 : f32 to vector<8x128xf32>
      %c62 = arith.constant 62 : index
      %227 = memref.load %arg1[%c62] : memref<543xf32, #tpu.memory_space<smem>>
      %228 = vector.broadcast %227 : f32 to vector<8x128xf32>
      %c63 = arith.constant 63 : index
      %229 = memref.load %arg1[%c63] : memref<543xf32, #tpu.memory_space<smem>>
      %230 = vector.broadcast %229 : f32 to vector<8x128xf32>
      %c64 = arith.constant 64 : index
      %231 = memref.load %arg1[%c64] : memref<543xf32, #tpu.memory_space<smem>>
      %232 = vector.broadcast %231 : f32 to vector<8x128xf32>
      %c0_51 = arith.constant 0 : index
      %233 = arith.index_cast %4 : i32 to index
      %c0_52 = arith.constant 0 : index
      %234 = vector.load %arg2[%c0_51, %233, %c0_52] : memref<9x16x128xf32, #tpu.memory_space<vmem>>, vector<1x8x128xf32>
      %235 = vector.shape_cast %234 : vector<1x8x128xf32> to vector<8x128xf32>
      %c33 = arith.constant 33 : index
      %236 = memref.load %arg1[%c33] : memref<543xf32, #tpu.memory_space<smem>>
      %237 = vector.broadcast %236 : f32 to vector<8x128xf32>
      %238 = arith.mulf %235, %237 : vector<8x128xf32>
      %239 = arith.addf %226, %238 : vector<8x128xf32>
      %c34 = arith.constant 34 : index
      %240 = memref.load %arg1[%c34] : memref<543xf32, #tpu.memory_space<smem>>
      %241 = vector.broadcast %240 : f32 to vector<8x128xf32>
      %242 = arith.mulf %235, %241 : vector<8x128xf32>
      %243 = arith.addf %228, %242 : vector<8x128xf32>
      %c35 = arith.constant 35 : index
      %244 = memref.load %arg1[%c35] : memref<543xf32, #tpu.memory_space<smem>>
      %245 = vector.broadcast %244 : f32 to vector<8x128xf32>
      %246 = arith.mulf %235, %245 : vector<8x128xf32>
      %247 = arith.addf %230, %246 : vector<8x128xf32>
      %c36 = arith.constant 36 : index
      %248 = memref.load %arg1[%c36] : memref<543xf32, #tpu.memory_space<smem>>
      %249 = vector.broadcast %248 : f32 to vector<8x128xf32>
      %250 = arith.mulf %235, %249 : vector<8x128xf32>
      %251 = arith.addf %232, %250 : vector<8x128xf32>
      %c1_53 = arith.constant 1 : index
      %252 = arith.index_cast %4 : i32 to index
      %c0_54 = arith.constant 0 : index
      %253 = vector.load %arg2[%c1_53, %252, %c0_54] : memref<9x16x128xf32, #tpu.memory_space<vmem>>, vector<1x8x128xf32>
      %254 = vector.shape_cast %253 : vector<1x8x128xf32> to vector<8x128xf32>
      %c37 = arith.constant 37 : index
      %255 = memref.load %arg1[%c37] : memref<543xf32, #tpu.memory_space<smem>>
      %256 = vector.broadcast %255 : f32 to vector<8x128xf32>
      %257 = arith.mulf %254, %256 : vector<8x128xf32>
      %258 = arith.addf %239, %257 : vector<8x128xf32>
      %c38 = arith.constant 38 : index
      %259 = memref.load %arg1[%c38] : memref<543xf32, #tpu.memory_space<smem>>
      %260 = vector.broadcast %259 : f32 to vector<8x128xf32>
      %261 = arith.mulf %254, %260 : vector<8x128xf32>
      %262 = arith.addf %243, %261 : vector<8x128xf32>
      %c39 = arith.constant 39 : index
      %263 = memref.load %arg1[%c39] : memref<543xf32, #tpu.memory_space<smem>>
      %264 = vector.broadcast %263 : f32 to vector<8x128xf32>
      %265 = arith.mulf %254, %264 : vector<8x128xf32>
      %266 = arith.addf %247, %265 : vector<8x128xf32>
      %c40 = arith.constant 40 : index
      %267 = memref.load %arg1[%c40] : memref<543xf32, #tpu.memory_space<smem>>
      %268 = vector.broadcast %267 : f32 to vector<8x128xf32>
      %269 = arith.mulf %254, %268 : vector<8x128xf32>
      %270 = arith.addf %251, %269 : vector<8x128xf32>
      %c2_55 = arith.constant 2 : index
      %271 = arith.index_cast %4 : i32 to index
      %c0_56 = arith.constant 0 : index
      %272 = vector.load %arg2[%c2_55, %271, %c0_56] : memref<9x16x128xf32, #tpu.memory_space<vmem>>, vector<1x8x128xf32>
      %273 = vector.shape_cast %272 : vector<1x8x128xf32> to vector<8x128xf32>
      %c41 = arith.constant 41 : index
      %274 = memref.load %arg1[%c41] : memref<543xf32, #tpu.memory_space<smem>>
      %275 = vector.broadcast %274 : f32 to vector<8x128xf32>
      %276 = arith.mulf %273, %275 : vector<8x128xf32>
      %277 = arith.addf %258, %276 : vector<8x128xf32>
      %c42 = arith.constant 42 : index
      %278 = memref.load %arg1[%c42] : memref<543xf32, #tpu.memory_space<smem>>
      %279 = vector.broadcast %278 : f32 to vector<8x128xf32>
      %280 = arith.mulf %273, %279 : vector<8x128xf32>
      %281 = arith.addf %262, %280 : vector<8x128xf32>
      %c43 = arith.constant 43 : index
      %282 = memref.load %arg1[%c43] : memref<543xf32, #tpu.memory_space<smem>>
      %283 = vector.broadcast %282 : f32 to vector<8x128xf32>
      %284 = arith.mulf %273, %283 : vector<8x128xf32>
      %285 = arith.addf %266, %284 : vector<8x128xf32>
      %c44 = arith.constant 44 : index
      %286 = memref.load %arg1[%c44] : memref<543xf32, #tpu.memory_space<smem>>
      %287 = vector.broadcast %286 : f32 to vector<8x128xf32>
      %288 = arith.mulf %273, %287 : vector<8x128xf32>
      %289 = arith.addf %270, %288 : vector<8x128xf32>
      %c3_57 = arith.constant 3 : index
      %290 = arith.index_cast %4 : i32 to index
      %c0_58 = arith.constant 0 : index
      %291 = vector.load %arg2[%c3_57, %290, %c0_58] : memref<9x16x128xf32, #tpu.memory_space<vmem>>, vector<1x8x128xf32>
      %292 = vector.shape_cast %291 : vector<1x8x128xf32> to vector<8x128xf32>
      %c45 = arith.constant 45 : index
      %293 = memref.load %arg1[%c45] : memref<543xf32, #tpu.memory_space<smem>>
      %294 = vector.broadcast %293 : f32 to vector<8x128xf32>
      %295 = arith.mulf %292, %294 : vector<8x128xf32>
      %296 = arith.addf %277, %295 : vector<8x128xf32>
      %c46 = arith.constant 46 : index
      %297 = memref.load %arg1[%c46] : memref<543xf32, #tpu.memory_space<smem>>
      %298 = vector.broadcast %297 : f32 to vector<8x128xf32>
      %299 = arith.mulf %292, %298 : vector<8x128xf32>
      %300 = arith.addf %281, %299 : vector<8x128xf32>
      %c47 = arith.constant 47 : index
      %301 = memref.load %arg1[%c47] : memref<543xf32, #tpu.memory_space<smem>>
      %302 = vector.broadcast %301 : f32 to vector<8x128xf32>
      %303 = arith.mulf %292, %302 : vector<8x128xf32>
      %304 = arith.addf %285, %303 : vector<8x128xf32>
      %c48 = arith.constant 48 : index
      %305 = memref.load %arg1[%c48] : memref<543xf32, #tpu.memory_space<smem>>
      %306 = vector.broadcast %305 : f32 to vector<8x128xf32>
      %307 = arith.mulf %292, %306 : vector<8x128xf32>
      %308 = arith.addf %289, %307 : vector<8x128xf32>
      %c0_59 = arith.constant 0 : index
      %309 = arith.index_cast %4 : i32 to index
      %c0_60 = arith.constant 0 : index
      %310 = vector.load %arg3[%c0_59, %309, %c0_60] : memref<8x16x128xf32, #tpu.memory_space<vmem>>, vector<1x8x128xf32>
      %311 = vector.shape_cast %310 : vector<1x8x128xf32> to vector<8x128xf32>
      %c49 = arith.constant 49 : index
      %312 = memref.load %arg1[%c49] : memref<543xf32, #tpu.memory_space<smem>>
      %313 = vector.broadcast %312 : f32 to vector<8x128xf32>
      %314 = arith.mulf %311, %313 : vector<8x128xf32>
      %315 = arith.addf %296, %314 : vector<8x128xf32>
      %c50 = arith.constant 50 : index
      %316 = memref.load %arg1[%c50] : memref<543xf32, #tpu.memory_space<smem>>
      %317 = vector.broadcast %316 : f32 to vector<8x128xf32>
      %318 = arith.mulf %311, %317 : vector<8x128xf32>
      %319 = arith.addf %300, %318 : vector<8x128xf32>
      %c51 = arith.constant 51 : index
      %320 = memref.load %arg1[%c51] : memref<543xf32, #tpu.memory_space<smem>>
      %321 = vector.broadcast %320 : f32 to vector<8x128xf32>
      %322 = arith.mulf %311, %321 : vector<8x128xf32>
      %323 = arith.addf %304, %322 : vector<8x128xf32>
      %c52 = arith.constant 52 : index
      %324 = memref.load %arg1[%c52] : memref<543xf32, #tpu.memory_space<smem>>
      %325 = vector.broadcast %324 : f32 to vector<8x128xf32>
      %326 = arith.mulf %311, %325 : vector<8x128xf32>
      %327 = arith.addf %308, %326 : vector<8x128xf32>
      %c1_61 = arith.constant 1 : index
      %328 = arith.index_cast %4 : i32 to index
      %c0_62 = arith.constant 0 : index
      %329 = vector.load %arg3[%c1_61, %328, %c0_62] : memref<8x16x128xf32, #tpu.memory_space<vmem>>, vector<1x8x128xf32>
      %330 = vector.shape_cast %329 : vector<1x8x128xf32> to vector<8x128xf32>
      %c53 = arith.constant 53 : index
      %331 = memref.load %arg1[%c53] : memref<543xf32, #tpu.memory_space<smem>>
      %332 = vector.broadcast %331 : f32 to vector<8x128xf32>
      %333 = arith.mulf %330, %332 : vector<8x128xf32>
      %334 = arith.addf %315, %333 : vector<8x128xf32>
      %c54 = arith.constant 54 : index
      %335 = memref.load %arg1[%c54] : memref<543xf32, #tpu.memory_space<smem>>
      %336 = vector.broadcast %335 : f32 to vector<8x128xf32>
      %337 = arith.mulf %330, %336 : vector<8x128xf32>
      %338 = arith.addf %319, %337 : vector<8x128xf32>
      %c55 = arith.constant 55 : index
      %339 = memref.load %arg1[%c55] : memref<543xf32, #tpu.memory_space<smem>>
      %340 = vector.broadcast %339 : f32 to vector<8x128xf32>
      %341 = arith.mulf %330, %340 : vector<8x128xf32>
      %342 = arith.addf %323, %341 : vector<8x128xf32>
      %c56 = arith.constant 56 : index
      %343 = memref.load %arg1[%c56] : memref<543xf32, #tpu.memory_space<smem>>
      %344 = vector.broadcast %343 : f32 to vector<8x128xf32>
      %345 = arith.mulf %330, %344 : vector<8x128xf32>
      %346 = arith.addf %327, %345 : vector<8x128xf32>
      %c2_63 = arith.constant 2 : index
      %347 = arith.index_cast %4 : i32 to index
      %c0_64 = arith.constant 0 : index
      %348 = vector.load %arg3[%c2_63, %347, %c0_64] : memref<8x16x128xf32, #tpu.memory_space<vmem>>, vector<1x8x128xf32>
      %349 = vector.shape_cast %348 : vector<1x8x128xf32> to vector<8x128xf32>
      %c57 = arith.constant 57 : index
      %350 = memref.load %arg1[%c57] : memref<543xf32, #tpu.memory_space<smem>>
      %351 = vector.broadcast %350 : f32 to vector<8x128xf32>
      %352 = arith.mulf %349, %351 : vector<8x128xf32>
      %353 = arith.addf %334, %352 : vector<8x128xf32>
      %c58 = arith.constant 58 : index
      %354 = memref.load %arg1[%c58] : memref<543xf32, #tpu.memory_space<smem>>
      %355 = vector.broadcast %354 : f32 to vector<8x128xf32>
      %356 = arith.mulf %349, %355 : vector<8x128xf32>
      %357 = arith.addf %338, %356 : vector<8x128xf32>
      %c59 = arith.constant 59 : index
      %358 = memref.load %arg1[%c59] : memref<543xf32, #tpu.memory_space<smem>>
      %359 = vector.broadcast %358 : f32 to vector<8x128xf32>
      %360 = arith.mulf %349, %359 : vector<8x128xf32>
      %361 = arith.addf %342, %360 : vector<8x128xf32>
      %c60 = arith.constant 60 : index
      %362 = memref.load %arg1[%c60] : memref<543xf32, #tpu.memory_space<smem>>
      %363 = vector.broadcast %362 : f32 to vector<8x128xf32>
      %364 = arith.mulf %349, %363 : vector<8x128xf32>
      %365 = arith.addf %346, %364 : vector<8x128xf32>
      %cst_65 = arith.constant 0.00999999977 : f32
      %366 = vector.broadcast %cst_65 : f32 to vector<8x128xf32>
      %367 = arith.mulf %366, %353 : vector<8x128xf32>
      %368 = arith.maximumf %353, %367 : vector<8x128xf32>
      %cst_66 = arith.constant 0.00999999977 : f32
      %369 = vector.broadcast %cst_66 : f32 to vector<8x128xf32>
      %370 = arith.mulf %369, %357 : vector<8x128xf32>
      %371 = arith.maximumf %357, %370 : vector<8x128xf32>
      %cst_67 = arith.constant 0.00999999977 : f32
      %372 = vector.broadcast %cst_67 : f32 to vector<8x128xf32>
      %373 = arith.mulf %372, %361 : vector<8x128xf32>
      %374 = arith.maximumf %361, %373 : vector<8x128xf32>
      %cst_68 = arith.constant 0.00999999977 : f32
      %375 = vector.broadcast %cst_68 : f32 to vector<8x128xf32>
      %376 = arith.mulf %375, %365 : vector<8x128xf32>
      %377 = arith.maximumf %365, %376 : vector<8x128xf32>
      %c73 = arith.constant 73 : index
      %378 = memref.load %arg1[%c73] : memref<543xf32, #tpu.memory_space<smem>>
      %379 = vector.broadcast %378 : f32 to vector<8x128xf32>
      %c74 = arith.constant 74 : index
      %380 = memref.load %arg1[%c74] : memref<543xf32, #tpu.memory_space<smem>>
      %381 = vector.broadcast %380 : f32 to vector<8x128xf32>
      %c65 = arith.constant 65 : index
      %382 = memref.load %arg1[%c65] : memref<543xf32, #tpu.memory_space<smem>>
      %383 = vector.broadcast %382 : f32 to vector<8x128xf32>
      %384 = arith.mulf %368, %383 : vector<8x128xf32>
      %385 = arith.addf %379, %384 : vector<8x128xf32>
      %c66 = arith.constant 66 : index
      %386 = memref.load %arg1[%c66] : memref<543xf32, #tpu.memory_space<smem>>
      %387 = vector.broadcast %386 : f32 to vector<8x128xf32>
      %388 = arith.mulf %368, %387 : vector<8x128xf32>
      %389 = arith.addf %381, %388 : vector<8x128xf32>
      %c67 = arith.constant 67 : index
      %390 = memref.load %arg1[%c67] : memref<543xf32, #tpu.memory_space<smem>>
      %391 = vector.broadcast %390 : f32 to vector<8x128xf32>
      %392 = arith.mulf %371, %391 : vector<8x128xf32>
      %393 = arith.addf %385, %392 : vector<8x128xf32>
      %c68 = arith.constant 68 : index
      %394 = memref.load %arg1[%c68] : memref<543xf32, #tpu.memory_space<smem>>
      %395 = vector.broadcast %394 : f32 to vector<8x128xf32>
      %396 = arith.mulf %371, %395 : vector<8x128xf32>
      %397 = arith.addf %389, %396 : vector<8x128xf32>
      %c69 = arith.constant 69 : index
      %398 = memref.load %arg1[%c69] : memref<543xf32, #tpu.memory_space<smem>>
      %399 = vector.broadcast %398 : f32 to vector<8x128xf32>
      %400 = arith.mulf %374, %399 : vector<8x128xf32>
      %401 = arith.addf %393, %400 : vector<8x128xf32>
      %c70 = arith.constant 70 : index
      %402 = memref.load %arg1[%c70] : memref<543xf32, #tpu.memory_space<smem>>
      %403 = vector.broadcast %402 : f32 to vector<8x128xf32>
      %404 = arith.mulf %374, %403 : vector<8x128xf32>
      %405 = arith.addf %397, %404 : vector<8x128xf32>
      %c71 = arith.constant 71 : index
      %406 = memref.load %arg1[%c71] : memref<543xf32, #tpu.memory_space<smem>>
      %407 = vector.broadcast %406 : f32 to vector<8x128xf32>
      %408 = arith.mulf %377, %407 : vector<8x128xf32>
      %409 = arith.addf %401, %408 : vector<8x128xf32>
      %c72 = arith.constant 72 : index
      %410 = memref.load %arg1[%c72] : memref<543xf32, #tpu.memory_space<smem>>
      %411 = vector.broadcast %410 : f32 to vector<8x128xf32>
      %412 = arith.mulf %377, %411 : vector<8x128xf32>
      %413 = arith.addf %405, %412 : vector<8x128xf32>
      %cst_69 = arith.constant 0.00999999977 : f32
      %414 = vector.broadcast %cst_69 : f32 to vector<8x128xf32>
      %415 = arith.mulf %414, %409 : vector<8x128xf32>
      %416 = arith.maximumf %409, %415 : vector<8x128xf32>
      %cst_70 = arith.constant 0.00999999977 : f32
      %417 = vector.broadcast %cst_70 : f32 to vector<8x128xf32>
      %418 = arith.mulf %417, %413 : vector<8x128xf32>
      %419 = arith.maximumf %413, %418 : vector<8x128xf32>
      %c77 = arith.constant 77 : index
      %420 = memref.load %arg1[%c77] : memref<543xf32, #tpu.memory_space<smem>>
      %421 = vector.broadcast %420 : f32 to vector<8x128xf32>
      %c75 = arith.constant 75 : index
      %422 = memref.load %arg1[%c75] : memref<543xf32, #tpu.memory_space<smem>>
      %423 = vector.broadcast %422 : f32 to vector<8x128xf32>
      %424 = arith.mulf %416, %423 : vector<8x128xf32>
      %425 = arith.addf %421, %424 : vector<8x128xf32>
      %c76 = arith.constant 76 : index
      %426 = memref.load %arg1[%c76] : memref<543xf32, #tpu.memory_space<smem>>
      %427 = vector.broadcast %426 : f32 to vector<8x128xf32>
      %428 = arith.mulf %419, %427 : vector<8x128xf32>
      %429 = arith.addf %425, %428 : vector<8x128xf32>
      %cst_71 = arith.constant -1.000000e+00 : f32
      %cst_72 = arith.constant 1.000000e+00 : f32
      %430 = vector.broadcast %cst_71 : f32 to vector<8x128xf32>
      %431 = arith.maximumf %430, %429 : vector<8x128xf32>
      %432 = vector.broadcast %cst_72 : f32 to vector<8x128xf32>
      %433 = arith.minimumf %432, %431 : vector<8x128xf32>
      %c4_73 = arith.constant 4 : index
      %434 = arith.index_cast %4 : i32 to index
      %c0_74 = arith.constant 0 : index
      %435 = vector.load %arg2[%c4_73, %434, %c0_74] : memref<9x16x128xf32, #tpu.memory_space<vmem>>, vector<1x8x128xf32>
      %436 = vector.shape_cast %435 : vector<1x8x128xf32> to vector<8x128xf32>
      %437 = arith.subf %436, %433 : vector<8x128xf32>
      %cst_75 = arith.constant 1.000000e+00 : f32
      %438 = vector.broadcast %cst_75 : f32 to vector<8x128xf32>
      %439 = arith.addf %437, %438 : vector<8x128xf32>
      %cst_76 = arith.constant 5.000000e-01 : f32
      %440 = vector.broadcast %cst_76 : f32 to vector<8x128xf32>
      %441 = arith.mulf %439, %440 : vector<8x128xf32>
      %cst_77 = arith.constant 0.000000e+00 : f32
      %442 = vector.broadcast %cst_77 : f32 to vector<8x128xf32>
      %443 = arith.cmpf olt, %441, %442 : vector<8x128xf32>
      %444 = math.ceil %441 : vector<8x128xf32>
      %445 = math.floor %441 : vector<8x128xf32>
      %446 = arith.select %443, %444, %445 : vector<8x128xi1>, vector<8x128xf32>
      %cst_78 = arith.constant 2.000000e+00 : f32
      %447 = vector.broadcast %cst_78 : f32 to vector<8x128xf32>
      %448 = arith.mulf %447, %446 : vector<8x128xf32>
      %449 = arith.subf %439, %448 : vector<8x128xf32>
      %cst_79 = arith.constant 1.000000e+00 : f32
      %450 = vector.broadcast %cst_79 : f32 to vector<8x128xf32>
      %451 = arith.subf %449, %450 : vector<8x128xf32>
      %c3_80 = arith.constant 3 : index
      %452 = arith.index_cast %4 : i32 to index
      %c0_81 = arith.constant 0 : index
      %453 = vector.load %arg3[%c3_80, %452, %c0_81] : memref<8x16x128xf32, #tpu.memory_space<vmem>>, vector<1x8x128xf32>
      %454 = vector.shape_cast %453 : vector<1x8x128xf32> to vector<8x128xf32>
      %455 = vector.shape_cast %451 : vector<8x128xf32> to vector<1x8x128xf32>
      tpu.vector_store %arg3[%c3_80, %452, %c0_81], %455 {strides = array<i32>} : memref<8x16x128xf32, #tpu.memory_space<vmem>>, vector<1x8x128xf32>,
      %c123 = arith.constant 123 : index
      %456 = memref.load %arg1[%c123] : memref<543xf32, #tpu.memory_space<smem>>
      %457 = vector.broadcast %456 : f32 to vector<8x128xf32>
      %c124 = arith.constant 124 : index
      %458 = memref.load %arg1[%c124] : memref<543xf32, #tpu.memory_space<smem>>
      %459 = vector.broadcast %458 : f32 to vector<8x128xf32>
      %c125 = arith.constant 125 : index
      %460 = memref.load %arg1[%c125] : memref<543xf32, #tpu.memory_space<smem>>
      %461 = vector.broadcast %460 : f32 to vector<8x128xf32>
      %c126 = arith.constant 126 : index
      %462 = memref.load %arg1[%c126] : memref<543xf32, #tpu.memory_space<smem>>
      %463 = vector.broadcast %462 : f32 to vector<8x128xf32>
      %c127 = arith.constant 127 : index
      %464 = memref.load %arg1[%c127] : memref<543xf32, #tpu.memory_space<smem>>
      %465 = vector.broadcast %464 : f32 to vector<8x128xf32>
      %c0_82 = arith.constant 0 : index
      %466 = arith.index_cast %4 : i32 to index
      %c0_83 = arith.constant 0 : index
      %467 = vector.load %arg2[%c0_82, %466, %c0_83] : memref<9x16x128xf32, #tpu.memory_space<vmem>>, vector<1x8x128xf32>
      %468 = vector.shape_cast %467 : vector<1x8x128xf32> to vector<8x128xf32>
      %c78 = arith.constant 78 : index
      %469 = memref.load %arg1[%c78] : memref<543xf32, #tpu.memory_space<smem>>
      %470 = vector.broadcast %469 : f32 to vector<8x128xf32>
      %471 = arith.mulf %468, %470 : vector<8x128xf32>
      %472 = arith.addf %457, %471 : vector<8x128xf32>
      %c79 = arith.constant 79 : index
      %473 = memref.load %arg1[%c79] : memref<543xf32, #tpu.memory_space<smem>>
      %474 = vector.broadcast %473 : f32 to vector<8x128xf32>
      %475 = arith.mulf %468, %474 : vector<8x128xf32>
      %476 = arith.addf %459, %475 : vector<8x128xf32>
      %c80 = arith.constant 80 : index
      %477 = memref.load %arg1[%c80] : memref<543xf32, #tpu.memory_space<smem>>
      %478 = vector.broadcast %477 : f32 to vector<8x128xf32>
      %479 = arith.mulf %468, %478 : vector<8x128xf32>
      %480 = arith.addf %461, %479 : vector<8x128xf32>
      %c81 = arith.constant 81 : index
      %481 = memref.load %arg1[%c81] : memref<543xf32, #tpu.memory_space<smem>>
      %482 = vector.broadcast %481 : f32 to vector<8x128xf32>
      %483 = arith.mulf %468, %482 : vector<8x128xf32>
      %484 = arith.addf %463, %483 : vector<8x128xf32>
      %c82 = arith.constant 82 : index
      %485 = memref.load %arg1[%c82] : memref<543xf32, #tpu.memory_space<smem>>
      %486 = vector.broadcast %485 : f32 to vector<8x128xf32>
      %487 = arith.mulf %468, %486 : vector<8x128xf32>
      %488 = arith.addf %465, %487 : vector<8x128xf32>
      %c1_84 = arith.constant 1 : index
      %489 = arith.index_cast %4 : i32 to index
      %c0_85 = arith.constant 0 : index
      %490 = vector.load %arg2[%c1_84, %489, %c0_85] : memref<9x16x128xf32, #tpu.memory_space<vmem>>, vector<1x8x128xf32>
      %491 = vector.shape_cast %490 : vector<1x8x128xf32> to vector<8x128xf32>
      %c83 = arith.constant 83 : index
      %492 = memref.load %arg1[%c83] : memref<543xf32, #tpu.memory_space<smem>>
      %493 = vector.broadcast %492 : f32 to vector<8x128xf32>
      %494 = arith.mulf %491, %493 : vector<8x128xf32>
      %495 = arith.addf %472, %494 : vector<8x128xf32>
      %c84 = arith.constant 84 : index
      %496 = memref.load %arg1[%c84] : memref<543xf32, #tpu.memory_space<smem>>
      %497 = vector.broadcast %496 : f32 to vector<8x128xf32>
      %498 = arith.mulf %491, %497 : vector<8x128xf32>
      %499 = arith.addf %476, %498 : vector<8x128xf32>
      %c85 = arith.constant 85 : index
      %500 = memref.load %arg1[%c85] : memref<543xf32, #tpu.memory_space<smem>>
      %501 = vector.broadcast %500 : f32 to vector<8x128xf32>
      %502 = arith.mulf %491, %501 : vector<8x128xf32>
      %503 = arith.addf %480, %502 : vector<8x128xf32>
      %c86 = arith.constant 86 : index
      %504 = memref.load %arg1[%c86] : memref<543xf32, #tpu.memory_space<smem>>
      %505 = vector.broadcast %504 : f32 to vector<8x128xf32>
      %506 = arith.mulf %491, %505 : vector<8x128xf32>
      %507 = arith.addf %484, %506 : vector<8x128xf32>
      %c87 = arith.constant 87 : index
      %508 = memref.load %arg1[%c87] : memref<543xf32, #tpu.memory_space<smem>>
      %509 = vector.broadcast %508 : f32 to vector<8x128xf32>
      %510 = arith.mulf %491, %509 : vector<8x128xf32>
      %511 = arith.addf %488, %510 : vector<8x128xf32>
      %c2_86 = arith.constant 2 : index
      %512 = arith.index_cast %4 : i32 to index
      %c0_87 = arith.constant 0 : index
      %513 = vector.load %arg2[%c2_86, %512, %c0_87] : memref<9x16x128xf32, #tpu.memory_space<vmem>>, vector<1x8x128xf32>
      %514 = vector.shape_cast %513 : vector<1x8x128xf32> to vector<8x128xf32>
      %c88 = arith.constant 88 : index
      %515 = memref.load %arg1[%c88] : memref<543xf32, #tpu.memory_space<smem>>
      %516 = vector.broadcast %515 : f32 to vector<8x128xf32>
      %517 = arith.mulf %514, %516 : vector<8x128xf32>
      %518 = arith.addf %495, %517 : vector<8x128xf32>
      %c89 = arith.constant 89 : index
      %519 = memref.load %arg1[%c89] : memref<543xf32, #tpu.memory_space<smem>>
      %520 = vector.broadcast %519 : f32 to vector<8x128xf32>
      %521 = arith.mulf %514, %520 : vector<8x128xf32>
      %522 = arith.addf %499, %521 : vector<8x128xf32>
      %c90 = arith.constant 90 : index
      %523 = memref.load %arg1[%c90] : memref<543xf32, #tpu.memory_space<smem>>
      %524 = vector.broadcast %523 : f32 to vector<8x128xf32>
      %525 = arith.mulf %514, %524 : vector<8x128xf32>
      %526 = arith.addf %503, %525 : vector<8x128xf32>
      %c91 = arith.constant 91 : index
      %527 = memref.load %arg1[%c91] : memref<543xf32, #tpu.memory_space<smem>>
      %528 = vector.broadcast %527 : f32 to vector<8x128xf32>
      %529 = arith.mulf %514, %528 : vector<8x128xf32>
      %530 = arith.addf %507, %529 : vector<8x128xf32>
      %c92 = arith.constant 92 : index
      %531 = memref.load %arg1[%c92] : memref<543xf32, #tpu.memory_space<smem>>
      %532 = vector.broadcast %531 : f32 to vector<8x128xf32>
      %533 = arith.mulf %514, %532 : vector<8x128xf32>
      %534 = arith.addf %511, %533 : vector<8x128xf32>
      %c3_88 = arith.constant 3 : index
      %535 = arith.index_cast %4 : i32 to index
      %c0_89 = arith.constant 0 : index
      %536 = vector.load %arg2[%c3_88, %535, %c0_89] : memref<9x16x128xf32, #tpu.memory_space<vmem>>, vector<1x8x128xf32>
      %537 = vector.shape_cast %536 : vector<1x8x128xf32> to vector<8x128xf32>
      %c93 = arith.constant 93 : index
      %538 = memref.load %arg1[%c93] : memref<543xf32, #tpu.memory_space<smem>>
      %539 = vector.broadcast %538 : f32 to vector<8x128xf32>
      %540 = arith.mulf %537, %539 : vector<8x128xf32>
      %541 = arith.addf %518, %540 : vector<8x128xf32>
      %c94 = arith.constant 94 : index
      %542 = memref.load %arg1[%c94] : memref<543xf32, #tpu.memory_space<smem>>
      %543 = vector.broadcast %542 : f32 to vector<8x128xf32>
      %544 = arith.mulf %537, %543 : vector<8x128xf32>
      %545 = arith.addf %522, %544 : vector<8x128xf32>
      %c95 = arith.constant 95 : index
      %546 = memref.load %arg1[%c95] : memref<543xf32, #tpu.memory_space<smem>>
      %547 = vector.broadcast %546 : f32 to vector<8x128xf32>
      %548 = arith.mulf %537, %547 : vector<8x128xf32>
      %549 = arith.addf %526, %548 : vector<8x128xf32>
      %c96 = arith.constant 96 : index
      %550 = memref.load %arg1[%c96] : memref<543xf32, #tpu.memory_space<smem>>
      %551 = vector.broadcast %550 : f32 to vector<8x128xf32>
      %552 = arith.mulf %537, %551 : vector<8x128xf32>
      %553 = arith.addf %530, %552 : vector<8x128xf32>
      %c97 = arith.constant 97 : index
      %554 = memref.load %arg1[%c97] : memref<543xf32, #tpu.memory_space<smem>>
      %555 = vector.broadcast %554 : f32 to vector<8x128xf32>
      %556 = arith.mulf %537, %555 : vector<8x128xf32>
      %557 = arith.addf %534, %556 : vector<8x128xf32>
      %c4_90 = arith.constant 4 : index
      %558 = arith.index_cast %4 : i32 to index
      %c0_91 = arith.constant 0 : index
      %559 = vector.load %arg2[%c4_90, %558, %c0_91] : memref<9x16x128xf32, #tpu.memory_space<vmem>>, vector<1x8x128xf32>
      %560 = vector.shape_cast %559 : vector<1x8x128xf32> to vector<8x128xf32>
      %c98 = arith.constant 98 : index
      %561 = memref.load %arg1[%c98] : memref<543xf32, #tpu.memory_space<smem>>
      %562 = vector.broadcast %561 : f32 to vector<8x128xf32>
      %563 = arith.mulf %560, %562 : vector<8x128xf32>
      %564 = arith.addf %541, %563 : vector<8x128xf32>
      %c99 = arith.constant 99 : index
      %565 = memref.load %arg1[%c99] : memref<543xf32, #tpu.memory_space<smem>>
      %566 = vector.broadcast %565 : f32 to vector<8x128xf32>
      %567 = arith.mulf %560, %566 : vector<8x128xf32>
      %568 = arith.addf %545, %567 : vector<8x128xf32>
      %c100 = arith.constant 100 : index
      %569 = memref.load %arg1[%c100] : memref<543xf32, #tpu.memory_space<smem>>
      %570 = vector.broadcast %569 : f32 to vector<8x128xf32>
      %571 = arith.mulf %560, %570 : vector<8x128xf32>
      %572 = arith.addf %549, %571 : vector<8x128xf32>
      %c101 = arith.constant 101 : index
      %573 = memref.load %arg1[%c101] : memref<543xf32, #tpu.memory_space<smem>>
      %574 = vector.broadcast %573 : f32 to vector<8x128xf32>
      %575 = arith.mulf %560, %574 : vector<8x128xf32>
      %576 = arith.addf %553, %575 : vector<8x128xf32>
      %c102 = arith.constant 102 : index
      %577 = memref.load %arg1[%c102] : memref<543xf32, #tpu.memory_space<smem>>
      %578 = vector.broadcast %577 : f32 to vector<8x128xf32>
      %579 = arith.mulf %560, %578 : vector<8x128xf32>
      %580 = arith.addf %557, %579 : vector<8x128xf32>
      %c0_92 = arith.constant 0 : index
      %581 = arith.index_cast %4 : i32 to index
      %c0_93 = arith.constant 0 : index
      %582 = vector.load %arg3[%c0_92, %581, %c0_93] : memref<8x16x128xf32, #tpu.memory_space<vmem>>, vector<1x8x128xf32>
      %583 = vector.shape_cast %582 : vector<1x8x128xf32> to vector<8x128xf32>
      %c103 = arith.constant 103 : index
      %584 = memref.load %arg1[%c103] : memref<543xf32, #tpu.memory_space<smem>>
      %585 = vector.broadcast %584 : f32 to vector<8x128xf32>
      %586 = arith.mulf %583, %585 : vector<8x128xf32>
      %587 = arith.addf %564, %586 : vector<8x128xf32>
      %c104 = arith.constant 104 : index
      %588 = memref.load %arg1[%c104] : memref<543xf32, #tpu.memory_space<smem>>
      %589 = vector.broadcast %588 : f32 to vector<8x128xf32>
      %590 = arith.mulf %583, %589 : vector<8x128xf32>
      %591 = arith.addf %568, %590 : vector<8x128xf32>
      %c105 = arith.constant 105 : index
      %592 = memref.load %arg1[%c105] : memref<543xf32, #tpu.memory_space<smem>>
      %593 = vector.broadcast %592 : f32 to vector<8x128xf32>
      %594 = arith.mulf %583, %593 : vector<8x128xf32>
      %595 = arith.addf %572, %594 : vector<8x128xf32>
      %c106 = arith.constant 106 : index
      %596 = memref.load %arg1[%c106] : memref<543xf32, #tpu.memory_space<smem>>
      %597 = vector.broadcast %596 : f32 to vector<8x128xf32>
      %598 = arith.mulf %583, %597 : vector<8x128xf32>
      %599 = arith.addf %576, %598 : vector<8x128xf32>
      %c107 = arith.constant 107 : index
      %600 = memref.load %arg1[%c107] : memref<543xf32, #tpu.memory_space<smem>>
      %601 = vector.broadcast %600 : f32 to vector<8x128xf32>
      %602 = arith.mulf %583, %601 : vector<8x128xf32>
      %603 = arith.addf %580, %602 : vector<8x128xf32>
      %c1_94 = arith.constant 1 : index
      %604 = arith.index_cast %4 : i32 to index
      %c0_95 = arith.constant 0 : index
      %605 = vector.load %arg3[%c1_94, %604, %c0_95] : memref<8x16x128xf32, #tpu.memory_space<vmem>>, vector<1x8x128xf32>
      %606 = vector.shape_cast %605 : vector<1x8x128xf32> to vector<8x128xf32>
      %c108 = arith.constant 108 : index
      %607 = memref.load %arg1[%c108] : memref<543xf32, #tpu.memory_space<smem>>
      %608 = vector.broadcast %607 : f32 to vector<8x128xf32>
      %609 = arith.mulf %606, %608 : vector<8x128xf32>
      %610 = arith.addf %587, %609 : vector<8x128xf32>
      %c109 = arith.constant 109 : index
      %611 = memref.load %arg1[%c109] : memref<543xf32, #tpu.memory_space<smem>>
      %612 = vector.broadcast %611 : f32 to vector<8x128xf32>
      %613 = arith.mulf %606, %612 : vector<8x128xf32>
      %614 = arith.addf %591, %613 : vector<8x128xf32>
      %c110 = arith.constant 110 : index
      %615 = memref.load %arg1[%c110] : memref<543xf32, #tpu.memory_space<smem>>
      %616 = vector.broadcast %615 : f32 to vector<8x128xf32>
      %617 = arith.mulf %606, %616 : vector<8x128xf32>
      %618 = arith.addf %595, %617 : vector<8x128xf32>
      %c111 = arith.constant 111 : index
      %619 = memref.load %arg1[%c111] : memref<543xf32, #tpu.memory_space<smem>>
      %620 = vector.broadcast %619 : f32 to vector<8x128xf32>
      %621 = arith.mulf %606, %620 : vector<8x128xf32>
      %622 = arith.addf %599, %621 : vector<8x128xf32>
      %c112 = arith.constant 112 : index
      %623 = memref.load %arg1[%c112] : memref<543xf32, #tpu.memory_space<smem>>
      %624 = vector.broadcast %623 : f32 to vector<8x128xf32>
      %625 = arith.mulf %606, %624 : vector<8x128xf32>
      %626 = arith.addf %603, %625 : vector<8x128xf32>
      %c2_96 = arith.constant 2 : index
      %627 = arith.index_cast %4 : i32 to index
      %c0_97 = arith.constant 0 : index
      %628 = vector.load %arg3[%c2_96, %627, %c0_97] : memref<8x16x128xf32, #tpu.memory_space<vmem>>, vector<1x8x128xf32>
      %629 = vector.shape_cast %628 : vector<1x8x128xf32> to vector<8x128xf32>
      %c113 = arith.constant 113 : index
      %630 = memref.load %arg1[%c113] : memref<543xf32, #tpu.memory_space<smem>>
      %631 = vector.broadcast %630 : f32 to vector<8x128xf32>
      %632 = arith.mulf %629, %631 : vector<8x128xf32>
      %633 = arith.addf %610, %632 : vector<8x128xf32>
      %c114 = arith.constant 114 : index
      %634 = memref.load %arg1[%c114] : memref<543xf32, #tpu.memory_space<smem>>
      %635 = vector.broadcast %634 : f32 to vector<8x128xf32>
      %636 = arith.mulf %629, %635 : vector<8x128xf32>
      %637 = arith.addf %614, %636 : vector<8x128xf32>
      %c115 = arith.constant 115 : index
      %638 = memref.load %arg1[%c115] : memref<543xf32, #tpu.memory_space<smem>>
      %639 = vector.broadcast %638 : f32 to vector<8x128xf32>
      %640 = arith.mulf %629, %639 : vector<8x128xf32>
      %641 = arith.addf %618, %640 : vector<8x128xf32>
      %c116 = arith.constant 116 : index
      %642 = memref.load %arg1[%c116] : memref<543xf32, #tpu.memory_space<smem>>
      %643 = vector.broadcast %642 : f32 to vector<8x128xf32>
      %644 = arith.mulf %629, %643 : vector<8x128xf32>
      %645 = arith.addf %622, %644 : vector<8x128xf32>
      %c117 = arith.constant 117 : index
      %646 = memref.load %arg1[%c117] : memref<543xf32, #tpu.memory_space<smem>>
      %647 = vector.broadcast %646 : f32 to vector<8x128xf32>
      %648 = arith.mulf %629, %647 : vector<8x128xf32>
      %649 = arith.addf %626, %648 : vector<8x128xf32>
      %c3_98 = arith.constant 3 : index
      %650 = arith.index_cast %4 : i32 to index
      %c0_99 = arith.constant 0 : index
      %651 = vector.load %arg3[%c3_98, %650, %c0_99] : memref<8x16x128xf32, #tpu.memory_space<vmem>>, vector<1x8x128xf32>
      %652 = vector.shape_cast %651 : vector<1x8x128xf32> to vector<8x128xf32>
      %c118 = arith.constant 118 : index
      %653 = memref.load %arg1[%c118] : memref<543xf32, #tpu.memory_space<smem>>
      %654 = vector.broadcast %653 : f32 to vector<8x128xf32>
      %655 = arith.mulf %652, %654 : vector<8x128xf32>
      %656 = arith.addf %633, %655 : vector<8x128xf32>
      %c119 = arith.constant 119 : index
      %657 = memref.load %arg1[%c119] : memref<543xf32, #tpu.memory_space<smem>>
      %658 = vector.broadcast %657 : f32 to vector<8x128xf32>
      %659 = arith.mulf %652, %658 : vector<8x128xf32>
      %660 = arith.addf %637, %659 : vector<8x128xf32>
      %c120 = arith.constant 120 : index
      %661 = memref.load %arg1[%c120] : memref<543xf32, #tpu.memory_space<smem>>
      %662 = vector.broadcast %661 : f32 to vector<8x128xf32>
      %663 = arith.mulf %652, %662 : vector<8x128xf32>
      %664 = arith.addf %641, %663 : vector<8x128xf32>
      %c121 = arith.constant 121 : index
      %665 = memref.load %arg1[%c121] : memref<543xf32, #tpu.memory_space<smem>>
      %666 = vector.broadcast %665 : f32 to vector<8x128xf32>
      %667 = arith.mulf %652, %666 : vector<8x128xf32>
      %668 = arith.addf %645, %667 : vector<8x128xf32>
      %c122 = arith.constant 122 : index
      %669 = memref.load %arg1[%c122] : memref<543xf32, #tpu.memory_space<smem>>
      %670 = vector.broadcast %669 : f32 to vector<8x128xf32>
      %671 = arith.mulf %652, %670 : vector<8x128xf32>
      %672 = arith.addf %649, %671 : vector<8x128xf32>
      %cst_100 = arith.constant 0.00999999977 : f32
      %673 = vector.broadcast %cst_100 : f32 to vector<8x128xf32>
      %674 = arith.mulf %673, %656 : vector<8x128xf32>
      %675 = arith.maximumf %656, %674 : vector<8x128xf32>
      %cst_101 = arith.constant 0.00999999977 : f32
      %676 = vector.broadcast %cst_101 : f32 to vector<8x128xf32>
      %677 = arith.mulf %676, %660 : vector<8x128xf32>
      %678 = arith.maximumf %660, %677 : vector<8x128xf32>
      %cst_102 = arith.constant 0.00999999977 : f32
      %679 = vector.broadcast %cst_102 : f32 to vector<8x128xf32>
      %680 = arith.mulf %679, %664 : vector<8x128xf32>
      %681 = arith.maximumf %664, %680 : vector<8x128xf32>
      %cst_103 = arith.constant 0.00999999977 : f32
      %682 = vector.broadcast %cst_103 : f32 to vector<8x128xf32>
      %683 = arith.mulf %682, %668 : vector<8x128xf32>
      %684 = arith.maximumf %668, %683 : vector<8x128xf32>
      %cst_104 = arith.constant 0.00999999977 : f32
      %685 = vector.broadcast %cst_104 : f32 to vector<8x128xf32>
      %686 = arith.mulf %685, %672 : vector<8x128xf32>
      %687 = arith.maximumf %672, %686 : vector<8x128xf32>
      %c138 = arith.constant 138 : index
      %688 = memref.load %arg1[%c138] : memref<543xf32, #tpu.memory_space<smem>>
      %689 = vector.broadcast %688 : f32 to vector<8x128xf32>
      %c139 = arith.constant 139 : index
      %690 = memref.load %arg1[%c139] : memref<543xf32, #tpu.memory_space<smem>>
      %691 = vector.broadcast %690 : f32 to vector<8x128xf32>
      %c128 = arith.constant 128 : index
      %692 = memref.load %arg1[%c128] : memref<543xf32, #tpu.memory_space<smem>>
      %693 = vector.broadcast %692 : f32 to vector<8x128xf32>
      %694 = arith.mulf %675, %693 : vector<8x128xf32>
      %695 = arith.addf %689, %694 : vector<8x128xf32>
      %c129 = arith.constant 129 : index
      %696 = memref.load %arg1[%c129] : memref<543xf32, #tpu.memory_space<smem>>
      %697 = vector.broadcast %696 : f32 to vector<8x128xf32>
      %698 = arith.mulf %675, %697 : vector<8x128xf32>
      %699 = arith.addf %691, %698 : vector<8x128xf32>
      %c130 = arith.constant 130 : index
      %700 = memref.load %arg1[%c130] : memref<543xf32, #tpu.memory_space<smem>>
      %701 = vector.broadcast %700 : f32 to vector<8x128xf32>
      %702 = arith.mulf %678, %701 : vector<8x128xf32>
      %703 = arith.addf %695, %702 : vector<8x128xf32>
      %c131 = arith.constant 131 : index
      %704 = memref.load %arg1[%c131] : memref<543xf32, #tpu.memory_space<smem>>
      %705 = vector.broadcast %704 : f32 to vector<8x128xf32>
      %706 = arith.mulf %678, %705 : vector<8x128xf32>
      %707 = arith.addf %699, %706 : vector<8x128xf32>
      %c132 = arith.constant 132 : index
      %708 = memref.load %arg1[%c132] : memref<543xf32, #tpu.memory_space<smem>>
      %709 = vector.broadcast %708 : f32 to vector<8x128xf32>
      %710 = arith.mulf %681, %709 : vector<8x128xf32>
      %711 = arith.addf %703, %710 : vector<8x128xf32>
      %c133 = arith.constant 133 : index
      %712 = memref.load %arg1[%c133] : memref<543xf32, #tpu.memory_space<smem>>
      %713 = vector.broadcast %712 : f32 to vector<8x128xf32>
      %714 = arith.mulf %681, %713 : vector<8x128xf32>
      %715 = arith.addf %707, %714 : vector<8x128xf32>
      %c134 = arith.constant 134 : index
      %716 = memref.load %arg1[%c134] : memref<543xf32, #tpu.memory_space<smem>>
      %717 = vector.broadcast %716 : f32 to vector<8x128xf32>
      %718 = arith.mulf %684, %717 : vector<8x128xf32>
      %719 = arith.addf %711, %718 : vector<8x128xf32>
      %c135 = arith.constant 135 : index
      %720 = memref.load %arg1[%c135] : memref<543xf32, #tpu.memory_space<smem>>
      %721 = vector.broadcast %720 : f32 to vector<8x128xf32>
      %722 = arith.mulf %684, %721 : vector<8x128xf32>
      %723 = arith.addf %715, %722 : vector<8x128xf32>
      %c136 = arith.constant 136 : index
      %724 = memref.load %arg1[%c136] : memref<543xf32, #tpu.memory_space<smem>>
      %725 = vector.broadcast %724 : f32 to vector<8x128xf32>
      %726 = arith.mulf %687, %725 : vector<8x128xf32>
      %727 = arith.addf %719, %726 : vector<8x128xf32>
      %c137 = arith.constant 137 : index
      %728 = memref.load %arg1[%c137] : memref<543xf32, #tpu.memory_space<smem>>
      %729 = vector.broadcast %728 : f32 to vector<8x128xf32>
      %730 = arith.mulf %687, %729 : vector<8x128xf32>
      %731 = arith.addf %723, %730 : vector<8x128xf32>
      %cst_105 = arith.constant 0.00999999977 : f32
      %732 = vector.broadcast %cst_105 : f32 to vector<8x128xf32>
      %733 = arith.mulf %732, %727 : vector<8x128xf32>
      %734 = arith.maximumf %727, %733 : vector<8x128xf32>
      %cst_106 = arith.constant 0.00999999977 : f32
      %735 = vector.broadcast %cst_106 : f32 to vector<8x128xf32>
      %736 = arith.mulf %735, %731 : vector<8x128xf32>
      %737 = arith.maximumf %731, %736 : vector<8x128xf32>
      %c142 = arith.constant 142 : index
      %738 = memref.load %arg1[%c142] : memref<543xf32, #tpu.memory_space<smem>>
      %739 = vector.broadcast %738 : f32 to vector<8x128xf32>
      %c140 = arith.constant 140 : index
      %740 = memref.load %arg1[%c140] : memref<543xf32, #tpu.memory_space<smem>>
      %741 = vector.broadcast %740 : f32 to vector<8x128xf32>
      %742 = arith.mulf %734, %741 : vector<8x128xf32>
      %743 = arith.addf %739, %742 : vector<8x128xf32>
      %c141 = arith.constant 141 : index
      %744 = memref.load %arg1[%c141] : memref<543xf32, #tpu.memory_space<smem>>
      %745 = vector.broadcast %744 : f32 to vector<8x128xf32>
      %746 = arith.mulf %737, %745 : vector<8x128xf32>
      %747 = arith.addf %743, %746 : vector<8x128xf32>
      %cst_107 = arith.constant -1.000000e+00 : f32
      %cst_108 = arith.constant 1.000000e+00 : f32
      %748 = vector.broadcast %cst_107 : f32 to vector<8x128xf32>
      %749 = arith.maximumf %748, %747 : vector<8x128xf32>
      %750 = vector.broadcast %cst_108 : f32 to vector<8x128xf32>
      %751 = arith.minimumf %750, %749 : vector<8x128xf32>
      %c5_109 = arith.constant 5 : index
      %752 = arith.index_cast %4 : i32 to index
      %c0_110 = arith.constant 0 : index
      %753 = vector.load %arg2[%c5_109, %752, %c0_110] : memref<9x16x128xf32, #tpu.memory_space<vmem>>, vector<1x8x128xf32>
      %754 = vector.shape_cast %753 : vector<1x8x128xf32> to vector<8x128xf32>
      %755 = arith.subf %754, %751 : vector<8x128xf32>
      %cst_111 = arith.constant 1.000000e+00 : f32
      %756 = vector.broadcast %cst_111 : f32 to vector<8x128xf32>
      %757 = arith.addf %755, %756 : vector<8x128xf32>
      %cst_112 = arith.constant 5.000000e-01 : f32
      %758 = vector.broadcast %cst_112 : f32 to vector<8x128xf32>
      %759 = arith.mulf %757, %758 : vector<8x128xf32>
      %cst_113 = arith.constant 0.000000e+00 : f32
      %760 = vector.broadcast %cst_113 : f32 to vector<8x128xf32>
      %761 = arith.cmpf olt, %759, %760 : vector<8x128xf32>
      %762 = math.ceil %759 : vector<8x128xf32>
      %763 = math.floor %759 : vector<8x128xf32>
      %764 = arith.select %761, %762, %763 : vector<8x128xi1>, vector<8x128xf32>
      %cst_114 = arith.constant 2.000000e+00 : f32
      %765 = vector.broadcast %cst_114 : f32 to vector<8x128xf32>
      %766 = arith.mulf %765, %764 : vector<8x128xf32>
      %767 = arith.subf %757, %766 : vector<8x128xf32>
      %cst_115 = arith.constant 1.000000e+00 : f32
      %768 = vector.broadcast %cst_115 : f32 to vector<8x128xf32>
      %769 = arith.subf %767, %768 : vector<8x128xf32>
      %c4_116 = arith.constant 4 : index
      %770 = arith.index_cast %4 : i32 to index
      %c0_117 = arith.constant 0 : index
      %771 = vector.load %arg3[%c4_116, %770, %c0_117] : memref<8x16x128xf32, #tpu.memory_space<vmem>>, vector<1x8x128xf32>
      %772 = vector.shape_cast %771 : vector<1x8x128xf32> to vector<8x128xf32>
      %773 = vector.shape_cast %769 : vector<8x128xf32> to vector<1x8x128xf32>
      tpu.vector_store %arg3[%c4_116, %770, %c0_117], %773 {strides = array<i32>} : memref<8x16x128xf32, #tpu.memory_space<vmem>>, vector<1x8x128xf32>,
      %c209 = arith.constant 209 : index
      %774 = memref.load %arg1[%c209] : memref<543xf32, #tpu.memory_space<smem>>
      %775 = vector.broadcast %774 : f32 to vector<8x128xf32>
      %c210 = arith.constant 210 : index
      %776 = memref.load %arg1[%c210] : memref<543xf32, #tpu.memory_space<smem>>
      %777 = vector.broadcast %776 : f32 to vector<8x128xf32>
      %c211 = arith.constant 211 : index
      %778 = memref.load %arg1[%c211] : memref<543xf32, #tpu.memory_space<smem>>
      %779 = vector.broadcast %778 : f32 to vector<8x128xf32>
      %c212 = arith.constant 212 : index
      %780 = memref.load %arg1[%c212] : memref<543xf32, #tpu.memory_space<smem>>
      %781 = vector.broadcast %780 : f32 to vector<8x128xf32>
      %c213 = arith.constant 213 : index
      %782 = memref.load %arg1[%c213] : memref<543xf32, #tpu.memory_space<smem>>
      %783 = vector.broadcast %782 : f32 to vector<8x128xf32>
      %c214 = arith.constant 214 : index
      %784 = memref.load %arg1[%c214] : memref<543xf32, #tpu.memory_space<smem>>
      %785 = vector.broadcast %784 : f32 to vector<8x128xf32>
      %c0_118 = arith.constant 0 : index
      %786 = arith.index_cast %4 : i32 to index
      %c0_119 = arith.constant 0 : index
      %787 = vector.load %arg2[%c0_118, %786, %c0_119] : memref<9x16x128xf32, #tpu.memory_space<vmem>>, vector<1x8x128xf32>
      %788 = vector.shape_cast %787 : vector<1x8x128xf32> to vector<8x128xf32>
      %c143 = arith.constant 143 : index
      %789 = memref.load %arg1[%c143] : memref<543xf32, #tpu.memory_space<smem>>
      %790 = vector.broadcast %789 : f32 to vector<8x128xf32>
      %791 = arith.mulf %788, %790 : vector<8x128xf32>
      %792 = arith.addf %775, %791 : vector<8x128xf32>
      %c144 = arith.constant 144 : index
      %793 = memref.load %arg1[%c144] : memref<543xf32, #tpu.memory_space<smem>>
      %794 = vector.broadcast %793 : f32 to vector<8x128xf32>
      %795 = arith.mulf %788, %794 : vector<8x128xf32>
      %796 = arith.addf %777, %795 : vector<8x128xf32>
      %c145 = arith.constant 145 : index
      %797 = memref.load %arg1[%c145] : memref<543xf32, #tpu.memory_space<smem>>
      %798 = vector.broadcast %797 : f32 to vector<8x128xf32>
      %799 = arith.mulf %788, %798 : vector<8x128xf32>
      %800 = arith.addf %779, %799 : vector<8x128xf32>
      %c146 = arith.constant 146 : index
      %801 = memref.load %arg1[%c146] : memref<543xf32, #tpu.memory_space<smem>>
      %802 = vector.broadcast %801 : f32 to vector<8x128xf32>
      %803 = arith.mulf %788, %802 : vector<8x128xf32>
      %804 = arith.addf %781, %803 : vector<8x128xf32>
      %c147 = arith.constant 147 : index
      %805 = memref.load %arg1[%c147] : memref<543xf32, #tpu.memory_space<smem>>
      %806 = vector.broadcast %805 : f32 to vector<8x128xf32>
      %807 = arith.mulf %788, %806 : vector<8x128xf32>
      %808 = arith.addf %783, %807 : vector<8x128xf32>
      %c148 = arith.constant 148 : index
      %809 = memref.load %arg1[%c148] : memref<543xf32, #tpu.memory_space<smem>>
      %810 = vector.broadcast %809 : f32 to vector<8x128xf32>
      %811 = arith.mulf %788, %810 : vector<8x128xf32>
      %812 = arith.addf %785, %811 : vector<8x128xf32>
      %c1_120 = arith.constant 1 : index
      %813 = arith.index_cast %4 : i32 to index
      %c0_121 = arith.constant 0 : index
      %814 = vector.load %arg2[%c1_120, %813, %c0_121] : memref<9x16x128xf32, #tpu.memory_space<vmem>>, vector<1x8x128xf32>
      %815 = vector.shape_cast %814 : vector<1x8x128xf32> to vector<8x128xf32>
      %c149 = arith.constant 149 : index
      %816 = memref.load %arg1[%c149] : memref<543xf32, #tpu.memory_space<smem>>
      %817 = vector.broadcast %816 : f32 to vector<8x128xf32>
      %818 = arith.mulf %815, %817 : vector<8x128xf32>
      %819 = arith.addf %792, %818 : vector<8x128xf32>
      %c150 = arith.constant 150 : index
      %820 = memref.load %arg1[%c150] : memref<543xf32, #tpu.memory_space<smem>>
      %821 = vector.broadcast %820 : f32 to vector<8x128xf32>
      %822 = arith.mulf %815, %821 : vector<8x128xf32>
      %823 = arith.addf %796, %822 : vector<8x128xf32>
      %c151 = arith.constant 151 : index
      %824 = memref.load %arg1[%c151] : memref<543xf32, #tpu.memory_space<smem>>
      %825 = vector.broadcast %824 : f32 to vector<8x128xf32>
      %826 = arith.mulf %815, %825 : vector<8x128xf32>
      %827 = arith.addf %800, %826 : vector<8x128xf32>
      %c152 = arith.constant 152 : index
      %828 = memref.load %arg1[%c152] : memref<543xf32, #tpu.memory_space<smem>>
      %829 = vector.broadcast %828 : f32 to vector<8x128xf32>
      %830 = arith.mulf %815, %829 : vector<8x128xf32>
      %831 = arith.addf %804, %830 : vector<8x128xf32>
      %c153 = arith.constant 153 : index
      %832 = memref.load %arg1[%c153] : memref<543xf32, #tpu.memory_space<smem>>
      %833 = vector.broadcast %832 : f32 to vector<8x128xf32>
      %834 = arith.mulf %815, %833 : vector<8x128xf32>
      %835 = arith.addf %808, %834 : vector<8x128xf32>
      %c154 = arith.constant 154 : index
      %836 = memref.load %arg1[%c154] : memref<543xf32, #tpu.memory_space<smem>>
      %837 = vector.broadcast %836 : f32 to vector<8x128xf32>
      %838 = arith.mulf %815, %837 : vector<8x128xf32>
      %839 = arith.addf %812, %838 : vector<8x128xf32>
      %c2_122 = arith.constant 2 : index
      %840 = arith.index_cast %4 : i32 to index
      %c0_123 = arith.constant 0 : index
      %841 = vector.load %arg2[%c2_122, %840, %c0_123] : memref<9x16x128xf32, #tpu.memory_space<vmem>>, vector<1x8x128xf32>
      %842 = vector.shape_cast %841 : vector<1x8x128xf32> to vector<8x128xf32>
      %c155 = arith.constant 155 : index
      %843 = memref.load %arg1[%c155] : memref<543xf32, #tpu.memory_space<smem>>
      %844 = vector.broadcast %843 : f32 to vector<8x128xf32>
      %845 = arith.mulf %842, %844 : vector<8x128xf32>
      %846 = arith.addf %819, %845 : vector<8x128xf32>
      %c156 = arith.constant 156 : index
      %847 = memref.load %arg1[%c156] : memref<543xf32, #tpu.memory_space<smem>>
      %848 = vector.broadcast %847 : f32 to vector<8x128xf32>
      %849 = arith.mulf %842, %848 : vector<8x128xf32>
      %850 = arith.addf %823, %849 : vector<8x128xf32>
      %c157 = arith.constant 157 : index
      %851 = memref.load %arg1[%c157] : memref<543xf32, #tpu.memory_space<smem>>
      %852 = vector.broadcast %851 : f32 to vector<8x128xf32>
      %853 = arith.mulf %842, %852 : vector<8x128xf32>
      %854 = arith.addf %827, %853 : vector<8x128xf32>
      %c158 = arith.constant 158 : index
      %855 = memref.load %arg1[%c158] : memref<543xf32, #tpu.memory_space<smem>>
      %856 = vector.broadcast %855 : f32 to vector<8x128xf32>
      %857 = arith.mulf %842, %856 : vector<8x128xf32>
      %858 = arith.addf %831, %857 : vector<8x128xf32>
      %c159 = arith.constant 159 : index
      %859 = memref.load %arg1[%c159] : memref<543xf32, #tpu.memory_space<smem>>
      %860 = vector.broadcast %859 : f32 to vector<8x128xf32>
      %861 = arith.mulf %842, %860 : vector<8x128xf32>
      %862 = arith.addf %835, %861 : vector<8x128xf32>
      %c160 = arith.constant 160 : index
      %863 = memref.load %arg1[%c160] : memref<543xf32, #tpu.memory_space<smem>>
      %864 = vector.broadcast %863 : f32 to vector<8x128xf32>
      %865 = arith.mulf %842, %864 : vector<8x128xf32>
      %866 = arith.addf %839, %865 : vector<8x128xf32>
      %c3_124 = arith.constant 3 : index
      %867 = arith.index_cast %4 : i32 to index
      %c0_125 = arith.constant 0 : index
      %868 = vector.load %arg2[%c3_124, %867, %c0_125] : memref<9x16x128xf32, #tpu.memory_space<vmem>>, vector<1x8x128xf32>
      %869 = vector.shape_cast %868 : vector<1x8x128xf32> to vector<8x128xf32>
      %c161 = arith.constant 161 : index
      %870 = memref.load %arg1[%c161] : memref<543xf32, #tpu.memory_space<smem>>
      %871 = vector.broadcast %870 : f32 to vector<8x128xf32>
      %872 = arith.mulf %869, %871 : vector<8x128xf32>
      %873 = arith.addf %846, %872 : vector<8x128xf32>
      %c162 = arith.constant 162 : index
      %874 = memref.load %arg1[%c162] : memref<543xf32, #tpu.memory_space<smem>>
      %875 = vector.broadcast %874 : f32 to vector<8x128xf32>
      %876 = arith.mulf %869, %875 : vector<8x128xf32>
      %877 = arith.addf %850, %876 : vector<8x128xf32>
      %c163 = arith.constant 163 : index
      %878 = memref.load %arg1[%c163] : memref<543xf32, #tpu.memory_space<smem>>
      %879 = vector.broadcast %878 : f32 to vector<8x128xf32>
      %880 = arith.mulf %869, %879 : vector<8x128xf32>
      %881 = arith.addf %854, %880 : vector<8x128xf32>
      %c164 = arith.constant 164 : index
      %882 = memref.load %arg1[%c164] : memref<543xf32, #tpu.memory_space<smem>>
      %883 = vector.broadcast %882 : f32 to vector<8x128xf32>
      %884 = arith.mulf %869, %883 : vector<8x128xf32>
      %885 = arith.addf %858, %884 : vector<8x128xf32>
      %c165 = arith.constant 165 : index
      %886 = memref.load %arg1[%c165] : memref<543xf32, #tpu.memory_space<smem>>
      %887 = vector.broadcast %886 : f32 to vector<8x128xf32>
      %888 = arith.mulf %869, %887 : vector<8x128xf32>
      %889 = arith.addf %862, %888 : vector<8x128xf32>
      %c166 = arith.constant 166 : index
      %890 = memref.load %arg1[%c166] : memref<543xf32, #tpu.memory_space<smem>>
      %891 = vector.broadcast %890 : f32 to vector<8x128xf32>
      %892 = arith.mulf %869, %891 : vector<8x128xf32>
      %893 = arith.addf %866, %892 : vector<8x128xf32>
      %c4_126 = arith.constant 4 : index
      %894 = arith.index_cast %4 : i32 to index
      %c0_127 = arith.constant 0 : index
      %895 = vector.load %arg2[%c4_126, %894, %c0_127] : memref<9x16x128xf32, #tpu.memory_space<vmem>>, vector<1x8x128xf32>
      %896 = vector.shape_cast %895 : vector<1x8x128xf32> to vector<8x128xf32>
      %c167 = arith.constant 167 : index
      %897 = memref.load %arg1[%c167] : memref<543xf32, #tpu.memory_space<smem>>
      %898 = vector.broadcast %897 : f32 to vector<8x128xf32>
      %899 = arith.mulf %896, %898 : vector<8x128xf32>
      %900 = arith.addf %873, %899 : vector<8x128xf32>
      %c168 = arith.constant 168 : index
      %901 = memref.load %arg1[%c168] : memref<543xf32, #tpu.memory_space<smem>>
      %902 = vector.broadcast %901 : f32 to vector<8x128xf32>
      %903 = arith.mulf %896, %902 : vector<8x128xf32>
      %904 = arith.addf %877, %903 : vector<8x128xf32>
      %c169 = arith.constant 169 : index
      %905 = memref.load %arg1[%c169] : memref<543xf32, #tpu.memory_space<smem>>
      %906 = vector.broadcast %905 : f32 to vector<8x128xf32>
      %907 = arith.mulf %896, %906 : vector<8x128xf32>
      %908 = arith.addf %881, %907 : vector<8x128xf32>
      %c170 = arith.constant 170 : index
      %909 = memref.load %arg1[%c170] : memref<543xf32, #tpu.memory_space<smem>>
      %910 = vector.broadcast %909 : f32 to vector<8x128xf32>
      %911 = arith.mulf %896, %910 : vector<8x128xf32>
      %912 = arith.addf %885, %911 : vector<8x128xf32>
      %c171 = arith.constant 171 : index
      %913 = memref.load %arg1[%c171] : memref<543xf32, #tpu.memory_space<smem>>
      %914 = vector.broadcast %913 : f32 to vector<8x128xf32>
      %915 = arith.mulf %896, %914 : vector<8x128xf32>
      %916 = arith.addf %889, %915 : vector<8x128xf32>
      %c172 = arith.constant 172 : index
      %917 = memref.load %arg1[%c172] : memref<543xf32, #tpu.memory_space<smem>>
      %918 = vector.broadcast %917 : f32 to vector<8x128xf32>
      %919 = arith.mulf %896, %918 : vector<8x128xf32>
      %920 = arith.addf %893, %919 : vector<8x128xf32>
      %c5_128 = arith.constant 5 : index
      %921 = arith.index_cast %4 : i32 to index
      %c0_129 = arith.constant 0 : index
      %922 = vector.load %arg2[%c5_128, %921, %c0_129] : memref<9x16x128xf32, #tpu.memory_space<vmem>>, vector<1x8x128xf32>
      %923 = vector.shape_cast %922 : vector<1x8x128xf32> to vector<8x128xf32>
      %c173 = arith.constant 173 : index
      %924 = memref.load %arg1[%c173] : memref<543xf32, #tpu.memory_space<smem>>
      %925 = vector.broadcast %924 : f32 to vector<8x128xf32>
      %926 = arith.mulf %923, %925 : vector<8x128xf32>
      %927 = arith.addf %900, %926 : vector<8x128xf32>
      %c174 = arith.constant 174 : index
      %928 = memref.load %arg1[%c174] : memref<543xf32, #tpu.memory_space<smem>>
      %929 = vector.broadcast %928 : f32 to vector<8x128xf32>
      %930 = arith.mulf %923, %929 : vector<8x128xf32>
      %931 = arith.addf %904, %930 : vector<8x128xf32>
      %c175 = arith.constant 175 : index
      %932 = memref.load %arg1[%c175] : memref<543xf32, #tpu.memory_space<smem>>
      %933 = vector.broadcast %932 : f32 to vector<8x128xf32>
      %934 = arith.mulf %923, %933 : vector<8x128xf32>
      %935 = arith.addf %908, %934 : vector<8x128xf32>
      %c176 = arith.constant 176 : index
      %936 = memref.load %arg1[%c176] : memref<543xf32, #tpu.memory_space<smem>>
      %937 = vector.broadcast %936 : f32 to vector<8x128xf32>
      %938 = arith.mulf %923, %937 : vector<8x128xf32>
      %939 = arith.addf %912, %938 : vector<8x128xf32>
      %c177 = arith.constant 177 : index
      %940 = memref.load %arg1[%c177] : memref<543xf32, #tpu.memory_space<smem>>
      %941 = vector.broadcast %940 : f32 to vector<8x128xf32>
      %942 = arith.mulf %923, %941 : vector<8x128xf32>
      %943 = arith.addf %916, %942 : vector<8x128xf32>
      %c178 = arith.constant 178 : index
      %944 = memref.load %arg1[%c178] : memref<543xf32, #tpu.memory_space<smem>>
      %945 = vector.broadcast %944 : f32 to vector<8x128xf32>
      %946 = arith.mulf %923, %945 : vector<8x128xf32>
      %947 = arith.addf %920, %946 : vector<8x128xf32>
      %c0_130 = arith.constant 0 : index
      %948 = arith.index_cast %4 : i32 to index
      %c0_131 = arith.constant 0 : index
      %949 = vector.load %arg3[%c0_130, %948, %c0_131] : memref<8x16x128xf32, #tpu.memory_space<vmem>>, vector<1x8x128xf32>
      %950 = vector.shape_cast %949 : vector<1x8x128xf32> to vector<8x128xf32>
      %c179 = arith.constant 179 : index
      %951 = memref.load %arg1[%c179] : memref<543xf32, #tpu.memory_space<smem>>
      %952 = vector.broadcast %951 : f32 to vector<8x128xf32>
      %953 = arith.mulf %950, %952 : vector<8x128xf32>
      %954 = arith.addf %927, %953 : vector<8x128xf32>
      %c180 = arith.constant 180 : index
      %955 = memref.load %arg1[%c180] : memref<543xf32, #tpu.memory_space<smem>>
      %956 = vector.broadcast %955 : f32 to vector<8x128xf32>
      %957 = arith.mulf %950, %956 : vector<8x128xf32>
      %958 = arith.addf %931, %957 : vector<8x128xf32>
      %c181 = arith.constant 181 : index
      %959 = memref.load %arg1[%c181] : memref<543xf32, #tpu.memory_space<smem>>
      %960 = vector.broadcast %959 : f32 to vector<8x128xf32>
      %961 = arith.mulf %950, %960 : vector<8x128xf32>
      %962 = arith.addf %935, %961 : vector<8x128xf32>
      %c182 = arith.constant 182 : index
      %963 = memref.load %arg1[%c182] : memref<543xf32, #tpu.memory_space<smem>>
      %964 = vector.broadcast %963 : f32 to vector<8x128xf32>
      %965 = arith.mulf %950, %964 : vector<8x128xf32>
      %966 = arith.addf %939, %965 : vector<8x128xf32>
      %c183 = arith.constant 183 : index
      %967 = memref.load %arg1[%c183] : memref<543xf32, #tpu.memory_space<smem>>
      %968 = vector.broadcast %967 : f32 to vector<8x128xf32>
      %969 = arith.mulf %950, %968 : vector<8x128xf32>
      %970 = arith.addf %943, %969 : vector<8x128xf32>
      %c184 = arith.constant 184 : index
      %971 = memref.load %arg1[%c184] : memref<543xf32, #tpu.memory_space<smem>>
      %972 = vector.broadcast %971 : f32 to vector<8x128xf32>
      %973 = arith.mulf %950, %972 : vector<8x128xf32>
      %974 = arith.addf %947, %973 : vector<8x128xf32>
      %c1_132 = arith.constant 1 : index
      %975 = arith.index_cast %4 : i32 to index
      %c0_133 = arith.constant 0 : index
      %976 = vector.load %arg3[%c1_132, %975, %c0_133] : memref<8x16x128xf32, #tpu.memory_space<vmem>>, vector<1x8x128xf32>
      %977 = vector.shape_cast %976 : vector<1x8x128xf32> to vector<8x128xf32>
      %c185 = arith.constant 185 : index
      %978 = memref.load %arg1[%c185] : memref<543xf32, #tpu.memory_space<smem>>
      %979 = vector.broadcast %978 : f32 to vector<8x128xf32>
      %980 = arith.mulf %977, %979 : vector<8x128xf32>
      %981 = arith.addf %954, %980 : vector<8x128xf32>
      %c186 = arith.constant 186 : index
      %982 = memref.load %arg1[%c186] : memref<543xf32, #tpu.memory_space<smem>>
      %983 = vector.broadcast %982 : f32 to vector<8x128xf32>
      %984 = arith.mulf %977, %983 : vector<8x128xf32>
      %985 = arith.addf %958, %984 : vector<8x128xf32>
      %c187 = arith.constant 187 : index
      %986 = memref.load %arg1[%c187] : memref<543xf32, #tpu.memory_space<smem>>
      %987 = vector.broadcast %986 : f32 to vector<8x128xf32>
      %988 = arith.mulf %977, %987 : vector<8x128xf32>
      %989 = arith.addf %962, %988 : vector<8x128xf32>
      %c188 = arith.constant 188 : index
      %990 = memref.load %arg1[%c188] : memref<543xf32, #tpu.memory_space<smem>>
      %991 = vector.broadcast %990 : f32 to vector<8x128xf32>
      %992 = arith.mulf %977, %991 : vector<8x128xf32>
      %993 = arith.addf %966, %992 : vector<8x128xf32>
      %c189 = arith.constant 189 : index
      %994 = memref.load %arg1[%c189] : memref<543xf32, #tpu.memory_space<smem>>
      %995 = vector.broadcast %994 : f32 to vector<8x128xf32>
      %996 = arith.mulf %977, %995 : vector<8x128xf32>
      %997 = arith.addf %970, %996 : vector<8x128xf32>
      %c190 = arith.constant 190 : index
      %998 = memref.load %arg1[%c190] : memref<543xf32, #tpu.memory_space<smem>>
      %999 = vector.broadcast %998 : f32 to vector<8x128xf32>
      %1000 = arith.mulf %977, %999 : vector<8x128xf32>
      %1001 = arith.addf %974, %1000 : vector<8x128xf32>
      %c2_134 = arith.constant 2 : index
      %1002 = arith.index_cast %4 : i32 to index
      %c0_135 = arith.constant 0 : index
      %1003 = vector.load %arg3[%c2_134, %1002, %c0_135] : memref<8x16x128xf32, #tpu.memory_space<vmem>>, vector<1x8x128xf32>
      %1004 = vector.shape_cast %1003 : vector<1x8x128xf32> to vector<8x128xf32>
      %c191 = arith.constant 191 : index
      %1005 = memref.load %arg1[%c191] : memref<543xf32, #tpu.memory_space<smem>>
      %1006 = vector.broadcast %1005 : f32 to vector<8x128xf32>
      %1007 = arith.mulf %1004, %1006 : vector<8x128xf32>
      %1008 = arith.addf %981, %1007 : vector<8x128xf32>
      %c192 = arith.constant 192 : index
      %1009 = memref.load %arg1[%c192] : memref<543xf32, #tpu.memory_space<smem>>
      %1010 = vector.broadcast %1009 : f32 to vector<8x128xf32>
      %1011 = arith.mulf %1004, %1010 : vector<8x128xf32>
      %1012 = arith.addf %985, %1011 : vector<8x128xf32>
      %c193 = arith.constant 193 : index
      %1013 = memref.load %arg1[%c193] : memref<543xf32, #tpu.memory_space<smem>>
      %1014 = vector.broadcast %1013 : f32 to vector<8x128xf32>
      %1015 = arith.mulf %1004, %1014 : vector<8x128xf32>
      %1016 = arith.addf %989, %1015 : vector<8x128xf32>
      %c194 = arith.constant 194 : index
      %1017 = memref.load %arg1[%c194] : memref<543xf32, #tpu.memory_space<smem>>
      %1018 = vector.broadcast %1017 : f32 to vector<8x128xf32>
      %1019 = arith.mulf %1004, %1018 : vector<8x128xf32>
      %1020 = arith.addf %993, %1019 : vector<8x128xf32>
      %c195 = arith.constant 195 : index
      %1021 = memref.load %arg1[%c195] : memref<543xf32, #tpu.memory_space<smem>>
      %1022 = vector.broadcast %1021 : f32 to vector<8x128xf32>
      %1023 = arith.mulf %1004, %1022 : vector<8x128xf32>
      %1024 = arith.addf %997, %1023 : vector<8x128xf32>
      %c196 = arith.constant 196 : index
      %1025 = memref.load %arg1[%c196] : memref<543xf32, #tpu.memory_space<smem>>
      %1026 = vector.broadcast %1025 : f32 to vector<8x128xf32>
      %1027 = arith.mulf %1004, %1026 : vector<8x128xf32>
      %1028 = arith.addf %1001, %1027 : vector<8x128xf32>
      %c3_136 = arith.constant 3 : index
      %1029 = arith.index_cast %4 : i32 to index
      %c0_137 = arith.constant 0 : index
      %1030 = vector.load %arg3[%c3_136, %1029, %c0_137] : memref<8x16x128xf32, #tpu.memory_space<vmem>>, vector<1x8x128xf32>
      %1031 = vector.shape_cast %1030 : vector<1x8x128xf32> to vector<8x128xf32>
      %c197 = arith.constant 197 : index
      %1032 = memref.load %arg1[%c197] : memref<543xf32, #tpu.memory_space<smem>>
      %1033 = vector.broadcast %1032 : f32 to vector<8x128xf32>
      %1034 = arith.mulf %1031, %1033 : vector<8x128xf32>
      %1035 = arith.addf %1008, %1034 : vector<8x128xf32>
      %c198 = arith.constant 198 : index
      %1036 = memref.load %arg1[%c198] : memref<543xf32, #tpu.memory_space<smem>>
      %1037 = vector.broadcast %1036 : f32 to vector<8x128xf32>
      %1038 = arith.mulf %1031, %1037 : vector<8x128xf32>
      %1039 = arith.addf %1012, %1038 : vector<8x128xf32>
      %c199 = arith.constant 199 : index
      %1040 = memref.load %arg1[%c199] : memref<543xf32, #tpu.memory_space<smem>>
      %1041 = vector.broadcast %1040 : f32 to vector<8x128xf32>
      %1042 = arith.mulf %1031, %1041 : vector<8x128xf32>
      %1043 = arith.addf %1016, %1042 : vector<8x128xf32>
      %c200 = arith.constant 200 : index
      %1044 = memref.load %arg1[%c200] : memref<543xf32, #tpu.memory_space<smem>>
      %1045 = vector.broadcast %1044 : f32 to vector<8x128xf32>
      %1046 = arith.mulf %1031, %1045 : vector<8x128xf32>
      %1047 = arith.addf %1020, %1046 : vector<8x128xf32>
      %c201 = arith.constant 201 : index
      %1048 = memref.load %arg1[%c201] : memref<543xf32, #tpu.memory_space<smem>>
      %1049 = vector.broadcast %1048 : f32 to vector<8x128xf32>
      %1050 = arith.mulf %1031, %1049 : vector<8x128xf32>
      %1051 = arith.addf %1024, %1050 : vector<8x128xf32>
      %c202 = arith.constant 202 : index
      %1052 = memref.load %arg1[%c202] : memref<543xf32, #tpu.memory_space<smem>>
      %1053 = vector.broadcast %1052 : f32 to vector<8x128xf32>
      %1054 = arith.mulf %1031, %1053 : vector<8x128xf32>
      %1055 = arith.addf %1028, %1054 : vector<8x128xf32>
      %c4_138 = arith.constant 4 : index
      %1056 = arith.index_cast %4 : i32 to index
      %c0_139 = arith.constant 0 : index
      %1057 = vector.load %arg3[%c4_138, %1056, %c0_139] : memref<8x16x128xf32, #tpu.memory_space<vmem>>, vector<1x8x128xf32>
      %1058 = vector.shape_cast %1057 : vector<1x8x128xf32> to vector<8x128xf32>
      %c203 = arith.constant 203 : index
      %1059 = memref.load %arg1[%c203] : memref<543xf32, #tpu.memory_space<smem>>
      %1060 = vector.broadcast %1059 : f32 to vector<8x128xf32>
      %1061 = arith.mulf %1058, %1060 : vector<8x128xf32>
      %1062 = arith.addf %1035, %1061 : vector<8x128xf32>
      %c204 = arith.constant 204 : index
      %1063 = memref.load %arg1[%c204] : memref<543xf32, #tpu.memory_space<smem>>
      %1064 = vector.broadcast %1063 : f32 to vector<8x128xf32>
      %1065 = arith.mulf %1058, %1064 : vector<8x128xf32>
      %1066 = arith.addf %1039, %1065 : vector<8x128xf32>
      %c205 = arith.constant 205 : index
      %1067 = memref.load %arg1[%c205] : memref<543xf32, #tpu.memory_space<smem>>
      %1068 = vector.broadcast %1067 : f32 to vector<8x128xf32>
      %1069 = arith.mulf %1058, %1068 : vector<8x128xf32>
      %1070 = arith.addf %1043, %1069 : vector<8x128xf32>
      %c206 = arith.constant 206 : index
      %1071 = memref.load %arg1[%c206] : memref<543xf32, #tpu.memory_space<smem>>
      %1072 = vector.broadcast %1071 : f32 to vector<8x128xf32>
      %1073 = arith.mulf %1058, %1072 : vector<8x128xf32>
      %1074 = arith.addf %1047, %1073 : vector<8x128xf32>
      %c207 = arith.constant 207 : index
      %1075 = memref.load %arg1[%c207] : memref<543xf32, #tpu.memory_space<smem>>
      %1076 = vector.broadcast %1075 : f32 to vector<8x128xf32>
      %1077 = arith.mulf %1058, %1076 : vector<8x128xf32>
      %1078 = arith.addf %1051, %1077 : vector<8x128xf32>
      %c208 = arith.constant 208 : index
      %1079 = memref.load %arg1[%c208] : memref<543xf32, #tpu.memory_space<smem>>
      %1080 = vector.broadcast %1079 : f32 to vector<8x128xf32>
      %1081 = arith.mulf %1058, %1080 : vector<8x128xf32>
      %1082 = arith.addf %1055, %1081 : vector<8x128xf32>
      %cst_140 = arith.constant 0.00999999977 : f32
      %1083 = vector.broadcast %cst_140 : f32 to vector<8x128xf32>
      %1084 = arith.mulf %1083, %1062 : vector<8x128xf32>
      %1085 = arith.maximumf %1062, %1084 : vector<8x128xf32>
      %cst_141 = arith.constant 0.00999999977 : f32
      %1086 = vector.broadcast %cst_141 : f32 to vector<8x128xf32>
      %1087 = arith.mulf %1086, %1066 : vector<8x128xf32>
      %1088 = arith.maximumf %1066, %1087 : vector<8x128xf32>
      %cst_142 = arith.constant 0.00999999977 : f32
      %1089 = vector.broadcast %cst_142 : f32 to vector<8x128xf32>
      %1090 = arith.mulf %1089, %1070 : vector<8x128xf32>
      %1091 = arith.maximumf %1070, %1090 : vector<8x128xf32>
      %cst_143 = arith.constant 0.00999999977 : f32
      %1092 = vector.broadcast %cst_143 : f32 to vector<8x128xf32>
      %1093 = arith.mulf %1092, %1074 : vector<8x128xf32>
      %1094 = arith.maximumf %1074, %1093 : vector<8x128xf32>
      %cst_144 = arith.constant 0.00999999977 : f32
      %1095 = vector.broadcast %cst_144 : f32 to vector<8x128xf32>
      %1096 = arith.mulf %1095, %1078 : vector<8x128xf32>
      %1097 = arith.maximumf %1078, %1096 : vector<8x128xf32>
      %cst_145 = arith.constant 0.00999999977 : f32
      %1098 = vector.broadcast %cst_145 : f32 to vector<8x128xf32>
      %1099 = arith.mulf %1098, %1082 : vector<8x128xf32>
      %1100 = arith.maximumf %1082, %1099 : vector<8x128xf32>
      %c233 = arith.constant 233 : index
      %1101 = memref.load %arg1[%c233] : memref<543xf32, #tpu.memory_space<smem>>
      %1102 = vector.broadcast %1101 : f32 to vector<8x128xf32>
      %c234 = arith.constant 234 : index
      %1103 = memref.load %arg1[%c234] : memref<543xf32, #tpu.memory_space<smem>>
      %1104 = vector.broadcast %1103 : f32 to vector<8x128xf32>
      %c235 = arith.constant 235 : index
      %1105 = memref.load %arg1[%c235] : memref<543xf32, #tpu.memory_space<smem>>
      %1106 = vector.broadcast %1105 : f32 to vector<8x128xf32>
      %c215 = arith.constant 215 : index
      %1107 = memref.load %arg1[%c215] : memref<543xf32, #tpu.memory_space<smem>>
      %1108 = vector.broadcast %1107 : f32 to vector<8x128xf32>
      %1109 = arith.mulf %1085, %1108 : vector<8x128xf32>
      %1110 = arith.addf %1102, %1109 : vector<8x128xf32>
      %c216 = arith.constant 216 : index
      %1111 = memref.load %arg1[%c216] : memref<543xf32, #tpu.memory_space<smem>>
      %1112 = vector.broadcast %1111 : f32 to vector<8x128xf32>
      %1113 = arith.mulf %1085, %1112 : vector<8x128xf32>
      %1114 = arith.addf %1104, %1113 : vector<8x128xf32>
      %c217 = arith.constant 217 : index
      %1115 = memref.load %arg1[%c217] : memref<543xf32, #tpu.memory_space<smem>>
      %1116 = vector.broadcast %1115 : f32 to vector<8x128xf32>
      %1117 = arith.mulf %1085, %1116 : vector<8x128xf32>
      %1118 = arith.addf %1106, %1117 : vector<8x128xf32>
      %c218 = arith.constant 218 : index
      %1119 = memref.load %arg1[%c218] : memref<543xf32, #tpu.memory_space<smem>>
      %1120 = vector.broadcast %1119 : f32 to vector<8x128xf32>
      %1121 = arith.mulf %1088, %1120 : vector<8x128xf32>
      %1122 = arith.addf %1110, %1121 : vector<8x128xf32>
      %c219 = arith.constant 219 : index
      %1123 = memref.load %arg1[%c219] : memref<543xf32, #tpu.memory_space<smem>>
      %1124 = vector.broadcast %1123 : f32 to vector<8x128xf32>
      %1125 = arith.mulf %1088, %1124 : vector<8x128xf32>
      %1126 = arith.addf %1114, %1125 : vector<8x128xf32>
      %c220 = arith.constant 220 : index
      %1127 = memref.load %arg1[%c220] : memref<543xf32, #tpu.memory_space<smem>>
      %1128 = vector.broadcast %1127 : f32 to vector<8x128xf32>
      %1129 = arith.mulf %1088, %1128 : vector<8x128xf32>
      %1130 = arith.addf %1118, %1129 : vector<8x128xf32>
      %c221 = arith.constant 221 : index
      %1131 = memref.load %arg1[%c221] : memref<543xf32, #tpu.memory_space<smem>>
      %1132 = vector.broadcast %1131 : f32 to vector<8x128xf32>
      %1133 = arith.mulf %1091, %1132 : vector<8x128xf32>
      %1134 = arith.addf %1122, %1133 : vector<8x128xf32>
      %c222 = arith.constant 222 : index
      %1135 = memref.load %arg1[%c222] : memref<543xf32, #tpu.memory_space<smem>>
      %1136 = vector.broadcast %1135 : f32 to vector<8x128xf32>
      %1137 = arith.mulf %1091, %1136 : vector<8x128xf32>
      %1138 = arith.addf %1126, %1137 : vector<8x128xf32>
      %c223 = arith.constant 223 : index
      %1139 = memref.load %arg1[%c223] : memref<543xf32, #tpu.memory_space<smem>>
      %1140 = vector.broadcast %1139 : f32 to vector<8x128xf32>
      %1141 = arith.mulf %1091, %1140 : vector<8x128xf32>
      %1142 = arith.addf %1130, %1141 : vector<8x128xf32>
      %c224 = arith.constant 224 : index
      %1143 = memref.load %arg1[%c224] : memref<543xf32, #tpu.memory_space<smem>>
      %1144 = vector.broadcast %1143 : f32 to vector<8x128xf32>
      %1145 = arith.mulf %1094, %1144 : vector<8x128xf32>
      %1146 = arith.addf %1134, %1145 : vector<8x128xf32>
      %c225 = arith.constant 225 : index
      %1147 = memref.load %arg1[%c225] : memref<543xf32, #tpu.memory_space<smem>>
      %1148 = vector.broadcast %1147 : f32 to vector<8x128xf32>
      %1149 = arith.mulf %1094, %1148 : vector<8x128xf32>
      %1150 = arith.addf %1138, %1149 : vector<8x128xf32>
      %c226 = arith.constant 226 : index
      %1151 = memref.load %arg1[%c226] : memref<543xf32, #tpu.memory_space<smem>>
      %1152 = vector.broadcast %1151 : f32 to vector<8x128xf32>
      %1153 = arith.mulf %1094, %1152 : vector<8x128xf32>
      %1154 = arith.addf %1142, %1153 : vector<8x128xf32>
      %c227 = arith.constant 227 : index
      %1155 = memref.load %arg1[%c227] : memref<543xf32, #tpu.memory_space<smem>>
      %1156 = vector.broadcast %1155 : f32 to vector<8x128xf32>
      %1157 = arith.mulf %1097, %1156 : vector<8x128xf32>
      %1158 = arith.addf %1146, %1157 : vector<8x128xf32>
      %c228 = arith.constant 228 : index
      %1159 = memref.load %arg1[%c228] : memref<543xf32, #tpu.memory_space<smem>>
      %1160 = vector.broadcast %1159 : f32 to vector<8x128xf32>
      %1161 = arith.mulf %1097, %1160 : vector<8x128xf32>
      %1162 = arith.addf %1150, %1161 : vector<8x128xf32>
      %c229 = arith.constant 229 : index
      %1163 = memref.load %arg1[%c229] : memref<543xf32, #tpu.memory_space<smem>>
      %1164 = vector.broadcast %1163 : f32 to vector<8x128xf32>
      %1165 = arith.mulf %1097, %1164 : vector<8x128xf32>
      %1166 = arith.addf %1154, %1165 : vector<8x128xf32>
      %c230 = arith.constant 230 : index
      %1167 = memref.load %arg1[%c230] : memref<543xf32, #tpu.memory_space<smem>>
      %1168 = vector.broadcast %1167 : f32 to vector<8x128xf32>
      %1169 = arith.mulf %1100, %1168 : vector<8x128xf32>
      %1170 = arith.addf %1158, %1169 : vector<8x128xf32>
      %c231 = arith.constant 231 : index
      %1171 = memref.load %arg1[%c231] : memref<543xf32, #tpu.memory_space<smem>>
      %1172 = vector.broadcast %1171 : f32 to vector<8x128xf32>
      %1173 = arith.mulf %1100, %1172 : vector<8x128xf32>
      %1174 = arith.addf %1162, %1173 : vector<8x128xf32>
      %c232 = arith.constant 232 : index
      %1175 = memref.load %arg1[%c232] : memref<543xf32, #tpu.memory_space<smem>>
      %1176 = vector.broadcast %1175 : f32 to vector<8x128xf32>
      %1177 = arith.mulf %1100, %1176 : vector<8x128xf32>
      %1178 = arith.addf %1166, %1177 : vector<8x128xf32>
      %cst_146 = arith.constant 0.00999999977 : f32
      %1179 = vector.broadcast %cst_146 : f32 to vector<8x128xf32>
      %1180 = arith.mulf %1179, %1170 : vector<8x128xf32>
      %1181 = arith.maximumf %1170, %1180 : vector<8x128xf32>
      %cst_147 = arith.constant 0.00999999977 : f32
      %1182 = vector.broadcast %cst_147 : f32 to vector<8x128xf32>
      %1183 = arith.mulf %1182, %1174 : vector<8x128xf32>
      %1184 = arith.maximumf %1174, %1183 : vector<8x128xf32>
      %cst_148 = arith.constant 0.00999999977 : f32
      %1185 = vector.broadcast %cst_148 : f32 to vector<8x128xf32>
      %1186 = arith.mulf %1185, %1178 : vector<8x128xf32>
      %1187 = arith.maximumf %1178, %1186 : vector<8x128xf32>
      %c239 = arith.constant 239 : index
      %1188 = memref.load %arg1[%c239] : memref<543xf32, #tpu.memory_space<smem>>
      %1189 = vector.broadcast %1188 : f32 to vector<8x128xf32>
      %c236 = arith.constant 236 : index
      %1190 = memref.load %arg1[%c236] : memref<543xf32, #tpu.memory_space<smem>>
      %1191 = vector.broadcast %1190 : f32 to vector<8x128xf32>
      %1192 = arith.mulf %1181, %1191 : vector<8x128xf32>
      %1193 = arith.addf %1189, %1192 : vector<8x128xf32>
      %c237 = arith.constant 237 : index
      %1194 = memref.load %arg1[%c237] : memref<543xf32, #tpu.memory_space<smem>>
      %1195 = vector.broadcast %1194 : f32 to vector<8x128xf32>
      %1196 = arith.mulf %1184, %1195 : vector<8x128xf32>
      %1197 = arith.addf %1193, %1196 : vector<8x128xf32>
      %c238 = arith.constant 238 : index
      %1198 = memref.load %arg1[%c238] : memref<543xf32, #tpu.memory_space<smem>>
      %1199 = vector.broadcast %1198 : f32 to vector<8x128xf32>
      %1200 = arith.mulf %1187, %1199 : vector<8x128xf32>
      %1201 = arith.addf %1197, %1200 : vector<8x128xf32>
      %cst_149 = arith.constant -1.000000e+00 : f32
      %cst_150 = arith.constant 1.000000e+00 : f32
      %1202 = vector.broadcast %cst_149 : f32 to vector<8x128xf32>
      %1203 = arith.maximumf %1202, %1201 : vector<8x128xf32>
      %1204 = vector.broadcast %cst_150 : f32 to vector<8x128xf32>
      %1205 = arith.minimumf %1204, %1203 : vector<8x128xf32>
      %c6_151 = arith.constant 6 : index
      %1206 = arith.index_cast %4 : i32 to index
      %c0_152 = arith.constant 0 : index
      %1207 = vector.load %arg2[%c6_151, %1206, %c0_152] : memref<9x16x128xf32, #tpu.memory_space<vmem>>, vector<1x8x128xf32>
      %1208 = vector.shape_cast %1207 : vector<1x8x128xf32> to vector<8x128xf32>
      %1209 = arith.subf %1208, %1205 : vector<8x128xf32>
      %cst_153 = arith.constant 1.000000e+00 : f32
      %1210 = vector.broadcast %cst_153 : f32 to vector<8x128xf32>
      %1211 = arith.addf %1209, %1210 : vector<8x128xf32>
      %cst_154 = arith.constant 5.000000e-01 : f32
      %1212 = vector.broadcast %cst_154 : f32 to vector<8x128xf32>
      %1213 = arith.mulf %1211, %1212 : vector<8x128xf32>
      %cst_155 = arith.constant 0.000000e+00 : f32
      %1214 = vector.broadcast %cst_155 : f32 to vector<8x128xf32>
      %1215 = arith.cmpf olt, %1213, %1214 : vector<8x128xf32>
      %1216 = math.ceil %1213 : vector<8x128xf32>
      %1217 = math.floor %1213 : vector<8x128xf32>
      %1218 = arith.select %1215, %1216, %1217 : vector<8x128xi1>, vector<8x128xf32>
      %cst_156 = arith.constant 2.000000e+00 : f32
      %1219 = vector.broadcast %cst_156 : f32 to vector<8x128xf32>
      %1220 = arith.mulf %1219, %1218 : vector<8x128xf32>
      %1221 = arith.subf %1211, %1220 : vector<8x128xf32>
      %cst_157 = arith.constant 1.000000e+00 : f32
      %1222 = vector.broadcast %cst_157 : f32 to vector<8x128xf32>
      %1223 = arith.subf %1221, %1222 : vector<8x128xf32>
      %c5_158 = arith.constant 5 : index
      %1224 = arith.index_cast %4 : i32 to index
      %c0_159 = arith.constant 0 : index
      %1225 = vector.load %arg3[%c5_158, %1224, %c0_159] : memref<8x16x128xf32, #tpu.memory_space<vmem>>, vector<1x8x128xf32>
      %1226 = vector.shape_cast %1225 : vector<1x8x128xf32> to vector<8x128xf32>
      %1227 = vector.shape_cast %1223 : vector<8x128xf32> to vector<1x8x128xf32>
      tpu.vector_store %arg3[%c5_158, %1224, %c0_159], %1227 {strides = array<i32>} : memref<8x16x128xf32, #tpu.memory_space<vmem>>, vector<1x8x128xf32>,
      %c331 = arith.constant 331 : index
      %1228 = memref.load %arg1[%c331] : memref<543xf32, #tpu.memory_space<smem>>
      %1229 = vector.broadcast %1228 : f32 to vector<8x128xf32>
      %c332 = arith.constant 332 : index
      %1230 = memref.load %arg1[%c332] : memref<543xf32, #tpu.memory_space<smem>>
      %1231 = vector.broadcast %1230 : f32 to vector<8x128xf32>
      %c333 = arith.constant 333 : index
      %1232 = memref.load %arg1[%c333] : memref<543xf32, #tpu.memory_space<smem>>
      %1233 = vector.broadcast %1232 : f32 to vector<8x128xf32>
      %c334 = arith.constant 334 : index
      %1234 = memref.load %arg1[%c334] : memref<543xf32, #tpu.memory_space<smem>>
      %1235 = vector.broadcast %1234 : f32 to vector<8x128xf32>
      %c335 = arith.constant 335 : index
      %1236 = memref.load %arg1[%c335] : memref<543xf32, #tpu.memory_space<smem>>
      %1237 = vector.broadcast %1236 : f32 to vector<8x128xf32>
      %c336 = arith.constant 336 : index
      %1238 = memref.load %arg1[%c336] : memref<543xf32, #tpu.memory_space<smem>>
      %1239 = vector.broadcast %1238 : f32 to vector<8x128xf32>
      %c337 = arith.constant 337 : index
      %1240 = memref.load %arg1[%c337] : memref<543xf32, #tpu.memory_space<smem>>
      %1241 = vector.broadcast %1240 : f32 to vector<8x128xf32>
      %c0_160 = arith.constant 0 : index
      %1242 = arith.index_cast %4 : i32 to index
      %c0_161 = arith.constant 0 : index
      %1243 = vector.load %arg2[%c0_160, %1242, %c0_161] : memref<9x16x128xf32, #tpu.memory_space<vmem>>, vector<1x8x128xf32>
      %1244 = vector.shape_cast %1243 : vector<1x8x128xf32> to vector<8x128xf32>
      %c240 = arith.constant 240 : index
      %1245 = memref.load %arg1[%c240] : memref<543xf32, #tpu.memory_space<smem>>
      %1246 = vector.broadcast %1245 : f32 to vector<8x128xf32>
      %1247 = arith.mulf %1244, %1246 : vector<8x128xf32>
      %1248 = arith.addf %1229, %1247 : vector<8x128xf32>
      %c241 = arith.constant 241 : index
      %1249 = memref.load %arg1[%c241] : memref<543xf32, #tpu.memory_space<smem>>
      %1250 = vector.broadcast %1249 : f32 to vector<8x128xf32>
      %1251 = arith.mulf %1244, %1250 : vector<8x128xf32>
      %1252 = arith.addf %1231, %1251 : vector<8x128xf32>
      %c242 = arith.constant 242 : index
      %1253 = memref.load %arg1[%c242] : memref<543xf32, #tpu.memory_space<smem>>
      %1254 = vector.broadcast %1253 : f32 to vector<8x128xf32>
      %1255 = arith.mulf %1244, %1254 : vector<8x128xf32>
      %1256 = arith.addf %1233, %1255 : vector<8x128xf32>
      %c243 = arith.constant 243 : index
      %1257 = memref.load %arg1[%c243] : memref<543xf32, #tpu.memory_space<smem>>
      %1258 = vector.broadcast %1257 : f32 to vector<8x128xf32>
      %1259 = arith.mulf %1244, %1258 : vector<8x128xf32>
      %1260 = arith.addf %1235, %1259 : vector<8x128xf32>
      %c244 = arith.constant 244 : index
      %1261 = memref.load %arg1[%c244] : memref<543xf32, #tpu.memory_space<smem>>
      %1262 = vector.broadcast %1261 : f32 to vector<8x128xf32>
      %1263 = arith.mulf %1244, %1262 : vector<8x128xf32>
      %1264 = arith.addf %1237, %1263 : vector<8x128xf32>
      %c245 = arith.constant 245 : index
      %1265 = memref.load %arg1[%c245] : memref<543xf32, #tpu.memory_space<smem>>
      %1266 = vector.broadcast %1265 : f32 to vector<8x128xf32>
      %1267 = arith.mulf %1244, %1266 : vector<8x128xf32>
      %1268 = arith.addf %1239, %1267 : vector<8x128xf32>
      %c246 = arith.constant 246 : index
      %1269 = memref.load %arg1[%c246] : memref<543xf32, #tpu.memory_space<smem>>
      %1270 = vector.broadcast %1269 : f32 to vector<8x128xf32>
      %1271 = arith.mulf %1244, %1270 : vector<8x128xf32>
      %1272 = arith.addf %1241, %1271 : vector<8x128xf32>
      %c1_162 = arith.constant 1 : index
      %1273 = arith.index_cast %4 : i32 to index
      %c0_163 = arith.constant 0 : index
      %1274 = vector.load %arg2[%c1_162, %1273, %c0_163] : memref<9x16x128xf32, #tpu.memory_space<vmem>>, vector<1x8x128xf32>
      %1275 = vector.shape_cast %1274 : vector<1x8x128xf32> to vector<8x128xf32>
      %c247 = arith.constant 247 : index
      %1276 = memref.load %arg1[%c247] : memref<543xf32, #tpu.memory_space<smem>>
      %1277 = vector.broadcast %1276 : f32 to vector<8x128xf32>
      %1278 = arith.mulf %1275, %1277 : vector<8x128xf32>
      %1279 = arith.addf %1248, %1278 : vector<8x128xf32>
      %c248 = arith.constant 248 : index
      %1280 = memref.load %arg1[%c248] : memref<543xf32, #tpu.memory_space<smem>>
      %1281 = vector.broadcast %1280 : f32 to vector<8x128xf32>
      %1282 = arith.mulf %1275, %1281 : vector<8x128xf32>
      %1283 = arith.addf %1252, %1282 : vector<8x128xf32>
      %c249 = arith.constant 249 : index
      %1284 = memref.load %arg1[%c249] : memref<543xf32, #tpu.memory_space<smem>>
      %1285 = vector.broadcast %1284 : f32 to vector<8x128xf32>
      %1286 = arith.mulf %1275, %1285 : vector<8x128xf32>
      %1287 = arith.addf %1256, %1286 : vector<8x128xf32>
      %c250 = arith.constant 250 : index
      %1288 = memref.load %arg1[%c250] : memref<543xf32, #tpu.memory_space<smem>>
      %1289 = vector.broadcast %1288 : f32 to vector<8x128xf32>
      %1290 = arith.mulf %1275, %1289 : vector<8x128xf32>
      %1291 = arith.addf %1260, %1290 : vector<8x128xf32>
      %c251 = arith.constant 251 : index
      %1292 = memref.load %arg1[%c251] : memref<543xf32, #tpu.memory_space<smem>>
      %1293 = vector.broadcast %1292 : f32 to vector<8x128xf32>
      %1294 = arith.mulf %1275, %1293 : vector<8x128xf32>
      %1295 = arith.addf %1264, %1294 : vector<8x128xf32>
      %c252 = arith.constant 252 : index
      %1296 = memref.load %arg1[%c252] : memref<543xf32, #tpu.memory_space<smem>>
      %1297 = vector.broadcast %1296 : f32 to vector<8x128xf32>
      %1298 = arith.mulf %1275, %1297 : vector<8x128xf32>
      %1299 = arith.addf %1268, %1298 : vector<8x128xf32>
      %c253 = arith.constant 253 : index
      %1300 = memref.load %arg1[%c253] : memref<543xf32, #tpu.memory_space<smem>>
      %1301 = vector.broadcast %1300 : f32 to vector<8x128xf32>
      %1302 = arith.mulf %1275, %1301 : vector<8x128xf32>
      %1303 = arith.addf %1272, %1302 : vector<8x128xf32>
      %c2_164 = arith.constant 2 : index
      %1304 = arith.index_cast %4 : i32 to index
      %c0_165 = arith.constant 0 : index
      %1305 = vector.load %arg2[%c2_164, %1304, %c0_165] : memref<9x16x128xf32, #tpu.memory_space<vmem>>, vector<1x8x128xf32>
      %1306 = vector.shape_cast %1305 : vector<1x8x128xf32> to vector<8x128xf32>
      %c254 = arith.constant 254 : index
      %1307 = memref.load %arg1[%c254] : memref<543xf32, #tpu.memory_space<smem>>
      %1308 = vector.broadcast %1307 : f32 to vector<8x128xf32>
      %1309 = arith.mulf %1306, %1308 : vector<8x128xf32>
      %1310 = arith.addf %1279, %1309 : vector<8x128xf32>
      %c255 = arith.constant 255 : index
      %1311 = memref.load %arg1[%c255] : memref<543xf32, #tpu.memory_space<smem>>
      %1312 = vector.broadcast %1311 : f32 to vector<8x128xf32>
      %1313 = arith.mulf %1306, %1312 : vector<8x128xf32>
      %1314 = arith.addf %1283, %1313 : vector<8x128xf32>
      %c256 = arith.constant 256 : index
      %1315 = memref.load %arg1[%c256] : memref<543xf32, #tpu.memory_space<smem>>
      %1316 = vector.broadcast %1315 : f32 to vector<8x128xf32>
      %1317 = arith.mulf %1306, %1316 : vector<8x128xf32>
      %1318 = arith.addf %1287, %1317 : vector<8x128xf32>
      %c257 = arith.constant 257 : index
      %1319 = memref.load %arg1[%c257] : memref<543xf32, #tpu.memory_space<smem>>
      %1320 = vector.broadcast %1319 : f32 to vector<8x128xf32>
      %1321 = arith.mulf %1306, %1320 : vector<8x128xf32>
      %1322 = arith.addf %1291, %1321 : vector<8x128xf32>
      %c258 = arith.constant 258 : index
      %1323 = memref.load %arg1[%c258] : memref<543xf32, #tpu.memory_space<smem>>
      %1324 = vector.broadcast %1323 : f32 to vector<8x128xf32>
      %1325 = arith.mulf %1306, %1324 : vector<8x128xf32>
      %1326 = arith.addf %1295, %1325 : vector<8x128xf32>
      %c259 = arith.constant 259 : index
      %1327 = memref.load %arg1[%c259] : memref<543xf32, #tpu.memory_space<smem>>
      %1328 = vector.broadcast %1327 : f32 to vector<8x128xf32>
      %1329 = arith.mulf %1306, %1328 : vector<8x128xf32>
      %1330 = arith.addf %1299, %1329 : vector<8x128xf32>
      %c260 = arith.constant 260 : index
      %1331 = memref.load %arg1[%c260] : memref<543xf32, #tpu.memory_space<smem>>
      %1332 = vector.broadcast %1331 : f32 to vector<8x128xf32>
      %1333 = arith.mulf %1306, %1332 : vector<8x128xf32>
      %1334 = arith.addf %1303, %1333 : vector<8x128xf32>
      %c3_166 = arith.constant 3 : index
      %1335 = arith.index_cast %4 : i32 to index
      %c0_167 = arith.constant 0 : index
      %1336 = vector.load %arg2[%c3_166, %1335, %c0_167] : memref<9x16x128xf32, #tpu.memory_space<vmem>>, vector<1x8x128xf32>
      %1337 = vector.shape_cast %1336 : vector<1x8x128xf32> to vector<8x128xf32>
      %c261 = arith.constant 261 : index
      %1338 = memref.load %arg1[%c261] : memref<543xf32, #tpu.memory_space<smem>>
      %1339 = vector.broadcast %1338 : f32 to vector<8x128xf32>
      %1340 = arith.mulf %1337, %1339 : vector<8x128xf32>
      %1341 = arith.addf %1310, %1340 : vector<8x128xf32>
      %c262 = arith.constant 262 : index
      %1342 = memref.load %arg1[%c262] : memref<543xf32, #tpu.memory_space<smem>>
      %1343 = vector.broadcast %1342 : f32 to vector<8x128xf32>
      %1344 = arith.mulf %1337, %1343 : vector<8x128xf32>
      %1345 = arith.addf %1314, %1344 : vector<8x128xf32>
      %c263 = arith.constant 263 : index
      %1346 = memref.load %arg1[%c263] : memref<543xf32, #tpu.memory_space<smem>>
      %1347 = vector.broadcast %1346 : f32 to vector<8x128xf32>
      %1348 = arith.mulf %1337, %1347 : vector<8x128xf32>
      %1349 = arith.addf %1318, %1348 : vector<8x128xf32>
      %c264 = arith.constant 264 : index
      %1350 = memref.load %arg1[%c264] : memref<543xf32, #tpu.memory_space<smem>>
      %1351 = vector.broadcast %1350 : f32 to vector<8x128xf32>
      %1352 = arith.mulf %1337, %1351 : vector<8x128xf32>
      %1353 = arith.addf %1322, %1352 : vector<8x128xf32>
      %c265 = arith.constant 265 : index
      %1354 = memref.load %arg1[%c265] : memref<543xf32, #tpu.memory_space<smem>>
      %1355 = vector.broadcast %1354 : f32 to vector<8x128xf32>
      %1356 = arith.mulf %1337, %1355 : vector<8x128xf32>
      %1357 = arith.addf %1326, %1356 : vector<8x128xf32>
      %c266 = arith.constant 266 : index
      %1358 = memref.load %arg1[%c266] : memref<543xf32, #tpu.memory_space<smem>>
      %1359 = vector.broadcast %1358 : f32 to vector<8x128xf32>
      %1360 = arith.mulf %1337, %1359 : vector<8x128xf32>
      %1361 = arith.addf %1330, %1360 : vector<8x128xf32>
      %c267 = arith.constant 267 : index
      %1362 = memref.load %arg1[%c267] : memref<543xf32, #tpu.memory_space<smem>>
      %1363 = vector.broadcast %1362 : f32 to vector<8x128xf32>
      %1364 = arith.mulf %1337, %1363 : vector<8x128xf32>
      %1365 = arith.addf %1334, %1364 : vector<8x128xf32>
      %c4_168 = arith.constant 4 : index
      %1366 = arith.index_cast %4 : i32 to index
      %c0_169 = arith.constant 0 : index
      %1367 = vector.load %arg2[%c4_168, %1366, %c0_169] : memref<9x16x128xf32, #tpu.memory_space<vmem>>, vector<1x8x128xf32>
      %1368 = vector.shape_cast %1367 : vector<1x8x128xf32> to vector<8x128xf32>
      %c268 = arith.constant 268 : index
      %1369 = memref.load %arg1[%c268] : memref<543xf32, #tpu.memory_space<smem>>
      %1370 = vector.broadcast %1369 : f32 to vector<8x128xf32>
      %1371 = arith.mulf %1368, %1370 : vector<8x128xf32>
      %1372 = arith.addf %1341, %1371 : vector<8x128xf32>
      %c269 = arith.constant 269 : index
      %1373 = memref.load %arg1[%c269] : memref<543xf32, #tpu.memory_space<smem>>
      %1374 = vector.broadcast %1373 : f32 to vector<8x128xf32>
      %1375 = arith.mulf %1368, %1374 : vector<8x128xf32>
      %1376 = arith.addf %1345, %1375 : vector<8x128xf32>
      %c270 = arith.constant 270 : index
      %1377 = memref.load %arg1[%c270] : memref<543xf32, #tpu.memory_space<smem>>
      %1378 = vector.broadcast %1377 : f32 to vector<8x128xf32>
      %1379 = arith.mulf %1368, %1378 : vector<8x128xf32>
      %1380 = arith.addf %1349, %1379 : vector<8x128xf32>
      %c271 = arith.constant 271 : index
      %1381 = memref.load %arg1[%c271] : memref<543xf32, #tpu.memory_space<smem>>
      %1382 = vector.broadcast %1381 : f32 to vector<8x128xf32>
      %1383 = arith.mulf %1368, %1382 : vector<8x128xf32>
      %1384 = arith.addf %1353, %1383 : vector<8x128xf32>
      %c272 = arith.constant 272 : index
      %1385 = memref.load %arg1[%c272] : memref<543xf32, #tpu.memory_space<smem>>
      %1386 = vector.broadcast %1385 : f32 to vector<8x128xf32>
      %1387 = arith.mulf %1368, %1386 : vector<8x128xf32>
      %1388 = arith.addf %1357, %1387 : vector<8x128xf32>
      %c273 = arith.constant 273 : index
      %1389 = memref.load %arg1[%c273] : memref<543xf32, #tpu.memory_space<smem>>
      %1390 = vector.broadcast %1389 : f32 to vector<8x128xf32>
      %1391 = arith.mulf %1368, %1390 : vector<8x128xf32>
      %1392 = arith.addf %1361, %1391 : vector<8x128xf32>
      %c274 = arith.constant 274 : index
      %1393 = memref.load %arg1[%c274] : memref<543xf32, #tpu.memory_space<smem>>
      %1394 = vector.broadcast %1393 : f32 to vector<8x128xf32>
      %1395 = arith.mulf %1368, %1394 : vector<8x128xf32>
      %1396 = arith.addf %1365, %1395 : vector<8x128xf32>
      %c5_170 = arith.constant 5 : index
      %1397 = arith.index_cast %4 : i32 to index
      %c0_171 = arith.constant 0 : index
      %1398 = vector.load %arg2[%c5_170, %1397, %c0_171] : memref<9x16x128xf32, #tpu.memory_space<vmem>>, vector<1x8x128xf32>
      %1399 = vector.shape_cast %1398 : vector<1x8x128xf32> to vector<8x128xf32>
      %c275 = arith.constant 275 : index
      %1400 = memref.load %arg1[%c275] : memref<543xf32, #tpu.memory_space<smem>>
      %1401 = vector.broadcast %1400 : f32 to vector<8x128xf32>
      %1402 = arith.mulf %1399, %1401 : vector<8x128xf32>
      %1403 = arith.addf %1372, %1402 : vector<8x128xf32>
      %c276 = arith.constant 276 : index
      %1404 = memref.load %arg1[%c276] : memref<543xf32, #tpu.memory_space<smem>>
      %1405 = vector.broadcast %1404 : f32 to vector<8x128xf32>
      %1406 = arith.mulf %1399, %1405 : vector<8x128xf32>
      %1407 = arith.addf %1376, %1406 : vector<8x128xf32>
      %c277 = arith.constant 277 : index
      %1408 = memref.load %arg1[%c277] : memref<543xf32, #tpu.memory_space<smem>>
      %1409 = vector.broadcast %1408 : f32 to vector<8x128xf32>
      %1410 = arith.mulf %1399, %1409 : vector<8x128xf32>
      %1411 = arith.addf %1380, %1410 : vector<8x128xf32>
      %c278 = arith.constant 278 : index
      %1412 = memref.load %arg1[%c278] : memref<543xf32, #tpu.memory_space<smem>>
      %1413 = vector.broadcast %1412 : f32 to vector<8x128xf32>
      %1414 = arith.mulf %1399, %1413 : vector<8x128xf32>
      %1415 = arith.addf %1384, %1414 : vector<8x128xf32>
      %c279 = arith.constant 279 : index
      %1416 = memref.load %arg1[%c279] : memref<543xf32, #tpu.memory_space<smem>>
      %1417 = vector.broadcast %1416 : f32 to vector<8x128xf32>
      %1418 = arith.mulf %1399, %1417 : vector<8x128xf32>
      %1419 = arith.addf %1388, %1418 : vector<8x128xf32>
      %c280 = arith.constant 280 : index
      %1420 = memref.load %arg1[%c280] : memref<543xf32, #tpu.memory_space<smem>>
      %1421 = vector.broadcast %1420 : f32 to vector<8x128xf32>
      %1422 = arith.mulf %1399, %1421 : vector<8x128xf32>
      %1423 = arith.addf %1392, %1422 : vector<8x128xf32>
      %c281 = arith.constant 281 : index
      %1424 = memref.load %arg1[%c281] : memref<543xf32, #tpu.memory_space<smem>>
      %1425 = vector.broadcast %1424 : f32 to vector<8x128xf32>
      %1426 = arith.mulf %1399, %1425 : vector<8x128xf32>
      %1427 = arith.addf %1396, %1426 : vector<8x128xf32>
      %c6_172 = arith.constant 6 : index
      %1428 = arith.index_cast %4 : i32 to index
      %c0_173 = arith.constant 0 : index
      %1429 = vector.load %arg2[%c6_172, %1428, %c0_173] : memref<9x16x128xf32, #tpu.memory_space<vmem>>, vector<1x8x128xf32>
      %1430 = vector.shape_cast %1429 : vector<1x8x128xf32> to vector<8x128xf32>
      %c282 = arith.constant 282 : index
      %1431 = memref.load %arg1[%c282] : memref<543xf32, #tpu.memory_space<smem>>
      %1432 = vector.broadcast %1431 : f32 to vector<8x128xf32>
      %1433 = arith.mulf %1430, %1432 : vector<8x128xf32>
      %1434 = arith.addf %1403, %1433 : vector<8x128xf32>
      %c283 = arith.constant 283 : index
      %1435 = memref.load %arg1[%c283] : memref<543xf32, #tpu.memory_space<smem>>
      %1436 = vector.broadcast %1435 : f32 to vector<8x128xf32>
      %1437 = arith.mulf %1430, %1436 : vector<8x128xf32>
      %1438 = arith.addf %1407, %1437 : vector<8x128xf32>
      %c284 = arith.constant 284 : index
      %1439 = memref.load %arg1[%c284] : memref<543xf32, #tpu.memory_space<smem>>
      %1440 = vector.broadcast %1439 : f32 to vector<8x128xf32>
      %1441 = arith.mulf %1430, %1440 : vector<8x128xf32>
      %1442 = arith.addf %1411, %1441 : vector<8x128xf32>
      %c285 = arith.constant 285 : index
      %1443 = memref.load %arg1[%c285] : memref<543xf32, #tpu.memory_space<smem>>
      %1444 = vector.broadcast %1443 : f32 to vector<8x128xf32>
      %1445 = arith.mulf %1430, %1444 : vector<8x128xf32>
      %1446 = arith.addf %1415, %1445 : vector<8x128xf32>
      %c286 = arith.constant 286 : index
      %1447 = memref.load %arg1[%c286] : memref<543xf32, #tpu.memory_space<smem>>
      %1448 = vector.broadcast %1447 : f32 to vector<8x128xf32>
      %1449 = arith.mulf %1430, %1448 : vector<8x128xf32>
      %1450 = arith.addf %1419, %1449 : vector<8x128xf32>
      %c287 = arith.constant 287 : index
      %1451 = memref.load %arg1[%c287] : memref<543xf32, #tpu.memory_space<smem>>
      %1452 = vector.broadcast %1451 : f32 to vector<8x128xf32>
      %1453 = arith.mulf %1430, %1452 : vector<8x128xf32>
      %1454 = arith.addf %1423, %1453 : vector<8x128xf32>
      %c288 = arith.constant 288 : index
      %1455 = memref.load %arg1[%c288] : memref<543xf32, #tpu.memory_space<smem>>
      %1456 = vector.broadcast %1455 : f32 to vector<8x128xf32>
      %1457 = arith.mulf %1430, %1456 : vector<8x128xf32>
      %1458 = arith.addf %1427, %1457 : vector<8x128xf32>
      %c0_174 = arith.constant 0 : index
      %1459 = arith.index_cast %4 : i32 to index
      %c0_175 = arith.constant 0 : index
      %1460 = vector.load %arg3[%c0_174, %1459, %c0_175] : memref<8x16x128xf32, #tpu.memory_space<vmem>>, vector<1x8x128xf32>
      %1461 = vector.shape_cast %1460 : vector<1x8x128xf32> to vector<8x128xf32>
      %c289 = arith.constant 289 : index
      %1462 = memref.load %arg1[%c289] : memref<543xf32, #tpu.memory_space<smem>>
      %1463 = vector.broadcast %1462 : f32 to vector<8x128xf32>
      %1464 = arith.mulf %1461, %1463 : vector<8x128xf32>
      %1465 = arith.addf %1434, %1464 : vector<8x128xf32>
      %c290 = arith.constant 290 : index
      %1466 = memref.load %arg1[%c290] : memref<543xf32, #tpu.memory_space<smem>>
      %1467 = vector.broadcast %1466 : f32 to vector<8x128xf32>
      %1468 = arith.mulf %1461, %1467 : vector<8x128xf32>
      %1469 = arith.addf %1438, %1468 : vector<8x128xf32>
      %c291 = arith.constant 291 : index
      %1470 = memref.load %arg1[%c291] : memref<543xf32, #tpu.memory_space<smem>>
      %1471 = vector.broadcast %1470 : f32 to vector<8x128xf32>
      %1472 = arith.mulf %1461, %1471 : vector<8x128xf32>
      %1473 = arith.addf %1442, %1472 : vector<8x128xf32>
      %c292 = arith.constant 292 : index
      %1474 = memref.load %arg1[%c292] : memref<543xf32, #tpu.memory_space<smem>>
      %1475 = vector.broadcast %1474 : f32 to vector<8x128xf32>
      %1476 = arith.mulf %1461, %1475 : vector<8x128xf32>
      %1477 = arith.addf %1446, %1476 : vector<8x128xf32>
      %c293 = arith.constant 293 : index
      %1478 = memref.load %arg1[%c293] : memref<543xf32, #tpu.memory_space<smem>>
      %1479 = vector.broadcast %1478 : f32 to vector<8x128xf32>
      %1480 = arith.mulf %1461, %1479 : vector<8x128xf32>
      %1481 = arith.addf %1450, %1480 : vector<8x128xf32>
      %c294 = arith.constant 294 : index
      %1482 = memref.load %arg1[%c294] : memref<543xf32, #tpu.memory_space<smem>>
      %1483 = vector.broadcast %1482 : f32 to vector<8x128xf32>
      %1484 = arith.mulf %1461, %1483 : vector<8x128xf32>
      %1485 = arith.addf %1454, %1484 : vector<8x128xf32>
      %c295 = arith.constant 295 : index
      %1486 = memref.load %arg1[%c295] : memref<543xf32, #tpu.memory_space<smem>>
      %1487 = vector.broadcast %1486 : f32 to vector<8x128xf32>
      %1488 = arith.mulf %1461, %1487 : vector<8x128xf32>
      %1489 = arith.addf %1458, %1488 : vector<8x128xf32>
      %c1_176 = arith.constant 1 : index
      %1490 = arith.index_cast %4 : i32 to index
      %c0_177 = arith.constant 0 : index
      %1491 = vector.load %arg3[%c1_176, %1490, %c0_177] : memref<8x16x128xf32, #tpu.memory_space<vmem>>, vector<1x8x128xf32>
      %1492 = vector.shape_cast %1491 : vector<1x8x128xf32> to vector<8x128xf32>
      %c296 = arith.constant 296 : index
      %1493 = memref.load %arg1[%c296] : memref<543xf32, #tpu.memory_space<smem>>
      %1494 = vector.broadcast %1493 : f32 to vector<8x128xf32>
      %1495 = arith.mulf %1492, %1494 : vector<8x128xf32>
      %1496 = arith.addf %1465, %1495 : vector<8x128xf32>
      %c297 = arith.constant 297 : index
      %1497 = memref.load %arg1[%c297] : memref<543xf32, #tpu.memory_space<smem>>
      %1498 = vector.broadcast %1497 : f32 to vector<8x128xf32>
      %1499 = arith.mulf %1492, %1498 : vector<8x128xf32>
      %1500 = arith.addf %1469, %1499 : vector<8x128xf32>
      %c298 = arith.constant 298 : index
      %1501 = memref.load %arg1[%c298] : memref<543xf32, #tpu.memory_space<smem>>
      %1502 = vector.broadcast %1501 : f32 to vector<8x128xf32>
      %1503 = arith.mulf %1492, %1502 : vector<8x128xf32>
      %1504 = arith.addf %1473, %1503 : vector<8x128xf32>
      %c299 = arith.constant 299 : index
      %1505 = memref.load %arg1[%c299] : memref<543xf32, #tpu.memory_space<smem>>
      %1506 = vector.broadcast %1505 : f32 to vector<8x128xf32>
      %1507 = arith.mulf %1492, %1506 : vector<8x128xf32>
      %1508 = arith.addf %1477, %1507 : vector<8x128xf32>
      %c300 = arith.constant 300 : index
      %1509 = memref.load %arg1[%c300] : memref<543xf32, #tpu.memory_space<smem>>
      %1510 = vector.broadcast %1509 : f32 to vector<8x128xf32>
      %1511 = arith.mulf %1492, %1510 : vector<8x128xf32>
      %1512 = arith.addf %1481, %1511 : vector<8x128xf32>
      %c301 = arith.constant 301 : index
      %1513 = memref.load %arg1[%c301] : memref<543xf32, #tpu.memory_space<smem>>
      %1514 = vector.broadcast %1513 : f32 to vector<8x128xf32>
      %1515 = arith.mulf %1492, %1514 : vector<8x128xf32>
      %1516 = arith.addf %1485, %1515 : vector<8x128xf32>
      %c302 = arith.constant 302 : index
      %1517 = memref.load %arg1[%c302] : memref<543xf32, #tpu.memory_space<smem>>
      %1518 = vector.broadcast %1517 : f32 to vector<8x128xf32>
      %1519 = arith.mulf %1492, %1518 : vector<8x128xf32>
      %1520 = arith.addf %1489, %1519 : vector<8x128xf32>
      %c2_178 = arith.constant 2 : index
      %1521 = arith.index_cast %4 : i32 to index
      %c0_179 = arith.constant 0 : index
      %1522 = vector.load %arg3[%c2_178, %1521, %c0_179] : memref<8x16x128xf32, #tpu.memory_space<vmem>>, vector<1x8x128xf32>
      %1523 = vector.shape_cast %1522 : vector<1x8x128xf32> to vector<8x128xf32>
      %c303 = arith.constant 303 : index
      %1524 = memref.load %arg1[%c303] : memref<543xf32, #tpu.memory_space<smem>>
      %1525 = vector.broadcast %1524 : f32 to vector<8x128xf32>
      %1526 = arith.mulf %1523, %1525 : vector<8x128xf32>
      %1527 = arith.addf %1496, %1526 : vector<8x128xf32>
      %c304 = arith.constant 304 : index
      %1528 = memref.load %arg1[%c304] : memref<543xf32, #tpu.memory_space<smem>>
      %1529 = vector.broadcast %1528 : f32 to vector<8x128xf32>
      %1530 = arith.mulf %1523, %1529 : vector<8x128xf32>
      %1531 = arith.addf %1500, %1530 : vector<8x128xf32>
      %c305 = arith.constant 305 : index
      %1532 = memref.load %arg1[%c305] : memref<543xf32, #tpu.memory_space<smem>>
      %1533 = vector.broadcast %1532 : f32 to vector<8x128xf32>
      %1534 = arith.mulf %1523, %1533 : vector<8x128xf32>
      %1535 = arith.addf %1504, %1534 : vector<8x128xf32>
      %c306 = arith.constant 306 : index
      %1536 = memref.load %arg1[%c306] : memref<543xf32, #tpu.memory_space<smem>>
      %1537 = vector.broadcast %1536 : f32 to vector<8x128xf32>
      %1538 = arith.mulf %1523, %1537 : vector<8x128xf32>
      %1539 = arith.addf %1508, %1538 : vector<8x128xf32>
      %c307 = arith.constant 307 : index
      %1540 = memref.load %arg1[%c307] : memref<543xf32, #tpu.memory_space<smem>>
      %1541 = vector.broadcast %1540 : f32 to vector<8x128xf32>
      %1542 = arith.mulf %1523, %1541 : vector<8x128xf32>
      %1543 = arith.addf %1512, %1542 : vector<8x128xf32>
      %c308 = arith.constant 308 : index
      %1544 = memref.load %arg1[%c308] : memref<543xf32, #tpu.memory_space<smem>>
      %1545 = vector.broadcast %1544 : f32 to vector<8x128xf32>
      %1546 = arith.mulf %1523, %1545 : vector<8x128xf32>
      %1547 = arith.addf %1516, %1546 : vector<8x128xf32>
      %c309 = arith.constant 309 : index
      %1548 = memref.load %arg1[%c309] : memref<543xf32, #tpu.memory_space<smem>>
      %1549 = vector.broadcast %1548 : f32 to vector<8x128xf32>
      %1550 = arith.mulf %1523, %1549 : vector<8x128xf32>
      %1551 = arith.addf %1520, %1550 : vector<8x128xf32>
      %c3_180 = arith.constant 3 : index
      %1552 = arith.index_cast %4 : i32 to index
      %c0_181 = arith.constant 0 : index
      %1553 = vector.load %arg3[%c3_180, %1552, %c0_181] : memref<8x16x128xf32, #tpu.memory_space<vmem>>, vector<1x8x128xf32>
      %1554 = vector.shape_cast %1553 : vector<1x8x128xf32> to vector<8x128xf32>
      %c310 = arith.constant 310 : index
      %1555 = memref.load %arg1[%c310] : memref<543xf32, #tpu.memory_space<smem>>
      %1556 = vector.broadcast %1555 : f32 to vector<8x128xf32>
      %1557 = arith.mulf %1554, %1556 : vector<8x128xf32>
      %1558 = arith.addf %1527, %1557 : vector<8x128xf32>
      %c311 = arith.constant 311 : index
      %1559 = memref.load %arg1[%c311] : memref<543xf32, #tpu.memory_space<smem>>
      %1560 = vector.broadcast %1559 : f32 to vector<8x128xf32>
      %1561 = arith.mulf %1554, %1560 : vector<8x128xf32>
      %1562 = arith.addf %1531, %1561 : vector<8x128xf32>
      %c312 = arith.constant 312 : index
      %1563 = memref.load %arg1[%c312] : memref<543xf32, #tpu.memory_space<smem>>
      %1564 = vector.broadcast %1563 : f32 to vector<8x128xf32>
      %1565 = arith.mulf %1554, %1564 : vector<8x128xf32>
      %1566 = arith.addf %1535, %1565 : vector<8x128xf32>
      %c313 = arith.constant 313 : index
      %1567 = memref.load %arg1[%c313] : memref<543xf32, #tpu.memory_space<smem>>
      %1568 = vector.broadcast %1567 : f32 to vector<8x128xf32>
      %1569 = arith.mulf %1554, %1568 : vector<8x128xf32>
      %1570 = arith.addf %1539, %1569 : vector<8x128xf32>
      %c314 = arith.constant 314 : index
      %1571 = memref.load %arg1[%c314] : memref<543xf32, #tpu.memory_space<smem>>
      %1572 = vector.broadcast %1571 : f32 to vector<8x128xf32>
      %1573 = arith.mulf %1554, %1572 : vector<8x128xf32>
      %1574 = arith.addf %1543, %1573 : vector<8x128xf32>
      %c315 = arith.constant 315 : index
      %1575 = memref.load %arg1[%c315] : memref<543xf32, #tpu.memory_space<smem>>
      %1576 = vector.broadcast %1575 : f32 to vector<8x128xf32>
      %1577 = arith.mulf %1554, %1576 : vector<8x128xf32>
      %1578 = arith.addf %1547, %1577 : vector<8x128xf32>
      %c316 = arith.constant 316 : index
      %1579 = memref.load %arg1[%c316] : memref<543xf32, #tpu.memory_space<smem>>
      %1580 = vector.broadcast %1579 : f32 to vector<8x128xf32>
      %1581 = arith.mulf %1554, %1580 : vector<8x128xf32>
      %1582 = arith.addf %1551, %1581 : vector<8x128xf32>
      %c4_182 = arith.constant 4 : index
      %1583 = arith.index_cast %4 : i32 to index
      %c0_183 = arith.constant 0 : index
      %1584 = vector.load %arg3[%c4_182, %1583, %c0_183] : memref<8x16x128xf32, #tpu.memory_space<vmem>>, vector<1x8x128xf32>
      %1585 = vector.shape_cast %1584 : vector<1x8x128xf32> to vector<8x128xf32>
      %c317 = arith.constant 317 : index
      %1586 = memref.load %arg1[%c317] : memref<543xf32, #tpu.memory_space<smem>>
      %1587 = vector.broadcast %1586 : f32 to vector<8x128xf32>
      %1588 = arith.mulf %1585, %1587 : vector<8x128xf32>
      %1589 = arith.addf %1558, %1588 : vector<8x128xf32>
      %c318 = arith.constant 318 : index
      %1590 = memref.load %arg1[%c318] : memref<543xf32, #tpu.memory_space<smem>>
      %1591 = vector.broadcast %1590 : f32 to vector<8x128xf32>
      %1592 = arith.mulf %1585, %1591 : vector<8x128xf32>
      %1593 = arith.addf %1562, %1592 : vector<8x128xf32>
      %c319 = arith.constant 319 : index
      %1594 = memref.load %arg1[%c319] : memref<543xf32, #tpu.memory_space<smem>>
      %1595 = vector.broadcast %1594 : f32 to vector<8x128xf32>
      %1596 = arith.mulf %1585, %1595 : vector<8x128xf32>
      %1597 = arith.addf %1566, %1596 : vector<8x128xf32>
      %c320 = arith.constant 320 : index
      %1598 = memref.load %arg1[%c320] : memref<543xf32, #tpu.memory_space<smem>>
      %1599 = vector.broadcast %1598 : f32 to vector<8x128xf32>
      %1600 = arith.mulf %1585, %1599 : vector<8x128xf32>
      %1601 = arith.addf %1570, %1600 : vector<8x128xf32>
      %c321 = arith.constant 321 : index
      %1602 = memref.load %arg1[%c321] : memref<543xf32, #tpu.memory_space<smem>>
      %1603 = vector.broadcast %1602 : f32 to vector<8x128xf32>
      %1604 = arith.mulf %1585, %1603 : vector<8x128xf32>
      %1605 = arith.addf %1574, %1604 : vector<8x128xf32>
      %c322 = arith.constant 322 : index
      %1606 = memref.load %arg1[%c322] : memref<543xf32, #tpu.memory_space<smem>>
      %1607 = vector.broadcast %1606 : f32 to vector<8x128xf32>
      %1608 = arith.mulf %1585, %1607 : vector<8x128xf32>
      %1609 = arith.addf %1578, %1608 : vector<8x128xf32>
      %c323 = arith.constant 323 : index
      %1610 = memref.load %arg1[%c323] : memref<543xf32, #tpu.memory_space<smem>>
      %1611 = vector.broadcast %1610 : f32 to vector<8x128xf32>
      %1612 = arith.mulf %1585, %1611 : vector<8x128xf32>
      %1613 = arith.addf %1582, %1612 : vector<8x128xf32>
      %c5_184 = arith.constant 5 : index
      %1614 = arith.index_cast %4 : i32 to index
      %c0_185 = arith.constant 0 : index
      %1615 = vector.load %arg3[%c5_184, %1614, %c0_185] : memref<8x16x128xf32, #tpu.memory_space<vmem>>, vector<1x8x128xf32>
      %1616 = vector.shape_cast %1615 : vector<1x8x128xf32> to vector<8x128xf32>
      %c324 = arith.constant 324 : index
      %1617 = memref.load %arg1[%c324] : memref<543xf32, #tpu.memory_space<smem>>
      %1618 = vector.broadcast %1617 : f32 to vector<8x128xf32>
      %1619 = arith.mulf %1616, %1618 : vector<8x128xf32>
      %1620 = arith.addf %1589, %1619 : vector<8x128xf32>
      %c325 = arith.constant 325 : index
      %1621 = memref.load %arg1[%c325] : memref<543xf32, #tpu.memory_space<smem>>
      %1622 = vector.broadcast %1621 : f32 to vector<8x128xf32>
      %1623 = arith.mulf %1616, %1622 : vector<8x128xf32>
      %1624 = arith.addf %1593, %1623 : vector<8x128xf32>
      %c326 = arith.constant 326 : index
      %1625 = memref.load %arg1[%c326] : memref<543xf32, #tpu.memory_space<smem>>
      %1626 = vector.broadcast %1625 : f32 to vector<8x128xf32>
      %1627 = arith.mulf %1616, %1626 : vector<8x128xf32>
      %1628 = arith.addf %1597, %1627 : vector<8x128xf32>
      %c327 = arith.constant 327 : index
      %1629 = memref.load %arg1[%c327] : memref<543xf32, #tpu.memory_space<smem>>
      %1630 = vector.broadcast %1629 : f32 to vector<8x128xf32>
      %1631 = arith.mulf %1616, %1630 : vector<8x128xf32>
      %1632 = arith.addf %1601, %1631 : vector<8x128xf32>
      %c328 = arith.constant 328 : index
      %1633 = memref.load %arg1[%c328] : memref<543xf32, #tpu.memory_space<smem>>
      %1634 = vector.broadcast %1633 : f32 to vector<8x128xf32>
      %1635 = arith.mulf %1616, %1634 : vector<8x128xf32>
      %1636 = arith.addf %1605, %1635 : vector<8x128xf32>
      %c329 = arith.constant 329 : index
      %1637 = memref.load %arg1[%c329] : memref<543xf32, #tpu.memory_space<smem>>
      %1638 = vector.broadcast %1637 : f32 to vector<8x128xf32>
      %1639 = arith.mulf %1616, %1638 : vector<8x128xf32>
      %1640 = arith.addf %1609, %1639 : vector<8x128xf32>
      %c330 = arith.constant 330 : index
      %1641 = memref.load %arg1[%c330] : memref<543xf32, #tpu.memory_space<smem>>
      %1642 = vector.broadcast %1641 : f32 to vector<8x128xf32>
      %1643 = arith.mulf %1616, %1642 : vector<8x128xf32>
      %1644 = arith.addf %1613, %1643 : vector<8x128xf32>
      %cst_186 = arith.constant 0.00999999977 : f32
      %1645 = vector.broadcast %cst_186 : f32 to vector<8x128xf32>
      %1646 = arith.mulf %1645, %1620 : vector<8x128xf32>
      %1647 = arith.maximumf %1620, %1646 : vector<8x128xf32>
      %cst_187 = arith.constant 0.00999999977 : f32
      %1648 = vector.broadcast %cst_187 : f32 to vector<8x128xf32>
      %1649 = arith.mulf %1648, %1624 : vector<8x128xf32>
      %1650 = arith.maximumf %1624, %1649 : vector<8x128xf32>
      %cst_188 = arith.constant 0.00999999977 : f32
      %1651 = vector.broadcast %cst_188 : f32 to vector<8x128xf32>
      %1652 = arith.mulf %1651, %1628 : vector<8x128xf32>
      %1653 = arith.maximumf %1628, %1652 : vector<8x128xf32>
      %cst_189 = arith.constant 0.00999999977 : f32
      %1654 = vector.broadcast %cst_189 : f32 to vector<8x128xf32>
      %1655 = arith.mulf %1654, %1632 : vector<8x128xf32>
      %1656 = arith.maximumf %1632, %1655 : vector<8x128xf32>
      %cst_190 = arith.constant 0.00999999977 : f32
      %1657 = vector.broadcast %cst_190 : f32 to vector<8x128xf32>
      %1658 = arith.mulf %1657, %1636 : vector<8x128xf32>
      %1659 = arith.maximumf %1636, %1658 : vector<8x128xf32>
      %cst_191 = arith.constant 0.00999999977 : f32
      %1660 = vector.broadcast %cst_191 : f32 to vector<8x128xf32>
      %1661 = arith.mulf %1660, %1640 : vector<8x128xf32>
      %1662 = arith.maximumf %1640, %1661 : vector<8x128xf32>
      %cst_192 = arith.constant 0.00999999977 : f32
      %1663 = vector.broadcast %cst_192 : f32 to vector<8x128xf32>
      %1664 = arith.mulf %1663, %1644 : vector<8x128xf32>
      %1665 = arith.maximumf %1644, %1664 : vector<8x128xf32>
      %c359 = arith.constant 359 : index
      %1666 = memref.load %arg1[%c359] : memref<543xf32, #tpu.memory_space<smem>>
      %1667 = vector.broadcast %1666 : f32 to vector<8x128xf32>
      %c360 = arith.constant 360 : index
      %1668 = memref.load %arg1[%c360] : memref<543xf32, #tpu.memory_space<smem>>
      %1669 = vector.broadcast %1668 : f32 to vector<8x128xf32>
      %c361 = arith.constant 361 : index
      %1670 = memref.load %arg1[%c361] : memref<543xf32, #tpu.memory_space<smem>>
      %1671 = vector.broadcast %1670 : f32 to vector<8x128xf32>
      %c338 = arith.constant 338 : index
      %1672 = memref.load %arg1[%c338] : memref<543xf32, #tpu.memory_space<smem>>
      %1673 = vector.broadcast %1672 : f32 to vector<8x128xf32>
      %1674 = arith.mulf %1647, %1673 : vector<8x128xf32>
      %1675 = arith.addf %1667, %1674 : vector<8x128xf32>
      %c339 = arith.constant 339 : index
      %1676 = memref.load %arg1[%c339] : memref<543xf32, #tpu.memory_space<smem>>
      %1677 = vector.broadcast %1676 : f32 to vector<8x128xf32>
      %1678 = arith.mulf %1647, %1677 : vector<8x128xf32>
      %1679 = arith.addf %1669, %1678 : vector<8x128xf32>
      %c340 = arith.constant 340 : index
      %1680 = memref.load %arg1[%c340] : memref<543xf32, #tpu.memory_space<smem>>
      %1681 = vector.broadcast %1680 : f32 to vector<8x128xf32>
      %1682 = arith.mulf %1647, %1681 : vector<8x128xf32>
      %1683 = arith.addf %1671, %1682 : vector<8x128xf32>
      %c341 = arith.constant 341 : index
      %1684 = memref.load %arg1[%c341] : memref<543xf32, #tpu.memory_space<smem>>
      %1685 = vector.broadcast %1684 : f32 to vector<8x128xf32>
      %1686 = arith.mulf %1650, %1685 : vector<8x128xf32>
      %1687 = arith.addf %1675, %1686 : vector<8x128xf32>
      %c342 = arith.constant 342 : index
      %1688 = memref.load %arg1[%c342] : memref<543xf32, #tpu.memory_space<smem>>
      %1689 = vector.broadcast %1688 : f32 to vector<8x128xf32>
      %1690 = arith.mulf %1650, %1689 : vector<8x128xf32>
      %1691 = arith.addf %1679, %1690 : vector<8x128xf32>
      %c343 = arith.constant 343 : index
      %1692 = memref.load %arg1[%c343] : memref<543xf32, #tpu.memory_space<smem>>
      %1693 = vector.broadcast %1692 : f32 to vector<8x128xf32>
      %1694 = arith.mulf %1650, %1693 : vector<8x128xf32>
      %1695 = arith.addf %1683, %1694 : vector<8x128xf32>
      %c344 = arith.constant 344 : index
      %1696 = memref.load %arg1[%c344] : memref<543xf32, #tpu.memory_space<smem>>
      %1697 = vector.broadcast %1696 : f32 to vector<8x128xf32>
      %1698 = arith.mulf %1653, %1697 : vector<8x128xf32>
      %1699 = arith.addf %1687, %1698 : vector<8x128xf32>
      %c345 = arith.constant 345 : index
      %1700 = memref.load %arg1[%c345] : memref<543xf32, #tpu.memory_space<smem>>
      %1701 = vector.broadcast %1700 : f32 to vector<8x128xf32>
      %1702 = arith.mulf %1653, %1701 : vector<8x128xf32>
      %1703 = arith.addf %1691, %1702 : vector<8x128xf32>
      %c346 = arith.constant 346 : index
      %1704 = memref.load %arg1[%c346] : memref<543xf32, #tpu.memory_space<smem>>
      %1705 = vector.broadcast %1704 : f32 to vector<8x128xf32>
      %1706 = arith.mulf %1653, %1705 : vector<8x128xf32>
      %1707 = arith.addf %1695, %1706 : vector<8x128xf32>
      %c347 = arith.constant 347 : index
      %1708 = memref.load %arg1[%c347] : memref<543xf32, #tpu.memory_space<smem>>
      %1709 = vector.broadcast %1708 : f32 to vector<8x128xf32>
      %1710 = arith.mulf %1656, %1709 : vector<8x128xf32>
      %1711 = arith.addf %1699, %1710 : vector<8x128xf32>
      %c348 = arith.constant 348 : index
      %1712 = memref.load %arg1[%c348] : memref<543xf32, #tpu.memory_space<smem>>
      %1713 = vector.broadcast %1712 : f32 to vector<8x128xf32>
      %1714 = arith.mulf %1656, %1713 : vector<8x128xf32>
      %1715 = arith.addf %1703, %1714 : vector<8x128xf32>
      %c349 = arith.constant 349 : index
      %1716 = memref.load %arg1[%c349] : memref<543xf32, #tpu.memory_space<smem>>
      %1717 = vector.broadcast %1716 : f32 to vector<8x128xf32>
      %1718 = arith.mulf %1656, %1717 : vector<8x128xf32>
      %1719 = arith.addf %1707, %1718 : vector<8x128xf32>
      %c350 = arith.constant 350 : index
      %1720 = memref.load %arg1[%c350] : memref<543xf32, #tpu.memory_space<smem>>
      %1721 = vector.broadcast %1720 : f32 to vector<8x128xf32>
      %1722 = arith.mulf %1659, %1721 : vector<8x128xf32>
      %1723 = arith.addf %1711, %1722 : vector<8x128xf32>
      %c351 = arith.constant 351 : index
      %1724 = memref.load %arg1[%c351] : memref<543xf32, #tpu.memory_space<smem>>
      %1725 = vector.broadcast %1724 : f32 to vector<8x128xf32>
      %1726 = arith.mulf %1659, %1725 : vector<8x128xf32>
      %1727 = arith.addf %1715, %1726 : vector<8x128xf32>
      %c352 = arith.constant 352 : index
      %1728 = memref.load %arg1[%c352] : memref<543xf32, #tpu.memory_space<smem>>
      %1729 = vector.broadcast %1728 : f32 to vector<8x128xf32>
      %1730 = arith.mulf %1659, %1729 : vector<8x128xf32>
      %1731 = arith.addf %1719, %1730 : vector<8x128xf32>
      %c353 = arith.constant 353 : index
      %1732 = memref.load %arg1[%c353] : memref<543xf32, #tpu.memory_space<smem>>
      %1733 = vector.broadcast %1732 : f32 to vector<8x128xf32>
      %1734 = arith.mulf %1662, %1733 : vector<8x128xf32>
      %1735 = arith.addf %1723, %1734 : vector<8x128xf32>
      %c354 = arith.constant 354 : index
      %1736 = memref.load %arg1[%c354] : memref<543xf32, #tpu.memory_space<smem>>
      %1737 = vector.broadcast %1736 : f32 to vector<8x128xf32>
      %1738 = arith.mulf %1662, %1737 : vector<8x128xf32>
      %1739 = arith.addf %1727, %1738 : vector<8x128xf32>
      %c355 = arith.constant 355 : index
      %1740 = memref.load %arg1[%c355] : memref<543xf32, #tpu.memory_space<smem>>
      %1741 = vector.broadcast %1740 : f32 to vector<8x128xf32>
      %1742 = arith.mulf %1662, %1741 : vector<8x128xf32>
      %1743 = arith.addf %1731, %1742 : vector<8x128xf32>
      %c356 = arith.constant 356 : index
      %1744 = memref.load %arg1[%c356] : memref<543xf32, #tpu.memory_space<smem>>
      %1745 = vector.broadcast %1744 : f32 to vector<8x128xf32>
      %1746 = arith.mulf %1665, %1745 : vector<8x128xf32>
      %1747 = arith.addf %1735, %1746 : vector<8x128xf32>
      %c357 = arith.constant 357 : index
      %1748 = memref.load %arg1[%c357] : memref<543xf32, #tpu.memory_space<smem>>
      %1749 = vector.broadcast %1748 : f32 to vector<8x128xf32>
      %1750 = arith.mulf %1665, %1749 : vector<8x128xf32>
      %1751 = arith.addf %1739, %1750 : vector<8x128xf32>
      %c358 = arith.constant 358 : index
      %1752 = memref.load %arg1[%c358] : memref<543xf32, #tpu.memory_space<smem>>
      %1753 = vector.broadcast %1752 : f32 to vector<8x128xf32>
      %1754 = arith.mulf %1665, %1753 : vector<8x128xf32>
      %1755 = arith.addf %1743, %1754 : vector<8x128xf32>
      %cst_193 = arith.constant 0.00999999977 : f32
      %1756 = vector.broadcast %cst_193 : f32 to vector<8x128xf32>
      %1757 = arith.mulf %1756, %1747 : vector<8x128xf32>
      %1758 = arith.maximumf %1747, %1757 : vector<8x128xf32>
      %cst_194 = arith.constant 0.00999999977 : f32
      %1759 = vector.broadcast %cst_194 : f32 to vector<8x128xf32>
      %1760 = arith.mulf %1759, %1751 : vector<8x128xf32>
      %1761 = arith.maximumf %1751, %1760 : vector<8x128xf32>
      %cst_195 = arith.constant 0.00999999977 : f32
      %1762 = vector.broadcast %cst_195 : f32 to vector<8x128xf32>
      %1763 = arith.mulf %1762, %1755 : vector<8x128xf32>
      %1764 = arith.maximumf %1755, %1763 : vector<8x128xf32>
      %c365 = arith.constant 365 : index
      %1765 = memref.load %arg1[%c365] : memref<543xf32, #tpu.memory_space<smem>>
      %1766 = vector.broadcast %1765 : f32 to vector<8x128xf32>
      %c362 = arith.constant 362 : index
      %1767 = memref.load %arg1[%c362] : memref<543xf32, #tpu.memory_space<smem>>
      %1768 = vector.broadcast %1767 : f32 to vector<8x128xf32>
      %1769 = arith.mulf %1758, %1768 : vector<8x128xf32>
      %1770 = arith.addf %1766, %1769 : vector<8x128xf32>
      %c363 = arith.constant 363 : index
      %1771 = memref.load %arg1[%c363] : memref<543xf32, #tpu.memory_space<smem>>
      %1772 = vector.broadcast %1771 : f32 to vector<8x128xf32>
      %1773 = arith.mulf %1761, %1772 : vector<8x128xf32>
      %1774 = arith.addf %1770, %1773 : vector<8x128xf32>
      %c364 = arith.constant 364 : index
      %1775 = memref.load %arg1[%c364] : memref<543xf32, #tpu.memory_space<smem>>
      %1776 = vector.broadcast %1775 : f32 to vector<8x128xf32>
      %1777 = arith.mulf %1764, %1776 : vector<8x128xf32>
      %1778 = arith.addf %1774, %1777 : vector<8x128xf32>
      %cst_196 = arith.constant -1.000000e+00 : f32
      %cst_197 = arith.constant 1.000000e+00 : f32
      %1779 = vector.broadcast %cst_196 : f32 to vector<8x128xf32>
      %1780 = arith.maximumf %1779, %1778 : vector<8x128xf32>
      %1781 = vector.broadcast %cst_197 : f32 to vector<8x128xf32>
      %1782 = arith.minimumf %1781, %1780 : vector<8x128xf32>
      %c7_198 = arith.constant 7 : index
      %1783 = arith.index_cast %4 : i32 to index
      %c0_199 = arith.constant 0 : index
      %1784 = vector.load %arg2[%c7_198, %1783, %c0_199] : memref<9x16x128xf32, #tpu.memory_space<vmem>>, vector<1x8x128xf32>
      %1785 = vector.shape_cast %1784 : vector<1x8x128xf32> to vector<8x128xf32>
      %1786 = arith.subf %1785, %1782 : vector<8x128xf32>
      %cst_200 = arith.constant 1.000000e+00 : f32
      %1787 = vector.broadcast %cst_200 : f32 to vector<8x128xf32>
      %1788 = arith.addf %1786, %1787 : vector<8x128xf32>
      %cst_201 = arith.constant 5.000000e-01 : f32
      %1789 = vector.broadcast %cst_201 : f32 to vector<8x128xf32>
      %1790 = arith.mulf %1788, %1789 : vector<8x128xf32>
      %cst_202 = arith.constant 0.000000e+00 : f32
      %1791 = vector.broadcast %cst_202 : f32 to vector<8x128xf32>
      %1792 = arith.cmpf olt, %1790, %1791 : vector<8x128xf32>
      %1793 = math.ceil %1790 : vector<8x128xf32>
      %1794 = math.floor %1790 : vector<8x128xf32>
      %1795 = arith.select %1792, %1793, %1794 : vector<8x128xi1>, vector<8x128xf32>
      %cst_203 = arith.constant 2.000000e+00 : f32
      %1796 = vector.broadcast %cst_203 : f32 to vector<8x128xf32>
      %1797 = arith.mulf %1796, %1795 : vector<8x128xf32>
      %1798 = arith.subf %1788, %1797 : vector<8x128xf32>
      %cst_204 = arith.constant 1.000000e+00 : f32
      %1799 = vector.broadcast %cst_204 : f32 to vector<8x128xf32>
      %1800 = arith.subf %1798, %1799 : vector<8x128xf32>
      %c6_205 = arith.constant 6 : index
      %1801 = arith.index_cast %4 : i32 to index
      %c0_206 = arith.constant 0 : index
      %1802 = vector.load %arg3[%c6_205, %1801, %c0_206] : memref<8x16x128xf32, #tpu.memory_space<vmem>>, vector<1x8x128xf32>
      %1803 = vector.shape_cast %1802 : vector<1x8x128xf32> to vector<8x128xf32>
      %1804 = vector.shape_cast %1800 : vector<8x128xf32> to vector<1x8x128xf32>
      tpu.vector_store %arg3[%c6_205, %1801, %c0_206], %1804 {strides = array<i32>} : memref<8x16x128xf32, #tpu.memory_space<vmem>>, vector<1x8x128xf32>,
      %c486 = arith.constant 486 : index
      %1805 = memref.load %arg1[%c486] : memref<543xf32, #tpu.memory_space<smem>>
      %1806 = vector.broadcast %1805 : f32 to vector<8x128xf32>
      %c487 = arith.constant 487 : index
      %1807 = memref.load %arg1[%c487] : memref<543xf32, #tpu.memory_space<smem>>
      %1808 = vector.broadcast %1807 : f32 to vector<8x128xf32>
      %c488 = arith.constant 488 : index
      %1809 = memref.load %arg1[%c488] : memref<543xf32, #tpu.memory_space<smem>>
      %1810 = vector.broadcast %1809 : f32 to vector<8x128xf32>
      %c489 = arith.constant 489 : index
      %1811 = memref.load %arg1[%c489] : memref<543xf32, #tpu.memory_space<smem>>
      %1812 = vector.broadcast %1811 : f32 to vector<8x128xf32>
      %c490 = arith.constant 490 : index
      %1813 = memref.load %arg1[%c490] : memref<543xf32, #tpu.memory_space<smem>>
      %1814 = vector.broadcast %1813 : f32 to vector<8x128xf32>
      %c491 = arith.constant 491 : index
      %1815 = memref.load %arg1[%c491] : memref<543xf32, #tpu.memory_space<smem>>
      %1816 = vector.broadcast %1815 : f32 to vector<8x128xf32>
      %c492 = arith.constant 492 : index
      %1817 = memref.load %arg1[%c492] : memref<543xf32, #tpu.memory_space<smem>>
      %1818 = vector.broadcast %1817 : f32 to vector<8x128xf32>
      %c493 = arith.constant 493 : index
      %1819 = memref.load %arg1[%c493] : memref<543xf32, #tpu.memory_space<smem>>
      %1820 = vector.broadcast %1819 : f32 to vector<8x128xf32>
      %c0_207 = arith.constant 0 : index
      %1821 = arith.index_cast %4 : i32 to index
      %c0_208 = arith.constant 0 : index
      %1822 = vector.load %arg2[%c0_207, %1821, %c0_208] : memref<9x16x128xf32, #tpu.memory_space<vmem>>, vector<1x8x128xf32>
      %1823 = vector.shape_cast %1822 : vector<1x8x128xf32> to vector<8x128xf32>
      %c366 = arith.constant 366 : index
      %1824 = memref.load %arg1[%c366] : memref<543xf32, #tpu.memory_space<smem>>
      %1825 = vector.broadcast %1824 : f32 to vector<8x128xf32>
      %1826 = arith.mulf %1823, %1825 : vector<8x128xf32>
      %1827 = arith.addf %1806, %1826 : vector<8x128xf32>
      %c367 = arith.constant 367 : index
      %1828 = memref.load %arg1[%c367] : memref<543xf32, #tpu.memory_space<smem>>
      %1829 = vector.broadcast %1828 : f32 to vector<8x128xf32>
      %1830 = arith.mulf %1823, %1829 : vector<8x128xf32>
      %1831 = arith.addf %1808, %1830 : vector<8x128xf32>
      %c368 = arith.constant 368 : index
      %1832 = memref.load %arg1[%c368] : memref<543xf32, #tpu.memory_space<smem>>
      %1833 = vector.broadcast %1832 : f32 to vector<8x128xf32>
      %1834 = arith.mulf %1823, %1833 : vector<8x128xf32>
      %1835 = arith.addf %1810, %1834 : vector<8x128xf32>
      %c369 = arith.constant 369 : index
      %1836 = memref.load %arg1[%c369] : memref<543xf32, #tpu.memory_space<smem>>
      %1837 = vector.broadcast %1836 : f32 to vector<8x128xf32>
      %1838 = arith.mulf %1823, %1837 : vector<8x128xf32>
      %1839 = arith.addf %1812, %1838 : vector<8x128xf32>
      %c370 = arith.constant 370 : index
      %1840 = memref.load %arg1[%c370] : memref<543xf32, #tpu.memory_space<smem>>
      %1841 = vector.broadcast %1840 : f32 to vector<8x128xf32>
      %1842 = arith.mulf %1823, %1841 : vector<8x128xf32>
      %1843 = arith.addf %1814, %1842 : vector<8x128xf32>
      %c371 = arith.constant 371 : index
      %1844 = memref.load %arg1[%c371] : memref<543xf32, #tpu.memory_space<smem>>
      %1845 = vector.broadcast %1844 : f32 to vector<8x128xf32>
      %1846 = arith.mulf %1823, %1845 : vector<8x128xf32>
      %1847 = arith.addf %1816, %1846 : vector<8x128xf32>
      %c372 = arith.constant 372 : index
      %1848 = memref.load %arg1[%c372] : memref<543xf32, #tpu.memory_space<smem>>
      %1849 = vector.broadcast %1848 : f32 to vector<8x128xf32>
      %1850 = arith.mulf %1823, %1849 : vector<8x128xf32>
      %1851 = arith.addf %1818, %1850 : vector<8x128xf32>
      %c373 = arith.constant 373 : index
      %1852 = memref.load %arg1[%c373] : memref<543xf32, #tpu.memory_space<smem>>
      %1853 = vector.broadcast %1852 : f32 to vector<8x128xf32>
      %1854 = arith.mulf %1823, %1853 : vector<8x128xf32>
      %1855 = arith.addf %1820, %1854 : vector<8x128xf32>
      %c1_209 = arith.constant 1 : index
      %1856 = arith.index_cast %4 : i32 to index
      %c0_210 = arith.constant 0 : index
      %1857 = vector.load %arg2[%c1_209, %1856, %c0_210] : memref<9x16x128xf32, #tpu.memory_space<vmem>>, vector<1x8x128xf32>
      %1858 = vector.shape_cast %1857 : vector<1x8x128xf32> to vector<8x128xf32>
      %c374 = arith.constant 374 : index
      %1859 = memref.load %arg1[%c374] : memref<543xf32, #tpu.memory_space<smem>>
      %1860 = vector.broadcast %1859 : f32 to vector<8x128xf32>
      %1861 = arith.mulf %1858, %1860 : vector<8x128xf32>
      %1862 = arith.addf %1827, %1861 : vector<8x128xf32>
      %c375 = arith.constant 375 : index
      %1863 = memref.load %arg1[%c375] : memref<543xf32, #tpu.memory_space<smem>>
      %1864 = vector.broadcast %1863 : f32 to vector<8x128xf32>
      %1865 = arith.mulf %1858, %1864 : vector<8x128xf32>
      %1866 = arith.addf %1831, %1865 : vector<8x128xf32>
      %c376 = arith.constant 376 : index
      %1867 = memref.load %arg1[%c376] : memref<543xf32, #tpu.memory_space<smem>>
      %1868 = vector.broadcast %1867 : f32 to vector<8x128xf32>
      %1869 = arith.mulf %1858, %1868 : vector<8x128xf32>
      %1870 = arith.addf %1835, %1869 : vector<8x128xf32>
      %c377 = arith.constant 377 : index
      %1871 = memref.load %arg1[%c377] : memref<543xf32, #tpu.memory_space<smem>>
      %1872 = vector.broadcast %1871 : f32 to vector<8x128xf32>
      %1873 = arith.mulf %1858, %1872 : vector<8x128xf32>
      %1874 = arith.addf %1839, %1873 : vector<8x128xf32>
      %c378 = arith.constant 378 : index
      %1875 = memref.load %arg1[%c378] : memref<543xf32, #tpu.memory_space<smem>>
      %1876 = vector.broadcast %1875 : f32 to vector<8x128xf32>
      %1877 = arith.mulf %1858, %1876 : vector<8x128xf32>
      %1878 = arith.addf %1843, %1877 : vector<8x128xf32>
      %c379 = arith.constant 379 : index
      %1879 = memref.load %arg1[%c379] : memref<543xf32, #tpu.memory_space<smem>>
      %1880 = vector.broadcast %1879 : f32 to vector<8x128xf32>
      %1881 = arith.mulf %1858, %1880 : vector<8x128xf32>
      %1882 = arith.addf %1847, %1881 : vector<8x128xf32>
      %c380 = arith.constant 380 : index
      %1883 = memref.load %arg1[%c380] : memref<543xf32, #tpu.memory_space<smem>>
      %1884 = vector.broadcast %1883 : f32 to vector<8x128xf32>
      %1885 = arith.mulf %1858, %1884 : vector<8x128xf32>
      %1886 = arith.addf %1851, %1885 : vector<8x128xf32>
      %c381 = arith.constant 381 : index
      %1887 = memref.load %arg1[%c381] : memref<543xf32, #tpu.memory_space<smem>>
      %1888 = vector.broadcast %1887 : f32 to vector<8x128xf32>
      %1889 = arith.mulf %1858, %1888 : vector<8x128xf32>
      %1890 = arith.addf %1855, %1889 : vector<8x128xf32>
      %c2_211 = arith.constant 2 : index
      %1891 = arith.index_cast %4 : i32 to index
      %c0_212 = arith.constant 0 : index
      %1892 = vector.load %arg2[%c2_211, %1891, %c0_212] : memref<9x16x128xf32, #tpu.memory_space<vmem>>, vector<1x8x128xf32>
      %1893 = vector.shape_cast %1892 : vector<1x8x128xf32> to vector<8x128xf32>
      %c382 = arith.constant 382 : index
      %1894 = memref.load %arg1[%c382] : memref<543xf32, #tpu.memory_space<smem>>
      %1895 = vector.broadcast %1894 : f32 to vector<8x128xf32>
      %1896 = arith.mulf %1893, %1895 : vector<8x128xf32>
      %1897 = arith.addf %1862, %1896 : vector<8x128xf32>
      %c383 = arith.constant 383 : index
      %1898 = memref.load %arg1[%c383] : memref<543xf32, #tpu.memory_space<smem>>
      %1899 = vector.broadcast %1898 : f32 to vector<8x128xf32>
      %1900 = arith.mulf %1893, %1899 : vector<8x128xf32>
      %1901 = arith.addf %1866, %1900 : vector<8x128xf32>
      %c384 = arith.constant 384 : index
      %1902 = memref.load %arg1[%c384] : memref<543xf32, #tpu.memory_space<smem>>
      %1903 = vector.broadcast %1902 : f32 to vector<8x128xf32>
      %1904 = arith.mulf %1893, %1903 : vector<8x128xf32>
      %1905 = arith.addf %1870, %1904 : vector<8x128xf32>
      %c385 = arith.constant 385 : index
      %1906 = memref.load %arg1[%c385] : memref<543xf32, #tpu.memory_space<smem>>
      %1907 = vector.broadcast %1906 : f32 to vector<8x128xf32>
      %1908 = arith.mulf %1893, %1907 : vector<8x128xf32>
      %1909 = arith.addf %1874, %1908 : vector<8x128xf32>
      %c386 = arith.constant 386 : index
      %1910 = memref.load %arg1[%c386] : memref<543xf32, #tpu.memory_space<smem>>
      %1911 = vector.broadcast %1910 : f32 to vector<8x128xf32>
      %1912 = arith.mulf %1893, %1911 : vector<8x128xf32>
      %1913 = arith.addf %1878, %1912 : vector<8x128xf32>
      %c387 = arith.constant 387 : index
      %1914 = memref.load %arg1[%c387] : memref<543xf32, #tpu.memory_space<smem>>
      %1915 = vector.broadcast %1914 : f32 to vector<8x128xf32>
      %1916 = arith.mulf %1893, %1915 : vector<8x128xf32>
      %1917 = arith.addf %1882, %1916 : vector<8x128xf32>
      %c388 = arith.constant 388 : index
      %1918 = memref.load %arg1[%c388] : memref<543xf32, #tpu.memory_space<smem>>
      %1919 = vector.broadcast %1918 : f32 to vector<8x128xf32>
      %1920 = arith.mulf %1893, %1919 : vector<8x128xf32>
      %1921 = arith.addf %1886, %1920 : vector<8x128xf32>
      %c389 = arith.constant 389 : index
      %1922 = memref.load %arg1[%c389] : memref<543xf32, #tpu.memory_space<smem>>
      %1923 = vector.broadcast %1922 : f32 to vector<8x128xf32>
      %1924 = arith.mulf %1893, %1923 : vector<8x128xf32>
      %1925 = arith.addf %1890, %1924 : vector<8x128xf32>
      %c3_213 = arith.constant 3 : index
      %1926 = arith.index_cast %4 : i32 to index
      %c0_214 = arith.constant 0 : index
      %1927 = vector.load %arg2[%c3_213, %1926, %c0_214] : memref<9x16x128xf32, #tpu.memory_space<vmem>>, vector<1x8x128xf32>
      %1928 = vector.shape_cast %1927 : vector<1x8x128xf32> to vector<8x128xf32>
      %c390 = arith.constant 390 : index
      %1929 = memref.load %arg1[%c390] : memref<543xf32, #tpu.memory_space<smem>>
      %1930 = vector.broadcast %1929 : f32 to vector<8x128xf32>
      %1931 = arith.mulf %1928, %1930 : vector<8x128xf32>
      %1932 = arith.addf %1897, %1931 : vector<8x128xf32>
      %c391 = arith.constant 391 : index
      %1933 = memref.load %arg1[%c391] : memref<543xf32, #tpu.memory_space<smem>>
      %1934 = vector.broadcast %1933 : f32 to vector<8x128xf32>
      %1935 = arith.mulf %1928, %1934 : vector<8x128xf32>
      %1936 = arith.addf %1901, %1935 : vector<8x128xf32>
      %c392 = arith.constant 392 : index
      %1937 = memref.load %arg1[%c392] : memref<543xf32, #tpu.memory_space<smem>>
      %1938 = vector.broadcast %1937 : f32 to vector<8x128xf32>
      %1939 = arith.mulf %1928, %1938 : vector<8x128xf32>
      %1940 = arith.addf %1905, %1939 : vector<8x128xf32>
      %c393 = arith.constant 393 : index
      %1941 = memref.load %arg1[%c393] : memref<543xf32, #tpu.memory_space<smem>>
      %1942 = vector.broadcast %1941 : f32 to vector<8x128xf32>
      %1943 = arith.mulf %1928, %1942 : vector<8x128xf32>
      %1944 = arith.addf %1909, %1943 : vector<8x128xf32>
      %c394 = arith.constant 394 : index
      %1945 = memref.load %arg1[%c394] : memref<543xf32, #tpu.memory_space<smem>>
      %1946 = vector.broadcast %1945 : f32 to vector<8x128xf32>
      %1947 = arith.mulf %1928, %1946 : vector<8x128xf32>
      %1948 = arith.addf %1913, %1947 : vector<8x128xf32>
      %c395 = arith.constant 395 : index
      %1949 = memref.load %arg1[%c395] : memref<543xf32, #tpu.memory_space<smem>>
      %1950 = vector.broadcast %1949 : f32 to vector<8x128xf32>
      %1951 = arith.mulf %1928, %1950 : vector<8x128xf32>
      %1952 = arith.addf %1917, %1951 : vector<8x128xf32>
      %c396 = arith.constant 396 : index
      %1953 = memref.load %arg1[%c396] : memref<543xf32, #tpu.memory_space<smem>>
      %1954 = vector.broadcast %1953 : f32 to vector<8x128xf32>
      %1955 = arith.mulf %1928, %1954 : vector<8x128xf32>
      %1956 = arith.addf %1921, %1955 : vector<8x128xf32>
      %c397 = arith.constant 397 : index
      %1957 = memref.load %arg1[%c397] : memref<543xf32, #tpu.memory_space<smem>>
      %1958 = vector.broadcast %1957 : f32 to vector<8x128xf32>
      %1959 = arith.mulf %1928, %1958 : vector<8x128xf32>
      %1960 = arith.addf %1925, %1959 : vector<8x128xf32>
      %c4_215 = arith.constant 4 : index
      %1961 = arith.index_cast %4 : i32 to index
      %c0_216 = arith.constant 0 : index
      %1962 = vector.load %arg2[%c4_215, %1961, %c0_216] : memref<9x16x128xf32, #tpu.memory_space<vmem>>, vector<1x8x128xf32>
      %1963 = vector.shape_cast %1962 : vector<1x8x128xf32> to vector<8x128xf32>
      %c398 = arith.constant 398 : index
      %1964 = memref.load %arg1[%c398] : memref<543xf32, #tpu.memory_space<smem>>
      %1965 = vector.broadcast %1964 : f32 to vector<8x128xf32>
      %1966 = arith.mulf %1963, %1965 : vector<8x128xf32>
      %1967 = arith.addf %1932, %1966 : vector<8x128xf32>
      %c399 = arith.constant 399 : index
      %1968 = memref.load %arg1[%c399] : memref<543xf32, #tpu.memory_space<smem>>
      %1969 = vector.broadcast %1968 : f32 to vector<8x128xf32>
      %1970 = arith.mulf %1963, %1969 : vector<8x128xf32>
      %1971 = arith.addf %1936, %1970 : vector<8x128xf32>
      %c400 = arith.constant 400 : index
      %1972 = memref.load %arg1[%c400] : memref<543xf32, #tpu.memory_space<smem>>
      %1973 = vector.broadcast %1972 : f32 to vector<8x128xf32>
      %1974 = arith.mulf %1963, %1973 : vector<8x128xf32>
      %1975 = arith.addf %1940, %1974 : vector<8x128xf32>
      %c401 = arith.constant 401 : index
      %1976 = memref.load %arg1[%c401] : memref<543xf32, #tpu.memory_space<smem>>
      %1977 = vector.broadcast %1976 : f32 to vector<8x128xf32>
      %1978 = arith.mulf %1963, %1977 : vector<8x128xf32>
      %1979 = arith.addf %1944, %1978 : vector<8x128xf32>
      %c402 = arith.constant 402 : index
      %1980 = memref.load %arg1[%c402] : memref<543xf32, #tpu.memory_space<smem>>
      %1981 = vector.broadcast %1980 : f32 to vector<8x128xf32>
      %1982 = arith.mulf %1963, %1981 : vector<8x128xf32>
      %1983 = arith.addf %1948, %1982 : vector<8x128xf32>
      %c403 = arith.constant 403 : index
      %1984 = memref.load %arg1[%c403] : memref<543xf32, #tpu.memory_space<smem>>
      %1985 = vector.broadcast %1984 : f32 to vector<8x128xf32>
      %1986 = arith.mulf %1963, %1985 : vector<8x128xf32>
      %1987 = arith.addf %1952, %1986 : vector<8x128xf32>
      %c404 = arith.constant 404 : index
      %1988 = memref.load %arg1[%c404] : memref<543xf32, #tpu.memory_space<smem>>
      %1989 = vector.broadcast %1988 : f32 to vector<8x128xf32>
      %1990 = arith.mulf %1963, %1989 : vector<8x128xf32>
      %1991 = arith.addf %1956, %1990 : vector<8x128xf32>
      %c405 = arith.constant 405 : index
      %1992 = memref.load %arg1[%c405] : memref<543xf32, #tpu.memory_space<smem>>
      %1993 = vector.broadcast %1992 : f32 to vector<8x128xf32>
      %1994 = arith.mulf %1963, %1993 : vector<8x128xf32>
      %1995 = arith.addf %1960, %1994 : vector<8x128xf32>
      %c5_217 = arith.constant 5 : index
      %1996 = arith.index_cast %4 : i32 to index
      %c0_218 = arith.constant 0 : index
      %1997 = vector.load %arg2[%c5_217, %1996, %c0_218] : memref<9x16x128xf32, #tpu.memory_space<vmem>>, vector<1x8x128xf32>
      %1998 = vector.shape_cast %1997 : vector<1x8x128xf32> to vector<8x128xf32>
      %c406 = arith.constant 406 : index
      %1999 = memref.load %arg1[%c406] : memref<543xf32, #tpu.memory_space<smem>>
      %2000 = vector.broadcast %1999 : f32 to vector<8x128xf32>
      %2001 = arith.mulf %1998, %2000 : vector<8x128xf32>
      %2002 = arith.addf %1967, %2001 : vector<8x128xf32>
      %c407 = arith.constant 407 : index
      %2003 = memref.load %arg1[%c407] : memref<543xf32, #tpu.memory_space<smem>>
      %2004 = vector.broadcast %2003 : f32 to vector<8x128xf32>
      %2005 = arith.mulf %1998, %2004 : vector<8x128xf32>
      %2006 = arith.addf %1971, %2005 : vector<8x128xf32>
      %c408 = arith.constant 408 : index
      %2007 = memref.load %arg1[%c408] : memref<543xf32, #tpu.memory_space<smem>>
      %2008 = vector.broadcast %2007 : f32 to vector<8x128xf32>
      %2009 = arith.mulf %1998, %2008 : vector<8x128xf32>
      %2010 = arith.addf %1975, %2009 : vector<8x128xf32>
      %c409 = arith.constant 409 : index
      %2011 = memref.load %arg1[%c409] : memref<543xf32, #tpu.memory_space<smem>>
      %2012 = vector.broadcast %2011 : f32 to vector<8x128xf32>
      %2013 = arith.mulf %1998, %2012 : vector<8x128xf32>
      %2014 = arith.addf %1979, %2013 : vector<8x128xf32>
      %c410 = arith.constant 410 : index
      %2015 = memref.load %arg1[%c410] : memref<543xf32, #tpu.memory_space<smem>>
      %2016 = vector.broadcast %2015 : f32 to vector<8x128xf32>
      %2017 = arith.mulf %1998, %2016 : vector<8x128xf32>
      %2018 = arith.addf %1983, %2017 : vector<8x128xf32>
      %c411 = arith.constant 411 : index
      %2019 = memref.load %arg1[%c411] : memref<543xf32, #tpu.memory_space<smem>>
      %2020 = vector.broadcast %2019 : f32 to vector<8x128xf32>
      %2021 = arith.mulf %1998, %2020 : vector<8x128xf32>
      %2022 = arith.addf %1987, %2021 : vector<8x128xf32>
      %c412 = arith.constant 412 : index
      %2023 = memref.load %arg1[%c412] : memref<543xf32, #tpu.memory_space<smem>>
      %2024 = vector.broadcast %2023 : f32 to vector<8x128xf32>
      %2025 = arith.mulf %1998, %2024 : vector<8x128xf32>
      %2026 = arith.addf %1991, %2025 : vector<8x128xf32>
      %c413 = arith.constant 413 : index
      %2027 = memref.load %arg1[%c413] : memref<543xf32, #tpu.memory_space<smem>>
      %2028 = vector.broadcast %2027 : f32 to vector<8x128xf32>
      %2029 = arith.mulf %1998, %2028 : vector<8x128xf32>
      %2030 = arith.addf %1995, %2029 : vector<8x128xf32>
      %c6_219 = arith.constant 6 : index
      %2031 = arith.index_cast %4 : i32 to index
      %c0_220 = arith.constant 0 : index
      %2032 = vector.load %arg2[%c6_219, %2031, %c0_220] : memref<9x16x128xf32, #tpu.memory_space<vmem>>, vector<1x8x128xf32>
      %2033 = vector.shape_cast %2032 : vector<1x8x128xf32> to vector<8x128xf32>
      %c414 = arith.constant 414 : index
      %2034 = memref.load %arg1[%c414] : memref<543xf32, #tpu.memory_space<smem>>
      %2035 = vector.broadcast %2034 : f32 to vector<8x128xf32>
      %2036 = arith.mulf %2033, %2035 : vector<8x128xf32>
      %2037 = arith.addf %2002, %2036 : vector<8x128xf32>
      %c415 = arith.constant 415 : index
      %2038 = memref.load %arg1[%c415] : memref<543xf32, #tpu.memory_space<smem>>
      %2039 = vector.broadcast %2038 : f32 to vector<8x128xf32>
      %2040 = arith.mulf %2033, %2039 : vector<8x128xf32>
      %2041 = arith.addf %2006, %2040 : vector<8x128xf32>
      %c416 = arith.constant 416 : index
      %2042 = memref.load %arg1[%c416] : memref<543xf32, #tpu.memory_space<smem>>
      %2043 = vector.broadcast %2042 : f32 to vector<8x128xf32>
      %2044 = arith.mulf %2033, %2043 : vector<8x128xf32>
      %2045 = arith.addf %2010, %2044 : vector<8x128xf32>
      %c417 = arith.constant 417 : index
      %2046 = memref.load %arg1[%c417] : memref<543xf32, #tpu.memory_space<smem>>
      %2047 = vector.broadcast %2046 : f32 to vector<8x128xf32>
      %2048 = arith.mulf %2033, %2047 : vector<8x128xf32>
      %2049 = arith.addf %2014, %2048 : vector<8x128xf32>
      %c418 = arith.constant 418 : index
      %2050 = memref.load %arg1[%c418] : memref<543xf32, #tpu.memory_space<smem>>
      %2051 = vector.broadcast %2050 : f32 to vector<8x128xf32>
      %2052 = arith.mulf %2033, %2051 : vector<8x128xf32>
      %2053 = arith.addf %2018, %2052 : vector<8x128xf32>
      %c419 = arith.constant 419 : index
      %2054 = memref.load %arg1[%c419] : memref<543xf32, #tpu.memory_space<smem>>
      %2055 = vector.broadcast %2054 : f32 to vector<8x128xf32>
      %2056 = arith.mulf %2033, %2055 : vector<8x128xf32>
      %2057 = arith.addf %2022, %2056 : vector<8x128xf32>
      %c420 = arith.constant 420 : index
      %2058 = memref.load %arg1[%c420] : memref<543xf32, #tpu.memory_space<smem>>
      %2059 = vector.broadcast %2058 : f32 to vector<8x128xf32>
      %2060 = arith.mulf %2033, %2059 : vector<8x128xf32>
      %2061 = arith.addf %2026, %2060 : vector<8x128xf32>
      %c421 = arith.constant 421 : index
      %2062 = memref.load %arg1[%c421] : memref<543xf32, #tpu.memory_space<smem>>
      %2063 = vector.broadcast %2062 : f32 to vector<8x128xf32>
      %2064 = arith.mulf %2033, %2063 : vector<8x128xf32>
      %2065 = arith.addf %2030, %2064 : vector<8x128xf32>
      %c7_221 = arith.constant 7 : index
      %2066 = arith.index_cast %4 : i32 to index
      %c0_222 = arith.constant 0 : index
      %2067 = vector.load %arg2[%c7_221, %2066, %c0_222] : memref<9x16x128xf32, #tpu.memory_space<vmem>>, vector<1x8x128xf32>
      %2068 = vector.shape_cast %2067 : vector<1x8x128xf32> to vector<8x128xf32>
      %c422 = arith.constant 422 : index
      %2069 = memref.load %arg1[%c422] : memref<543xf32, #tpu.memory_space<smem>>
      %2070 = vector.broadcast %2069 : f32 to vector<8x128xf32>
      %2071 = arith.mulf %2068, %2070 : vector<8x128xf32>
      %2072 = arith.addf %2037, %2071 : vector<8x128xf32>
      %c423 = arith.constant 423 : index
      %2073 = memref.load %arg1[%c423] : memref<543xf32, #tpu.memory_space<smem>>
      %2074 = vector.broadcast %2073 : f32 to vector<8x128xf32>
      %2075 = arith.mulf %2068, %2074 : vector<8x128xf32>
      %2076 = arith.addf %2041, %2075 : vector<8x128xf32>
      %c424 = arith.constant 424 : index
      %2077 = memref.load %arg1[%c424] : memref<543xf32, #tpu.memory_space<smem>>
      %2078 = vector.broadcast %2077 : f32 to vector<8x128xf32>
      %2079 = arith.mulf %2068, %2078 : vector<8x128xf32>
      %2080 = arith.addf %2045, %2079 : vector<8x128xf32>
      %c425 = arith.constant 425 : index
      %2081 = memref.load %arg1[%c425] : memref<543xf32, #tpu.memory_space<smem>>
      %2082 = vector.broadcast %2081 : f32 to vector<8x128xf32>
      %2083 = arith.mulf %2068, %2082 : vector<8x128xf32>
      %2084 = arith.addf %2049, %2083 : vector<8x128xf32>
      %c426 = arith.constant 426 : index
      %2085 = memref.load %arg1[%c426] : memref<543xf32, #tpu.memory_space<smem>>
      %2086 = vector.broadcast %2085 : f32 to vector<8x128xf32>
      %2087 = arith.mulf %2068, %2086 : vector<8x128xf32>
      %2088 = arith.addf %2053, %2087 : vector<8x128xf32>
      %c427 = arith.constant 427 : index
      %2089 = memref.load %arg1[%c427] : memref<543xf32, #tpu.memory_space<smem>>
      %2090 = vector.broadcast %2089 : f32 to vector<8x128xf32>
      %2091 = arith.mulf %2068, %2090 : vector<8x128xf32>
      %2092 = arith.addf %2057, %2091 : vector<8x128xf32>
      %c428 = arith.constant 428 : index
      %2093 = memref.load %arg1[%c428] : memref<543xf32, #tpu.memory_space<smem>>
      %2094 = vector.broadcast %2093 : f32 to vector<8x128xf32>
      %2095 = arith.mulf %2068, %2094 : vector<8x128xf32>
      %2096 = arith.addf %2061, %2095 : vector<8x128xf32>
      %c429 = arith.constant 429 : index
      %2097 = memref.load %arg1[%c429] : memref<543xf32, #tpu.memory_space<smem>>
      %2098 = vector.broadcast %2097 : f32 to vector<8x128xf32>
      %2099 = arith.mulf %2068, %2098 : vector<8x128xf32>
      %2100 = arith.addf %2065, %2099 : vector<8x128xf32>
      %c0_223 = arith.constant 0 : index
      %2101 = arith.index_cast %4 : i32 to index
      %c0_224 = arith.constant 0 : index
      %2102 = vector.load %arg3[%c0_223, %2101, %c0_224] : memref<8x16x128xf32, #tpu.memory_space<vmem>>, vector<1x8x128xf32>
      %2103 = vector.shape_cast %2102 : vector<1x8x128xf32> to vector<8x128xf32>
      %c430 = arith.constant 430 : index
      %2104 = memref.load %arg1[%c430] : memref<543xf32, #tpu.memory_space<smem>>
      %2105 = vector.broadcast %2104 : f32 to vector<8x128xf32>
      %2106 = arith.mulf %2103, %2105 : vector<8x128xf32>
      %2107 = arith.addf %2072, %2106 : vector<8x128xf32>
      %c431 = arith.constant 431 : index
      %2108 = memref.load %arg1[%c431] : memref<543xf32, #tpu.memory_space<smem>>
      %2109 = vector.broadcast %2108 : f32 to vector<8x128xf32>
      %2110 = arith.mulf %2103, %2109 : vector<8x128xf32>
      %2111 = arith.addf %2076, %2110 : vector<8x128xf32>
      %c432 = arith.constant 432 : index
      %2112 = memref.load %arg1[%c432] : memref<543xf32, #tpu.memory_space<smem>>
      %2113 = vector.broadcast %2112 : f32 to vector<8x128xf32>
      %2114 = arith.mulf %2103, %2113 : vector<8x128xf32>
      %2115 = arith.addf %2080, %2114 : vector<8x128xf32>
      %c433 = arith.constant 433 : index
      %2116 = memref.load %arg1[%c433] : memref<543xf32, #tpu.memory_space<smem>>
      %2117 = vector.broadcast %2116 : f32 to vector<8x128xf32>
      %2118 = arith.mulf %2103, %2117 : vector<8x128xf32>
      %2119 = arith.addf %2084, %2118 : vector<8x128xf32>
      %c434 = arith.constant 434 : index
      %2120 = memref.load %arg1[%c434] : memref<543xf32, #tpu.memory_space<smem>>
      %2121 = vector.broadcast %2120 : f32 to vector<8x128xf32>
      %2122 = arith.mulf %2103, %2121 : vector<8x128xf32>
      %2123 = arith.addf %2088, %2122 : vector<8x128xf32>
      %c435 = arith.constant 435 : index
      %2124 = memref.load %arg1[%c435] : memref<543xf32, #tpu.memory_space<smem>>
      %2125 = vector.broadcast %2124 : f32 to vector<8x128xf32>
      %2126 = arith.mulf %2103, %2125 : vector<8x128xf32>
      %2127 = arith.addf %2092, %2126 : vector<8x128xf32>
      %c436 = arith.constant 436 : index
      %2128 = memref.load %arg1[%c436] : memref<543xf32, #tpu.memory_space<smem>>
      %2129 = vector.broadcast %2128 : f32 to vector<8x128xf32>
      %2130 = arith.mulf %2103, %2129 : vector<8x128xf32>
      %2131 = arith.addf %2096, %2130 : vector<8x128xf32>
      %c437 = arith.constant 437 : index
      %2132 = memref.load %arg1[%c437] : memref<543xf32, #tpu.memory_space<smem>>
      %2133 = vector.broadcast %2132 : f32 to vector<8x128xf32>
      %2134 = arith.mulf %2103, %2133 : vector<8x128xf32>
      %2135 = arith.addf %2100, %2134 : vector<8x128xf32>
      %c1_225 = arith.constant 1 : index
      %2136 = arith.index_cast %4 : i32 to index
      %c0_226 = arith.constant 0 : index
      %2137 = vector.load %arg3[%c1_225, %2136, %c0_226] : memref<8x16x128xf32, #tpu.memory_space<vmem>>, vector<1x8x128xf32>
      %2138 = vector.shape_cast %2137 : vector<1x8x128xf32> to vector<8x128xf32>
      %c438 = arith.constant 438 : index
      %2139 = memref.load %arg1[%c438] : memref<543xf32, #tpu.memory_space<smem>>
      %2140 = vector.broadcast %2139 : f32 to vector<8x128xf32>
      %2141 = arith.mulf %2138, %2140 : vector<8x128xf32>
      %2142 = arith.addf %2107, %2141 : vector<8x128xf32>
      %c439 = arith.constant 439 : index
      %2143 = memref.load %arg1[%c439] : memref<543xf32, #tpu.memory_space<smem>>
      %2144 = vector.broadcast %2143 : f32 to vector<8x128xf32>
      %2145 = arith.mulf %2138, %2144 : vector<8x128xf32>
      %2146 = arith.addf %2111, %2145 : vector<8x128xf32>
      %c440 = arith.constant 440 : index
      %2147 = memref.load %arg1[%c440] : memref<543xf32, #tpu.memory_space<smem>>
      %2148 = vector.broadcast %2147 : f32 to vector<8x128xf32>
      %2149 = arith.mulf %2138, %2148 : vector<8x128xf32>
      %2150 = arith.addf %2115, %2149 : vector<8x128xf32>
      %c441 = arith.constant 441 : index
      %2151 = memref.load %arg1[%c441] : memref<543xf32, #tpu.memory_space<smem>>
      %2152 = vector.broadcast %2151 : f32 to vector<8x128xf32>
      %2153 = arith.mulf %2138, %2152 : vector<8x128xf32>
      %2154 = arith.addf %2119, %2153 : vector<8x128xf32>
      %c442 = arith.constant 442 : index
      %2155 = memref.load %arg1[%c442] : memref<543xf32, #tpu.memory_space<smem>>
      %2156 = vector.broadcast %2155 : f32 to vector<8x128xf32>
      %2157 = arith.mulf %2138, %2156 : vector<8x128xf32>
      %2158 = arith.addf %2123, %2157 : vector<8x128xf32>
      %c443 = arith.constant 443 : index
      %2159 = memref.load %arg1[%c443] : memref<543xf32, #tpu.memory_space<smem>>
      %2160 = vector.broadcast %2159 : f32 to vector<8x128xf32>
      %2161 = arith.mulf %2138, %2160 : vector<8x128xf32>
      %2162 = arith.addf %2127, %2161 : vector<8x128xf32>
      %c444 = arith.constant 444 : index
      %2163 = memref.load %arg1[%c444] : memref<543xf32, #tpu.memory_space<smem>>
      %2164 = vector.broadcast %2163 : f32 to vector<8x128xf32>
      %2165 = arith.mulf %2138, %2164 : vector<8x128xf32>
      %2166 = arith.addf %2131, %2165 : vector<8x128xf32>
      %c445 = arith.constant 445 : index
      %2167 = memref.load %arg1[%c445] : memref<543xf32, #tpu.memory_space<smem>>
      %2168 = vector.broadcast %2167 : f32 to vector<8x128xf32>
      %2169 = arith.mulf %2138, %2168 : vector<8x128xf32>
      %2170 = arith.addf %2135, %2169 : vector<8x128xf32>
      %c2_227 = arith.constant 2 : index
      %2171 = arith.index_cast %4 : i32 to index
      %c0_228 = arith.constant 0 : index
      %2172 = vector.load %arg3[%c2_227, %2171, %c0_228] : memref<8x16x128xf32, #tpu.memory_space<vmem>>, vector<1x8x128xf32>
      %2173 = vector.shape_cast %2172 : vector<1x8x128xf32> to vector<8x128xf32>
      %c446 = arith.constant 446 : index
      %2174 = memref.load %arg1[%c446] : memref<543xf32, #tpu.memory_space<smem>>
      %2175 = vector.broadcast %2174 : f32 to vector<8x128xf32>
      %2176 = arith.mulf %2173, %2175 : vector<8x128xf32>
      %2177 = arith.addf %2142, %2176 : vector<8x128xf32>
      %c447 = arith.constant 447 : index
      %2178 = memref.load %arg1[%c447] : memref<543xf32, #tpu.memory_space<smem>>
      %2179 = vector.broadcast %2178 : f32 to vector<8x128xf32>
      %2180 = arith.mulf %2173, %2179 : vector<8x128xf32>
      %2181 = arith.addf %2146, %2180 : vector<8x128xf32>
      %c448 = arith.constant 448 : index
      %2182 = memref.load %arg1[%c448] : memref<543xf32, #tpu.memory_space<smem>>
      %2183 = vector.broadcast %2182 : f32 to vector<8x128xf32>
      %2184 = arith.mulf %2173, %2183 : vector<8x128xf32>
      %2185 = arith.addf %2150, %2184 : vector<8x128xf32>
      %c449 = arith.constant 449 : index
      %2186 = memref.load %arg1[%c449] : memref<543xf32, #tpu.memory_space<smem>>
      %2187 = vector.broadcast %2186 : f32 to vector<8x128xf32>
      %2188 = arith.mulf %2173, %2187 : vector<8x128xf32>
      %2189 = arith.addf %2154, %2188 : vector<8x128xf32>
      %c450 = arith.constant 450 : index
      %2190 = memref.load %arg1[%c450] : memref<543xf32, #tpu.memory_space<smem>>
      %2191 = vector.broadcast %2190 : f32 to vector<8x128xf32>
      %2192 = arith.mulf %2173, %2191 : vector<8x128xf32>
      %2193 = arith.addf %2158, %2192 : vector<8x128xf32>
      %c451 = arith.constant 451 : index
      %2194 = memref.load %arg1[%c451] : memref<543xf32, #tpu.memory_space<smem>>
      %2195 = vector.broadcast %2194 : f32 to vector<8x128xf32>
      %2196 = arith.mulf %2173, %2195 : vector<8x128xf32>
      %2197 = arith.addf %2162, %2196 : vector<8x128xf32>
      %c452 = arith.constant 452 : index
      %2198 = memref.load %arg1[%c452] : memref<543xf32, #tpu.memory_space<smem>>
      %2199 = vector.broadcast %2198 : f32 to vector<8x128xf32>
      %2200 = arith.mulf %2173, %2199 : vector<8x128xf32>
      %2201 = arith.addf %2166, %2200 : vector<8x128xf32>
      %c453 = arith.constant 453 : index
      %2202 = memref.load %arg1[%c453] : memref<543xf32, #tpu.memory_space<smem>>
      %2203 = vector.broadcast %2202 : f32 to vector<8x128xf32>
      %2204 = arith.mulf %2173, %2203 : vector<8x128xf32>
      %2205 = arith.addf %2170, %2204 : vector<8x128xf32>
      %c3_229 = arith.constant 3 : index
      %2206 = arith.index_cast %4 : i32 to index
      %c0_230 = arith.constant 0 : index
      %2207 = vector.load %arg3[%c3_229, %2206, %c0_230] : memref<8x16x128xf32, #tpu.memory_space<vmem>>, vector<1x8x128xf32>
      %2208 = vector.shape_cast %2207 : vector<1x8x128xf32> to vector<8x128xf32>
      %c454 = arith.constant 454 : index
      %2209 = memref.load %arg1[%c454] : memref<543xf32, #tpu.memory_space<smem>>
      %2210 = vector.broadcast %2209 : f32 to vector<8x128xf32>
      %2211 = arith.mulf %2208, %2210 : vector<8x128xf32>
      %2212 = arith.addf %2177, %2211 : vector<8x128xf32>
      %c455 = arith.constant 455 : index
      %2213 = memref.load %arg1[%c455] : memref<543xf32, #tpu.memory_space<smem>>
      %2214 = vector.broadcast %2213 : f32 to vector<8x128xf32>
      %2215 = arith.mulf %2208, %2214 : vector<8x128xf32>
      %2216 = arith.addf %2181, %2215 : vector<8x128xf32>
      %c456 = arith.constant 456 : index
      %2217 = memref.load %arg1[%c456] : memref<543xf32, #tpu.memory_space<smem>>
      %2218 = vector.broadcast %2217 : f32 to vector<8x128xf32>
      %2219 = arith.mulf %2208, %2218 : vector<8x128xf32>
      %2220 = arith.addf %2185, %2219 : vector<8x128xf32>
      %c457 = arith.constant 457 : index
      %2221 = memref.load %arg1[%c457] : memref<543xf32, #tpu.memory_space<smem>>
      %2222 = vector.broadcast %2221 : f32 to vector<8x128xf32>
      %2223 = arith.mulf %2208, %2222 : vector<8x128xf32>
      %2224 = arith.addf %2189, %2223 : vector<8x128xf32>
      %c458 = arith.constant 458 : index
      %2225 = memref.load %arg1[%c458] : memref<543xf32, #tpu.memory_space<smem>>
      %2226 = vector.broadcast %2225 : f32 to vector<8x128xf32>
      %2227 = arith.mulf %2208, %2226 : vector<8x128xf32>
      %2228 = arith.addf %2193, %2227 : vector<8x128xf32>
      %c459 = arith.constant 459 : index
      %2229 = memref.load %arg1[%c459] : memref<543xf32, #tpu.memory_space<smem>>
      %2230 = vector.broadcast %2229 : f32 to vector<8x128xf32>
      %2231 = arith.mulf %2208, %2230 : vector<8x128xf32>
      %2232 = arith.addf %2197, %2231 : vector<8x128xf32>
      %c460 = arith.constant 460 : index
      %2233 = memref.load %arg1[%c460] : memref<543xf32, #tpu.memory_space<smem>>
      %2234 = vector.broadcast %2233 : f32 to vector<8x128xf32>
      %2235 = arith.mulf %2208, %2234 : vector<8x128xf32>
      %2236 = arith.addf %2201, %2235 : vector<8x128xf32>
      %c461 = arith.constant 461 : index
      %2237 = memref.load %arg1[%c461] : memref<543xf32, #tpu.memory_space<smem>>
      %2238 = vector.broadcast %2237 : f32 to vector<8x128xf32>
      %2239 = arith.mulf %2208, %2238 : vector<8x128xf32>
      %2240 = arith.addf %2205, %2239 : vector<8x128xf32>
      %c4_231 = arith.constant 4 : index
      %2241 = arith.index_cast %4 : i32 to index
      %c0_232 = arith.constant 0 : index
      %2242 = vector.load %arg3[%c4_231, %2241, %c0_232] : memref<8x16x128xf32, #tpu.memory_space<vmem>>, vector<1x8x128xf32>
      %2243 = vector.shape_cast %2242 : vector<1x8x128xf32> to vector<8x128xf32>
      %c462 = arith.constant 462 : index
      %2244 = memref.load %arg1[%c462] : memref<543xf32, #tpu.memory_space<smem>>
      %2245 = vector.broadcast %2244 : f32 to vector<8x128xf32>
      %2246 = arith.mulf %2243, %2245 : vector<8x128xf32>
      %2247 = arith.addf %2212, %2246 : vector<8x128xf32>
      %c463 = arith.constant 463 : index
      %2248 = memref.load %arg1[%c463] : memref<543xf32, #tpu.memory_space<smem>>
      %2249 = vector.broadcast %2248 : f32 to vector<8x128xf32>
      %2250 = arith.mulf %2243, %2249 : vector<8x128xf32>
      %2251 = arith.addf %2216, %2250 : vector<8x128xf32>
      %c464 = arith.constant 464 : index
      %2252 = memref.load %arg1[%c464] : memref<543xf32, #tpu.memory_space<smem>>
      %2253 = vector.broadcast %2252 : f32 to vector<8x128xf32>
      %2254 = arith.mulf %2243, %2253 : vector<8x128xf32>
      %2255 = arith.addf %2220, %2254 : vector<8x128xf32>
      %c465 = arith.constant 465 : index
      %2256 = memref.load %arg1[%c465] : memref<543xf32, #tpu.memory_space<smem>>
      %2257 = vector.broadcast %2256 : f32 to vector<8x128xf32>
      %2258 = arith.mulf %2243, %2257 : vector<8x128xf32>
      %2259 = arith.addf %2224, %2258 : vector<8x128xf32>
      %c466 = arith.constant 466 : index
      %2260 = memref.load %arg1[%c466] : memref<543xf32, #tpu.memory_space<smem>>
      %2261 = vector.broadcast %2260 : f32 to vector<8x128xf32>
      %2262 = arith.mulf %2243, %2261 : vector<8x128xf32>
      %2263 = arith.addf %2228, %2262 : vector<8x128xf32>
      %c467 = arith.constant 467 : index
      %2264 = memref.load %arg1[%c467] : memref<543xf32, #tpu.memory_space<smem>>
      %2265 = vector.broadcast %2264 : f32 to vector<8x128xf32>
      %2266 = arith.mulf %2243, %2265 : vector<8x128xf32>
      %2267 = arith.addf %2232, %2266 : vector<8x128xf32>
      %c468 = arith.constant 468 : index
      %2268 = memref.load %arg1[%c468] : memref<543xf32, #tpu.memory_space<smem>>
      %2269 = vector.broadcast %2268 : f32 to vector<8x128xf32>
      %2270 = arith.mulf %2243, %2269 : vector<8x128xf32>
      %2271 = arith.addf %2236, %2270 : vector<8x128xf32>
      %c469 = arith.constant 469 : index
      %2272 = memref.load %arg1[%c469] : memref<543xf32, #tpu.memory_space<smem>>
      %2273 = vector.broadcast %2272 : f32 to vector<8x128xf32>
      %2274 = arith.mulf %2243, %2273 : vector<8x128xf32>
      %2275 = arith.addf %2240, %2274 : vector<8x128xf32>
      %c5_233 = arith.constant 5 : index
      %2276 = arith.index_cast %4 : i32 to index
      %c0_234 = arith.constant 0 : index
      %2277 = vector.load %arg3[%c5_233, %2276, %c0_234] : memref<8x16x128xf32, #tpu.memory_space<vmem>>, vector<1x8x128xf32>
      %2278 = vector.shape_cast %2277 : vector<1x8x128xf32> to vector<8x128xf32>
      %c470 = arith.constant 470 : index
      %2279 = memref.load %arg1[%c470] : memref<543xf32, #tpu.memory_space<smem>>
      %2280 = vector.broadcast %2279 : f32 to vector<8x128xf32>
      %2281 = arith.mulf %2278, %2280 : vector<8x128xf32>
      %2282 = arith.addf %2247, %2281 : vector<8x128xf32>
      %c471 = arith.constant 471 : index
      %2283 = memref.load %arg1[%c471] : memref<543xf32, #tpu.memory_space<smem>>
      %2284 = vector.broadcast %2283 : f32 to vector<8x128xf32>
      %2285 = arith.mulf %2278, %2284 : vector<8x128xf32>
      %2286 = arith.addf %2251, %2285 : vector<8x128xf32>
      %c472 = arith.constant 472 : index
      %2287 = memref.load %arg1[%c472] : memref<543xf32, #tpu.memory_space<smem>>
      %2288 = vector.broadcast %2287 : f32 to vector<8x128xf32>
      %2289 = arith.mulf %2278, %2288 : vector<8x128xf32>
      %2290 = arith.addf %2255, %2289 : vector<8x128xf32>
      %c473 = arith.constant 473 : index
      %2291 = memref.load %arg1[%c473] : memref<543xf32, #tpu.memory_space<smem>>
      %2292 = vector.broadcast %2291 : f32 to vector<8x128xf32>
      %2293 = arith.mulf %2278, %2292 : vector<8x128xf32>
      %2294 = arith.addf %2259, %2293 : vector<8x128xf32>
      %c474 = arith.constant 474 : index
      %2295 = memref.load %arg1[%c474] : memref<543xf32, #tpu.memory_space<smem>>
      %2296 = vector.broadcast %2295 : f32 to vector<8x128xf32>
      %2297 = arith.mulf %2278, %2296 : vector<8x128xf32>
      %2298 = arith.addf %2263, %2297 : vector<8x128xf32>
      %c475 = arith.constant 475 : index
      %2299 = memref.load %arg1[%c475] : memref<543xf32, #tpu.memory_space<smem>>
      %2300 = vector.broadcast %2299 : f32 to vector<8x128xf32>
      %2301 = arith.mulf %2278, %2300 : vector<8x128xf32>
      %2302 = arith.addf %2267, %2301 : vector<8x128xf32>
      %c476 = arith.constant 476 : index
      %2303 = memref.load %arg1[%c476] : memref<543xf32, #tpu.memory_space<smem>>
      %2304 = vector.broadcast %2303 : f32 to vector<8x128xf32>
      %2305 = arith.mulf %2278, %2304 : vector<8x128xf32>
      %2306 = arith.addf %2271, %2305 : vector<8x128xf32>
      %c477 = arith.constant 477 : index
      %2307 = memref.load %arg1[%c477] : memref<543xf32, #tpu.memory_space<smem>>
      %2308 = vector.broadcast %2307 : f32 to vector<8x128xf32>
      %2309 = arith.mulf %2278, %2308 : vector<8x128xf32>
      %2310 = arith.addf %2275, %2309 : vector<8x128xf32>
      %c6_235 = arith.constant 6 : index
      %2311 = arith.index_cast %4 : i32 to index
      %c0_236 = arith.constant 0 : index
      %2312 = vector.load %arg3[%c6_235, %2311, %c0_236] : memref<8x16x128xf32, #tpu.memory_space<vmem>>, vector<1x8x128xf32>
      %2313 = vector.shape_cast %2312 : vector<1x8x128xf32> to vector<8x128xf32>
      %c478 = arith.constant 478 : index
      %2314 = memref.load %arg1[%c478] : memref<543xf32, #tpu.memory_space<smem>>
      %2315 = vector.broadcast %2314 : f32 to vector<8x128xf32>
      %2316 = arith.mulf %2313, %2315 : vector<8x128xf32>
      %2317 = arith.addf %2282, %2316 : vector<8x128xf32>
      %c479 = arith.constant 479 : index
      %2318 = memref.load %arg1[%c479] : memref<543xf32, #tpu.memory_space<smem>>
      %2319 = vector.broadcast %2318 : f32 to vector<8x128xf32>
      %2320 = arith.mulf %2313, %2319 : vector<8x128xf32>
      %2321 = arith.addf %2286, %2320 : vector<8x128xf32>
      %c480 = arith.constant 480 : index
      %2322 = memref.load %arg1[%c480] : memref<543xf32, #tpu.memory_space<smem>>
      %2323 = vector.broadcast %2322 : f32 to vector<8x128xf32>
      %2324 = arith.mulf %2313, %2323 : vector<8x128xf32>
      %2325 = arith.addf %2290, %2324 : vector<8x128xf32>
      %c481 = arith.constant 481 : index
      %2326 = memref.load %arg1[%c481] : memref<543xf32, #tpu.memory_space<smem>>
      %2327 = vector.broadcast %2326 : f32 to vector<8x128xf32>
      %2328 = arith.mulf %2313, %2327 : vector<8x128xf32>
      %2329 = arith.addf %2294, %2328 : vector<8x128xf32>
      %c482 = arith.constant 482 : index
      %2330 = memref.load %arg1[%c482] : memref<543xf32, #tpu.memory_space<smem>>
      %2331 = vector.broadcast %2330 : f32 to vector<8x128xf32>
      %2332 = arith.mulf %2313, %2331 : vector<8x128xf32>
      %2333 = arith.addf %2298, %2332 : vector<8x128xf32>
      %c483 = arith.constant 483 : index
      %2334 = memref.load %arg1[%c483] : memref<543xf32, #tpu.memory_space<smem>>
      %2335 = vector.broadcast %2334 : f32 to vector<8x128xf32>
      %2336 = arith.mulf %2313, %2335 : vector<8x128xf32>
      %2337 = arith.addf %2302, %2336 : vector<8x128xf32>
      %c484 = arith.constant 484 : index
      %2338 = memref.load %arg1[%c484] : memref<543xf32, #tpu.memory_space<smem>>
      %2339 = vector.broadcast %2338 : f32 to vector<8x128xf32>
      %2340 = arith.mulf %2313, %2339 : vector<8x128xf32>
      %2341 = arith.addf %2306, %2340 : vector<8x128xf32>
      %c485 = arith.constant 485 : index
      %2342 = memref.load %arg1[%c485] : memref<543xf32, #tpu.memory_space<smem>>
      %2343 = vector.broadcast %2342 : f32 to vector<8x128xf32>
      %2344 = arith.mulf %2313, %2343 : vector<8x128xf32>
      %2345 = arith.addf %2310, %2344 : vector<8x128xf32>
      %cst_237 = arith.constant 0.00999999977 : f32
      %2346 = vector.broadcast %cst_237 : f32 to vector<8x128xf32>
      %2347 = arith.mulf %2346, %2317 : vector<8x128xf32>
      %2348 = arith.maximumf %2317, %2347 : vector<8x128xf32>
      %cst_238 = arith.constant 0.00999999977 : f32
      %2349 = vector.broadcast %cst_238 : f32 to vector<8x128xf32>
      %2350 = arith.mulf %2349, %2321 : vector<8x128xf32>
      %2351 = arith.maximumf %2321, %2350 : vector<8x128xf32>
      %cst_239 = arith.constant 0.00999999977 : f32
      %2352 = vector.broadcast %cst_239 : f32 to vector<8x128xf32>
      %2353 = arith.mulf %2352, %2325 : vector<8x128xf32>
      %2354 = arith.maximumf %2325, %2353 : vector<8x128xf32>
      %cst_240 = arith.constant 0.00999999977 : f32
      %2355 = vector.broadcast %cst_240 : f32 to vector<8x128xf32>
      %2356 = arith.mulf %2355, %2329 : vector<8x128xf32>
      %2357 = arith.maximumf %2329, %2356 : vector<8x128xf32>
      %cst_241 = arith.constant 0.00999999977 : f32
      %2358 = vector.broadcast %cst_241 : f32 to vector<8x128xf32>
      %2359 = arith.mulf %2358, %2333 : vector<8x128xf32>
      %2360 = arith.maximumf %2333, %2359 : vector<8x128xf32>
      %cst_242 = arith.constant 0.00999999977 : f32
      %2361 = vector.broadcast %cst_242 : f32 to vector<8x128xf32>
      %2362 = arith.mulf %2361, %2337 : vector<8x128xf32>
      %2363 = arith.maximumf %2337, %2362 : vector<8x128xf32>
      %cst_243 = arith.constant 0.00999999977 : f32
      %2364 = vector.broadcast %cst_243 : f32 to vector<8x128xf32>
      %2365 = arith.mulf %2364, %2341 : vector<8x128xf32>
      %2366 = arith.maximumf %2341, %2365 : vector<8x128xf32>
      %cst_244 = arith.constant 0.00999999977 : f32
      %2367 = vector.broadcast %cst_244 : f32 to vector<8x128xf32>
      %2368 = arith.mulf %2367, %2345 : vector<8x128xf32>
      %2369 = arith.maximumf %2345, %2368 : vector<8x128xf32>
      %c526 = arith.constant 526 : index
      %2370 = memref.load %arg1[%c526] : memref<543xf32, #tpu.memory_space<smem>>
      %2371 = vector.broadcast %2370 : f32 to vector<8x128xf32>
      %c527 = arith.constant 527 : index
      %2372 = memref.load %arg1[%c527] : memref<543xf32, #tpu.memory_space<smem>>
      %2373 = vector.broadcast %2372 : f32 to vector<8x128xf32>
      %c528 = arith.constant 528 : index
      %2374 = memref.load %arg1[%c528] : memref<543xf32, #tpu.memory_space<smem>>
      %2375 = vector.broadcast %2374 : f32 to vector<8x128xf32>
      %c529 = arith.constant 529 : index
      %2376 = memref.load %arg1[%c529] : memref<543xf32, #tpu.memory_space<smem>>
      %2377 = vector.broadcast %2376 : f32 to vector<8x128xf32>
      %c494 = arith.constant 494 : index
      %2378 = memref.load %arg1[%c494] : memref<543xf32, #tpu.memory_space<smem>>
      %2379 = vector.broadcast %2378 : f32 to vector<8x128xf32>
      %2380 = arith.mulf %2348, %2379 : vector<8x128xf32>
      %2381 = arith.addf %2371, %2380 : vector<8x128xf32>
      %c495 = arith.constant 495 : index
      %2382 = memref.load %arg1[%c495] : memref<543xf32, #tpu.memory_space<smem>>
      %2383 = vector.broadcast %2382 : f32 to vector<8x128xf32>
      %2384 = arith.mulf %2348, %2383 : vector<8x128xf32>
      %2385 = arith.addf %2373, %2384 : vector<8x128xf32>
      %c496 = arith.constant 496 : index
      %2386 = memref.load %arg1[%c496] : memref<543xf32, #tpu.memory_space<smem>>
      %2387 = vector.broadcast %2386 : f32 to vector<8x128xf32>
      %2388 = arith.mulf %2348, %2387 : vector<8x128xf32>
      %2389 = arith.addf %2375, %2388 : vector<8x128xf32>
      %c497 = arith.constant 497 : index
      %2390 = memref.load %arg1[%c497] : memref<543xf32, #tpu.memory_space<smem>>
      %2391 = vector.broadcast %2390 : f32 to vector<8x128xf32>
      %2392 = arith.mulf %2348, %2391 : vector<8x128xf32>
      %2393 = arith.addf %2377, %2392 : vector<8x128xf32>
      %c498 = arith.constant 498 : index
      %2394 = memref.load %arg1[%c498] : memref<543xf32, #tpu.memory_space<smem>>
      %2395 = vector.broadcast %2394 : f32 to vector<8x128xf32>
      %2396 = arith.mulf %2351, %2395 : vector<8x128xf32>
      %2397 = arith.addf %2381, %2396 : vector<8x128xf32>
      %c499 = arith.constant 499 : index
      %2398 = memref.load %arg1[%c499] : memref<543xf32, #tpu.memory_space<smem>>
      %2399 = vector.broadcast %2398 : f32 to vector<8x128xf32>
      %2400 = arith.mulf %2351, %2399 : vector<8x128xf32>
      %2401 = arith.addf %2385, %2400 : vector<8x128xf32>
      %c500 = arith.constant 500 : index
      %2402 = memref.load %arg1[%c500] : memref<543xf32, #tpu.memory_space<smem>>
      %2403 = vector.broadcast %2402 : f32 to vector<8x128xf32>
      %2404 = arith.mulf %2351, %2403 : vector<8x128xf32>
      %2405 = arith.addf %2389, %2404 : vector<8x128xf32>
      %c501 = arith.constant 501 : index
      %2406 = memref.load %arg1[%c501] : memref<543xf32, #tpu.memory_space<smem>>
      %2407 = vector.broadcast %2406 : f32 to vector<8x128xf32>
      %2408 = arith.mulf %2351, %2407 : vector<8x128xf32>
      %2409 = arith.addf %2393, %2408 : vector<8x128xf32>
      %c502 = arith.constant 502 : index
      %2410 = memref.load %arg1[%c502] : memref<543xf32, #tpu.memory_space<smem>>
      %2411 = vector.broadcast %2410 : f32 to vector<8x128xf32>
      %2412 = arith.mulf %2354, %2411 : vector<8x128xf32>
      %2413 = arith.addf %2397, %2412 : vector<8x128xf32>
      %c503 = arith.constant 503 : index
      %2414 = memref.load %arg1[%c503] : memref<543xf32, #tpu.memory_space<smem>>
      %2415 = vector.broadcast %2414 : f32 to vector<8x128xf32>
      %2416 = arith.mulf %2354, %2415 : vector<8x128xf32>
      %2417 = arith.addf %2401, %2416 : vector<8x128xf32>
      %c504 = arith.constant 504 : index
      %2418 = memref.load %arg1[%c504] : memref<543xf32, #tpu.memory_space<smem>>
      %2419 = vector.broadcast %2418 : f32 to vector<8x128xf32>
      %2420 = arith.mulf %2354, %2419 : vector<8x128xf32>
      %2421 = arith.addf %2405, %2420 : vector<8x128xf32>
      %c505 = arith.constant 505 : index
      %2422 = memref.load %arg1[%c505] : memref<543xf32, #tpu.memory_space<smem>>
      %2423 = vector.broadcast %2422 : f32 to vector<8x128xf32>
      %2424 = arith.mulf %2354, %2423 : vector<8x128xf32>
      %2425 = arith.addf %2409, %2424 : vector<8x128xf32>
      %c506 = arith.constant 506 : index
      %2426 = memref.load %arg1[%c506] : memref<543xf32, #tpu.memory_space<smem>>
      %2427 = vector.broadcast %2426 : f32 to vector<8x128xf32>
      %2428 = arith.mulf %2357, %2427 : vector<8x128xf32>
      %2429 = arith.addf %2413, %2428 : vector<8x128xf32>
      %c507 = arith.constant 507 : index
      %2430 = memref.load %arg1[%c507] : memref<543xf32, #tpu.memory_space<smem>>
      %2431 = vector.broadcast %2430 : f32 to vector<8x128xf32>
      %2432 = arith.mulf %2357, %2431 : vector<8x128xf32>
      %2433 = arith.addf %2417, %2432 : vector<8x128xf32>
      %c508 = arith.constant 508 : index
      %2434 = memref.load %arg1[%c508] : memref<543xf32, #tpu.memory_space<smem>>
      %2435 = vector.broadcast %2434 : f32 to vector<8x128xf32>
      %2436 = arith.mulf %2357, %2435 : vector<8x128xf32>
      %2437 = arith.addf %2421, %2436 : vector<8x128xf32>
      %c509 = arith.constant 509 : index
      %2438 = memref.load %arg1[%c509] : memref<543xf32, #tpu.memory_space<smem>>
      %2439 = vector.broadcast %2438 : f32 to vector<8x128xf32>
      %2440 = arith.mulf %2357, %2439 : vector<8x128xf32>
      %2441 = arith.addf %2425, %2440 : vector<8x128xf32>
      %c510 = arith.constant 510 : index
      %2442 = memref.load %arg1[%c510] : memref<543xf32, #tpu.memory_space<smem>>
      %2443 = vector.broadcast %2442 : f32 to vector<8x128xf32>
      %2444 = arith.mulf %2360, %2443 : vector<8x128xf32>
      %2445 = arith.addf %2429, %2444 : vector<8x128xf32>
      %c511 = arith.constant 511 : index
      %2446 = memref.load %arg1[%c511] : memref<543xf32, #tpu.memory_space<smem>>
      %2447 = vector.broadcast %2446 : f32 to vector<8x128xf32>
      %2448 = arith.mulf %2360, %2447 : vector<8x128xf32>
      %2449 = arith.addf %2433, %2448 : vector<8x128xf32>
      %c512 = arith.constant 512 : index
      %2450 = memref.load %arg1[%c512] : memref<543xf32, #tpu.memory_space<smem>>
      %2451 = vector.broadcast %2450 : f32 to vector<8x128xf32>
      %2452 = arith.mulf %2360, %2451 : vector<8x128xf32>
      %2453 = arith.addf %2437, %2452 : vector<8x128xf32>
      %c513 = arith.constant 513 : index
      %2454 = memref.load %arg1[%c513] : memref<543xf32, #tpu.memory_space<smem>>
      %2455 = vector.broadcast %2454 : f32 to vector<8x128xf32>
      %2456 = arith.mulf %2360, %2455 : vector<8x128xf32>
      %2457 = arith.addf %2441, %2456 : vector<8x128xf32>
      %c514 = arith.constant 514 : index
      %2458 = memref.load %arg1[%c514] : memref<543xf32, #tpu.memory_space<smem>>
      %2459 = vector.broadcast %2458 : f32 to vector<8x128xf32>
      %2460 = arith.mulf %2363, %2459 : vector<8x128xf32>
      %2461 = arith.addf %2445, %2460 : vector<8x128xf32>
      %c515 = arith.constant 515 : index
      %2462 = memref.load %arg1[%c515] : memref<543xf32, #tpu.memory_space<smem>>
      %2463 = vector.broadcast %2462 : f32 to vector<8x128xf32>
      %2464 = arith.mulf %2363, %2463 : vector<8x128xf32>
      %2465 = arith.addf %2449, %2464 : vector<8x128xf32>
      %c516 = arith.constant 516 : index
      %2466 = memref.load %arg1[%c516] : memref<543xf32, #tpu.memory_space<smem>>
      %2467 = vector.broadcast %2466 : f32 to vector<8x128xf32>
      %2468 = arith.mulf %2363, %2467 : vector<8x128xf32>
      %2469 = arith.addf %2453, %2468 : vector<8x128xf32>
      %c517 = arith.constant 517 : index
      %2470 = memref.load %arg1[%c517] : memref<543xf32, #tpu.memory_space<smem>>
      %2471 = vector.broadcast %2470 : f32 to vector<8x128xf32>
      %2472 = arith.mulf %2363, %2471 : vector<8x128xf32>
      %2473 = arith.addf %2457, %2472 : vector<8x128xf32>
      %c518 = arith.constant 518 : index
      %2474 = memref.load %arg1[%c518] : memref<543xf32, #tpu.memory_space<smem>>
      %2475 = vector.broadcast %2474 : f32 to vector<8x128xf32>
      %2476 = arith.mulf %2366, %2475 : vector<8x128xf32>
      %2477 = arith.addf %2461, %2476 : vector<8x128xf32>
      %c519 = arith.constant 519 : index
      %2478 = memref.load %arg1[%c519] : memref<543xf32, #tpu.memory_space<smem>>
      %2479 = vector.broadcast %2478 : f32 to vector<8x128xf32>
      %2480 = arith.mulf %2366, %2479 : vector<8x128xf32>
      %2481 = arith.addf %2465, %2480 : vector<8x128xf32>
      %c520 = arith.constant 520 : index
      %2482 = memref.load %arg1[%c520] : memref<543xf32, #tpu.memory_space<smem>>
      %2483 = vector.broadcast %2482 : f32 to vector<8x128xf32>
      %2484 = arith.mulf %2366, %2483 : vector<8x128xf32>
      %2485 = arith.addf %2469, %2484 : vector<8x128xf32>
      %c521 = arith.constant 521 : index
      %2486 = memref.load %arg1[%c521] : memref<543xf32, #tpu.memory_space<smem>>
      %2487 = vector.broadcast %2486 : f32 to vector<8x128xf32>
      %2488 = arith.mulf %2366, %2487 : vector<8x128xf32>
      %2489 = arith.addf %2473, %2488 : vector<8x128xf32>
      %c522 = arith.constant 522 : index
      %2490 = memref.load %arg1[%c522] : memref<543xf32, #tpu.memory_space<smem>>
      %2491 = vector.broadcast %2490 : f32 to vector<8x128xf32>
      %2492 = arith.mulf %2369, %2491 : vector<8x128xf32>
      %2493 = arith.addf %2477, %2492 : vector<8x128xf32>
      %c523 = arith.constant 523 : index
      %2494 = memref.load %arg1[%c523] : memref<543xf32, #tpu.memory_space<smem>>
      %2495 = vector.broadcast %2494 : f32 to vector<8x128xf32>
      %2496 = arith.mulf %2369, %2495 : vector<8x128xf32>
      %2497 = arith.addf %2481, %2496 : vector<8x128xf32>
      %c524 = arith.constant 524 : index
      %2498 = memref.load %arg1[%c524] : memref<543xf32, #tpu.memory_space<smem>>
      %2499 = vector.broadcast %2498 : f32 to vector<8x128xf32>
      %2500 = arith.mulf %2369, %2499 : vector<8x128xf32>
      %2501 = arith.addf %2485, %2500 : vector<8x128xf32>
      %c525 = arith.constant 525 : index
      %2502 = memref.load %arg1[%c525] : memref<543xf32, #tpu.memory_space<smem>>
      %2503 = vector.broadcast %2502 : f32 to vector<8x128xf32>
      %2504 = arith.mulf %2369, %2503 : vector<8x128xf32>
      %2505 = arith.addf %2489, %2504 : vector<8x128xf32>
      %cst_245 = arith.constant 0.00999999977 : f32
      %2506 = vector.broadcast %cst_245 : f32 to vector<8x128xf32>
      %2507 = arith.mulf %2506, %2493 : vector<8x128xf32>
      %2508 = arith.maximumf %2493, %2507 : vector<8x128xf32>
      %cst_246 = arith.constant 0.00999999977 : f32
      %2509 = vector.broadcast %cst_246 : f32 to vector<8x128xf32>
      %2510 = arith.mulf %2509, %2497 : vector<8x128xf32>
      %2511 = arith.maximumf %2497, %2510 : vector<8x128xf32>
      %cst_247 = arith.constant 0.00999999977 : f32
      %2512 = vector.broadcast %cst_247 : f32 to vector<8x128xf32>
      %2513 = arith.mulf %2512, %2501 : vector<8x128xf32>
      %2514 = arith.maximumf %2501, %2513 : vector<8x128xf32>
      %cst_248 = arith.constant 0.00999999977 : f32
      %2515 = vector.broadcast %cst_248 : f32 to vector<8x128xf32>
      %2516 = arith.mulf %2515, %2505 : vector<8x128xf32>
      %2517 = arith.maximumf %2505, %2516 : vector<8x128xf32>
      %c538 = arith.constant 538 : index
      %2518 = memref.load %arg1[%c538] : memref<543xf32, #tpu.memory_space<smem>>
      %2519 = vector.broadcast %2518 : f32 to vector<8x128xf32>
      %c539 = arith.constant 539 : index
      %2520 = memref.load %arg1[%c539] : memref<543xf32, #tpu.memory_space<smem>>
      %2521 = vector.broadcast %2520 : f32 to vector<8x128xf32>
      %c530 = arith.constant 530 : index
      %2522 = memref.load %arg1[%c530] : memref<543xf32, #tpu.memory_space<smem>>
      %2523 = vector.broadcast %2522 : f32 to vector<8x128xf32>
      %2524 = arith.mulf %2508, %2523 : vector<8x128xf32>
      %2525 = arith.addf %2519, %2524 : vector<8x128xf32>
      %c531 = arith.constant 531 : index
      %2526 = memref.load %arg1[%c531] : memref<543xf32, #tpu.memory_space<smem>>
      %2527 = vector.broadcast %2526 : f32 to vector<8x128xf32>
      %2528 = arith.mulf %2508, %2527 : vector<8x128xf32>
      %2529 = arith.addf %2521, %2528 : vector<8x128xf32>
      %c532 = arith.constant 532 : index
      %2530 = memref.load %arg1[%c532] : memref<543xf32, #tpu.memory_space<smem>>
      %2531 = vector.broadcast %2530 : f32 to vector<8x128xf32>
      %2532 = arith.mulf %2511, %2531 : vector<8x128xf32>
      %2533 = arith.addf %2525, %2532 : vector<8x128xf32>
      %c533 = arith.constant 533 : index
      %2534 = memref.load %arg1[%c533] : memref<543xf32, #tpu.memory_space<smem>>
      %2535 = vector.broadcast %2534 : f32 to vector<8x128xf32>
      %2536 = arith.mulf %2511, %2535 : vector<8x128xf32>
      %2537 = arith.addf %2529, %2536 : vector<8x128xf32>
      %c534 = arith.constant 534 : index
      %2538 = memref.load %arg1[%c534] : memref<543xf32, #tpu.memory_space<smem>>
      %2539 = vector.broadcast %2538 : f32 to vector<8x128xf32>
      %2540 = arith.mulf %2514, %2539 : vector<8x128xf32>
      %2541 = arith.addf %2533, %2540 : vector<8x128xf32>
      %c535 = arith.constant 535 : index
      %2542 = memref.load %arg1[%c535] : memref<543xf32, #tpu.memory_space<smem>>
      %2543 = vector.broadcast %2542 : f32 to vector<8x128xf32>
      %2544 = arith.mulf %2514, %2543 : vector<8x128xf32>
      %2545 = arith.addf %2537, %2544 : vector<8x128xf32>
      %c536 = arith.constant 536 : index
      %2546 = memref.load %arg1[%c536] : memref<543xf32, #tpu.memory_space<smem>>
      %2547 = vector.broadcast %2546 : f32 to vector<8x128xf32>
      %2548 = arith.mulf %2517, %2547 : vector<8x128xf32>
      %2549 = arith.addf %2541, %2548 : vector<8x128xf32>
      %c537 = arith.constant 537 : index
      %2550 = memref.load %arg1[%c537] : memref<543xf32, #tpu.memory_space<smem>>
      %2551 = vector.broadcast %2550 : f32 to vector<8x128xf32>
      %2552 = arith.mulf %2517, %2551 : vector<8x128xf32>
      %2553 = arith.addf %2545, %2552 : vector<8x128xf32>
      %cst_249 = arith.constant 0.00999999977 : f32
      %2554 = vector.broadcast %cst_249 : f32 to vector<8x128xf32>
      %2555 = arith.mulf %2554, %2549 : vector<8x128xf32>
      %2556 = arith.maximumf %2549, %2555 : vector<8x128xf32>
      %cst_250 = arith.constant 0.00999999977 : f32
      %2557 = vector.broadcast %cst_250 : f32 to vector<8x128xf32>
      %2558 = arith.mulf %2557, %2553 : vector<8x128xf32>
      %2559 = arith.maximumf %2553, %2558 : vector<8x128xf32>
      %c542 = arith.constant 542 : index
      %2560 = memref.load %arg1[%c542] : memref<543xf32, #tpu.memory_space<smem>>
      %2561 = vector.broadcast %2560 : f32 to vector<8x128xf32>
      %c540 = arith.constant 540 : index
      %2562 = memref.load %arg1[%c540] : memref<543xf32, #tpu.memory_space<smem>>
      %2563 = vector.broadcast %2562 : f32 to vector<8x128xf32>
      %2564 = arith.mulf %2556, %2563 : vector<8x128xf32>
      %2565 = arith.addf %2561, %2564 : vector<8x128xf32>
      %c541 = arith.constant 541 : index
      %2566 = memref.load %arg1[%c541] : memref<543xf32, #tpu.memory_space<smem>>
      %2567 = vector.broadcast %2566 : f32 to vector<8x128xf32>
      %2568 = arith.mulf %2559, %2567 : vector<8x128xf32>
      %2569 = arith.addf %2565, %2568 : vector<8x128xf32>
      %cst_251 = arith.constant -1.000000e+00 : f32
      %cst_252 = arith.constant 1.000000e+00 : f32
      %2570 = vector.broadcast %cst_251 : f32 to vector<8x128xf32>
      %2571 = arith.maximumf %2570, %2569 : vector<8x128xf32>
      %2572 = vector.broadcast %cst_252 : f32 to vector<8x128xf32>
      %2573 = arith.minimumf %2572, %2571 : vector<8x128xf32>
      %c8_253 = arith.constant 8 : index
      %2574 = arith.index_cast %4 : i32 to index
      %c0_254 = arith.constant 0 : index
      %2575 = vector.load %arg2[%c8_253, %2574, %c0_254] : memref<9x16x128xf32, #tpu.memory_space<vmem>>, vector<1x8x128xf32>
      %2576 = vector.shape_cast %2575 : vector<1x8x128xf32> to vector<8x128xf32>
      %2577 = arith.subf %2576, %2573 : vector<8x128xf32>
      %cst_255 = arith.constant 1.000000e+00 : f32
      %2578 = vector.broadcast %cst_255 : f32 to vector<8x128xf32>
      %2579 = arith.addf %2577, %2578 : vector<8x128xf32>
      %cst_256 = arith.constant 5.000000e-01 : f32
      %2580 = vector.broadcast %cst_256 : f32 to vector<8x128xf32>
      %2581 = arith.mulf %2579, %2580 : vector<8x128xf32>
      %cst_257 = arith.constant 0.000000e+00 : f32
      %2582 = vector.broadcast %cst_257 : f32 to vector<8x128xf32>
      %2583 = arith.cmpf olt, %2581, %2582 : vector<8x128xf32>
      %2584 = math.ceil %2581 : vector<8x128xf32>
      %2585 = math.floor %2581 : vector<8x128xf32>
      %2586 = arith.select %2583, %2584, %2585 : vector<8x128xi1>, vector<8x128xf32>
      %cst_258 = arith.constant 2.000000e+00 : f32
      %2587 = vector.broadcast %cst_258 : f32 to vector<8x128xf32>
      %2588 = arith.mulf %2587, %2586 : vector<8x128xf32>
      %2589 = arith.subf %2579, %2588 : vector<8x128xf32>
      %cst_259 = arith.constant 1.000000e+00 : f32
      %2590 = vector.broadcast %cst_259 : f32 to vector<8x128xf32>
      %2591 = arith.subf %2589, %2590 : vector<8x128xf32>
      %c7_260 = arith.constant 7 : index
      %2592 = arith.index_cast %4 : i32 to index
      %c0_261 = arith.constant 0 : index
      %2593 = vector.load %arg3[%c7_260, %2592, %c0_261] : memref<8x16x128xf32, #tpu.memory_space<vmem>>, vector<1x8x128xf32>
      %2594 = vector.shape_cast %2593 : vector<1x8x128xf32> to vector<8x128xf32>
      %2595 = vector.shape_cast %2591 : vector<8x128xf32> to vector<1x8x128xf32>
      tpu.vector_store %arg3[%c7_260, %2592, %c0_261], %2595 {strides = array<i32>} : memref<8x16x128xf32, #tpu.memory_space<vmem>>, vector<1x8x128xf32>,
    }
    %c2_i32_0 = arith.constant 2 : i32
    return
  }
  func.func @transform_0(%arg0: i32) -> i32 {
    %c0_i32 = arith.constant 0 : i32
    %c0_i32_0 = arith.constant 0 : i32
    return %c0_i32 : i32
  }
  func.func @transform_1(%arg0: i32) -> (i32, i32, i32) {
    %c0_i32 = arith.constant 0 : i32
    %c0_i32_0 = arith.constant 0 : i32
    %c0_i32_1 = arith.constant 0 : i32
    return %c0_i32, %arg0, %c0_i32_0 : i32, i32, i32
  }
  func.func @transform_2(%arg0: i32) -> (i32, i32, i32) {
    %c0_i32 = arith.constant 0 : i32
    %c0_i32_0 = arith.constant 0 : i32
    %c0_i32_1 = arith.constant 0 : i32
    return %c0_i32, %arg0, %c0_i32_0 : i32, i32, i32
  }
}

</mosaic_0001>

<llo_original>
// kernel: tpu_custom_call.1
$region0: #{tpu_custom_call.1}
  #allocation0 [shape = 'u32[]', space=smem, size = 0x4, offset = 0x4, fixed_abs, tag = 'smem constant byte address 0x4 - core index']
  #allocation1 [shape = 'u32[144,128]{1,0:T(1,128)}', space=vmem, size = 0x12000, scoped, tag = 'internal scratch']
  #allocation8 [shape = 's32[]', space=sflag, size = 0x4, offset = 0, fixed_abs, tag = 'sflag constant byte address 0x0 - dummy sync flag']
  #allocation10 [shape = 's32[]', space=sflag, size = 0x4, offset = 0, fixed_abs, tag = 'sflag constant byte address 0x0 - dummy sync flag']
  %s0 = inlined_call_operand.hbm [shape: f32[543], index: 0, kind: input, shape index: {}]
  %s1 = inlined_call_operand.hbm [shape: f32[9,32,128], index: 1, kind: input, shape index: {}]
  %s2 = inlined_call_operand.hbm [shape: f32[8,32,128], index: 2, kind: output, shape index: {}]
  %s3 = sld [smem:[#allocation0]]
  $region56: #{tpu_custom_call.1} parent=0
    _
  %s5 = ssub.s32 1, %s3
  %s6 = scalar_select 0, %s5, %s3
  $region1: #{tpu_custom_call.1} parent=0
    #allocation2 [shape = 'u8[2560]{0}', space=smem, size = 0xa00, scoped, tag = 'input window, operand 0, single buffered']
    #allocation3 [shape = 's32[2]{0}', space=sflag, size = 0x8, scoped, tag = 'scoped memory for tpu_custom_call.1']
    #allocation4 [shape = 's32[2]{0}', space=sflag, size = 0x8, scoped, tag = 'scoped memory for tpu_custom_call.1']
    #allocation5 [shape = 's32[2]{0}', space=sflag, size = 0x8, scoped, tag = 'scoped memory for tpu_custom_call.1']
    #allocation6 [shape = 'u8[147456]{0}', space=vmem, size = 0x24000, scoped, tag = 'input window, operand 1']
    #allocation7 [shape = 'u8[131072]{0}', space=vmem, size = 0x20000, scoped, tag = 'output window, operand 0']
    %7 = vsyncpa [#allocation5], 0
    %8 = vsyncpa [#allocation3], 0
    %s9 = scalar_lea.sflag [#allocation3], 1
    %10 = vsyncpa %s9, 0
    %11 = vsyncpa [#allocation4], 0
    %s12 = scalar_lea.sflag [#allocation4], 1
    %13 = vsyncpa %s12, 0
    loop: start=0, step=1, limit=4
    $region2: #{tpu_custom_call.1} parent=1 // loop_pre_header
      _
    $region3: #{tpu_custom_call.1} parent=1 // loop_header
      %s15 = sphi 0, %s19
      %p16 = scmp.ge.s32.totalorder %s15, 4
      %s23 = sphi 0, %s23
      %s25 = sphi 0, %s23
      %s26 = sphi 0, %s25
      %s40 = sphi 0, %s26
      %s46 = sphi 0, %s48
      %s49 = sphi 0, %s46
      %s50 = sphi 0, %s49
      %s66 = sphi 0, %s50
      %s72 = sphi 0, %s74
      %s75 = sphi 0, %s72
      %s76 = sphi 0, %s75
      %s92 = sphi 0, %s76
    $region4: #{tpu_custom_call.1} parent=1 // loop_header_branch
      %18 = sbr.rel (%p16) target = $region8
    $region5: #{tpu_custom_call.1} parent=1 // loop_body
      %s20 = ssub.s32 %s15, 1
      %s21 = ssub.s32 %s15, 2
      %s22 = sadd.s32 %s15, 1
      %s24 = sadd.s32 %s23, 1
      %p27 = scmp.eq.s32.totalorder %s15, 1
      %p28 = scmp.ne.s32.totalorder %s23, %s25
      %p29 = scmp.eq.s32.totalorder %s15, 0
      %p30 = por %p28, %p29
      %p31 = scmp.ne.s32.totalorder %s23, %s25
      %p32 = scmp.eq.s32.totalorder %s20, 1
      %p33 = por %p31, %p32
      %p34 = scmp.ne.s32.totalorder %s25, %s26
      %p35 = scmp.eq.s32.totalorder %s20, 0
      %p36 = por %p34, %p35
      %p37 = scmp.ne.s32.totalorder %s25, %s26
      %p38 = scmp.eq.s32.totalorder %s21, 1
      %p39 = por %p37, %p38
      %p41 = scmp.ne.s32.totalorder %s26, %s40
      %p42 = scmp.eq.s32.totalorder %s21, 0
      %p43 = por %p41, %p42
      %s44 = ssub.s32 %s15, %s22
      %p45 = scmp.eq.s32.totalorder %s44, 0
      %s47 = sadd.s32 %s46, 1
      %s48 = scalar_select %p45, %s46, %s47
      %p51 = pneg %p45
      %p52 = scmp.eq.s32.totalorder %s15, 1
      %p53 = por %p51, %p52
      %p54 = scmp.ne.s32.totalorder %s46, %s49
      %p55 = scmp.eq.s32.totalorder %s15, 0
      %p56 = por %p54, %p55
      %p57 = scmp.ne.s32.totalorder %s46, %s49
      %p58 = scmp.eq.s32.totalorder %s20, 1
      %p59 = por %p57, %p58
      %p60 = scmp.ne.s32.totalorder %s49, %s50
      %p61 = scmp.eq.s32.totalorder %s20, 0
      %p62 = por %p60, %p61
      %p63 = scmp.ne.s32.totalorder %s49, %s50
      %p64 = scmp.eq.s32.totalorder %s21, 1
      %p65 = por %p63, %p64
      %p67 = scmp.ne.s32.totalorder %s50, %s66
      %p68 = scmp.eq.s32.totalorder %s21, 0
      %p69 = por %p67, %p68
      %s70 = ssub.s32 %s15, %s22
      %p71 = scmp.eq.s32.totalorder %s70, 0
      %s73 = sadd.s32 %s72, 1
      %s74 = scalar_select %p71, %s72, %s73
      %p77 = pneg %p71
      %p78 = scmp.eq.s32.totalorder %s15, 1
      %p79 = por %p77, %p78
      %p80 = scmp.ne.s32.totalorder %s72, %s75
      %p81 = scmp.eq.s32.totalorder %s15, 0
      %p82 = por %p80, %p81
      %p83 = scmp.ne.s32.totalorder %s72, %s75
      %p84 = scmp.eq.s32.totalorder %s20, 1
      %p85 = por %p83, %p84
      %p86 = scmp.ne.s32.totalorder %s75, %s76
      %p87 = scmp.eq.s32.totalorder %s20, 0
      %p88 = por %p86, %p87
      %p89 = scmp.ne.s32.totalorder %s75, %s76
      %p90 = scmp.eq.s32.totalorder %s21, 1
      %p91 = por %p89, %p90
      %p93 = scmp.ne.s32.totalorder %s76, %s92
      %p94 = scmp.eq.s32.totalorder %s21, 0
      %p95 = por %p93, %p94
      %p96 = scmp.le.s32.totalorder 1, %s15
      %p97 = scmp.lt.s32.totalorder %s15, 3
      %p98 = pnand %p96, %p97
      %p99 = pneg %p98
      // Predicated region
      $region9: #{tpu_custom_call.1} parent=5 // pred_check
        _
      $region10: #{tpu_custom_call.1} parent=5 // pred_check_branch
        %101 = sbr.rel (%p98) target = $region12
      $region11: #{tpu_custom_call.1} parent=5 // pred_region
        %s102 = ssub.s32 %s15, 1
        // Predicated region
        $region13: #{tpu_custom_call.1} parent=11 // pred_check
          %p103 = pneg %p36
        $region14: #{tpu_custom_call.1} parent=11 // pred_check_branch
          %105 = sbr.rel (%p103) target = $region16
        $region15: #{tpu_custom_call.1} parent=11 // pred_region
          %s107 = ssub.s32 80, 80
          %108 = vsyncadd [#allocation5], %s107
          %111 = dma.hbm_to_smem %s0, 80, [#allocation2], [#allocation5]
        $region16: #{tpu_custom_call.1} parent=11 // pred_fallthru
          _
      $region12: #{tpu_custom_call.1} parent=5 // pred_fallthru
        _
      %p112 = scmp.lt.s32.totalorder %s15, 2
      // Predicated region
      $region17: #{tpu_custom_call.1} parent=5 // pred_check
        %p113 = pneg %p112
      $region18: #{tpu_custom_call.1} parent=5 // pred_check_branch
        %115 = sbr.rel (%p113) target = $region20
      $region19: #{tpu_custom_call.1} parent=5 // pred_region
        // Predicated region
        $region21: #{tpu_custom_call.1} parent=19 // pred_check
          %p116 = pneg %p56
        $region22: #{tpu_custom_call.1} parent=19 // pred_check_branch
          %118 = sbr.rel (%p116) target = $region24
        $region23: #{tpu_custom_call.1} parent=19 // pred_region
          #allocation9 [shape = 'u32[6]{0}', space=smem, size = 0x18, scoped, tag = 'DMA stride descriptor']
          %s119 = sand.u32 %s46, 1
          %s120 = scalar_lea.sflag [#allocation3], %s119
          %s121 = sand.u32 %s46, 1
          %s122 = smul.addr %s121, 144
          %s123 = scalar_lea.vmem [#allocation6], %s122
          %s124 = smul.u32 2, %s15
          %s126 = ssub.s32 2304, 2304
          %127 = vsyncadd %s120, %s126
          %s128 = smul.addr %s124, 128
          %s129 = scalar_lea.hbm %s1, %s128
          %s131 = sshll.u32 1, 14
          %s132 = sxor.u32 4294967295, %s131
          %s134 = sld [smem:[#allocation0]]
          %s135 = sadd.s32 2, %s134
          %s137 = sshll.u32 7, 26
          %s138 = sxor.u32 4294967295, %s137
          %s139 = sand.u32 0, %s138
          %s140 = sshll.u32 %s135, 26
          %s141 = sor.u32 %s139, %s140
          %s142 = sshll.u32 %s123, 4
          %s143 = int_to_ptr.vmem [resolvable:$true] %s142
          %149 = sst [smem:[#allocation9]] 512
          %s150 = scalar_lea.smem [#allocation9], 1
          %151 = sst [smem:[%s150]] 256
          %s152 = scalar_lea.smem [#allocation9], 2
          %153 = sst [smem:[%s152]] 2
          %s154 = scalar_lea.smem [#allocation9], 3
          %155 = sst [smem:[%s154]] 128
          %s156 = scalar_lea.smem [#allocation9], 4
          %157 = sst [smem:[%s156]] 128
          %s158 = scalar_lea.smem [#allocation9], 5
          %159 = sst [smem:[%s158]] 8
          %161 = dma.general %s129, 2304, %s143, %s120, 131072, [#allocation9], %s141, 0
        $region24: #{tpu_custom_call.1} parent=19 // pred_fallthru
          _
      $region20: #{tpu_custom_call.1} parent=5 // pred_fallthru
        _
      %p162 = scmp.le.s32.totalorder 1, %s15
      %p163 = scmp.lt.s32.totalorder %s15, 3
      %p164 = pnand %p162, %p163
      %p165 = pneg %p164
      // Predicated region
      $region25: #{tpu_custom_call.1} parent=5 // pred_check
        _
      $region26: #{tpu_custom_call.1} parent=5 // pred_check_branch
        %167 = sbr.rel (%p164) target = $region28
      $region27: #{tpu_custom_call.1} parent=5 // pred_region
        %s168 = ssub.s32 %s15, 1
        // Predicated region
        $region29: #{tpu_custom_call.1} parent=27 // pred_check
          %p169 = pneg %p36
        $region30: #{tpu_custom_call.1} parent=27 // pred_check_branch
          %171 = sbr.rel (%p169) target = $region32
        $region31: #{tpu_custom_call.1} parent=27 // pred_region
          %172 = dma.done [#allocation5], 80
        $region32: #{tpu_custom_call.1} parent=27 // pred_fallthru
          _
        %s173 = sand.u32 %s49, 1
        %s174 = scalar_lea.sflag [#allocation3], %s173
        %s175 = sand.u32 %s49, 1
        %s176 = smul.addr %s175, 144
        %s177 = scalar_lea.vmem [#allocation6], %s176
        // Predicated region
        $region33: #{tpu_custom_call.1} parent=27 // pred_check
          %p178 = pneg %p62
        $region34: #{tpu_custom_call.1} parent=27 // pred_check_branch
          %180 = sbr.rel (%p178) target = $region36
        $region35: #{tpu_custom_call.1} parent=27 // pred_region
          %181 = dma.done %s174, 2304
        $region36: #{tpu_custom_call.1} parent=27 // pred_fallthru
          _
        %182 = sfence
        %p183 = pneg %p36
        %p184 = pneg %p33
        %s185 = sand.u32 %s49, 1
        %s186 = scalar_lea.sflag [#allocation3], %s185
        %s187 = sand.u32 %s49, 1
        %s188 = smul.addr %s187, 144
        %s189 = scalar_lea.vmem [#allocation6], %s188
        %p190 = pneg %p62
        %p191 = pneg %p59
        %p192 = pneg %p88
        %p193 = pneg %p85
        %s194 = sand.u32 %s75, 1
        %s195 = scalar_lea.sflag [#allocation4], %s194
        %s196 = sand.u32 %s75, 1
        %s197 = smul.addr %s196, 128
        %s198 = scalar_lea.vmem [#allocation7], %s197
        %s199 = smul.u32 2, %s20
        %s200 = smul.u32 2, %s20
        loop: start=0, step=1, limit=2
        $region37: #{tpu_custom_call.1} parent=27 // loop_pre_header
          _
        $region38: #{tpu_custom_call.1} parent=27 // loop_header
          %s202 = sphi 0, %s206
          %p203 = scmp.ge.s32.totalorder %s202, 2
        $region39: #{tpu_custom_call.1} parent=27 // loop_header_branch
          %205 = sbr.rel (%p203) target = $region43
        $region40: #{tpu_custom_call.1} parent=27 // loop_body
          %s207 = smul.u32 %s202, 8
          %s208 = sadd.s32 %s207, 16
          %s209 = scalar_lea.vmem %s177, %s208 [#allocation6]
          %v210 = vld [vmem:[%s209] sm:$0xff]
          %s211 = scalar_lea.vmem %s177, %s207 [#allocation6]
          %v212 = vld [vmem:[%s211] sm:$0xff]
          %v213 = vsub.f32 %v210, %v212
          %s214 = scalar_lea.vmem %s198, %s207 [#allocation7]
          %215 = vst [vmem:[%s214] sm:$0xff] %v213
          %s216 = sld [smem:[#allocation2 + $0x6]]
          %v217 = vstv %s216
          %s218 = sld [smem:[#allocation2 + $0x7]]
          %v219 = vstv %s218
          %v220 = vld [vmem:[%s211] sm:$0xff]
          %s221 = sld [smem:[#allocation2]]
          %v222 = vstv %s221
          %v223 = vmul.f32 %v220, %v222
          %v224 = vadd.f32 %v217, %v223
          %s225 = sld [smem:[#allocation2 + $0x1]]
          %v226 = vstv %s225
          %v227 = vmul.f32 %v220, %v226
          %v228 = vadd.f32 %v219, %v227
          %v229 = vld [vmem:[%s209] sm:$0xff]
          %s230 = sld [smem:[#allocation2 + $0x2]]
          %v231 = vstv %s230
          %v232 = vmul.f32 %v229, %v231
          %v233 = vadd.f32 %v224, %v232
          %s234 = sld [smem:[#allocation2 + $0x3]]
          %v235 = vstv %s234
          %v236 = vmul.f32 %v229, %v235
          %v237 = vadd.f32 %v228, %v236
          %v238 = vld [vmem:[%s214] sm:$0xff]
          %s239 = sld [smem:[#allocation2 + $0x4]]
          %v240 = vstv %s239
          %v241 = vmul.f32 %v238, %v240
          %v242 = vadd.f32 %v233, %v241
          %s243 = sld [smem:[#allocation2 + $0x5]]
          %v244 = vstv %s243
          %v245 = vmul.f32 %v238, %v244
          %v246 = vadd.f32 %v237, %v245
          %v247 = vmul.f32 %v242, 0.01
          %v248 = vmax.f32 %v242, %v247
          %v249 = vmul.f32 %v246, 0.01
          %v250 = vmax.f32 %v246, %v249
          %s251 = sld [smem:[#allocation2 + $0xa]]
          %v252 = vstv %s251
          %s253 = sld [smem:[#allocation2 + $0x8]]
          %v254 = vstv %s253
          %v255 = vmul.f32 %v248, %v254
          %v256 = vadd.f32 %v252, %v255
          %s257 = sld [smem:[#allocation2 + $0x9]]
          %v258 = vstv %s257
          %v259 = vmul.f32 %v250, %v258
          %v260 = vadd.f32 %v256, %v259
          %v261 = vmax.f32 %v260, -1.0
          %v262 = vmin.f32 %v261, 1.0
          %s263 = sadd.s32 %s207, 32
          %s264 = scalar_lea.vmem %s177, %s263 [#allocation6]
          %v265 = vld [vmem:[%s264] sm:$0xff]
          %v266 = vsub.f32 %v265, %v262
          %v267 = vadd.f32 %v266, 1.0
          %v268 = vmul.f32 %v267, 0.5
          %vm269 = vcmp.lt.f32.partialorder %v268, 0.0
          %v270 = vceil.f32 %v268
          %v271 = vfloor.f32 %v268
          %v272 = vsel %vm269, %v270, %v271
          %v273 = vmul.f32 %v272, 2.0
          %v274 = vsub.f32 %v267, %v273
          %v275 = vsub.f32 %v274, 1.0
          %s276 = scalar_lea.vmem %s198, %s208 [#allocation7]
          %277 = vst [vmem:[%s276] sm:$0xff] %v275
          %s278 = sld [smem:[#allocation2 + $0x1a]]
          %v279 = vstv %s278
          %s280 = sld [smem:[#allocation2 + $0x1b]]
          %v281 = vstv %s280
          %s282 = sld [smem:[#allocation2 + $0x1c]]
          %v283 = vstv %s282
          %v284 = vld [vmem:[%s211] sm:$0xff]
          %s285 = sld [smem:[#allocation2 + $0xb]]
          %v286 = vstv %s285
          %v287 = vmul.f32 %v284, %v286
          %v288 = vadd.f32 %v279, %v287
          %s289 = sld [smem:[#allocation2 + $0xc]]
          %v290 = vstv %s289
          %v291 = vmul.f32 %v284, %v290
          %v292 = vadd.f32 %v281, %v291
          %s293 = sld [smem:[#allocation2 + $0xd]]
          %v294 = vstv %s293
          %v295 = vmul.f32 %v284, %v294
          %v296 = vadd.f32 %v283, %v295
          %v297 = vld [vmem:[%s209] sm:$0xff]
          %s298 = sld [smem:[#allocation2 + $0xe]]
          %v299 = vstv %s298
          %v300 = vmul.f32 %v297, %v299
          %v301 = vadd.f32 %v288, %v300
          %s302 = sld [smem:[#allocation2 + $0xf]]
          %v303 = vstv %s302
          %v304 = vmul.f32 %v297, %v303
          %v305 = vadd.f32 %v292, %v304
          %s306 = sld [smem:[#allocation2 + $0x10]]
          %v307 = vstv %s306
          %v308 = vmul.f32 %v297, %v307
          %v309 = vadd.f32 %v296, %v308
          %v310 = vld [vmem:[%s264] sm:$0xff]
          %s311 = sld [smem:[#allocation2 + $0x11]]
          %v312 = vstv %s311
          %v313 = vmul.f32 %v310, %v312
          %v314 = vadd.f32 %v301, %v313
          %s315 = sld [smem:[#allocation2 + $0x12]]
          %v316 = vstv %s315
          %v317 = vmul.f32 %v310, %v316
          %v318 = vadd.f32 %v305, %v317
          %s319 = sld [smem:[#allocation2 + $0x13]]
          %v320 = vstv %s319
          %v321 = vmul.f32 %v310, %v320
          %v322 = vadd.f32 %v309, %v321
          %v323 = vld [vmem:[%s214] sm:$0xff]
          %s324 = sld [smem:[#allocation2 + $0x14]]
          %v325 = vstv %s324
          %v326 = vmul.f32 %v323, %v325
          %v327 = vadd.f32 %v314, %v326
          %s328 = sld [smem:[#allocation2 + $0x15]]
          %v329 = vstv %s328
          %v330 = vmul.f32 %v323, %v329
          %v331 = vadd.f32 %v318, %v330
          %s332 = sld [smem:[#allocation2 + $0x16]]
          %v333 = vstv %s332
          %v334 = vmul.f32 %v323, %v333
          %v335 = vadd.f32 %v322, %v334
          %v336 = vld [vmem:[%s276] sm:$0xff]
          %s337 = sld [smem:[#allocation2 + $0x17]]
          %v338 = vstv %s337
          %v339 = vmul.f32 %v336, %v338
          %v340 = vadd.f32 %v327, %v339
          %s341 = sld [smem:[#allocation2 + $0x18]]
          %v342 = vstv %s341
          %v343 = vmul.f32 %v336, %v342
          %v344 = vadd.f32 %v331, %v343
          %s345 = sld [smem:[#allocation2 + $0x19]]
          %v346 = vstv %s345
          %v347 = vmul.f32 %v336, %v346
          %v348 = vadd.f32 %v335, %v347
          %v349 = vmul.f32 %v340, 0.01
          %v350 = vmax.f32 %v340, %v349
          %v351 = vmul.f32 %v344, 0.01
          %v352 = vmax.f32 %v344, %v351
          %v353 = vmul.f32 %v348, 0.01
          %v354 = vmax.f32 %v348, %v353
          %s355 = sld [smem:[#allocation2 + $0x20]]
          %v356 = vstv %s355
          %s357 = sld [smem:[#allocation2 + $0x1d]]
          %v358 = vstv %s357
          %v359 = vmul.f32 %v350, %v358
          %v360 = vadd.f32 %v356, %v359
          %s361 = sld [smem:[#allocation2 + $0x1e]]
          %v362 = vstv %s361
          %v363 = vmul.f32 %v352, %v362
          %v364 = vadd.f32 %v360, %v363
          %s365 = sld [smem:[#allocation2 + $0x1f]]
          %v366 = vstv %s365
          %v367 = vmul.f32 %v354, %v366
          %v368 = vadd.f32 %v364, %v367
          %v369 = vmax.f32 %v368, -1.0
          %v370 = vmin.f32 %v369, 1.0
          %s371 = sadd.s32 %s207, 48
          %s372 = scalar_lea.vmem %s177, %s371 [#allocation6]
          %v373 = vld [vmem:[%s372] sm:$0xff]
          %v374 = vsub.f32 %v373, %v370
          %v375 = vadd.f32 %v374, 1.0
          %v376 = vmul.f32 %v375, 0.5
          %vm377 = vcmp.lt.f32.partialorder %v376, 0.0
          %v378 = vceil.f32 %v376
          %v379 = vfloor.f32 %v376
          %v380 = vsel %vm377, %v378, %v379
          %v381 = vmul.f32 %v380, 2.0
          %v382 = vsub.f32 %v375, %v381
          %v383 = vsub.f32 %v382, 1.0
          %s384 = scalar_lea.vmem %s198, %s263 [#allocation7]
          %385 = vst [vmem:[%s384] sm:$0xff] %v383
          %s386 = sld [smem:[#allocation2 + $0x3d]]
          %v387 = vstv %s386
          %s388 = sld [smem:[#allocation2 + $0x3e]]
          %v389 = vstv %s388
          %s390 = sld [smem:[#allocation2 + $0x3f]]
          %v391 = vstv %s390
          %s392 = sld [smem:[#allocation2 + $0x40]]
          %v393 = vstv %s392
          %v394 = vld [vmem:[%s211] sm:$0xff]
          %s395 = sld [smem:[#allocation2 + $0x21]]
          %v396 = vstv %s395
          %v397 = vmul.f32 %v394, %v396
          %v398 = vadd.f32 %v387, %v397
          %s399 = sld [smem:[#allocation2 + $0x22]]
          %v400 = vstv %s399
          %v401 = vmul.f32 %v394, %v400
          %v402 = vadd.f32 %v389, %v401
          %s403 = sld [smem:[#allocation2 + $0x23]]
          %v404 = vstv %s403
          %v405 = vmul.f32 %v394, %v404
          %v406 = vadd.f32 %v391, %v405
          %s407 = sld [smem:[#allocation2 + $0x24]]
          %v408 = vstv %s407
          %v409 = vmul.f32 %v394, %v408
          %v410 = vadd.f32 %v393, %v409
          %v411 = vld [vmem:[%s209] sm:$0xff]
          %s412 = sld [smem:[#allocation2 + $0x25]]
          %v413 = vstv %s412
          %v414 = vmul.f32 %v411, %v413
          %v415 = vadd.f32 %v398, %v414
          %s416 = sld [smem:[#allocation2 + $0x26]]
          %v417 = vstv %s416
          %v418 = vmul.f32 %v411, %v417
          %v419 = vadd.f32 %v402, %v418
          %s420 = sld [smem:[#allocation2 + $0x27]]
          %v421 = vstv %s420
          %v422 = vmul.f32 %v411, %v421
          %v423 = vadd.f32 %v406, %v422
          %s424 = sld [smem:[#allocation2 + $0x28]]
          %v425 = vstv %s424
          %v426 = vmul.f32 %v411, %v425
          %v427 = vadd.f32 %v410, %v426
          %v428 = vld [vmem:[%s264] sm:$0xff]
          %s429 = sld [smem:[#allocation2 + $0x29]]
          %v430 = vstv %s429
          %v431 = vmul.f32 %v428, %v430
          %v432 = vadd.f32 %v415, %v431
          %s433 = sld [smem:[#allocation2 + $0x2a]]
          %v434 = vstv %s433
          %v435 = vmul.f32 %v428, %v434
          %v436 = vadd.f32 %v419, %v435
          %s437 = sld [smem:[#allocation2 + $0x2b]]
          %v438 = vstv %s437
          %v439 = vmul.f32 %v428, %v438
          %v440 = vadd.f32 %v423, %v439
          %s441 = sld [smem:[#allocation2 + $0x2c]]
          %v442 = vstv %s441
          %v443 = vmul.f32 %v428, %v442
          %v444 = vadd.f32 %v427, %v443
          %v445 = vld [vmem:[%s372] sm:$0xff]
          %s446 = sld [smem:[#allocation2 + $0x2d]]
          %v447 = vstv %s446
          %v448 = vmul.f32 %v445, %v447
          %v449 = vadd.f32 %v432, %v448
          %s450 = sld [smem:[#allocation2 + $0x2e]]
          %v451 = vstv %s450
          %v452 = vmul.f32 %v445, %v451
          %v453 = vadd.f32 %v436, %v452
          %s454 = sld [smem:[#allocation2 + $0x2f]]
          %v455 = vstv %s454
          %v456 = vmul.f32 %v445, %v455
          %v457 = vadd.f32 %v440, %v456
          %s458 = sld [smem:[#allocation2 + $0x30]]
          %v459 = vstv %s458
          %v460 = vmul.f32 %v445, %v459
          %v461 = vadd.f32 %v444, %v460
          %v462 = vld [vmem:[%s214] sm:$0xff]
          %s463 = sld [smem:[#allocation2 + $0x31]]
          %v464 = vstv %s463
          %v465 = vmul.f32 %v462, %v464
          %v466 = vadd.f32 %v449, %v465
          %s467 = sld [smem:[#allocation2 + $0x32]]
          %v468 = vstv %s467
          %v469 = vmul.f32 %v462, %v468
          %v470 = vadd.f32 %v453, %v469
          %s471 = sld [smem:[#allocation2 + $0x33]]
          %v472 = vstv %s471
          %v473 = vmul.f32 %v462, %v472
          %v474 = vadd.f32 %v457, %v473
          %s475 = sld [smem:[#allocation2 + $0x34]]
          %v476 = vstv %s475
          %v477 = vmul.f32 %v462, %v476
          %v478 = vadd.f32 %v461, %v477
          %v479 = vld [vmem:[%s276] sm:$0xff]
          %s480 = sld [smem:[#allocation2 + $0x35]]
          %v481 = vstv %s480
          %v482 = vmul.f32 %v479, %v481
          %v483 = vadd.f32 %v466, %v482
          %s484 = sld [smem:[#allocation2 + $0x36]]
          %v485 = vstv %s484
          %v486 = vmul.f32 %v479, %v485
          %v487 = vadd.f32 %v470, %v486
          %s488 = sld [smem:[#allocation2 + $0x37]]
          %v489 = vstv %s488
          %v490 = vmul.f32 %v479, %v489
          %v491 = vadd.f32 %v474, %v490
          %s492 = sld [smem:[#allocation2 + $0x38]]
          %v493 = vstv %s492
          %v494 = vmul.f32 %v479, %v493
          %v495 = vadd.f32 %v478, %v494
          %v496 = vld [vmem:[%s384] sm:$0xff]
          %s497 = sld [smem:[#allocation2 + $0x39]]
          %v498 = vstv %s497
          %v499 = vmul.f32 %v496, %v498
          %v500 = vadd.f32 %v483, %v499
          %s501 = sld [smem:[#allocation2 + $0x3a]]
          %v502 = vstv %s501
          %v503 = vmul.f32 %v496, %v502
          %v504 = vadd.f32 %v487, %v503
          %s505 = sld [smem:[#allocation2 + $0x3b]]
          %v506 = vstv %s505
          %v507 = vmul.f32 %v496, %v506
          %v508 = vadd.f32 %v491, %v507
          %s509 = sld [smem:[#allocation2 + $0x3c]]
          %v510 = vstv %s509
          %v511 = vmul.f32 %v496, %v510
          %v512 = vadd.f32 %v495, %v511
          %v513 = vmul.f32 %v500, 0.01
          %v514 = vmax.f32 %v500, %v513
          %v515 = vmul.f32 %v504, 0.01
          %v516 = vmax.f32 %v504, %v515
          %v517 = vmul.f32 %v508, 0.01
          %v518 = vmax.f32 %v508, %v517
          %v519 = vmul.f32 %v512, 0.01
          %v520 = vmax.f32 %v512, %v519
          %s521 = sld [smem:[#allocation2 + $0x49]]
          %v522 = vstv %s521
          %s523 = sld [smem:[#allocation2 + $0x4a]]
          %v524 = vstv %s523
          %s525 = sld [smem:[#allocation2 + $0x41]]
          %v526 = vstv %s525
          %v527 = vmul.f32 %v514, %v526
          %v528 = vadd.f32 %v522, %v527
          %s529 = sld [smem:[#allocation2 + $0x42]]
          %v530 = vstv %s529
          %v531 = vmul.f32 %v514, %v530
          %v532 = vadd.f32 %v524, %v531
          %s533 = sld [smem:[#allocation2 + $0x43]]
          %v534 = vstv %s533
          %v535 = vmul.f32 %v516, %v534
          %v536 = vadd.f32 %v528, %v535
          %s537 = sld [smem:[#allocation2 + $0x44]]
          %v538 = vstv %s537
          %v539 = vmul.f32 %v516, %v538
          %v540 = vadd.f32 %v532, %v539
          %s541 = sld [smem:[#allocation2 + $0x45]]
          %v542 = vstv %s541
          %v543 = vmul.f32 %v518, %v542
          %v544 = vadd.f32 %v536, %v543
          %s545 = sld [smem:[#allocation2 + $0x46]]
          %v546 = vstv %s545
          %v547 = vmul.f32 %v518, %v546
          %v548 = vadd.f32 %v540, %v547
          %s549 = sld [smem:[#allocation2 + $0x47]]
          %v550 = vstv %s549
          %v551 = vmul.f32 %v520, %v550
          %v552 = vadd.f32 %v544, %v551
          %s553 = sld [smem:[#allocation2 + $0x48]]
          %v554 = vstv %s553
          %v555 = vmul.f32 %v520, %v554
          %v556 = vadd.f32 %v548, %v555
          %v557 = vmul.f32 %v552, 0.01
          %v558 = vmax.f32 %v552, %v557
          %v559 = vmul.f32 %v556, 0.01
          %v560 = vmax.f32 %v556, %v559
          %s561 = sld [smem:[#allocation2 + $0x4d]]
          %v562 = vstv %s561
          %s563 = sld [smem:[#allocation2 + $0x4b]]
          %v564 = vstv %s563
          %v565 = vmul.f32 %v558, %v564
          %v566 = vadd.f32 %v562, %v565
          %s567 = sld [smem:[#allocation2 + $0x4c]]
          %v568 = vstv %s567
          %v569 = vmul.f32 %v560, %v568
          %v570 = vadd.f32 %v566, %v569
          %v571 = vmax.f32 %v570, -1.0
          %v572 = vmin.f32 %v571, 1.0
          %s573 = sadd.s32 %s207, 64
          %s574 = scalar_lea.vmem %s177, %s573 [#allocation6]
          %v575 = vld [vmem:[%s574] sm:$0xff]
          %v576 = vsub.f32 %v575, %v572
          %v577 = vadd.f32 %v576, 1.0
          %v578 = vmul.f32 %v577, 0.5
          %vm579 = vcmp.lt.f32.partialorder %v578, 0.0
          %v580 = vceil.f32 %v578
          %v581 = vfloor.f32 %v578
          %v582 = vsel %vm579, %v580, %v581
          %v583 = vmul.f32 %v582, 2.0
          %v584 = vsub.f32 %v577, %v583
          %v585 = vsub.f32 %v584, 1.0
          %s586 = scalar_lea.vmem %s198, %s371 [#allocation7]
          %587 = vst [vmem:[%s586] sm:$0xff] %v585
          %s588 = sld [smem:[#allocation2 + $0x7b]]
          %v589 = vstv %s588
          %s590 = sld [smem:[#allocation2 + $0x7c]]
          %v591 = vstv %s590
          %s592 = sld [smem:[#allocation2 + $0x7d]]
          %v593 = vstv %s592
          %s594 = sld [smem:[#allocation2 + $0x7e]]
          %v595 = vstv %s594
          %s596 = sld [smem:[#allocation2 + $0x7f]]
          %v597 = vstv %s596
          %v598 = vld [vmem:[%s211] sm:$0xff]
          %s599 = sld [smem:[#allocation2 + $0x4e]]
          %v600 = vstv %s599
          %v601 = vmul.f32 %v598, %v600
          %v602 = vadd.f32 %v589, %v601
          %s603 = sld [smem:[#allocation2 + $0x4f]]
          %v604 = vstv %s603
          %v605 = vmul.f32 %v598, %v604
          %v606 = vadd.f32 %v591, %v605
          %s607 = sld [smem:[#allocation2 + $0x50]]
          %v608 = vstv %s607
          %v609 = vmul.f32 %v598, %v608
          %v610 = vadd.f32 %v593, %v609
          %s611 = sld [smem:[#allocation2 + $0x51]]
          %v612 = vstv %s611
          %v613 = vmul.f32 %v598, %v612
          %v614 = vadd.f32 %v595, %v613
          %s615 = sld [smem:[#allocation2 + $0x52]]
          %v616 = vstv %s615
          %v617 = vmul.f32 %v598, %v616
          %v618 = vadd.f32 %v597, %v617
          %v619 = vld [vmem:[%s209] sm:$0xff]
          %s620 = sld [smem:[#allocation2 + $0x53]]
          %v621 = vstv %s620
          %v622 = vmul.f32 %v619, %v621
          %v623 = vadd.f32 %v602, %v622
          %s624 = sld [smem:[#allocation2 + $0x54]]
          %v625 = vstv %s624
          %v626 = vmul.f32 %v619, %v625
          %v627 = vadd.f32 %v606, %v626
          %s628 = sld [smem:[#allocation2 + $0x55]]
          %v629 = vstv %s628
          %v630 = vmul.f32 %v619, %v629
          %v631 = vadd.f32 %v610, %v630
          %s632 = sld [smem:[#allocation2 + $0x56]]
          %v633 = vstv %s632
          %v634 = vmul.f32 %v619, %v633
          %v635 = vadd.f32 %v614, %v634
          %s636 = sld [smem:[#allocation2 + $0x57]]
          %v637 = vstv %s636
          %v638 = vmul.f32 %v619, %v637
          %v639 = vadd.f32 %v618, %v638
          %v640 = vld [vmem:[%s264] sm:$0xff]
          %s641 = sld [smem:[#allocation2 + $0x58]]
          %v642 = vstv %s641
          %v643 = vmul.f32 %v640, %v642
          %v644 = vadd.f32 %v623, %v643
          %s645 = sld [smem:[#allocation2 + $0x59]]
          %v646 = vstv %s645
          %v647 = vmul.f32 %v640, %v646
          %v648 = vadd.f32 %v627, %v647
          %s649 = sld [smem:[#allocation2 + $0x5a]]
          %v650 = vstv %s649
          %v651 = vmul.f32 %v640, %v650
          %v652 = vadd.f32 %v631, %v651
          %s653 = sld [smem:[#allocation2 + $0x5b]]
          %v654 = vstv %s653
          %v655 = vmul.f32 %v640, %v654
          %v656 = vadd.f32 %v635, %v655
          %s657 = sld [smem:[#allocation2 + $0x5c]]
          %v658 = vstv %s657
          %v659 = vmul.f32 %v640, %v658
          %v660 = vadd.f32 %v639, %v659
          %v661 = vld [vmem:[%s372] sm:$0xff]
          %s662 = sld [smem:[#allocation2 + $0x5d]]
          %v663 = vstv %s662
          %v664 = vmul.f32 %v661, %v663
          %v665 = vadd.f32 %v644, %v664
          %s666 = sld [smem:[#allocation2 + $0x5e]]
          %v667 = vstv %s666
          %v668 = vmul.f32 %v661, %v667
          %v669 = vadd.f32 %v648, %v668
          %s670 = sld [smem:[#allocation2 + $0x5f]]
          %v671 = vstv %s670
          %v672 = vmul.f32 %v661, %v671
          %v673 = vadd.f32 %v652, %v672
          %s674 = sld [smem:[#allocation2 + $0x60]]
          %v675 = vstv %s674
          %v676 = vmul.f32 %v661, %v675
          %v677 = vadd.f32 %v656, %v676
          %s678 = sld [smem:[#allocation2 + $0x61]]
          %v679 = vstv %s678
          %v680 = vmul.f32 %v661, %v679
          %v681 = vadd.f32 %v660, %v680
          %v682 = vld [vmem:[%s574] sm:$0xff]
          %s683 = sld [smem:[#allocation2 + $0x62]]
          %v684 = vstv %s683
          %v685 = vmul.f32 %v682, %v684
          %v686 = vadd.f32 %v665, %v685
          %s687 = sld [smem:[#allocation2 + $0x63]]
          %v688 = vstv %s687
          %v689 = vmul.f32 %v682, %v688
          %v690 = vadd.f32 %v669, %v689
          %s691 = sld [smem:[#allocation2 + $0x64]]
          %v692 = vstv %s691
          %v693 = vmul.f32 %v682, %v692
          %v694 = vadd.f32 %v673, %v693
          %s695 = sld [smem:[#allocation2 + $0x65]]
          %v696 = vstv %s695
          %v697 = vmul.f32 %v682, %v696
          %v698 = vadd.f32 %v677, %v697
          %s699 = sld [smem:[#allocation2 + $0x66]]
          %v700 = vstv %s699
          %v701 = vmul.f32 %v682, %v700
          %v702 = vadd.f32 %v681, %v701
          %v703 = vld [vmem:[%s214] sm:$0xff]
          %s704 = sld [smem:[#allocation2 + $0x67]]
          %v705 = vstv %s704
          %v706 = vmul.f32 %v703, %v705
          %v707 = vadd.f32 %v686, %v706
          %s708 = sld [smem:[#allocation2 + $0x68]]
          %v709 = vstv %s708
          %v710 = vmul.f32 %v703, %v709
          %v711 = vadd.f32 %v690, %v710
          %s712 = sld [smem:[#allocation2 + $0x69]]
          %v713 = vstv %s712
          %v714 = vmul.f32 %v703, %v713
          %v715 = vadd.f32 %v694, %v714
          %s716 = sld [smem:[#allocation2 + $0x6a]]
          %v717 = vstv %s716
          %v718 = vmul.f32 %v703, %v717
          %v719 = vadd.f32 %v698, %v718
          %s720 = sld [smem:[#allocation2 + $0x6b]]
          %v721 = vstv %s720
          %v722 = vmul.f32 %v703, %v721
          %v723 = vadd.f32 %v702, %v722
          %v724 = vld [vmem:[%s276] sm:$0xff]
          %s725 = sld [smem:[#allocation2 + $0x6c]]
          %v726 = vstv %s725
          %v727 = vmul.f32 %v724, %v726
          %v728 = vadd.f32 %v707, %v727
          %s729 = sld [smem:[#allocation2 + $0x6d]]
          %v730 = vstv %s729
          %v731 = vmul.f32 %v724, %v730
          %v732 = vadd.f32 %v711, %v731
          %s733 = sld [smem:[#allocation2 + $0x6e]]
          %v734 = vstv %s733
          %v735 = vmul.f32 %v724, %v734
          %v736 = vadd.f32 %v715, %v735
          %s737 = sld [smem:[#allocation2 + $0x6f]]
          %v738 = vstv %s737
          %v739 = vmul.f32 %v724, %v738
          %v740 = vadd.f32 %v719, %v739
          %s741 = sld [smem:[#allocation2 + $0x70]]
          %v742 = vstv %s741
          %v743 = vmul.f32 %v724, %v742
          %v744 = vadd.f32 %v723, %v743
          %v745 = vld [vmem:[%s384] sm:$0xff]
          %s746 = sld [smem:[#allocation2 + $0x71]]
          %v747 = vstv %s746
          %v748 = vmul.f32 %v745, %v747
          %v749 = vadd.f32 %v728, %v748
          %s750 = sld [smem:[#allocation2 + $0x72]]
          %v751 = vstv %s750
          %v752 = vmul.f32 %v745, %v751
          %v753 = vadd.f32 %v732, %v752
          %s754 = sld [smem:[#allocation2 + $0x73]]
          %v755 = vstv %s754
          %v756 = vmul.f32 %v745, %v755
          %v757 = vadd.f32 %v736, %v756
          %s758 = sld [smem:[#allocation2 + $0x74]]
          %v759 = vstv %s758
          %v760 = vmul.f32 %v745, %v759
          %v761 = vadd.f32 %v740, %v760
          %s762 = sld [smem:[#allocation2 + $0x75]]
          %v763 = vstv %s762
          %v764 = vmul.f32 %v745, %v763
          %v765 = vadd.f32 %v744, %v764
          %v766 = vld [vmem:[%s586] sm:$0xff]
          %s767 = sld [smem:[#allocation2 + $0x76]]
          %v768 = vstv %s767
          %v769 = vmul.f32 %v766, %v768
          %v770 = vadd.f32 %v749, %v769
          %s771 = sld [smem:[#allocation2 + $0x77]]
          %v772 = vstv %s771
          %v773 = vmul.f32 %v766, %v772
          %v774 = vadd.f32 %v753, %v773
          %s775 = sld [smem:[#allocation2 + $0x78]]
          %v776 = vstv %s775
          %v777 = vmul.f32 %v766, %v776
          %v778 = vadd.f32 %v757, %v777
          %s779 = sld [smem:[#allocation2 + $0x79]]
          %v780 = vstv %s779
          %v781 = vmul.f32 %v766, %v780
          %v782 = vadd.f32 %v761, %v781
          %s783 = sld [smem:[#allocation2 + $0x7a]]
          %v784 = vstv %s783
          %v785 = vmul.f32 %v766, %v784
          %v786 = vadd.f32 %v765, %v785
          %v787 = vmul.f32 %v770, 0.01
          %v788 = vmax.f32 %v770, %v787
          %v789 = vmul.f32 %v774, 0.01
          %v790 = vmax.f32 %v774, %v789
          %v791 = vmul.f32 %v778, 0.01
          %v792 = vmax.f32 %v778, %v791
          %v793 = vmul.f32 %v782, 0.01
          %v794 = vmax.f32 %v782, %v793
          %v795 = vmul.f32 %v786, 0.01
          %v796 = vmax.f32 %v786, %v795
          %s797 = sld [smem:[#allocation2 + $0x8a]]
          %v798 = vstv %s797
          %s799 = sld [smem:[#allocation2 + $0x8b]]
          %v800 = vstv %s799
          %s801 = sld [smem:[#allocation2 + $0x80]]
          %v802 = vstv %s801
          %v803 = vmul.f32 %v788, %v802
          %v804 = vadd.f32 %v798, %v803
          %s805 = sld [smem:[#allocation2 + $0x81]]
          %v806 = vstv %s805
          %v807 = vmul.f32 %v788, %v806
          %v808 = vadd.f32 %v800, %v807
          %s809 = sld [smem:[#allocation2 + $0x82]]
          %v810 = vstv %s809
          %v811 = vmul.f32 %v790, %v810
          %v812 = vadd.f32 %v804, %v811
          %s813 = sld [smem:[#allocation2 + $0x83]]
          %v814 = vstv %s813
          %v815 = vmul.f32 %v790, %v814
          %v816 = vadd.f32 %v808, %v815
          %s817 = sld [smem:[#allocation2 + $0x84]]
          %v818 = vstv %s817
          %v819 = vmul.f32 %v792, %v818
          %v820 = vadd.f32 %v812, %v819
          %s821 = sld [smem:[#allocation2 + $0x85]]
          %v822 = vstv %s821
          %v823 = vmul.f32 %v792, %v822
          %v824 = vadd.f32 %v816, %v823
          %s825 = sld [smem:[#allocation2 + $0x86]]
          %v826 = vstv %s825
          %v827 = vmul.f32 %v794, %v826
          %v828 = vadd.f32 %v820, %v827
          %s829 = sld [smem:[#allocation2 + $0x87]]
          %v830 = vstv %s829
          %v831 = vmul.f32 %v794, %v830
          %v832 = vadd.f32 %v824, %v831
          %s833 = sld [smem:[#allocation2 + $0x88]]
          %v834 = vstv %s833
          %v835 = vmul.f32 %v796, %v834
          %v836 = vadd.f32 %v828, %v835
          %s837 = sld [smem:[#allocation2 + $0x89]]
          %v838 = vstv %s837
          %v839 = vmul.f32 %v796, %v838
          %v840 = vadd.f32 %v832, %v839
          %v841 = vmul.f32 %v836, 0.01
          %v842 = vmax.f32 %v836, %v841
          %v843 = vmul.f32 %v840, 0.01
          %v844 = vmax.f32 %v840, %v843
          %s845 = sld [smem:[#allocation2 + $0x8e]]
          %v846 = vstv %s845
          %s847 = sld [smem:[#allocation2 + $0x8c]]
          %v848 = vstv %s847
          %v849 = vmul.f32 %v842, %v848
          %v850 = vadd.f32 %v846, %v849
          %s851 = sld [smem:[#allocation2 + $0x8d]]
          %v852 = vstv %s851
          %v853 = vmul.f32 %v844, %v852
          %v854 = vadd.f32 %v850, %v853
          %v855 = vmax.f32 %v854, -1.0
          %v856 = vmin.f32 %v855, 1.0
          %s857 = sadd.s32 %s207, 80
          %s858 = scalar_lea.vmem %s177, %s857 [#allocation6]
          %v859 = vld [vmem:[%s858] sm:$0xff]
          %v860 = vsub.f32 %v859, %v856
          %v861 = vadd.f32 %v860, 1.0
          %v862 = vmul.f32 %v861, 0.5
          %vm863 = vcmp.lt.f32.partialorder %v862, 0.0
          %v864 = vceil.f32 %v862
          %v865 = vfloor.f32 %v862
          %v866 = vsel %vm863, %v864, %v865
          %v867 = vmul.f32 %v866, 2.0
          %v868 = vsub.f32 %v861, %v867
          %v869 = vsub.f32 %v868, 1.0
          %s870 = scalar_lea.vmem %s198, %s573 [#allocation7]
          %871 = vst [vmem:[%s870] sm:$0xff] %v869
          %s872 = sld [smem:[#allocation2 + $0xd1]]
          %v873 = vstv %s872
          %s874 = sld [smem:[#allocation2 + $0xd2]]
          %v875 = vstv %s874
          %s876 = sld [smem:[#allocation2 + $0xd3]]
          %v877 = vstv %s876
          %s878 = sld [smem:[#allocation2 + $0xd4]]
          %v879 = vstv %s878
          %s880 = sld [smem:[#allocation2 + $0xd5]]
          %v881 = vstv %s880
          %s882 = sld [smem:[#allocation2 + $0xd6]]
          %v883 = vstv %s882
          %v884 = vld [vmem:[%s211] sm:$0xff]
          %s885 = sld [smem:[#allocation2 + $0x8f]]
          %v886 = vstv %s885
          %v887 = vmul.f32 %v884, %v886
          %v888 = vadd.f32 %v873, %v887
          %s889 = sld [smem:[#allocation2 + $0x90]]
          %v890 = vstv %s889
          %v891 = vmul.f32 %v884, %v890
          %v892 = vadd.f32 %v875, %v891
          %s893 = sld [smem:[#allocation2 + $0x91]]
          %v894 = vstv %s893
          %v895 = vmul.f32 %v884, %v894
          %v896 = vadd.f32 %v877, %v895
          %s897 = sld [smem:[#allocation2 + $0x92]]
          %v898 = vstv %s897
          %v899 = vmul.f32 %v884, %v898
          %v900 = vadd.f32 %v879, %v899
          %s901 = sld [smem:[#allocation2 + $0x93]]
          %v902 = vstv %s901
          %v903 = vmul.f32 %v884, %v902
          %v904 = vadd.f32 %v881, %v903
          %s905 = sld [smem:[#allocation2 + $0x94]]
          %v906 = vstv %s905
          %v907 = vmul.f32 %v884, %v906
          %v908 = vadd.f32 %v883, %v907
          %v909 = vld [vmem:[%s209] sm:$0xff]
          %s910 = sld [smem:[#allocation2 + $0x95]]
          %v911 = vstv %s910
          %v912 = vmul.f32 %v909, %v911
          %v913 = vadd.f32 %v888, %v912
          %s914 = sld [smem:[#allocation2 + $0x96]]
          %v915 = vstv %s914
          %v916 = vmul.f32 %v909, %v915
          %v917 = vadd.f32 %v892, %v916
          %s918 = sld [smem:[#allocation2 + $0x97]]
          %v919 = vstv %s918
          %v920 = vmul.f32 %v909, %v919
          %v921 = vadd.f32 %v896, %v920
          %s922 = sld [smem:[#allocation2 + $0x98]]
          %v923 = vstv %s922
          %v924 = vmul.f32 %v909, %v923
          %v925 = vadd.f32 %v900, %v924
          %s926 = sld [smem:[#allocation2 + $0x99]]
          %v927 = vstv %s926
          %v928 = vmul.f32 %v909, %v927
          %v929 = vadd.f32 %v904, %v928
          %s930 = sld [smem:[#allocation2 + $0x9a]]
          %v931 = vstv %s930
          %v932 = vmul.f32 %v909, %v931
          %v933 = vadd.f32 %v908, %v932
          %v934 = vld [vmem:[%s264] sm:$0xff]
          %s935 = sld [smem:[#allocation2 + $0x9b]]
          %v936 = vstv %s935
          %v937 = vmul.f32 %v934, %v936
          %v938 = vadd.f32 %v913, %v937
          %s939 = sld [smem:[#allocation2 + $0x9c]]
          %v940 = vstv %s939
          %v941 = vmul.f32 %v934, %v940
          %v942 = vadd.f32 %v917, %v941
          %s943 = sld [smem:[#allocation2 + $0x9d]]
          %v944 = vstv %s943
          %v945 = vmul.f32 %v934, %v944
          %v946 = vadd.f32 %v921, %v945
          %s947 = sld [smem:[#allocation2 + $0x9e]]
          %v948 = vstv %s947
          %v949 = vmul.f32 %v934, %v948
          %v950 = vadd.f32 %v925, %v949
          %s951 = sld [smem:[#allocation2 + $0x9f]]
          %v952 = vstv %s951
          %v953 = vmul.f32 %v934, %v952
          %v954 = vadd.f32 %v929, %v953
          %s955 = sld [smem:[#allocation2 + $0xa0]]
          %v956 = vstv %s955
          %v957 = vmul.f32 %v934, %v956
          %v958 = vadd.f32 %v933, %v957
          %v959 = vld [vmem:[%s372] sm:$0xff]
          %s960 = sld [smem:[#allocation2 + $0xa1]]
          %v961 = vstv %s960
          %v962 = vmul.f32 %v959, %v961
          %v963 = vadd.f32 %v938, %v962
          %s964 = sld [smem:[#allocation2 + $0xa2]]
          %v965 = vstv %s964
          %v966 = vmul.f32 %v959, %v965
          %v967 = vadd.f32 %v942, %v966
          %s968 = sld [smem:[#allocation2 + $0xa3]]
          %v969 = vstv %s968
          %v970 = vmul.f32 %v959, %v969
          %v971 = vadd.f32 %v946, %v970
          %s972 = sld [smem:[#allocation2 + $0xa4]]
          %v973 = vstv %s972
          %v974 = vmul.f32 %v959, %v973
          %v975 = vadd.f32 %v950, %v974
          %s976 = sld [smem:[#allocation2 + $0xa5]]
          %v977 = vstv %s976
          %v978 = vmul.f32 %v959, %v977
          %v979 = vadd.f32 %v954, %v978
          %s980 = sld [smem:[#allocation2 + $0xa6]]
          %v981 = vstv %s980
          %v982 = vmul.f32 %v959, %v981
          %v983 = vadd.f32 %v958, %v982
          %v984 = vld [vmem:[%s574] sm:$0xff]
          %s985 = sld [smem:[#allocation2 + $0xa7]]
          %v986 = vstv %s985
          %v987 = vmul.f32 %v984, %v986
          %v988 = vadd.f32 %v963, %v987
          %s989 = sld [smem:[#allocation2 + $0xa8]]
          %v990 = vstv %s989
          %v991 = vmul.f32 %v984, %v990
          %v992 = vadd.f32 %v967, %v991
          %s993 = sld [smem:[#allocation2 + $0xa9]]
          %v994 = vstv %s993
          %v995 = vmul.f32 %v984, %v994
          %v996 = vadd.f32 %v971, %v995
          %s997 = sld [smem:[#allocation2 + $0xaa]]
          %v998 = vstv %s997
          %v999 = vmul.f32 %v984, %v998
          %v1000 = vadd.f32 %v975, %v999
          %s1001 = sld [smem:[#allocation2 + $0xab]]
          %v1002 = vstv %s1001
          %v1003 = vmul.f32 %v984, %v1002
          %v1004 = vadd.f32 %v979, %v1003
          %s1005 = sld [smem:[#allocation2 + $0xac]]
          %v1006 = vstv %s1005
          %v1007 = vmul.f32 %v984, %v1006
          %v1008 = vadd.f32 %v983, %v1007
          %v1009 = vld [vmem:[%s858] sm:$0xff]
          %s1010 = sld [smem:[#allocation2 + $0xad]]
          %v1011 = vstv %s1010
          %v1012 = vmul.f32 %v1009, %v1011
          %v1013 = vadd.f32 %v988, %v1012
          %s1014 = sld [smem:[#allocation2 + $0xae]]
          %v1015 = vstv %s1014
          %v1016 = vmul.f32 %v1009, %v1015
          %v1017 = vadd.f32 %v992, %v1016
          %s1018 = sld [smem:[#allocation2 + $0xaf]]
          %v1019 = vstv %s1018
          %v1020 = vmul.f32 %v1009, %v1019
          %v1021 = vadd.f32 %v996, %v1020
          %s1022 = sld [smem:[#allocation2 + $0xb0]]
          %v1023 = vstv %s1022
          %v1024 = vmul.f32 %v1009, %v1023
          %v1025 = vadd.f32 %v1000, %v1024
          %s1026 = sld [smem:[#allocation2 + $0xb1]]
          %v1027 = vstv %s1026
          %v1028 = vmul.f32 %v1009, %v1027
          %v1029 = vadd.f32 %v1004, %v1028
          %s1030 = sld [smem:[#allocation2 + $0xb2]]
          %v1031 = vstv %s1030
          %v1032 = vmul.f32 %v1009, %v1031
          %v1033 = vadd.f32 %v1008, %v1032
          %v1034 = vld [vmem:[%s214] sm:$0xff]
          %s1035 = sld [smem:[#allocation2 + $0xb3]]
          %v1036 = vstv %s1035
          %v1037 = vmul.f32 %v1034, %v1036
          %v1038 = vadd.f32 %v1013, %v1037
          %s1039 = sld [smem:[#allocation2 + $0xb4]]
          %v1040 = vstv %s1039
          %v1041 = vmul.f32 %v1034, %v1040
          %v1042 = vadd.f32 %v1017, %v1041
          %s1043 = sld [smem:[#allocation2 + $0xb5]]
          %v1044 = vstv %s1043
          %v1045 = vmul.f32 %v1034, %v1044
          %v1046 = vadd.f32 %v1021, %v1045
          %s1047 = sld [smem:[#allocation2 + $0xb6]]
          %v1048 = vstv %s1047
          %v1049 = vmul.f32 %v1034, %v1048
          %v1050 = vadd.f32 %v1025, %v1049
          %s1051 = sld [smem:[#allocation2 + $0xb7]]
          %v1052 = vstv %s1051
          %v1053 = vmul.f32 %v1034, %v1052
          %v1054 = vadd.f32 %v1029, %v1053
          %s1055 = sld [smem:[#allocation2 + $0xb8]]
          %v1056 = vstv %s1055
          %v1057 = vmul.f32 %v1034, %v1056
          %v1058 = vadd.f32 %v1033, %v1057
          %v1059 = vld [vmem:[%s276] sm:$0xff]
          %s1060 = sld [smem:[#allocation2 + $0xb9]]
          %v1061 = vstv %s1060
          %v1062 = vmul.f32 %v1059, %v1061
          %v1063 = vadd.f32 %v1038, %v1062
          %s1064 = sld [smem:[#allocation2 + $0xba]]
          %v1065 = vstv %s1064
          %v1066 = vmul.f32 %v1059, %v1065
          %v1067 = vadd.f32 %v1042, %v1066
          %s1068 = sld [smem:[#allocation2 + $0xbb]]
          %v1069 = vstv %s1068
          %v1070 = vmul.f32 %v1059, %v1069
          %v1071 = vadd.f32 %v1046, %v1070
          %s1072 = sld [smem:[#allocation2 + $0xbc]]
          %v1073 = vstv %s1072
          %v1074 = vmul.f32 %v1059, %v1073
          %v1075 = vadd.f32 %v1050, %v1074
          %s1076 = sld [smem:[#allocation2 + $0xbd]]
          %v1077 = vstv %s1076
          %v1078 = vmul.f32 %v1059, %v1077
          %v1079 = vadd.f32 %v1054, %v1078
          %s1080 = sld [smem:[#allocation2 + $0xbe]]
          %v1081 = vstv %s1080
          %v1082 = vmul.f32 %v1059, %v1081
          %v1083 = vadd.f32 %v1058, %v1082
          %v1084 = vld [vmem:[%s384] sm:$0xff]
          %s1085 = sld [smem:[#allocation2 + $0xbf]]
          %v1086 = vstv %s1085
          %v1087 = vmul.f32 %v1084, %v1086
          %v1088 = vadd.f32 %v1063, %v1087
          %s1089 = sld [smem:[#allocation2 + $0xc0]]
          %v1090 = vstv %s1089
          %v1091 = vmul.f32 %v1084, %v1090
          %v1092 = vadd.f32 %v1067, %v1091
          %s1093 = sld [smem:[#allocation2 + $0xc1]]
          %v1094 = vstv %s1093
          %v1095 = vmul.f32 %v1084, %v1094
          %v1096 = vadd.f32 %v1071, %v1095
          %s1097 = sld [smem:[#allocation2 + $0xc2]]
          %v1098 = vstv %s1097
          %v1099 = vmul.f32 %v1084, %v1098
          %v1100 = vadd.f32 %v1075, %v1099
          %s1101 = sld [smem:[#allocation2 + $0xc3]]
          %v1102 = vstv %s1101
          %v1103 = vmul.f32 %v1084, %v1102
          %v1104 = vadd.f32 %v1079, %v1103
          %s1105 = sld [smem:[#allocation2 + $0xc4]]
          %v1106 = vstv %s1105
          %v1107 = vmul.f32 %v1084, %v1106
          %v1108 = vadd.f32 %v1083, %v1107
          %v1109 = vld [vmem:[%s586] sm:$0xff]
          %s1110 = sld [smem:[#allocation2 + $0xc5]]
          %v1111 = vstv %s1110
          %v1112 = vmul.f32 %v1109, %v1111
          %v1113 = vadd.f32 %v1088, %v1112
          %s1114 = sld [smem:[#allocation2 + $0xc6]]
          %v1115 = vstv %s1114
          %v1116 = vmul.f32 %v1109, %v1115
          %v1117 = vadd.f32 %v1092, %v1116
          %s1118 = sld [smem:[#allocation2 + $0xc7]]
          %v1119 = vstv %s1118
          %v1120 = vmul.f32 %v1109, %v1119
          %v1121 = vadd.f32 %v1096, %v1120
          %s1122 = sld [smem:[#allocation2 + $0xc8]]
          %v1123 = vstv %s1122
          %v1124 = vmul.f32 %v1109, %v1123
          %v1125 = vadd.f32 %v1100, %v1124
          %s1126 = sld [smem:[#allocation2 + $0xc9]]
          %v1127 = vstv %s1126
          %v1128 = vmul.f32 %v1109, %v1127
          %v1129 = vadd.f32 %v1104, %v1128
          %s1130 = sld [smem:[#allocation2 + $0xca]]
          %v1131 = vstv %s1130
          %v1132 = vmul.f32 %v1109, %v1131
          %v1133 = vadd.f32 %v1108, %v1132
          %v1134 = vld [vmem:[%s870] sm:$0xff]
          %s1135 = sld [smem:[#allocation2 + $0xcb]]
          %v1136 = vstv %s1135
          %v1137 = vmul.f32 %v1134, %v1136
          %v1138 = vadd.f32 %v1113, %v1137
          %s1139 = sld [smem:[#allocation2 + $0xcc]]
          %v1140 = vstv %s1139
          %v1141 = vmul.f32 %v1134, %v1140
          %v1142 = vadd.f32 %v1117, %v1141
          %s1143 = sld [smem:[#allocation2 + $0xcd]]
          %v1144 = vstv %s1143
          %v1145 = vmul.f32 %v1134, %v1144
          %v1146 = vadd.f32 %v1121, %v1145
          %s1147 = sld [smem:[#allocation2 + $0xce]]
          %v1148 = vstv %s1147
          %v1149 = vmul.f32 %v1134, %v1148
          %v1150 = vadd.f32 %v1125, %v1149
          %s1151 = sld [smem:[#allocation2 + $0xcf]]
          %v1152 = vstv %s1151
          %v1153 = vmul.f32 %v1134, %v1152
          %v1154 = vadd.f32 %v1129, %v1153
          %s1155 = sld [smem:[#allocation2 + $0xd0]]
          %v1156 = vstv %s1155
          %v1157 = vmul.f32 %v1134, %v1156
          %v1158 = vadd.f32 %v1133, %v1157
          %v1159 = vmul.f32 %v1138, 0.01
          %v1160 = vmax.f32 %v1138, %v1159
          %v1161 = vmul.f32 %v1142, 0.01
          %v1162 = vmax.f32 %v1142, %v1161
          %v1163 = vmul.f32 %v1146, 0.01
          %v1164 = vmax.f32 %v1146, %v1163
          %v1165 = vmul.f32 %v1150, 0.01
          %v1166 = vmax.f32 %v1150, %v1165
          %v1167 = vmul.f32 %v1154, 0.01
          %v1168 = vmax.f32 %v1154, %v1167
          %v1169 = vmul.f32 %v1158, 0.01
          %v1170 = vmax.f32 %v1158, %v1169
          %s1171 = sld [smem:[#allocation2 + $0xe9]]
          %v1172 = vstv %s1171
          %s1173 = sld [smem:[#allocation2 + $0xea]]
          %v1174 = vstv %s1173
          %s1175 = sld [smem:[#allocation2 + $0xeb]]
          %v1176 = vstv %s1175
          %s1177 = sld [smem:[#allocation2 + $0xd7]]
          %v1178 = vstv %s1177
          %v1179 = vmul.f32 %v1160, %v1178
          %v1180 = vadd.f32 %v1172, %v1179
          %s1181 = sld [smem:[#allocation2 + $0xd8]]
          %v1182 = vstv %s1181
          %v1183 = vmul.f32 %v1160, %v1182
          %v1184 = vadd.f32 %v1174, %v1183
          %s1185 = sld [smem:[#allocation2 + $0xd9]]
          %v1186 = vstv %s1185
          %v1187 = vmul.f32 %v1160, %v1186
          %v1188 = vadd.f32 %v1176, %v1187
          %s1189 = sld [smem:[#allocation2 + $0xda]]
          %v1190 = vstv %s1189
          %v1191 = vmul.f32 %v1162, %v1190
          %v1192 = vadd.f32 %v1180, %v1191
          %s1193 = sld [smem:[#allocation2 + $0xdb]]
          %v1194 = vstv %s1193
          %v1195 = vmul.f32 %v1162, %v1194
          %v1196 = vadd.f32 %v1184, %v1195
          %s1197 = sld [smem:[#allocation2 + $0xdc]]
          %v1198 = vstv %s1197
          %v1199 = vmul.f32 %v1162, %v1198
          %v1200 = vadd.f32 %v1188, %v1199
          %s1201 = sld [smem:[#allocation2 + $0xdd]]
          %v1202 = vstv %s1201
          %v1203 = vmul.f32 %v1164, %v1202
          %v1204 = vadd.f32 %v1192, %v1203
          %s1205 = sld [smem:[#allocation2 + $0xde]]
          %v1206 = vstv %s1205
          %v1207 = vmul.f32 %v1164, %v1206
          %v1208 = vadd.f32 %v1196, %v1207
          %s1209 = sld [smem:[#allocation2 + $0xdf]]
          %v1210 = vstv %s1209
          %v1211 = vmul.f32 %v1164, %v1210
          %v1212 = vadd.f32 %v1200, %v1211
          %s1213 = sld [smem:[#allocation2 + $0xe0]]
          %v1214 = vstv %s1213
          %v1215 = vmul.f32 %v1166, %v1214
          %v1216 = vadd.f32 %v1204, %v1215
          %s1217 = sld [smem:[#allocation2 + $0xe1]]
          %v1218 = vstv %s1217
          %v1219 = vmul.f32 %v1166, %v1218
          %v1220 = vadd.f32 %v1208, %v1219
          %s1221 = sld [smem:[#allocation2 + $0xe2]]
          %v1222 = vstv %s1221
          %v1223 = vmul.f32 %v1166, %v1222
          %v1224 = vadd.f32 %v1212, %v1223
          %s1225 = sld [smem:[#allocation2 + $0xe3]]
          %v1226 = vstv %s1225
          %v1227 = vmul.f32 %v1168, %v1226
          %v1228 = vadd.f32 %v1216, %v1227
          %s1229 = sld [smem:[#allocation2 + $0xe4]]
          %v1230 = vstv %s1229
          %v1231 = vmul.f32 %v1168, %v1230
          %v1232 = vadd.f32 %v1220, %v1231
          %s1233 = sld [smem:[#allocation2 + $0xe5]]
          %v1234 = vstv %s1233
          %v1235 = vmul.f32 %v1168, %v1234
          %v1236 = vadd.f32 %v1224, %v1235
          %s1237 = sld [smem:[#allocation2 + $0xe6]]
          %v1238 = vstv %s1237
          %v1239 = vmul.f32 %v1170, %v1238
          %v1240 = vadd.f32 %v1228, %v1239
          %s1241 = sld [smem:[#allocation2 + $0xe7]]
          %v1242 = vstv %s1241
          %v1243 = vmul.f32 %v1170, %v1242
          %v1244 = vadd.f32 %v1232, %v1243
          %s1245 = sld [smem:[#allocation2 + $0xe8]]
          %v1246 = vstv %s1245
          %v1247 = vmul.f32 %v1170, %v1246
          %v1248 = vadd.f32 %v1236, %v1247
          %v1249 = vmul.f32 %v1240, 0.01
          %v1250 = vmax.f32 %v1240, %v1249
          %v1251 = vmul.f32 %v1244, 0.01
          %v1252 = vmax.f32 %v1244, %v1251
          %v1253 = vmul.f32 %v1248, 0.01
          %v1254 = vmax.f32 %v1248, %v1253
          %s1255 = sld [smem:[#allocation2 + $0xef]]
          %v1256 = vstv %s1255
          %s1257 = sld [smem:[#allocation2 + $0xec]]
          %v1258 = vstv %s1257
          %v1259 = vmul.f32 %v1250, %v1258
          %v1260 = vadd.f32 %v1256, %v1259
          %s1261 = sld [smem:[#allocation2 + $0xed]]
          %v1262 = vstv %s1261
          %v1263 = vmul.f32 %v1252, %v1262
          %v1264 = vadd.f32 %v1260, %v1263
          %s1265 = sld [smem:[#allocation2 + $0xee]]
          %v1266 = vstv %s1265
          %v1267 = vmul.f32 %v1254, %v1266
          %v1268 = vadd.f32 %v1264, %v1267
          %v1269 = vmax.f32 %v1268, -1.0
          %v1270 = vmin.f32 %v1269, 1.0
          %s1271 = sadd.s32 %s207, 96
          %s1272 = scalar_lea.vmem %s177, %s1271 [#allocation6]
          %v1273 = vld [vmem:[%s1272] sm:$0xff]
          %v1274 = vsub.f32 %v1273, %v1270
          %v1275 = vadd.f32 %v1274, 1.0
          %v1276 = vmul.f32 %v1275, 0.5
          %vm1277 = vcmp.lt.f32.partialorder %v1276, 0.0
          %v1278 = vceil.f32 %v1276
          %v1279 = vfloor.f32 %v1276
          %v1280 = vsel %vm1277, %v1278, %v1279
          %v1281 = vmul.f32 %v1280, 2.0
          %v1282 = vsub.f32 %v1275, %v1281
          %v1283 = vsub.f32 %v1282, 1.0
          %s1284 = scalar_lea.vmem %s198, %s857 [#allocation7]
          %1285 = vst [vmem:[%s1284] sm:$0xff] %v1283
          %s1286 = sld [smem:[#allocation2 + $0x14b]]
          %v1287 = vstv %s1286
          %s1288 = sld [smem:[#allocation2 + $0x14c]]
          %v1289 = vstv %s1288
          %s1290 = sld [smem:[#allocation2 + $0x14d]]
          %v1291 = vstv %s1290
          %s1292 = sld [smem:[#allocation2 + $0x14e]]
          %v1293 = vstv %s1292
          %s1294 = sld [smem:[#allocation2 + $0x14f]]
          %v1295 = vstv %s1294
          %s1296 = sld [smem:[#allocation2 + $0x150]]
          %v1297 = vstv %s1296
          %s1298 = sld [smem:[#allocation2 + $0x151]]
          %v1299 = vstv %s1298
          %v1300 = vld [vmem:[%s211] sm:$0xff]
          %s1301 = sld [smem:[#allocation2 + $0xf0]]
          %v1302 = vstv %s1301
          %v1303 = vmul.f32 %v1300, %v1302
          %v1304 = vadd.f32 %v1287, %v1303
          %s1305 = sld [smem:[#allocation2 + $0xf1]]
          %v1306 = vstv %s1305
          %v1307 = vmul.f32 %v1300, %v1306
          %v1308 = vadd.f32 %v1289, %v1307
          %s1309 = sld [smem:[#allocation2 + $0xf2]]
          %v1310 = vstv %s1309
          %v1311 = vmul.f32 %v1300, %v1310
          %v1312 = vadd.f32 %v1291, %v1311
          %s1313 = sld [smem:[#allocation2 + $0xf3]]
          %v1314 = vstv %s1313
          %v1315 = vmul.f32 %v1300, %v1314
          %v1316 = vadd.f32 %v1293, %v1315
          %s1317 = sld [smem:[#allocation2 + $0xf4]]
          %v1318 = vstv %s1317
          %v1319 = vmul.f32 %v1300, %v1318
          %v1320 = vadd.f32 %v1295, %v1319
          %s1321 = sld [smem:[#allocation2 + $0xf5]]
          %v1322 = vstv %s1321
          %v1323 = vmul.f32 %v1300, %v1322
          %v1324 = vadd.f32 %v1297, %v1323
          %s1325 = sld [smem:[#allocation2 + $0xf6]]
          %v1326 = vstv %s1325
          %v1327 = vmul.f32 %v1300, %v1326
          %v1328 = vadd.f32 %v1299, %v1327
          %v1329 = vld [vmem:[%s209] sm:$0xff]
          %s1330 = sld [smem:[#allocation2 + $0xf7]]
          %v1331 = vstv %s1330
          %v1332 = vmul.f32 %v1329, %v1331
          %v1333 = vadd.f32 %v1304, %v1332
          %s1334 = sld [smem:[#allocation2 + $0xf8]]
          %v1335 = vstv %s1334
          %v1336 = vmul.f32 %v1329, %v1335
          %v1337 = vadd.f32 %v1308, %v1336
          %s1338 = sld [smem:[#allocation2 + $0xf9]]
          %v1339 = vstv %s1338
          %v1340 = vmul.f32 %v1329, %v1339
          %v1341 = vadd.f32 %v1312, %v1340
          %s1342 = sld [smem:[#allocation2 + $0xfa]]
          %v1343 = vstv %s1342
          %v1344 = vmul.f32 %v1329, %v1343
          %v1345 = vadd.f32 %v1316, %v1344
          %s1346 = sld [smem:[#allocation2 + $0xfb]]
          %v1347 = vstv %s1346
          %v1348 = vmul.f32 %v1329, %v1347
          %v1349 = vadd.f32 %v1320, %v1348
          %s1350 = sld [smem:[#allocation2 + $0xfc]]
          %v1351 = vstv %s1350
          %v1352 = vmul.f32 %v1329, %v1351
          %v1353 = vadd.f32 %v1324, %v1352
          %s1354 = sld [smem:[#allocation2 + $0xfd]]
          %v1355 = vstv %s1354
          %v1356 = vmul.f32 %v1329, %v1355
          %v1357 = vadd.f32 %v1328, %v1356
          %v1358 = vld [vmem:[%s264] sm:$0xff]
          %s1359 = sld [smem:[#allocation2 + $0xfe]]
          %v1360 = vstv %s1359
          %v1361 = vmul.f32 %v1358, %v1360
          %v1362 = vadd.f32 %v1333, %v1361
          %s1363 = sld [smem:[#allocation2 + $0xff]]
          %v1364 = vstv %s1363
          %v1365 = vmul.f32 %v1358, %v1364
          %v1366 = vadd.f32 %v1337, %v1365
          %s1367 = sld [smem:[#allocation2 + $0x100]]
          %v1368 = vstv %s1367
          %v1369 = vmul.f32 %v1358, %v1368
          %v1370 = vadd.f32 %v1341, %v1369
          %s1371 = sld [smem:[#allocation2 + $0x101]]
          %v1372 = vstv %s1371
          %v1373 = vmul.f32 %v1358, %v1372
          %v1374 = vadd.f32 %v1345, %v1373
          %s1375 = sld [smem:[#allocation2 + $0x102]]
          %v1376 = vstv %s1375
          %v1377 = vmul.f32 %v1358, %v1376
          %v1378 = vadd.f32 %v1349, %v1377
          %s1379 = sld [smem:[#allocation2 + $0x103]]
          %v1380 = vstv %s1379
          %v1381 = vmul.f32 %v1358, %v1380
          %v1382 = vadd.f32 %v1353, %v1381
          %s1383 = sld [smem:[#allocation2 + $0x104]]
          %v1384 = vstv %s1383
          %v1385 = vmul.f32 %v1358, %v1384
          %v1386 = vadd.f32 %v1357, %v1385
          %v1387 = vld [vmem:[%s372] sm:$0xff]
          %s1388 = sld [smem:[#allocation2 + $0x105]]
          %v1389 = vstv %s1388
          %v1390 = vmul.f32 %v1387, %v1389
          %v1391 = vadd.f32 %v1362, %v1390
          %s1392 = sld [smem:[#allocation2 + $0x106]]
          %v1393 = vstv %s1392
          %v1394 = vmul.f32 %v1387, %v1393
          %v1395 = vadd.f32 %v1366, %v1394
          %s1396 = sld [smem:[#allocation2 + $0x107]]
          %v1397 = vstv %s1396
          %v1398 = vmul.f32 %v1387, %v1397
          %v1399 = vadd.f32 %v1370, %v1398
          %s1400 = sld [smem:[#allocation2 + $0x108]]
          %v1401 = vstv %s1400
          %v1402 = vmul.f32 %v1387, %v1401
          %v1403 = vadd.f32 %v1374, %v1402
          %s1404 = sld [smem:[#allocation2 + $0x109]]
          %v1405 = vstv %s1404
          %v1406 = vmul.f32 %v1387, %v1405
          %v1407 = vadd.f32 %v1378, %v1406
          %s1408 = sld [smem:[#allocation2 + $0x10a]]
          %v1409 = vstv %s1408
          %v1410 = vmul.f32 %v1387, %v1409
          %v1411 = vadd.f32 %v1382, %v1410
          %s1412 = sld [smem:[#allocation2 + $0x10b]]
          %v1413 = vstv %s1412
          %v1414 = vmul.f32 %v1387, %v1413
          %v1415 = vadd.f32 %v1386, %v1414
          %v1416 = vld [vmem:[%s574] sm:$0xff]
          %s1417 = sld [smem:[#allocation2 + $0x10c]]
          %v1418 = vstv %s1417
          %v1419 = vmul.f32 %v1416, %v1418
          %v1420 = vadd.f32 %v1391, %v1419
          %s1421 = sld [smem:[#allocation2 + $0x10d]]
          %v1422 = vstv %s1421
          %v1423 = vmul.f32 %v1416, %v1422
          %v1424 = vadd.f32 %v1395, %v1423
          %s1425 = sld [smem:[#allocation2 + $0x10e]]
          %v1426 = vstv %s1425
          %v1427 = vmul.f32 %v1416, %v1426
          %v1428 = vadd.f32 %v1399, %v1427
          %s1429 = sld [smem:[#allocation2 + $0x10f]]
          %v1430 = vstv %s1429
          %v1431 = vmul.f32 %v1416, %v1430
          %v1432 = vadd.f32 %v1403, %v1431
          %s1433 = sld [smem:[#allocation2 + $0x110]]
          %v1434 = vstv %s1433
          %v1435 = vmul.f32 %v1416, %v1434
          %v1436 = vadd.f32 %v1407, %v1435
          %s1437 = sld [smem:[#allocation2 + $0x111]]
          %v1438 = vstv %s1437
          %v1439 = vmul.f32 %v1416, %v1438
          %v1440 = vadd.f32 %v1411, %v1439
          %s1441 = sld [smem:[#allocation2 + $0x112]]
          %v1442 = vstv %s1441
          %v1443 = vmul.f32 %v1416, %v1442
          %v1444 = vadd.f32 %v1415, %v1443
          %v1445 = vld [vmem:[%s858] sm:$0xff]
          %s1446 = sld [smem:[#allocation2 + $0x113]]
          %v1447 = vstv %s1446
          %v1448 = vmul.f32 %v1445, %v1447
          %v1449 = vadd.f32 %v1420, %v1448
          %s1450 = sld [smem:[#allocation2 + $0x114]]
          %v1451 = vstv %s1450
          %v1452 = vmul.f32 %v1445, %v1451
          %v1453 = vadd.f32 %v1424, %v1452
          %s1454 = sld [smem:[#allocation2 + $0x115]]
          %v1455 = vstv %s1454
          %v1456 = vmul.f32 %v1445, %v1455
          %v1457 = vadd.f32 %v1428, %v1456
          %s1458 = sld [smem:[#allocation2 + $0x116]]
          %v1459 = vstv %s1458
          %v1460 = vmul.f32 %v1445, %v1459
          %v1461 = vadd.f32 %v1432, %v1460
          %s1462 = sld [smem:[#allocation2 + $0x117]]
          %v1463 = vstv %s1462
          %v1464 = vmul.f32 %v1445, %v1463
          %v1465 = vadd.f32 %v1436, %v1464
          %s1466 = sld [smem:[#allocation2 + $0x118]]
          %v1467 = vstv %s1466
          %v1468 = vmul.f32 %v1445, %v1467
          %v1469 = vadd.f32 %v1440, %v1468
          %s1470 = sld [smem:[#allocation2 + $0x119]]
          %v1471 = vstv %s1470
          %v1472 = vmul.f32 %v1445, %v1471
          %v1473 = vadd.f32 %v1444, %v1472
          %v1474 = vld [vmem:[%s1272] sm:$0xff]
          %s1475 = sld [smem:[#allocation2 + $0x11a]]
          %v1476 = vstv %s1475
          %v1477 = vmul.f32 %v1474, %v1476
          %v1478 = vadd.f32 %v1449, %v1477
          %s1479 = sld [smem:[#allocation2 + $0x11b]]
          %v1480 = vstv %s1479
          %v1481 = vmul.f32 %v1474, %v1480
          %v1482 = vadd.f32 %v1453, %v1481
          %s1483 = sld [smem:[#allocation2 + $0x11c]]
          %v1484 = vstv %s1483
          %v1485 = vmul.f32 %v1474, %v1484
          %v1486 = vadd.f32 %v1457, %v1485
          %s1487 = sld [smem:[#allocation2 + $0x11d]]
          %v1488 = vstv %s1487
          %v1489 = vmul.f32 %v1474, %v1488
          %v1490 = vadd.f32 %v1461, %v1489
          %s1491 = sld [smem:[#allocation2 + $0x11e]]
          %v1492 = vstv %s1491
          %v1493 = vmul.f32 %v1474, %v1492
          %v1494 = vadd.f32 %v1465, %v1493
          %s1495 = sld [smem:[#allocation2 + $0x11f]]
          %v1496 = vstv %s1495
          %v1497 = vmul.f32 %v1474, %v1496
          %v1498 = vadd.f32 %v1469, %v1497
          %s1499 = sld [smem:[#allocation2 + $0x120]]
          %v1500 = vstv %s1499
          %v1501 = vmul.f32 %v1474, %v1500
          %v1502 = vadd.f32 %v1473, %v1501
          %v1503 = vld [vmem:[%s214] sm:$0xff]
          %s1504 = sld [smem:[#allocation2 + $0x121]]
          %v1505 = vstv %s1504
          %v1506 = vmul.f32 %v1503, %v1505
          %v1507 = vadd.f32 %v1478, %v1506
          %s1508 = sld [smem:[#allocation2 + $0x122]]
          %v1509 = vstv %s1508
          %v1510 = vmul.f32 %v1503, %v1509
          %v1511 = vadd.f32 %v1482, %v1510
          %s1512 = sld [smem:[#allocation2 + $0x123]]
          %v1513 = vstv %s1512
          %v1514 = vmul.f32 %v1503, %v1513
          %v1515 = vadd.f32 %v1486, %v1514
          %s1516 = sld [smem:[#allocation2 + $0x124]]
          %v1517 = vstv %s1516
          %v1518 = vmul.f32 %v1503, %v1517
          %v1519 = vadd.f32 %v1490, %v1518
          %s1520 = sld [smem:[#allocation2 + $0x125]]
          %v1521 = vstv %s1520
          %v1522 = vmul.f32 %v1503, %v1521
          %v1523 = vadd.f32 %v1494, %v1522
          %s1524 = sld [smem:[#allocation2 + $0x126]]
          %v1525 = vstv %s1524
          %v1526 = vmul.f32 %v1503, %v1525
          %v1527 = vadd.f32 %v1498, %v1526
          %s1528 = sld [smem:[#allocation2 + $0x127]]
          %v1529 = vstv %s1528
          %v1530 = vmul.f32 %v1503, %v1529
          %v1531 = vadd.f32 %v1502, %v1530
          %v1532 = vld [vmem:[%s276] sm:$0xff]
          %s1533 = sld [smem:[#allocation2 + $0x128]]
          %v1534 = vstv %s1533
          %v1535 = vmul.f32 %v1532, %v1534
          %v1536 = vadd.f32 %v1507, %v1535
          %s1537 = sld [smem:[#allocation2 + $0x129]]
          %v1538 = vstv %s1537
          %v1539 = vmul.f32 %v1532, %v1538
          %v1540 = vadd.f32 %v1511, %v1539
          %s1541 = sld [smem:[#allocation2 + $0x12a]]
          %v1542 = vstv %s1541
          %v1543 = vmul.f32 %v1532, %v1542
          %v1544 = vadd.f32 %v1515, %v1543
          %s1545 = sld [smem:[#allocation2 + $0x12b]]
          %v1546 = vstv %s1545
          %v1547 = vmul.f32 %v1532, %v1546
          %v1548 = vadd.f32 %v1519, %v1547
          %s1549 = sld [smem:[#allocation2 + $0x12c]]
          %v1550 = vstv %s1549
          %v1551 = vmul.f32 %v1532, %v1550
          %v1552 = vadd.f32 %v1523, %v1551
          %s1553 = sld [smem:[#allocation2 + $0x12d]]
          %v1554 = vstv %s1553
          %v1555 = vmul.f32 %v1532, %v1554
          %v1556 = vadd.f32 %v1527, %v1555
          %s1557 = sld [smem:[#allocation2 + $0x12e]]
          %v1558 = vstv %s1557
          %v1559 = vmul.f32 %v1532, %v1558
          %v1560 = vadd.f32 %v1531, %v1559
          %v1561 = vld [vmem:[%s384] sm:$0xff]
          %s1562 = sld [smem:[#allocation2 + $0x12f]]
          %v1563 = vstv %s1562
          %v1564 = vmul.f32 %v1561, %v1563
          %v1565 = vadd.f32 %v1536, %v1564
          %s1566 = sld [smem:[#allocation2 + $0x130]]
          %v1567 = vstv %s1566
          %v1568 = vmul.f32 %v1561, %v1567
          %v1569 = vadd.f32 %v1540, %v1568
          %s1570 = sld [smem:[#allocation2 + $0x131]]
          %v1571 = vstv %s1570
          %v1572 = vmul.f32 %v1561, %v1571
          %v1573 = vadd.f32 %v1544, %v1572
          %s1574 = sld [smem:[#allocation2 + $0x132]]
          %v1575 = vstv %s1574
          %v1576 = vmul.f32 %v1561, %v1575
          %v1577 = vadd.f32 %v1548, %v1576
          %s1578 = sld [smem:[#allocation2 + $0x133]]
          %v1579 = vstv %s1578
          %v1580 = vmul.f32 %v1561, %v1579
          %v1581 = vadd.f32 %v1552, %v1580
          %s1582 = sld [smem:[#allocation2 + $0x134]]
          %v1583 = vstv %s1582
          %v1584 = vmul.f32 %v1561, %v1583
          %v1585 = vadd.f32 %v1556, %v1584
          %s1586 = sld [smem:[#allocation2 + $0x135]]
          %v1587 = vstv %s1586
          %v1588 = vmul.f32 %v1561, %v1587
          %v1589 = vadd.f32 %v1560, %v1588
          %v1590 = vld [vmem:[%s586] sm:$0xff]
          %s1591 = sld [smem:[#allocation2 + $0x136]]
          %v1592 = vstv %s1591
          %v1593 = vmul.f32 %v1590, %v1592
          %v1594 = vadd.f32 %v1565, %v1593
          %s1595 = sld [smem:[#allocation2 + $0x137]]
          %v1596 = vstv %s1595
          %v1597 = vmul.f32 %v1590, %v1596
          %v1598 = vadd.f32 %v1569, %v1597
          %s1599 = sld [smem:[#allocation2 + $0x138]]
          %v1600 = vstv %s1599
          %v1601 = vmul.f32 %v1590, %v1600
          %v1602 = vadd.f32 %v1573, %v1601
          %s1603 = sld [smem:[#allocation2 + $0x139]]
          %v1604 = vstv %s1603
          %v1605 = vmul.f32 %v1590, %v1604
          %v1606 = vadd.f32 %v1577, %v1605
          %s1607 = sld [smem:[#allocation2 + $0x13a]]
          %v1608 = vstv %s1607
          %v1609 = vmul.f32 %v1590, %v1608
          %v1610 = vadd.f32 %v1581, %v1609
          %s1611 = sld [smem:[#allocation2 + $0x13b]]
          %v1612 = vstv %s1611
          %v1613 = vmul.f32 %v1590, %v1612
          %v1614 = vadd.f32 %v1585, %v1613
          %s1615 = sld [smem:[#allocation2 + $0x13c]]
          %v1616 = vstv %s1615
          %v1617 = vmul.f32 %v1590, %v1616
          %v1618 = vadd.f32 %v1589, %v1617
          %v1619 = vld [vmem:[%s870] sm:$0xff]
          %s1620 = sld [smem:[#allocation2 + $0x13d]]
          %v1621 = vstv %s1620
          %v1622 = vmul.f32 %v1619, %v1621
          %v1623 = vadd.f32 %v1594, %v1622
          %s1624 = sld [smem:[#allocation2 + $0x13e]]
          %v1625 = vstv %s1624
          %v1626 = vmul.f32 %v1619, %v1625
          %v1627 = vadd.f32 %v1598, %v1626
          %s1628 = sld [smem:[#allocation2 + $0x13f]]
          %v1629 = vstv %s1628
          %v1630 = vmul.f32 %v1619, %v1629
          %v1631 = vadd.f32 %v1602, %v1630
          %s1632 = sld [smem:[#allocation2 + $0x140]]
          %v1633 = vstv %s1632
          %v1634 = vmul.f32 %v1619, %v1633
          %v1635 = vadd.f32 %v1606, %v1634
          %s1636 = sld [smem:[#allocation2 + $0x141]]
          %v1637 = vstv %s1636
          %v1638 = vmul.f32 %v1619, %v1637
          %v1639 = vadd.f32 %v1610, %v1638
          %s1640 = sld [smem:[#allocation2 + $0x142]]
          %v1641 = vstv %s1640
          %v1642 = vmul.f32 %v1619, %v1641
          %v1643 = vadd.f32 %v1614, %v1642
          %s1644 = sld [smem:[#allocation2 + $0x143]]
          %v1645 = vstv %s1644
          %v1646 = vmul.f32 %v1619, %v1645
          %v1647 = vadd.f32 %v1618, %v1646
          %v1648 = vld [vmem:[%s1284] sm:$0xff]
          %s1649 = sld [smem:[#allocation2 + $0x144]]
          %v1650 = vstv %s1649
          %v1651 = vmul.f32 %v1648, %v1650
          %v1652 = vadd.f32 %v1623, %v1651
          %s1653 = sld [smem:[#allocation2 + $0x145]]
          %v1654 = vstv %s1653
          %v1655 = vmul.f32 %v1648, %v1654
          %v1656 = vadd.f32 %v1627, %v1655
          %s1657 = sld [smem:[#allocation2 + $0x146]]
          %v1658 = vstv %s1657
          %v1659 = vmul.f32 %v1648, %v1658
          %v1660 = vadd.f32 %v1631, %v1659
          %s1661 = sld [smem:[#allocation2 + $0x147]]
          %v1662 = vstv %s1661
          %v1663 = vmul.f32 %v1648, %v1662
          %v1664 = vadd.f32 %v1635, %v1663
          %s1665 = sld [smem:[#allocation2 + $0x148]]
          %v1666 = vstv %s1665
          %v1667 = vmul.f32 %v1648, %v1666
          %v1668 = vadd.f32 %v1639, %v1667
          %s1669 = sld [smem:[#allocation2 + $0x149]]
          %v1670 = vstv %s1669
          %v1671 = vmul.f32 %v1648, %v1670
          %v1672 = vadd.f32 %v1643, %v1671
          %s1673 = sld [smem:[#allocation2 + $0x14a]]
          %v1674 = vstv %s1673
          %v1675 = vmul.f32 %v1648, %v1674
          %v1676 = vadd.f32 %v1647, %v1675
          %v1677 = vmul.f32 %v1652, 0.01
          %v1678 = vmax.f32 %v1652, %v1677
          %v1679 = vmul.f32 %v1656, 0.01
          %v1680 = vmax.f32 %v1656, %v1679
          %v1681 = vmul.f32 %v1660, 0.01
          %v1682 = vmax.f32 %v1660, %v1681
          %v1683 = vmul.f32 %v1664, 0.01
          %v1684 = vmax.f32 %v1664, %v1683
          %v1685 = vmul.f32 %v1668, 0.01
          %v1686 = vmax.f32 %v1668, %v1685
          %v1687 = vmul.f32 %v1672, 0.01
          %v1688 = vmax.f32 %v1672, %v1687
          %v1689 = vmul.f32 %v1676, 0.01
          %v1690 = vmax.f32 %v1676, %v1689
          %s1691 = sld [smem:[#allocation2 + $0x167]]
          %v1692 = vstv %s1691
          %s1693 = sld [smem:[#allocation2 + $0x168]]
          %v1694 = vstv %s1693
          %s1695 = sld [smem:[#allocation2 + $0x169]]
          %v1696 = vstv %s1695
          %s1697 = sld [smem:[#allocation2 + $0x152]]
          %v1698 = vstv %s1697
          %v1699 = vmul.f32 %v1678, %v1698
          %v1700 = vadd.f32 %v1692, %v1699
          %s1701 = sld [smem:[#allocation2 + $0x153]]
          %v1702 = vstv %s1701
          %v1703 = vmul.f32 %v1678, %v1702
          %v1704 = vadd.f32 %v1694, %v1703
          %s1705 = sld [smem:[#allocation2 + $0x154]]
          %v1706 = vstv %s1705
          %v1707 = vmul.f32 %v1678, %v1706
          %v1708 = vadd.f32 %v1696, %v1707
          %s1709 = sld [smem:[#allocation2 + $0x155]]
          %v1710 = vstv %s1709
          %v1711 = vmul.f32 %v1680, %v1710
          %v1712 = vadd.f32 %v1700, %v1711
          %s1713 = sld [smem:[#allocation2 + $0x156]]
          %v1714 = vstv %s1713
          %v1715 = vmul.f32 %v1680, %v1714
          %v1716 = vadd.f32 %v1704, %v1715
          %s1717 = sld [smem:[#allocation2 + $0x157]]
          %v1718 = vstv %s1717
          %v1719 = vmul.f32 %v1680, %v1718
          %v1720 = vadd.f32 %v1708, %v1719
          %s1721 = sld [smem:[#allocation2 + $0x158]]
          %v1722 = vstv %s1721
          %v1723 = vmul.f32 %v1682, %v1722
          %v1724 = vadd.f32 %v1712, %v1723
          %s1725 = sld [smem:[#allocation2 + $0x159]]
          %v1726 = vstv %s1725
          %v1727 = vmul.f32 %v1682, %v1726
          %v1728 = vadd.f32 %v1716, %v1727
          %s1729 = sld [smem:[#allocation2 + $0x15a]]
          %v1730 = vstv %s1729
          %v1731 = vmul.f32 %v1682, %v1730
          %v1732 = vadd.f32 %v1720, %v1731
          %s1733 = sld [smem:[#allocation2 + $0x15b]]
          %v1734 = vstv %s1733
          %v1735 = vmul.f32 %v1684, %v1734
          %v1736 = vadd.f32 %v1724, %v1735
          %s1737 = sld [smem:[#allocation2 + $0x15c]]
          %v1738 = vstv %s1737
          %v1739 = vmul.f32 %v1684, %v1738
          %v1740 = vadd.f32 %v1728, %v1739
          %s1741 = sld [smem:[#allocation2 + $0x15d]]
          %v1742 = vstv %s1741
          %v1743 = vmul.f32 %v1684, %v1742
          %v1744 = vadd.f32 %v1732, %v1743
          %s1745 = sld [smem:[#allocation2 + $0x15e]]
          %v1746 = vstv %s1745
          %v1747 = vmul.f32 %v1686, %v1746
          %v1748 = vadd.f32 %v1736, %v1747
          %s1749 = sld [smem:[#allocation2 + $0x15f]]
          %v1750 = vstv %s1749
          %v1751 = vmul.f32 %v1686, %v1750
          %v1752 = vadd.f32 %v1740, %v1751
          %s1753 = sld [smem:[#allocation2 + $0x160]]
          %v1754 = vstv %s1753
          %v1755 = vmul.f32 %v1686, %v1754
          %v1756 = vadd.f32 %v1744, %v1755
          %s1757 = sld [smem:[#allocation2 + $0x161]]
          %v1758 = vstv %s1757
          %v1759 = vmul.f32 %v1688, %v1758
          %v1760 = vadd.f32 %v1748, %v1759
          %s1761 = sld [smem:[#allocation2 + $0x162]]
          %v1762 = vstv %s1761
          %v1763 = vmul.f32 %v1688, %v1762
          %v1764 = vadd.f32 %v1752, %v1763
          %s1765 = sld [smem:[#allocation2 + $0x163]]
          %v1766 = vstv %s1765
          %v1767 = vmul.f32 %v1688, %v1766
          %v1768 = vadd.f32 %v1756, %v1767
          %s1769 = sld [smem:[#allocation2 + $0x164]]
          %v1770 = vstv %s1769
          %v1771 = vmul.f32 %v1690, %v1770
          %v1772 = vadd.f32 %v1760, %v1771
          %s1773 = sld [smem:[#allocation2 + $0x165]]
          %v1774 = vstv %s1773
          %v1775 = vmul.f32 %v1690, %v1774
          %v1776 = vadd.f32 %v1764, %v1775
          %s1777 = sld [smem:[#allocation2 + $0x166]]
          %v1778 = vstv %s1777
          %v1779 = vmul.f32 %v1690, %v1778
          %v1780 = vadd.f32 %v1768, %v1779
          %v1781 = vmul.f32 %v1772, 0.01
          %v1782 = vmax.f32 %v1772, %v1781
          %v1783 = vmul.f32 %v1776, 0.01
          %v1784 = vmax.f32 %v1776, %v1783
          %v1785 = vmul.f32 %v1780, 0.01
          %v1786 = vmax.f32 %v1780, %v1785
          %s1787 = sld [smem:[#allocation2 + $0x16d]]
          %v1788 = vstv %s1787
          %s1789 = sld [smem:[#allocation2 + $0x16a]]
          %v1790 = vstv %s1789
          %v1791 = vmul.f32 %v1782, %v1790
          %v1792 = vadd.f32 %v1788, %v1791
          %s1793 = sld [smem:[#allocation2 + $0x16b]]
          %v1794 = vstv %s1793
          %v1795 = vmul.f32 %v1784, %v1794
          %v1796 = vadd.f32 %v1792, %v1795
          %s1797 = sld [smem:[#allocation2 + $0x16c]]
          %v1798 = vstv %s1797
          %v1799 = vmul.f32 %v1786, %v1798
          %v1800 = vadd.f32 %v1796, %v1799
          %v1801 = vmax.f32 %v1800, -1.0
          %v1802 = vmin.f32 %v1801, 1.0
          %s1803 = sadd.s32 %s207, 112
          %s1804 = scalar_lea.vmem %s177, %s1803 [#allocation6]
          %v1805 = vld [vmem:[%s1804] sm:$0xff]
          %v1806 = vsub.f32 %v1805, %v1802
          %v1807 = vadd.f32 %v1806, 1.0
          %v1808 = vmul.f32 %v1807, 0.5
          %vm1809 = vcmp.lt.f32.partialorder %v1808, 0.0
          %v1810 = vceil.f32 %v1808
          %v1811 = vfloor.f32 %v1808
          %v1812 = vsel %vm1809, %v1810, %v1811
          %v1813 = vmul.f32 %v1812, 2.0
          %v1814 = vsub.f32 %v1807, %v1813
          %v1815 = vsub.f32 %v1814, 1.0
          %s1816 = scalar_lea.vmem %s198, %s1271 [#allocation7]
          %1817 = vst [vmem:[%s1816] sm:$0xff] %v1815
          %s1818 = sld [smem:[#allocation2 + $0x1e6]]
          %v1819 = vstv %s1818
          %s1820 = sld [smem:[#allocation2 + $0x1e7]]
          %v1821 = vstv %s1820
          %s1822 = sld [smem:[#allocation2 + $0x1e8]]
          %v1823 = vstv %s1822
          %s1824 = sld [smem:[#allocation2 + $0x1e9]]
          %v1825 = vstv %s1824
          %s1826 = sld [smem:[#allocation2 + $0x1ea]]
          %v1827 = vstv %s1826
          %s1828 = sld [smem:[#allocation2 + $0x1eb]]
          %v1829 = vstv %s1828
          %s1830 = sld [smem:[#allocation2 + $0x1ec]]
          %v1831 = vstv %s1830
          %s1832 = sld [smem:[#allocation2 + $0x1ed]]
          %v1833 = vstv %s1832
          %v1834 = vld [vmem:[%s211] sm:$0xff]
          %s1835 = sld [smem:[#allocation2 + $0x16e]]
          %v1836 = vstv %s1835
          %v1837 = vmul.f32 %v1834, %v1836
          %v1838 = vadd.f32 %v1819, %v1837
          %s1839 = sld [smem:[#allocation2 + $0x16f]]
          %v1840 = vstv %s1839
          %v1841 = vmul.f32 %v1834, %v1840
          %v1842 = vadd.f32 %v1821, %v1841
          %s1843 = sld [smem:[#allocation2 + $0x170]]
          %v1844 = vstv %s1843
          %v1845 = vmul.f32 %v1834, %v1844
          %v1846 = vadd.f32 %v1823, %v1845
          %s1847 = sld [smem:[#allocation2 + $0x171]]
          %v1848 = vstv %s1847
          %v1849 = vmul.f32 %v1834, %v1848
          %v1850 = vadd.f32 %v1825, %v1849
          %s1851 = sld [smem:[#allocation2 + $0x172]]
          %v1852 = vstv %s1851
          %v1853 = vmul.f32 %v1834, %v1852
          %v1854 = vadd.f32 %v1827, %v1853
          %s1855 = sld [smem:[#allocation2 + $0x173]]
          %v1856 = vstv %s1855
          %v1857 = vmul.f32 %v1834, %v1856
          %v1858 = vadd.f32 %v1829, %v1857
          %s1859 = sld [smem:[#allocation2 + $0x174]]
          %v1860 = vstv %s1859
          %v1861 = vmul.f32 %v1834, %v1860
          %v1862 = vadd.f32 %v1831, %v1861
          %s1863 = sld [smem:[#allocation2 + $0x175]]
          %v1864 = vstv %s1863
          %v1865 = vmul.f32 %v1834, %v1864
          %v1866 = vadd.f32 %v1833, %v1865
          %v1867 = vld [vmem:[%s209] sm:$0xff]
          %s1868 = sld [smem:[#allocation2 + $0x176]]
          %v1869 = vstv %s1868
          %v1870 = vmul.f32 %v1867, %v1869
          %v1871 = vadd.f32 %v1838, %v1870
          %s1872 = sld [smem:[#allocation2 + $0x177]]
          %v1873 = vstv %s1872
          %v1874 = vmul.f32 %v1867, %v1873
          %v1875 = vadd.f32 %v1842, %v1874
          %s1876 = sld [smem:[#allocation2 + $0x178]]
          %v1877 = vstv %s1876
          %v1878 = vmul.f32 %v1867, %v1877
          %v1879 = vadd.f32 %v1846, %v1878
          %s1880 = sld [smem:[#allocation2 + $0x179]]
          %v1881 = vstv %s1880
          %v1882 = vmul.f32 %v1867, %v1881
          %v1883 = vadd.f32 %v1850, %v1882
          %s1884 = sld [smem:[#allocation2 + $0x17a]]
          %v1885 = vstv %s1884
          %v1886 = vmul.f32 %v1867, %v1885
          %v1887 = vadd.f32 %v1854, %v1886
          %s1888 = sld [smem:[#allocation2 + $0x17b]]
          %v1889 = vstv %s1888
          %v1890 = vmul.f32 %v1867, %v1889
          %v1891 = vadd.f32 %v1858, %v1890
          %s1892 = sld [smem:[#allocation2 + $0x17c]]
          %v1893 = vstv %s1892
          %v1894 = vmul.f32 %v1867, %v1893
          %v1895 = vadd.f32 %v1862, %v1894
          %s1896 = sld [smem:[#allocation2 + $0x17d]]
          %v1897 = vstv %s1896
          %v1898 = vmul.f32 %v1867, %v1897
          %v1899 = vadd.f32 %v1866, %v1898
          %v1900 = vld [vmem:[%s264] sm:$0xff]
          %s1901 = sld [smem:[#allocation2 + $0x17e]]
          %v1902 = vstv %s1901
          %v1903 = vmul.f32 %v1900, %v1902
          %v1904 = vadd.f32 %v1871, %v1903
          %s1905 = sld [smem:[#allocation2 + $0x17f]]
          %v1906 = vstv %s1905
          %v1907 = vmul.f32 %v1900, %v1906
          %v1908 = vadd.f32 %v1875, %v1907
          %s1909 = sld [smem:[#allocation2 + $0x180]]
          %v1910 = vstv %s1909
          %v1911 = vmul.f32 %v1900, %v1910
          %v1912 = vadd.f32 %v1879, %v1911
          %s1913 = sld [smem:[#allocation2 + $0x181]]
          %v1914 = vstv %s1913
          %v1915 = vmul.f32 %v1900, %v1914
          %v1916 = vadd.f32 %v1883, %v1915
          %s1917 = sld [smem:[#allocation2 + $0x182]]
          %v1918 = vstv %s1917
          %v1919 = vmul.f32 %v1900, %v1918
          %v1920 = vadd.f32 %v1887, %v1919
          %s1921 = sld [smem:[#allocation2 + $0x183]]
          %v1922 = vstv %s1921
          %v1923 = vmul.f32 %v1900, %v1922
          %v1924 = vadd.f32 %v1891, %v1923
          %s1925 = sld [smem:[#allocation2 + $0x184]]
          %v1926 = vstv %s1925
          %v1927 = vmul.f32 %v1900, %v1926
          %v1928 = vadd.f32 %v1895, %v1927
          %s1929 = sld [smem:[#allocation2 + $0x185]]
          %v1930 = vstv %s1929
          %v1931 = vmul.f32 %v1900, %v1930
          %v1932 = vadd.f32 %v1899, %v1931
          %v1933 = vld [vmem:[%s372] sm:$0xff]
          %s1934 = sld [smem:[#allocation2 + $0x186]]
          %v1935 = vstv %s1934
          %v1936 = vmul.f32 %v1933, %v1935
          %v1937 = vadd.f32 %v1904, %v1936
          %s1938 = sld [smem:[#allocation2 + $0x187]]
          %v1939 = vstv %s1938
          %v1940 = vmul.f32 %v1933, %v1939
          %v1941 = vadd.f32 %v1908, %v1940
          %s1942 = sld [smem:[#allocation2 + $0x188]]
          %v1943 = vstv %s1942
          %v1944 = vmul.f32 %v1933, %v1943
          %v1945 = vadd.f32 %v1912, %v1944
          %s1946 = sld [smem:[#allocation2 + $0x189]]
          %v1947 = vstv %s1946
          %v1948 = vmul.f32 %v1933, %v1947
          %v1949 = vadd.f32 %v1916, %v1948
          %s1950 = sld [smem:[#allocation2 + $0x18a]]
          %v1951 = vstv %s1950
          %v1952 = vmul.f32 %v1933, %v1951
          %v1953 = vadd.f32 %v1920, %v1952
          %s1954 = sld [smem:[#allocation2 + $0x18b]]
          %v1955 = vstv %s1954
          %v1956 = vmul.f32 %v1933, %v1955
          %v1957 = vadd.f32 %v1924, %v1956
          %s1958 = sld [smem:[#allocation2 + $0x18c]]
          %v1959 = vstv %s1958
          %v1960 = vmul.f32 %v1933, %v1959
          %v1961 = vadd.f32 %v1928, %v1960
          %s1962 = sld [smem:[#allocation2 + $0x18d]]
          %v1963 = vstv %s1962
          %v1964 = vmul.f32 %v1933, %v1963
          %v1965 = vadd.f32 %v1932, %v1964
          %v1966 = vld [vmem:[%s574] sm:$0xff]
          %s1967 = sld [smem:[#allocation2 + $0x18e]]
          %v1968 = vstv %s1967
          %v1969 = vmul.f32 %v1966, %v1968
          %v1970 = vadd.f32 %v1937, %v1969
          %s1971 = sld [smem:[#allocation2 + $0x18f]]
          %v1972 = vstv %s1971
          %v1973 = vmul.f32 %v1966, %v1972
          %v1974 = vadd.f32 %v1941, %v1973
          %s1975 = sld [smem:[#allocation2 + $0x190]]
          %v1976 = vstv %s1975
          %v1977 = vmul.f32 %v1966, %v1976
          %v1978 = vadd.f32 %v1945, %v1977
          %s1979 = sld [smem:[#allocation2 + $0x191]]
          %v1980 = vstv %s1979
          %v1981 = vmul.f32 %v1966, %v1980
          %v1982 = vadd.f32 %v1949, %v1981
          %s1983 = sld [smem:[#allocation2 + $0x192]]
          %v1984 = vstv %s1983
          %v1985 = vmul.f32 %v1966, %v1984
          %v1986 = vadd.f32 %v1953, %v1985
          %s1987 = sld [smem:[#allocation2 + $0x193]]
          %v1988 = vstv %s1987
          %v1989 = vmul.f32 %v1966, %v1988
          %v1990 = vadd.f32 %v1957, %v1989
          %s1991 = sld [smem:[#allocation2 + $0x194]]
          %v1992 = vstv %s1991
          %v1993 = vmul.f32 %v1966, %v1992
          %v1994 = vadd.f32 %v1961, %v1993
          %s1995 = sld [smem:[#allocation2 + $0x195]]
          %v1996 = vstv %s1995
          %v1997 = vmul.f32 %v1966, %v1996
          %v1998 = vadd.f32 %v1965, %v1997
          %v1999 = vld [vmem:[%s858] sm:$0xff]
          %s2000 = sld [smem:[#allocation2 + $0x196]]
          %v2001 = vstv %s2000
          %v2002 = vmul.f32 %v1999, %v2001
          %v2003 = vadd.f32 %v1970, %v2002
          %s2004 = sld [smem:[#allocation2 + $0x197]]
          %v2005 = vstv %s2004
          %v2006 = vmul.f32 %v1999, %v2005
          %v2007 = vadd.f32 %v1974, %v2006
          %s2008 = sld [smem:[#allocation2 + $0x198]]
          %v2009 = vstv %s2008
          %v2010 = vmul.f32 %v1999, %v2009
          %v2011 = vadd.f32 %v1978, %v2010
          %s2012 = sld [smem:[#allocation2 + $0x199]]
          %v2013 = vstv %s2012
          %v2014 = vmul.f32 %v1999, %v2013
          %v2015 = vadd.f32 %v1982, %v2014
          %s2016 = sld [smem:[#allocation2 + $0x19a]]
          %v2017 = vstv %s2016
          %v2018 = vmul.f32 %v1999, %v2017
          %v2019 = vadd.f32 %v1986, %v2018
          %s2020 = sld [smem:[#allocation2 + $0x19b]]
          %v2021 = vstv %s2020
          %v2022 = vmul.f32 %v1999, %v2021
          %v2023 = vadd.f32 %v1990, %v2022
          %s2024 = sld [smem:[#allocation2 + $0x19c]]
          %v2025 = vstv %s2024
          %v2026 = vmul.f32 %v1999, %v2025
          %v2027 = vadd.f32 %v1994, %v2026
          %s2028 = sld [smem:[#allocation2 + $0x19d]]
          %v2029 = vstv %s2028
          %v2030 = vmul.f32 %v1999, %v2029
          %v2031 = vadd.f32 %v1998, %v2030
          %v2032 = vld [vmem:[%s1272] sm:$0xff]
          %s2033 = sld [smem:[#allocation2 + $0x19e]]
          %v2034 = vstv %s2033
          %v2035 = vmul.f32 %v2032, %v2034
          %v2036 = vadd.f32 %v2003, %v2035
          %s2037 = sld [smem:[#allocation2 + $0x19f]]
          %v2038 = vstv %s2037
          %v2039 = vmul.f32 %v2032, %v2038
          %v2040 = vadd.f32 %v2007, %v2039
          %s2041 = sld [smem:[#allocation2 + $0x1a0]]
          %v2042 = vstv %s2041
          %v2043 = vmul.f32 %v2032, %v2042
          %v2044 = vadd.f32 %v2011, %v2043
          %s2045 = sld [smem:[#allocation2 + $0x1a1]]
          %v2046 = vstv %s2045
          %v2047 = vmul.f32 %v2032, %v2046
          %v2048 = vadd.f32 %v2015, %v2047
          %s2049 = sld [smem:[#allocation2 + $0x1a2]]
          %v2050 = vstv %s2049
          %v2051 = vmul.f32 %v2032, %v2050
          %v2052 = vadd.f32 %v2019, %v2051
          %s2053 = sld [smem:[#allocation2 + $0x1a3]]
          %v2054 = vstv %s2053
          %v2055 = vmul.f32 %v2032, %v2054
          %v2056 = vadd.f32 %v2023, %v2055
          %s2057 = sld [smem:[#allocation2 + $0x1a4]]
          %v2058 = vstv %s2057
          %v2059 = vmul.f32 %v2032, %v2058
          %v2060 = vadd.f32 %v2027, %v2059
          %s2061 = sld [smem:[#allocation2 + $0x1a5]]
          %v2062 = vstv %s2061
          %v2063 = vmul.f32 %v2032, %v2062
          %v2064 = vadd.f32 %v2031, %v2063
          %v2065 = vld [vmem:[%s1804] sm:$0xff]
          %s2066 = sld [smem:[#allocation2 + $0x1a6]]
          %v2067 = vstv %s2066
          %v2068 = vmul.f32 %v2065, %v2067
          %v2069 = vadd.f32 %v2036, %v2068
          %s2070 = sld [smem:[#allocation2 + $0x1a7]]
          %v2071 = vstv %s2070
          %v2072 = vmul.f32 %v2065, %v2071
          %v2073 = vadd.f32 %v2040, %v2072
          %s2074 = sld [smem:[#allocation2 + $0x1a8]]
          %v2075 = vstv %s2074
          %v2076 = vmul.f32 %v2065, %v2075
          %v2077 = vadd.f32 %v2044, %v2076
          %s2078 = sld [smem:[#allocation2 + $0x1a9]]
          %v2079 = vstv %s2078
          %v2080 = vmul.f32 %v2065, %v2079
          %v2081 = vadd.f32 %v2048, %v2080
          %s2082 = sld [smem:[#allocation2 + $0x1aa]]
          %v2083 = vstv %s2082
          %v2084 = vmul.f32 %v2065, %v2083
          %v2085 = vadd.f32 %v2052, %v2084
          %s2086 = sld [smem:[#allocation2 + $0x1ab]]
          %v2087 = vstv %s2086
          %v2088 = vmul.f32 %v2065, %v2087
          %v2089 = vadd.f32 %v2056, %v2088
          %s2090 = sld [smem:[#allocation2 + $0x1ac]]
          %v2091 = vstv %s2090
          %v2092 = vmul.f32 %v2065, %v2091
          %v2093 = vadd.f32 %v2060, %v2092
          %s2094 = sld [smem:[#allocation2 + $0x1ad]]
          %v2095 = vstv %s2094
          %v2096 = vmul.f32 %v2065, %v2095
          %v2097 = vadd.f32 %v2064, %v2096
          %v2098 = vld [vmem:[%s214] sm:$0xff]
          %s2099 = sld [smem:[#allocation2 + $0x1ae]]
          %v2100 = vstv %s2099
          %v2101 = vmul.f32 %v2098, %v2100
          %v2102 = vadd.f32 %v2069, %v2101
          %s2103 = sld [smem:[#allocation2 + $0x1af]]
          %v2104 = vstv %s2103
          %v2105 = vmul.f32 %v2098, %v2104
          %v2106 = vadd.f32 %v2073, %v2105
          %s2107 = sld [smem:[#allocation2 + $0x1b0]]
          %v2108 = vstv %s2107
          %v2109 = vmul.f32 %v2098, %v2108
          %v2110 = vadd.f32 %v2077, %v2109
          %s2111 = sld [smem:[#allocation2 + $0x1b1]]
          %v2112 = vstv %s2111
          %v2113 = vmul.f32 %v2098, %v2112
          %v2114 = vadd.f32 %v2081, %v2113
          %s2115 = sld [smem:[#allocation2 + $0x1b2]]
          %v2116 = vstv %s2115
          %v2117 = vmul.f32 %v2098, %v2116
          %v2118 = vadd.f32 %v2085, %v2117
          %s2119 = sld [smem:[#allocation2 + $0x1b3]]
          %v2120 = vstv %s2119
          %v2121 = vmul.f32 %v2098, %v2120
          %v2122 = vadd.f32 %v2089, %v2121
          %s2123 = sld [smem:[#allocation2 + $0x1b4]]
          %v2124 = vstv %s2123
          %v2125 = vmul.f32 %v2098, %v2124
          %v2126 = vadd.f32 %v2093, %v2125
          %s2127 = sld [smem:[#allocation2 + $0x1b5]]
          %v2128 = vstv %s2127
          %v2129 = vmul.f32 %v2098, %v2128
          %v2130 = vadd.f32 %v2097, %v2129
          %v2131 = vld [vmem:[%s276] sm:$0xff]
          %s2132 = sld [smem:[#allocation2 + $0x1b6]]
          %v2133 = vstv %s2132
          %v2134 = vmul.f32 %v2131, %v2133
          %v2135 = vadd.f32 %v2102, %v2134
          %s2136 = sld [smem:[#allocation2 + $0x1b7]]
          %v2137 = vstv %s2136
          %v2138 = vmul.f32 %v2131, %v2137
          %v2139 = vadd.f32 %v2106, %v2138
          %s2140 = sld [smem:[#allocation2 + $0x1b8]]
          %v2141 = vstv %s2140
          %v2142 = vmul.f32 %v2131, %v2141
          %v2143 = vadd.f32 %v2110, %v2142
          %s2144 = sld [smem:[#allocation2 + $0x1b9]]
          %v2145 = vstv %s2144
          %v2146 = vmul.f32 %v2131, %v2145
          %v2147 = vadd.f32 %v2114, %v2146
          %s2148 = sld [smem:[#allocation2 + $0x1ba]]
          %v2149 = vstv %s2148
          %v2150 = vmul.f32 %v2131, %v2149
          %v2151 = vadd.f32 %v2118, %v2150
          %s2152 = sld [smem:[#allocation2 + $0x1bb]]
          %v2153 = vstv %s2152
          %v2154 = vmul.f32 %v2131, %v2153
          %v2155 = vadd.f32 %v2122, %v2154
          %s2156 = sld [smem:[#allocation2 + $0x1bc]]
          %v2157 = vstv %s2156
          %v2158 = vmul.f32 %v2131, %v2157
          %v2159 = vadd.f32 %v2126, %v2158
          %s2160 = sld [smem:[#allocation2 + $0x1bd]]
          %v2161 = vstv %s2160
          %v2162 = vmul.f32 %v2131, %v2161
          %v2163 = vadd.f32 %v2130, %v2162
          %v2164 = vld [vmem:[%s384] sm:$0xff]
          %s2165 = sld [smem:[#allocation2 + $0x1be]]
          %v2166 = vstv %s2165
          %v2167 = vmul.f32 %v2164, %v2166
          %v2168 = vadd.f32 %v2135, %v2167
          %s2169 = sld [smem:[#allocation2 + $0x1bf]]
          %v2170 = vstv %s2169
          %v2171 = vmul.f32 %v2164, %v2170
          %v2172 = vadd.f32 %v2139, %v2171
          %s2173 = sld [smem:[#allocation2 + $0x1c0]]
          %v2174 = vstv %s2173
          %v2175 = vmul.f32 %v2164, %v2174
          %v2176 = vadd.f32 %v2143, %v2175
          %s2177 = sld [smem:[#allocation2 + $0x1c1]]
          %v2178 = vstv %s2177
          %v2179 = vmul.f32 %v2164, %v2178
          %v2180 = vadd.f32 %v2147, %v2179
          %s2181 = sld [smem:[#allocation2 + $0x1c2]]
          %v2182 = vstv %s2181
          %v2183 = vmul.f32 %v2164, %v2182
          %v2184 = vadd.f32 %v2151, %v2183
          %s2185 = sld [smem:[#allocation2 + $0x1c3]]
          %v2186 = vstv %s2185
          %v2187 = vmul.f32 %v2164, %v2186
          %v2188 = vadd.f32 %v2155, %v2187
          %s2189 = sld [smem:[#allocation2 + $0x1c4]]
          %v2190 = vstv %s2189
          %v2191 = vmul.f32 %v2164, %v2190
          %v2192 = vadd.f32 %v2159, %v2191
          %s2193 = sld [smem:[#allocation2 + $0x1c5]]
          %v2194 = vstv %s2193
          %v2195 = vmul.f32 %v2164, %v2194
          %v2196 = vadd.f32 %v2163, %v2195
          %v2197 = vld [vmem:[%s586] sm:$0xff]
          %s2198 = sld [smem:[#allocation2 + $0x1c6]]
          %v2199 = vstv %s2198
          %v2200 = vmul.f32 %v2197, %v2199
          %v2201 = vadd.f32 %v2168, %v2200
          %s2202 = sld [smem:[#allocation2 + $0x1c7]]
          %v2203 = vstv %s2202
          %v2204 = vmul.f32 %v2197, %v2203
          %v2205 = vadd.f32 %v2172, %v2204
          %s2206 = sld [smem:[#allocation2 + $0x1c8]]
          %v2207 = vstv %s2206
          %v2208 = vmul.f32 %v2197, %v2207
          %v2209 = vadd.f32 %v2176, %v2208
          %s2210 = sld [smem:[#allocation2 + $0x1c9]]
          %v2211 = vstv %s2210
          %v2212 = vmul.f32 %v2197, %v2211
          %v2213 = vadd.f32 %v2180, %v2212
          %s2214 = sld [smem:[#allocation2 + $0x1ca]]
          %v2215 = vstv %s2214
          %v2216 = vmul.f32 %v2197, %v2215
          %v2217 = vadd.f32 %v2184, %v2216
          %s2218 = sld [smem:[#allocation2 + $0x1cb]]
          %v2219 = vstv %s2218
          %v2220 = vmul.f32 %v2197, %v2219
          %v2221 = vadd.f32 %v2188, %v2220
          %s2222 = sld [smem:[#allocation2 + $0x1cc]]
          %v2223 = vstv %s2222
          %v2224 = vmul.f32 %v2197, %v2223
          %v2225 = vadd.f32 %v2192, %v2224
          %s2226 = sld [smem:[#allocation2 + $0x1cd]]
          %v2227 = vstv %s2226
          %v2228 = vmul.f32 %v2197, %v2227
          %v2229 = vadd.f32 %v2196, %v2228
          %v2230 = vld [vmem:[%s870] sm:$0xff]
          %s2231 = sld [smem:[#allocation2 + $0x1ce]]
          %v2232 = vstv %s2231
          %v2233 = vmul.f32 %v2230, %v2232
          %v2234 = vadd.f32 %v2201, %v2233
          %s2235 = sld [smem:[#allocation2 + $0x1cf]]
          %v2236 = vstv %s2235
          %v2237 = vmul.f32 %v2230, %v2236
          %v2238 = vadd.f32 %v2205, %v2237
          %s2239 = sld [smem:[#allocation2 + $0x1d0]]
          %v2240 = vstv %s2239
          %v2241 = vmul.f32 %v2230, %v2240
          %v2242 = vadd.f32 %v2209, %v2241
          %s2243 = sld [smem:[#allocation2 + $0x1d1]]
          %v2244 = vstv %s2243
          %v2245 = vmul.f32 %v2230, %v2244
          %v2246 = vadd.f32 %v2213, %v2245
          %s2247 = sld [smem:[#allocation2 + $0x1d2]]
          %v2248 = vstv %s2247
          %v2249 = vmul.f32 %v2230, %v2248
          %v2250 = vadd.f32 %v2217, %v2249
          %s2251 = sld [smem:[#allocation2 + $0x1d3]]
          %v2252 = vstv %s2251
          %v2253 = vmul.f32 %v2230, %v2252
          %v2254 = vadd.f32 %v2221, %v2253
          %s2255 = sld [smem:[#allocation2 + $0x1d4]]
          %v2256 = vstv %s2255
          %v2257 = vmul.f32 %v2230, %v2256
          %v2258 = vadd.f32 %v2225, %v2257
          %s2259 = sld [smem:[#allocation2 + $0x1d5]]
          %v2260 = vstv %s2259
          %v2261 = vmul.f32 %v2230, %v2260
          %v2262 = vadd.f32 %v2229, %v2261
          %v2263 = vld [vmem:[%s1284] sm:$0xff]
          %s2264 = sld [smem:[#allocation2 + $0x1d6]]
          %v2265 = vstv %s2264
          %v2266 = vmul.f32 %v2263, %v2265
          %v2267 = vadd.f32 %v2234, %v2266
          %s2268 = sld [smem:[#allocation2 + $0x1d7]]
          %v2269 = vstv %s2268
          %v2270 = vmul.f32 %v2263, %v2269
          %v2271 = vadd.f32 %v2238, %v2270
          %s2272 = sld [smem:[#allocation2 + $0x1d8]]
          %v2273 = vstv %s2272
          %v2274 = vmul.f32 %v2263, %v2273
          %v2275 = vadd.f32 %v2242, %v2274
          %s2276 = sld [smem:[#allocation2 + $0x1d9]]
          %v2277 = vstv %s2276
          %v2278 = vmul.f32 %v2263, %v2277
          %v2279 = vadd.f32 %v2246, %v2278
          %s2280 = sld [smem:[#allocation2 + $0x1da]]
          %v2281 = vstv %s2280
          %v2282 = vmul.f32 %v2263, %v2281
          %v2283 = vadd.f32 %v2250, %v2282
          %s2284 = sld [smem:[#allocation2 + $0x1db]]
          %v2285 = vstv %s2284
          %v2286 = vmul.f32 %v2263, %v2285
          %v2287 = vadd.f32 %v2254, %v2286
          %s2288 = sld [smem:[#allocation2 + $0x1dc]]
          %v2289 = vstv %s2288
          %v2290 = vmul.f32 %v2263, %v2289
          %v2291 = vadd.f32 %v2258, %v2290
          %s2292 = sld [smem:[#allocation2 + $0x1dd]]
          %v2293 = vstv %s2292
          %v2294 = vmul.f32 %v2263, %v2293
          %v2295 = vadd.f32 %v2262, %v2294
          %v2296 = vld [vmem:[%s1816] sm:$0xff]
          %s2297 = sld [smem:[#allocation2 + $0x1de]]
          %v2298 = vstv %s2297
          %v2299 = vmul.f32 %v2296, %v2298
          %v2300 = vadd.f32 %v2267, %v2299
          %s2301 = sld [smem:[#allocation2 + $0x1df]]
          %v2302 = vstv %s2301
          %v2303 = vmul.f32 %v2296, %v2302
          %v2304 = vadd.f32 %v2271, %v2303
          %s2305 = sld [smem:[#allocation2 + $0x1e0]]
          %v2306 = vstv %s2305
          %v2307 = vmul.f32 %v2296, %v2306
          %v2308 = vadd.f32 %v2275, %v2307
          %s2309 = sld [smem:[#allocation2 + $0x1e1]]
          %v2310 = vstv %s2309
          %v2311 = vmul.f32 %v2296, %v2310
          %v2312 = vadd.f32 %v2279, %v2311
          %s2313 = sld [smem:[#allocation2 + $0x1e2]]
          %v2314 = vstv %s2313
          %v2315 = vmul.f32 %v2296, %v2314
          %v2316 = vadd.f32 %v2283, %v2315
          %s2317 = sld [smem:[#allocation2 + $0x1e3]]
          %v2318 = vstv %s2317
          %v2319 = vmul.f32 %v2296, %v2318
          %v2320 = vadd.f32 %v2287, %v2319
          %s2321 = sld [smem:[#allocation2 + $0x1e4]]
          %v2322 = vstv %s2321
          %v2323 = vmul.f32 %v2296, %v2322
          %v2324 = vadd.f32 %v2291, %v2323
          %s2325 = sld [smem:[#allocation2 + $0x1e5]]
          %v2326 = vstv %s2325
          %v2327 = vmul.f32 %v2296, %v2326
          %v2328 = vadd.f32 %v2295, %v2327
          %v2329 = vmul.f32 %v2300, 0.01
          %v2330 = vmax.f32 %v2300, %v2329
          %v2331 = vmul.f32 %v2304, 0.01
          %v2332 = vmax.f32 %v2304, %v2331
          %v2333 = vmul.f32 %v2308, 0.01
          %v2334 = vmax.f32 %v2308, %v2333
          %v2335 = vmul.f32 %v2312, 0.01
          %v2336 = vmax.f32 %v2312, %v2335
          %v2337 = vmul.f32 %v2316, 0.01
          %v2338 = vmax.f32 %v2316, %v2337
          %v2339 = vmul.f32 %v2320, 0.01
          %v2340 = vmax.f32 %v2320, %v2339
          %v2341 = vmul.f32 %v2324, 0.01
          %v2342 = vmax.f32 %v2324, %v2341
          %v2343 = vmul.f32 %v2328, 0.01
          %v2344 = vmax.f32 %v2328, %v2343
          %s2345 = sld [smem:[#allocation2 + $0x20e]]
          %v2346 = vstv %s2345
          %s2347 = sld [smem:[#allocation2 + $0x20f]]
          %v2348 = vstv %s2347
          %s2349 = sld [smem:[#allocation2 + $0x210]]
          %v2350 = vstv %s2349
          %s2351 = sld [smem:[#allocation2 + $0x211]]
          %v2352 = vstv %s2351
          %s2353 = sld [smem:[#allocation2 + $0x1ee]]
          %v2354 = vstv %s2353
          %v2355 = vmul.f32 %v2330, %v2354
          %v2356 = vadd.f32 %v2346, %v2355
          %s2357 = sld [smem:[#allocation2 + $0x1ef]]
          %v2358 = vstv %s2357
          %v2359 = vmul.f32 %v2330, %v2358
          %v2360 = vadd.f32 %v2348, %v2359
          %s2361 = sld [smem:[#allocation2 + $0x1f0]]
          %v2362 = vstv %s2361
          %v2363 = vmul.f32 %v2330, %v2362
          %v2364 = vadd.f32 %v2350, %v2363
          %s2365 = sld [smem:[#allocation2 + $0x1f1]]
          %v2366 = vstv %s2365
          %v2367 = vmul.f32 %v2330, %v2366
          %v2368 = vadd.f32 %v2352, %v2367
          %s2369 = sld [smem:[#allocation2 + $0x1f2]]
          %v2370 = vstv %s2369
          %v2371 = vmul.f32 %v2332, %v2370
          %v2372 = vadd.f32 %v2356, %v2371
          %s2373 = sld [smem:[#allocation2 + $0x1f3]]
          %v2374 = vstv %s2373
          %v2375 = vmul.f32 %v2332, %v2374
          %v2376 = vadd.f32 %v2360, %v2375
          %s2377 = sld [smem:[#allocation2 + $0x1f4]]
          %v2378 = vstv %s2377
          %v2379 = vmul.f32 %v2332, %v2378
          %v2380 = vadd.f32 %v2364, %v2379
          %s2381 = sld [smem:[#allocation2 + $0x1f5]]
          %v2382 = vstv %s2381
          %v2383 = vmul.f32 %v2332, %v2382
          %v2384 = vadd.f32 %v2368, %v2383
          %s2385 = sld [smem:[#allocation2 + $0x1f6]]
          %v2386 = vstv %s2385
          %v2387 = vmul.f32 %v2334, %v2386
          %v2388 = vadd.f32 %v2372, %v2387
          %s2389 = sld [smem:[#allocation2 + $0x1f7]]
          %v2390 = vstv %s2389
          %v2391 = vmul.f32 %v2334, %v2390
          %v2392 = vadd.f32 %v2376, %v2391
          %s2393 = sld [smem:[#allocation2 + $0x1f8]]
          %v2394 = vstv %s2393
          %v2395 = vmul.f32 %v2334, %v2394
          %v2396 = vadd.f32 %v2380, %v2395
          %s2397 = sld [smem:[#allocation2 + $0x1f9]]
          %v2398 = vstv %s2397
          %v2399 = vmul.f32 %v2334, %v2398
          %v2400 = vadd.f32 %v2384, %v2399
          %s2401 = sld [smem:[#allocation2 + $0x1fa]]
          %v2402 = vstv %s2401
          %v2403 = vmul.f32 %v2336, %v2402
          %v2404 = vadd.f32 %v2388, %v2403
          %s2405 = sld [smem:[#allocation2 + $0x1fb]]
          %v2406 = vstv %s2405
          %v2407 = vmul.f32 %v2336, %v2406
          %v2408 = vadd.f32 %v2392, %v2407
          %s2409 = sld [smem:[#allocation2 + $0x1fc]]
          %v2410 = vstv %s2409
          %v2411 = vmul.f32 %v2336, %v2410
          %v2412 = vadd.f32 %v2396, %v2411
          %s2413 = sld [smem:[#allocation2 + $0x1fd]]
          %v2414 = vstv %s2413
          %v2415 = vmul.f32 %v2336, %v2414
          %v2416 = vadd.f32 %v2400, %v2415
          %s2417 = sld [smem:[#allocation2 + $0x1fe]]
          %v2418 = vstv %s2417
          %v2419 = vmul.f32 %v2338, %v2418
          %v2420 = vadd.f32 %v2404, %v2419
          %s2421 = sld [smem:[#allocation2 + $0x1ff]]
          %v2422 = vstv %s2421
          %v2423 = vmul.f32 %v2338, %v2422
          %v2424 = vadd.f32 %v2408, %v2423
          %s2425 = sld [smem:[#allocation2 + $0x200]]
          %v2426 = vstv %s2425
          %v2427 = vmul.f32 %v2338, %v2426
          %v2428 = vadd.f32 %v2412, %v2427
          %s2429 = sld [smem:[#allocation2 + $0x201]]
          %v2430 = vstv %s2429
          %v2431 = vmul.f32 %v2338, %v2430
          %v2432 = vadd.f32 %v2416, %v2431
          %s2433 = sld [smem:[#allocation2 + $0x202]]
          %v2434 = vstv %s2433
          %v2435 = vmul.f32 %v2340, %v2434
          %v2436 = vadd.f32 %v2420, %v2435
          %s2437 = sld [smem:[#allocation2 + $0x203]]
          %v2438 = vstv %s2437
          %v2439 = vmul.f32 %v2340, %v2438
          %v2440 = vadd.f32 %v2424, %v2439
          %s2441 = sld [smem:[#allocation2 + $0x204]]
          %v2442 = vstv %s2441
          %v2443 = vmul.f32 %v2340, %v2442
          %v2444 = vadd.f32 %v2428, %v2443
          %s2445 = sld [smem:[#allocation2 + $0x205]]
          %v2446 = vstv %s2445
          %v2447 = vmul.f32 %v2340, %v2446
          %v2448 = vadd.f32 %v2432, %v2447
          %s2449 = sld [smem:[#allocation2 + $0x206]]
          %v2450 = vstv %s2449
          %v2451 = vmul.f32 %v2342, %v2450
          %v2452 = vadd.f32 %v2436, %v2451
          %s2453 = sld [smem:[#allocation2 + $0x207]]
          %v2454 = vstv %s2453
          %v2455 = vmul.f32 %v2342, %v2454
          %v2456 = vadd.f32 %v2440, %v2455
          %s2457 = sld [smem:[#allocation2 + $0x208]]
          %v2458 = vstv %s2457
          %v2459 = vmul.f32 %v2342, %v2458
          %v2460 = vadd.f32 %v2444, %v2459
          %s2461 = sld [smem:[#allocation2 + $0x209]]
          %v2462 = vstv %s2461
          %v2463 = vmul.f32 %v2342, %v2462
          %v2464 = vadd.f32 %v2448, %v2463
          %s2465 = sld [smem:[#allocation2 + $0x20a]]
          %v2466 = vstv %s2465
          %v2467 = vmul.f32 %v2344, %v2466
          %v2468 = vadd.f32 %v2452, %v2467
          %s2469 = sld [smem:[#allocation2 + $0x20b]]
          %v2470 = vstv %s2469
          %v2471 = vmul.f32 %v2344, %v2470
          %v2472 = vadd.f32 %v2456, %v2471
          %s2473 = sld [smem:[#allocation2 + $0x20c]]
          %v2474 = vstv %s2473
          %v2475 = vmul.f32 %v2344, %v2474
          %v2476 = vadd.f32 %v2460, %v2475
          %s2477 = sld [smem:[#allocation2 + $0x20d]]
          %v2478 = vstv %s2477
          %v2479 = vmul.f32 %v2344, %v2478
          %v2480 = vadd.f32 %v2464, %v2479
          %v2481 = vmul.f32 %v2468, 0.01
          %v2482 = vmax.f32 %v2468, %v2481
          %v2483 = vmul.f32 %v2472, 0.01
          %v2484 = vmax.f32 %v2472, %v2483
          %v2485 = vmul.f32 %v2476, 0.01
          %v2486 = vmax.f32 %v2476, %v2485
          %v2487 = vmul.f32 %v2480, 0.01
          %v2488 = vmax.f32 %v2480, %v2487
          %s2489 = sld [smem:[#allocation2 + $0x21a]]
          %v2490 = vstv %s2489
          %s2491 = sld [smem:[#allocation2 + $0x21b]]
          %v2492 = vstv %s2491
          %s2493 = sld [smem:[#allocation2 + $0x212]]
          %v2494 = vstv %s2493
          %v2495 = vmul.f32 %v2482, %v2494
          %v2496 = vadd.f32 %v2490, %v2495
          %s2497 = sld [smem:[#allocation2 + $0x213]]
          %v2498 = vstv %s2497
          %v2499 = vmul.f32 %v2482, %v2498
          %v2500 = vadd.f32 %v2492, %v2499
          %s2501 = sld [smem:[#allocation2 + $0x214]]
          %v2502 = vstv %s2501
          %v2503 = vmul.f32 %v2484, %v2502
          %v2504 = vadd.f32 %v2496, %v2503
          %s2505 = sld [smem:[#allocation2 + $0x215]]
          %v2506 = vstv %s2505
          %v2507 = vmul.f32 %v2484, %v2506
          %v2508 = vadd.f32 %v2500, %v2507
          %s2509 = sld [smem:[#allocation2 + $0x216]]
          %v2510 = vstv %s2509
          %v2511 = vmul.f32 %v2486, %v2510
          %v2512 = vadd.f32 %v2504, %v2511
          %s2513 = sld [smem:[#allocation2 + $0x217]]
          %v2514 = vstv %s2513
          %v2515 = vmul.f32 %v2486, %v2514
          %v2516 = vadd.f32 %v2508, %v2515
          %s2517 = sld [smem:[#allocation2 + $0x218]]
          %v2518 = vstv %s2517
          %v2519 = vmul.f32 %v2488, %v2518
          %v2520 = vadd.f32 %v2512, %v2519
          %s2521 = sld [smem:[#allocation2 + $0x219]]
          %v2522 = vstv %s2521
          %v2523 = vmul.f32 %v2488, %v2522
          %v2524 = vadd.f32 %v2516, %v2523
          %v2525 = vmul.f32 %v2520, 0.01
          %v2526 = vmax.f32 %v2520, %v2525
          %v2527 = vmul.f32 %v2524, 0.01
          %v2528 = vmax.f32 %v2524, %v2527
          %s2529 = sld [smem:[#allocation2 + $0x21e]]
          %v2530 = vstv %s2529
          %s2531 = sld [smem:[#allocation2 + $0x21c]]
          %v2532 = vstv %s2531
          %v2533 = vmul.f32 %v2526, %v2532
          %v2534 = vadd.f32 %v2530, %v2533
          %s2535 = sld [smem:[#allocation2 + $0x21d]]
          %v2536 = vstv %s2535
          %v2537 = vmul.f32 %v2528, %v2536
          %v2538 = vadd.f32 %v2534, %v2537
          %v2539 = vmax.f32 %v2538, -1.0
          %v2540 = vmin.f32 %v2539, 1.0
          %s2541 = sadd.s32 %s207, 128
          %s2542 = scalar_lea.vmem %s177, %s2541 [#allocation6]
          %v2543 = vld [vmem:[%s2542] sm:$0xff]
          %v2544 = vsub.f32 %v2543, %v2540
          %v2545 = vadd.f32 %v2544, 1.0
          %v2546 = vmul.f32 %v2545, 0.5
          %vm2547 = vcmp.lt.f32.partialorder %v2546, 0.0
          %v2548 = vceil.f32 %v2546
          %v2549 = vfloor.f32 %v2546
          %v2550 = vsel %vm2547, %v2548, %v2549
          %v2551 = vmul.f32 %v2550, 2.0
          %v2552 = vsub.f32 %v2545, %v2551
          %v2553 = vsub.f32 %v2552, 1.0
          %s2554 = scalar_lea.vmem %s198, %s1803 [#allocation7]
          %2555 = vst [vmem:[%s2554] sm:$0xff] %v2553
        $region41: #{tpu_custom_call.1} parent=27 // loop_footer
          %s206 = sadd.s32 1, %s202
        $region42: #{tpu_custom_call.1} parent=27 // loop_footer_branch
          %201 = sbr.rel target = $region38
        $region43: #{tpu_custom_call.1} parent=27 // loop_exit
          _
        %s2556 = sand.u32 %s75, 1
        %s2557 = scalar_lea.sflag [#allocation4], %s2556
        %s2558 = sand.u32 %s75, 1
        %s2559 = smul.addr %s2558, 128
        %s2560 = scalar_lea.vmem [#allocation7], %s2559
        // Predicated region
        $region44: #{tpu_custom_call.1} parent=27 // pred_check
          %p2561 = pneg %p85
        $region45: #{tpu_custom_call.1} parent=27 // pred_check_branch
          %2563 = sbr.rel (%p2561) target = $region47
        $region46: #{tpu_custom_call.1} parent=27 // pred_region
          #allocation11 [shape = 'u32[6]{0}', space=smem, size = 0x18, scoped, tag = 'DMA stride descriptor']
          %s2564 = smul.u32 2, %s20
          %s2566 = ssub.s32 2048, 2048
          %2567 = vsyncadd %s2557, %s2566
          %s2568 = smul.addr %s2564, 128
          %s2569 = scalar_lea.hbm %s2, %s2568
          %s2571 = sshll.u32 1, 14
          %s2572 = sxor.u32 4294967295, %s2571
          %s2575 = sshll.u32 7, 18
          %s2576 = sxor.u32 4294967295, %s2575
          %s2577 = sand.u32 0, %s2576
          %s2579 = sor.u32 %s2577, 0
          %s2580 = sshll.u32 %s2560, 4
          %s2581 = int_to_ptr.vmem [resolvable:$true] %s2580
          %2587 = sst [smem:[#allocation11]] 256
          %s2588 = scalar_lea.smem [#allocation11], 1
          %2589 = sst [smem:[%s2588]] 512
          %s2590 = scalar_lea.smem [#allocation11], 2
          %2591 = sst [smem:[%s2590]] 2
          %s2592 = scalar_lea.smem [#allocation11], 3
          %2593 = sst [smem:[%s2592]] 128
          %s2594 = scalar_lea.smem [#allocation11], 4
          %2595 = sst [smem:[%s2594]] 128
          %s2596 = scalar_lea.smem [#allocation11], 5
          %2597 = sst [smem:[%s2596]] 8
          %2599 = dma.general %s2581, 2048, %s2569, %s2557, 131072, [#allocation11], %s2579, 0
        $region47: #{tpu_custom_call.1} parent=27 // pred_fallthru
          _
      $region28: #{tpu_custom_call.1} parent=5 // pred_fallthru
        _
      %p2600 = scmp.le.s32.totalorder 2, %s15
      // Predicated region
      $region48: #{tpu_custom_call.1} parent=5 // pred_check
        %p2601 = pneg %p2600
      $region49: #{tpu_custom_call.1} parent=5 // pred_check_branch
        %2603 = sbr.rel (%p2601) target = $region51
      $region50: #{tpu_custom_call.1} parent=5 // pred_region
        %s2604 = ssub.s32 %s15, 2
        // Predicated region
        $region52: #{tpu_custom_call.1} parent=50 // pred_check
          %p2605 = pneg %p91
        $region53: #{tpu_custom_call.1} parent=50 // pred_check_branch
          %2607 = sbr.rel (%p2605) target = $region55
        $region54: #{tpu_custom_call.1} parent=50 // pred_region
          %s2608 = sand.u32 %s76, 1
          %s2609 = scalar_lea.sflag [#allocation4], %s2608
          %s2610 = sand.u32 %s76, 1
          %s2611 = smul.addr %s2610, 128
          %s2612 = scalar_lea.vmem [#allocation7], %s2611
          %2613 = dma.done %s2609, 2048
        $region55: #{tpu_custom_call.1} parent=50 // pred_fallthru
          _
      $region51: #{tpu_custom_call.1} parent=5 // pred_fallthru
        _
    $region6: #{tpu_custom_call.1} parent=1 // loop_footer
      %s19 = sadd.s32 1, %s15
    $region7: #{tpu_custom_call.1} parent=1 // loop_footer_branch
      %14 = sbr.rel target = $region3
    $region8: #{tpu_custom_call.1} parent=1 // loop_exit
      _
    %2614 = vsyncpa [#allocation3], 1
    %s2615 = scalar_lea.sflag [#allocation3], 1
    %2616 = vsyncpa %s2615, 1
    %2617 = vsyncpa [#allocation4], 1
    %s2618 = scalar_lea.sflag [#allocation4], 1
    %2619 = vsyncpa %s2618, 1
    %2620 = vsyncpa [#allocation5], 1
    %s2621 = scalar_lea.sflag [#allocation5], 1
    %2622 = vsyncpa %s2621, 1

</llo_original>
